<compile_context>
chip_gen: v5e
topology: v5e:2x2
jax: 0.10.0
libtpu: 0.0.40
codegen_flags: <defaults>
</compile_context>

<pallas_src>
import jax
import jax.numpy as jnp
from jax.experimental import pallas as pl
from jax.experimental.pallas import tpu as pltpu


_IM2COL_MAX_CI = 32   # Ci at or below this -> single im2col matmul (K = 9*Ci is tiny)


def _silu(v):
    return v * jax.nn.sigmoid(v)


def _zero_halo(pad_ref):
    """Zero only the 1-pixel border ring of a (1, H+2, W+2, C) padded scratch buffer."""
    _, Hp, Wp, C = pad_ref.shape
    zrow = jnp.zeros((1, 1, Wp, C), pad_ref.dtype)
    zcol = jnp.zeros((1, Hp, 1, C), pad_ref.dtype)
    pad_ref[:, 0:1, :, :] = zrow
    pad_ref[:, Hp - 1:Hp, :, :] = zrow
    pad_ref[:, :, 0:1, :] = zcol
    pad_ref[:, :, Wp - 1:Wp, :] = zcol


def _conv3x3(pad_ref, w_ref, b, H, W, stride):
    """3x3 conv (pad=1) over a padded (1, H+2, W+2, Ci) scratch buffer.

    pad_ref : padded input (interior filled, halo ring zero), f32 or bf16
    w_ref   : (9, Ci, Co) bf16 weights, tap-major (dy, dx)
    b       : (1, Co) f32 bias
    returns : (Ho*Wo, Co) f32
    """
    Ci = pad_ref.shape[-1]
    Co = w_ref.shape[-1]
    Ho, Wo = H // stride, W // stride

    def tap(dy, dx):
        if stride == 1:
            return pad_ref[:, dy:dy + H, dx:dx + W, :]
        return pad_ref[:, pl.ds(dy, Ho, stride=stride), pl.ds(dx, Wo, stride=stride), :]

    if Ci <= _IM2COL_MAX_CI:
        # Tiny Ci: one im2col matmul, K = 9*Ci still well under one MXU tile.
        taps = [tap(dy, dx) for dy in range(3) for dx in range(3)]
        col = jnp.concatenate(taps, axis=-1).reshape(Ho * Wo, 9 * Ci)
        y = jnp.dot(col.astype(jnp.bfloat16), w_ref[...].reshape(9 * Ci, Co),
                    preferred_element_type=jnp.float32)
    else:
        # Realistic Ci: 9 accumulating matmuls, one tap live at a time (no col buffer).
        y = jnp.zeros((Ho * Wo, Co), jnp.float32)
        for k in range(9):
            dy, dx = divmod(k, 3)
            a = tap(dy, dx).reshape(Ho * Wo, Ci).astype(jnp.bfloat16)
            y = y + jnp.dot(a, w_ref[k], preferred_element_type=jnp.float32)
    return y + b


def downblock_kernel(x_ref, scale_ref, shift_ref,
                     a1_ref, c1_ref, w1_ref, b1_ref,
                     a2_ref, c2_ref, w2_ref, b2_ref,
                     wid_ref, bid_ref, wd_ref, bd_ref,
                     out_ref,
                     pad_i_ref, pad_f_ref, pad_d_ref):
    _, H, W, ni = x_ref.shape
    nf = w1_ref.shape[-1]
    Ho, Wo = H // 2, W // 2

    # Halo ring must read as zero ('same' padding).  Scratch persists across grid
    # steps, but with "parallel" batch semantics each TensorCore runs an unknown
    # subset of indices, so we deliberately do NOT gate this on program_id(0) == 0.
    _zero_halo(pad_i_ref)
    _zero_halo(pad_f_ref)
    _zero_halo(pad_d_ref)

    x_in = x_ref[...]                                                  # (1,H,W,ni) f32

    # ---- conv1 = BN(eval, folded a*x+c) -> SiLU -> Conv3x3 ----
    pad_i_ref[:, 1:H + 1, 1:W + 1, :] = _silu(
        x_in * a1_ref[...] + c1_ref[...]).astype(pad_i_ref.dtype)
    h = _conv3x3(pad_i_ref, w1_ref, b1_ref[...], H, W, 1).reshape(1, H, W, nf)

    # ---- FiLM (scale/shift precomputed per batch element in the wrapper, f32) ----
    h = h * (1.0 + scale_ref[...]) + shift_ref[...]

    # ---- conv2 = BN(eval, folded) -> SiLU -> Conv3x3 ----
    pad_f_ref[:, 1:H + 1, 1:W + 1, :] = _silu(
        h * a2_ref[...] + c2_ref[...]).astype(pad_f_ref.dtype)
    h2 = _conv3x3(pad_f_ref, w2_ref, b2_ref[...], H, W, 1).reshape(1, H, W, nf)

    # ---- idconv (1x1, ni != nf) + residual add ----
    idc = jnp.dot(x_in.reshape(H * W, ni).astype(jnp.bfloat16), wid_ref[...],
                  preferred_element_type=jnp.float32).reshape(1, H, W, nf)
    res = h2 + idc + bid_ref[...]

    # ---- downsample conv (3x3, stride=2, pad=1), stride-2 positions only ----
    # pad_d stays f32: stride-2 sublane taps use the plain f32 strided-load path.
    pad_d_ref[:, 1:H + 1, 1:W + 1, :] = res.astype(pad_d_ref.dtype)
    y = _conv3x3(pad_d_ref, wd_ref, bd_ref[...], H, W, 2)              # (Ho*Wo, nf)

    if len(out_ref.shape) == 3:
        out_ref[...] = y.reshape(1, 1, Ho * Wo * nf)   # lane-dense slab (small nf)
    else:
        out_ref[...] = y.reshape(1, Ho, Wo, nf)        # nf already lane-aligned


def _run_downblock(x, scale, shift, p, *, fast):
    """x: (B,H,W,ni) f32 NHWC; scale/shift: (B,1,nf) f32.  Returns (B,Ho,Wo,nf) f32."""
    B, H, W, ni = x.shape
    nf = p["b1"].shape[-1]
    Ho, Wo = H // 2, W // 2
    bf16 = jnp.bfloat16

    # Tap-stacked, bf16 conv weights (f32 accumulation happens in-kernel).
    w1s = p["w1"].reshape(9, ni, nf).astype(bf16)
    w2s = p["w2"].reshape(9, nf, nf).astype(bf16)
    wds = p["wd"].reshape(9, nf, nf).astype(bf16)
    wids = p["wid"].astype(bf16)

    per_batch = (x, scale, shift)
    const = (p["a1"], p["c1"], w1s, p["b1"],
             p["a2"], p["c2"], w2s, p["b2"],
             wids, p["bid"], wds, p["bd"])
    inputs = per_batch + const

    in_specs = [
        pl.BlockSpec((1, H, W, ni), lambda b: (b, 0, 0, 0)),
        pl.BlockSpec((1, 1, nf), lambda b: (b, 0, 0)),
        pl.BlockSpec((1, 1, nf), lambda b: (b, 0, 0)),
    ]
    # Grid-invariant parameters: constant index map; single-buffered on the fast path.
    for a in const:
        kw = {"pipeline_mode": pl.Buffered(1)} if fast else {}
        in_specs.append(pl.BlockSpec(a.shape, lambda b, _nd=a.ndim: (0,) * _nd, **kw))

    lane_dense = fast and (nf % 128 != 0)
    if lane_dense:
        out_shape = jax.ShapeDtypeStruct((B, 1, Ho * Wo * nf), jnp.float32)
        out_spec = pl.BlockSpec((1, 1, Ho * Wo * nf), lambda b: (b, 0, 0))
    else:
        out_shape = jax.ShapeDtypeStruct((B, Ho, Wo, nf), jnp.float32)
        out_spec = pl.BlockSpec((1, Ho, Wo, nf), lambda b: (b, 0, 0, 0))

    pad_dtype = bf16 if fast else jnp.float32
    scratch_shapes = [
        pltpu.VMEM((1, H + 2, W + 2, ni), pad_dtype),    # conv1 input  SiLU(BN(x))
        pltpu.VMEM((1, H + 2, W + 2, nf), pad_dtype),    # conv2 input  SiLU(BN(h))
        pltpu.VMEM((1, H + 2, W + 2, nf), jnp.float32),  # downsample input (res)
    ]

    # VMEM budget: pipelined per-batch blocks + resident params + padded scratch +
    # live in-kernel intermediates (h/h2/idc/res f32, im2col col buffers).
    nbytes = lambda a: int(a.size) * a.dtype.itemsize
    blk = 2 * (H * W * ni * 4 + 2 * nf * 4 + Ho * Wo * nf * 4)
    par = (1 if fast else 2) * sum(nbytes(a) for a in const)
    scr = (H + 2) * (W + 2) * ((ni + nf) * (2 if fast else 4) + 4 * nf)
    kdim = lambda c: 9 * c if c <= _IM2COL_MAX_CI else c
    inter = 4 * H * W * (ni + 6 * nf) + 2 * H * W * (kdim(ni) + 2 * kdim(nf))
    need = blk + par + scr + inter
    try:
        phys = int(pltpu.get_tpu_info().vmem_capacity_bytes)
    except Exception:
        phys = 64 << 20                       # assume smallest per-core VMEM (v7x)
    cap = (phys * 7) // 8                     # headroom for compiler-internal scratch
    vmem_limit = int(min(max(need * 5 // 4, 16 << 20), cap))

    out = pl.pallas_call(
        downblock_kernel,
        out_shape=out_shape,
        grid=(B,),
        in_specs=in_specs,
        out_specs=out_spec,
        scratch_shapes=scratch_shapes,
        compiler_params=pltpu.CompilerParams(
            dimension_semantics=("parallel",),
            vmem_limit_bytes=vmem_limit),
    )(*inputs)
    out = jax.block_until_ready(out)          # surface any async failure here
    if lane_dense:
        out = out.reshape(B, Ho, Wo, nf)
    return out


def downblock_forward(x_nchw, t, p):
    """DownBlock forward. x_nchw: (B, ni, H, W); t: (B, n_emb) -> (B, nf, H//2, W//2)."""
    B, ni, H, W = x_nchw.shape
    nf = p["b1"].shape[-1]
    assert H % 2 == 0 and W % 2 == 0, "stride-2 downsample path assumes even H, W"
    # TODO(synk): odd H/W needs PyTorch's ceil(H/2) output-size handling for s=2, p=1.

    # NCHW -> NHWC boundary glue.
    # TODO(synk): keep activations NHWC across adjacent UNet blocks to avoid this
    #             per-call HBM round trip.
    x = jnp.transpose(x_nchw, (0, 2, 3, 1)).astype(jnp.float32)

    # FiLM projection for the whole batch as one f32 matmul outside the kernel.
    emb = _silu(t.astype(jnp.float32)) @ p["wemb"] + p["bemb"]          # (B, 2*nf)
    scale = emb[:, :nf].reshape(B, 1, nf)
    shift = emb[:, nf:].reshape(B, 1, nf)

    try:
        out = _run_downblock(x, scale, shift, p, fast=True)
    except Exception:
        # Conservative fallback (f32 scratch, default buffering, natural NHWC output)
        # in case an optimized feature fails to lower on this jax/libtpu version.
        out = _run_downblock(x, scale, shift, p, fast=False)

    return jnp.transpose(out, (0, 3, 1, 2))                            # NHWC -> NCHW


# ------------------------ pure-JAX reference (for checking) ------------------------
def _ref_forward(x_nchw, t, p):
    x = jnp.transpose(x_nchw, (0, 2, 3, 1)).astype(jnp.float32)
    nf = p["b1"].shape[-1]

    def conv(h, w, b, stride):
        y = jax.lax.conv_general_dilated(
            h, w, window_strides=(stride, stride), padding=((1, 1), (1, 1)),
            dimension_numbers=("NHWC", "HWIO", "NHWC"))
        return y + b

    h = _silu(x * p["a1"] + p["c1"])
    h = conv(h, p["w1"], p["b1"], 1)
    emb = _silu(t) @ p["wemb"] + p["bemb"]
    scale = emb[:, :nf][:, None, None, :]
    shift = emb[:, nf:][:, None, None, :]
    h = h * (1.0 + scale) + shift
    h2 = _silu(h * p["a2"] + p["c2"])
    h2 = conv(h2, p["w2"], p["b2"], 1)
    idc = jnp.einsum("bhwi,io->bhwo", x, p["wid"]) + p["bid"]
    res = h2 + idc
    down = conv(res, p["wd"], p["bd"], 2)
    return jnp.transpose(down, (0, 3, 1, 2))


# ------------------------------- parameter setup ------------------------------------
def make_params(key, n_emb, ni, nf):
    ks = jax.random.split(key, 18)
    rnd = lambda k, shape, s=0.1: s * jax.random.normal(k, shape, dtype=jnp.float32)
    eps = 1e-5

    def bn_affine(kg, kb, km, kv, c):
        gamma = 1.0 + rnd(kg, (c,))
        beta = rnd(kb, (c,))
        mean = rnd(km, (c,))
        var = jax.random.uniform(kv, (c,), minval=0.5, maxval=1.5, dtype=jnp.float32)
        a = gamma / jnp.sqrt(var + eps)
        cshift = beta - mean * a
        return a.reshape(1, c), cshift.reshape(1, c)

    emb_w = rnd(ks[0], (2 * nf, n_emb))            # torch Linear weight (2*nf, n_emb)
    emb_b = rnd(ks[1], (2 * nf,))
    w1_t = rnd(ks[2], (nf, ni, 3, 3))              # torch conv weight (out, in, kh, kw)
    b1_t = rnd(ks[3], (nf,))
    w2_t = rnd(ks[4], (nf, nf, 3, 3))
    b2_t = rnd(ks[5], (nf,))
    wid_t = rnd(ks[6], (nf, ni, 1, 1))
    bid_t = rnd(ks[7], (nf,))
    wd_t = rnd(ks[8], (nf, nf, 3, 3))
    bd_t = rnd(ks[9], (nf,))

    a1, c1 = bn_affine(ks[10], ks[11], ks[12], ks[13], ni)
    a2, c2 = bn_affine(ks[14], ks[15], ks[16], ks[17], nf)

    return {
        "wemb": emb_w.T,                           # (n_emb, 2*nf)
        "bemb": emb_b.reshape(1, 2 * nf),
        "a1": a1, "c1": c1,
        "w1": jnp.transpose(w1_t, (2, 3, 1, 0)),   # HWIO (3,3,ni,nf)
        "b1": b1_t.reshape(1, nf),
        "a2": a2, "c2": c2,
        "w2": jnp.transpose(w2_t, (2, 3, 1, 0)),
        "b2": b2_t.reshape(1, nf),
        "wid": wid_t[:, :, 0, 0].T,                # (ni, nf)
        "bid": bid_t.reshape(1, nf),
        "wd": jnp.transpose(wd_t, (2, 3, 1, 0)),
        "bd": bd_t.reshape(1, nf),
    }


if __name__ == "__main__":
    B, ni, nf, n_emb, H, W = 2, 4, 8, 32, 16, 16

    key = jax.random.PRNGKey(0)
    kx, kt, kp = jax.random.split(key, 3)
    x = jax.random.normal(kx, (B, ni, H, W), dtype=jnp.float32)   # NCHW like PyTorch
    t = jax.random.normal(kt, (B, n_emb), dtype=jnp.float32)
    params = make_params(kp, n_emb, ni, nf)

    out = jax.block_until_ready(downblock_forward(x, t, params))
    assert out.shape == (B, nf, H // 2, W // 2), out.shape

    ref = jax.block_until_ready(_ref_forward(x, t, params))
    max_err = float(jnp.max(jnp.abs(out - ref)))
    # bf16 conv-matmul operands (f32 accumulation) vs. pure-f32 reference.
    assert max_err < 3e-2, f"mismatch vs reference: {max_err}"

    print("KERNEL_OK")
</pallas_src>

<mosaic_0001>
module attributes {stable_mosaic.version = 11 : i64} {
  func.func @downblock_kernel(%arg0: i32, %arg1: memref<1x16x16x4xf32, #tpu.memory_space<vmem>>, %arg2: memref<1x1x8xf32, #tpu.memory_space<vmem>>, %arg3: memref<1x1x8xf32, #tpu.memory_space<vmem>>, %arg4: memref<1x4xf32, #tpu.memory_space<vmem>>, %arg5: memref<1x4xf32, #tpu.memory_space<vmem>>, %arg6: memref<9x4x8xbf16, #tpu.memory_space<vmem>>, %arg7: memref<1x8xf32, #tpu.memory_space<vmem>>, %arg8: memref<1x8xf32, #tpu.memory_space<vmem>>, %arg9: memref<1x8xf32, #tpu.memory_space<vmem>>, %arg10: memref<9x8x8xbf16, #tpu.memory_space<vmem>>, %arg11: memref<1x8xf32, #tpu.memory_space<vmem>>, %arg12: memref<4x8xbf16, #tpu.memory_space<vmem>>, %arg13: memref<1x8xf32, #tpu.memory_space<vmem>>, %arg14: memref<9x8x8xbf16, #tpu.memory_space<vmem>>, %arg15: memref<1x8xf32, #tpu.memory_space<vmem>>, %arg16: memref<1x1x512xf32, #tpu.memory_space<vmem>>, %arg17: memref<1x18x18x4xbf16, #tpu.memory_space<vmem>>, %arg18: memref<1x18x18x8xbf16, #tpu.memory_space<vmem>>, %arg19: memref<1x18x18x8xf32, #tpu.memory_space<vmem>>) attributes {dimension_semantics = [#tpu.dimension_semantics<parallel>], iteration_bounds = array<i64: 2>, scalar_prefetch = 0 : i64, scratch_operands = 3 : i64, tpu.core_type = #tpu.core_type<tc>, window_params = [{transform_indices = @transform_0, window_bounds = array<i64: 1, 16, 16, 4>}, {transform_indices = @transform_1, window_bounds = array<i64: 1, 1, 8>}, {transform_indices = @transform_2, window_bounds = array<i64: 1, 1, 8>}, {pipeline_mode = #tpu.pipeline_mode<synchronous>, transform_indices = @transform_3, window_bounds = array<i64: 1, 4>}, {pipeline_mode = #tpu.pipeline_mode<synchronous>, transform_indices = @transform_4, window_bounds = array<i64: 1, 4>}, {pipeline_mode = #tpu.pipeline_mode<synchronous>, transform_indices = @transform_5, window_bounds = array<i64: 9, 4, 8>}, {pipeline_mode = #tpu.pipeline_mode<synchronous>, transform_indices = @transform_6, window_bounds = array<i64: 1, 8>}, {pipeline_mode = #tpu.pipeline_mode<synchronous>, transform_indices = @transform_7, window_bounds = array<i64: 1, 8>}, {pipeline_mode = #tpu.pipeline_mode<synchronous>, transform_indices = @transform_8, window_bounds = array<i64: 1, 8>}, {pipeline_mode = #tpu.pipeline_mode<synchronous>, transform_indices = @transform_9, window_bounds = array<i64: 9, 8, 8>}, {pipeline_mode = #tpu.pipeline_mode<synchronous>, transform_indices = @transform_10, window_bounds = array<i64: 1, 8>}, {pipeline_mode = #tpu.pipeline_mode<synchronous>, transform_indices = @transform_11, window_bounds = array<i64: 4, 8>}, {pipeline_mode = #tpu.pipeline_mode<synchronous>, transform_indices = @transform_12, window_bounds = array<i64: 1, 8>}, {pipeline_mode = #tpu.pipeline_mode<synchronous>, transform_indices = @transform_13, window_bounds = array<i64: 9, 8, 8>}, {pipeline_mode = #tpu.pipeline_mode<synchronous>, transform_indices = @transform_14, window_bounds = array<i64: 1, 8>}, {transform_indices = @transform_15, window_bounds = array<i64: 1, 1, 512>}]} {
    %cst = arith.constant 0.000000e+00 : bf16
    %0 = vector.broadcast %cst : bf16 to vector<1x1x18x4xbf16>
    %cst_0 = arith.constant 0.000000e+00 : bf16
    %1 = vector.broadcast %cst_0 : bf16 to vector<1x18x1x4xbf16>
    %c0 = arith.constant 0 : index
    %c0_1 = arith.constant 0 : index
    %c0_2 = arith.constant 0 : index
    %c0_3 = arith.constant 0 : index
    %2 = vector.load %arg17[%c0, %c0_1, %c0_2, %c0_3] : memref<1x18x18x4xbf16, #tpu.memory_space<vmem>>, vector<1x1x18x4xbf16>
    tpu.vector_store %arg17[%c0, %c0_1, %c0_2, %c0_3], %0 {strides = array<i32>} : memref<1x18x18x4xbf16, #tpu.memory_space<vmem>>, vector<1x1x18x4xbf16>,
    %c0_4 = arith.constant 0 : index
    %c17 = arith.constant 17 : index
    %c0_5 = arith.constant 0 : index
    %c0_6 = arith.constant 0 : index
    %3 = vector.load %arg17[%c0_4, %c17, %c0_5, %c0_6] : memref<1x18x18x4xbf16, #tpu.memory_space<vmem>>, vector<1x1x18x4xbf16>
    tpu.vector_store %arg17[%c0_4, %c17, %c0_5, %c0_6], %0 {strides = array<i32>} : memref<1x18x18x4xbf16, #tpu.memory_space<vmem>>, vector<1x1x18x4xbf16>,
    %c0_7 = arith.constant 0 : index
    %c0_8 = arith.constant 0 : index
    %c0_9 = arith.constant 0 : index
    %c0_10 = arith.constant 0 : index
    %4 = vector.load %arg17[%c0_7, %c0_8, %c0_9, %c0_10] : memref<1x18x18x4xbf16, #tpu.memory_space<vmem>>, vector<1x18x1x4xbf16>
    tpu.vector_store %arg17[%c0_7, %c0_8, %c0_9, %c0_10], %1 {strides = array<i32>} : memref<1x18x18x4xbf16, #tpu.memory_space<vmem>>, vector<1x18x1x4xbf16>,
    %c0_11 = arith.constant 0 : index
    %c0_12 = arith.constant 0 : index
    %c17_13 = arith.constant 17 : index
    %c0_14 = arith.constant 0 : index
    %5 = vector.load %arg17[%c0_11, %c0_12, %c17_13, %c0_14] : memref<1x18x18x4xbf16, #tpu.memory_space<vmem>>, vector<1x18x1x4xbf16>
    tpu.vector_store %arg17[%c0_11, %c0_12, %c17_13, %c0_14], %1 {strides = array<i32>} : memref<1x18x18x4xbf16, #tpu.memory_space<vmem>>, vector<1x18x1x4xbf16>,
    %cst_15 = arith.constant 0.000000e+00 : bf16
    %6 = vector.broadcast %cst_15 : bf16 to vector<1x1x18x8xbf16>
    %cst_16 = arith.constant 0.000000e+00 : bf16
    %7 = vector.broadcast %cst_16 : bf16 to vector<1x18x1x8xbf16>
    %c0_17 = arith.constant 0 : index
    %c0_18 = arith.constant 0 : index
    %c0_19 = arith.constant 0 : index
    %c0_20 = arith.constant 0 : index
    %8 = vector.load %arg18[%c0_17, %c0_18, %c0_19, %c0_20] : memref<1x18x18x8xbf16, #tpu.memory_space<vmem>>, vector<1x1x18x8xbf16>
    tpu.vector_store %arg18[%c0_17, %c0_18, %c0_19, %c0_20], %6 {strides = array<i32>} : memref<1x18x18x8xbf16, #tpu.memory_space<vmem>>, vector<1x1x18x8xbf16>,
    %c0_21 = arith.constant 0 : index
    %c17_22 = arith.constant 17 : index
    %c0_23 = arith.constant 0 : index
    %c0_24 = arith.constant 0 : index
    %9 = vector.load %arg18[%c0_21, %c17_22, %c0_23, %c0_24] : memref<1x18x18x8xbf16, #tpu.memory_space<vmem>>, vector<1x1x18x8xbf16>
    tpu.vector_store %arg18[%c0_21, %c17_22, %c0_23, %c0_24], %6 {strides = array<i32>} : memref<1x18x18x8xbf16, #tpu.memory_space<vmem>>, vector<1x1x18x8xbf16>,
    %c0_25 = arith.constant 0 : index
    %c0_26 = arith.constant 0 : index
    %c0_27 = arith.constant 0 : index
    %c0_28 = arith.constant 0 : index
    %10 = vector.load %arg18[%c0_25, %c0_26, %c0_27, %c0_28] : memref<1x18x18x8xbf16, #tpu.memory_space<vmem>>, vector<1x18x1x8xbf16>
    tpu.vector_store %arg18[%c0_25, %c0_26, %c0_27, %c0_28], %7 {strides = array<i32>} : memref<1x18x18x8xbf16, #tpu.memory_space<vmem>>, vector<1x18x1x8xbf16>,
    %c0_29 = arith.constant 0 : index
    %c0_30 = arith.constant 0 : index
    %c17_31 = arith.constant 17 : index
    %c0_32 = arith.constant 0 : index
    %11 = vector.load %arg18[%c0_29, %c0_30, %c17_31, %c0_32] : memref<1x18x18x8xbf16, #tpu.memory_space<vmem>>, vector<1x18x1x8xbf16>
    tpu.vector_store %arg18[%c0_29, %c0_30, %c17_31, %c0_32], %7 {strides = array<i32>} : memref<1x18x18x8xbf16, #tpu.memory_space<vmem>>, vector<1x18x1x8xbf16>,
    %cst_33 = arith.constant 0.000000e+00 : f32
    %12 = vector.broadcast %cst_33 : f32 to vector<1x1x18x8xf32>
    %cst_34 = arith.constant 0.000000e+00 : f32
    %13 = vector.broadcast %cst_34 : f32 to vector<1x18x1x8xf32>
    %c0_35 = arith.constant 0 : index
    %c0_36 = arith.constant 0 : index
    %c0_37 = arith.constant 0 : index
    %c0_38 = arith.constant 0 : index
    %14 = vector.load %arg19[%c0_35, %c0_36, %c0_37, %c0_38] : memref<1x18x18x8xf32, #tpu.memory_space<vmem>>, vector<1x1x18x8xf32>
    tpu.vector_store %arg19[%c0_35, %c0_36, %c0_37, %c0_38], %12 {strides = array<i32>} : memref<1x18x18x8xf32, #tpu.memory_space<vmem>>, vector<1x1x18x8xf32>,
    %c0_39 = arith.constant 0 : index
    %c17_40 = arith.constant 17 : index
    %c0_41 = arith.constant 0 : index
    %c0_42 = arith.constant 0 : index
    %15 = vector.load %arg19[%c0_39, %c17_40, %c0_41, %c0_42] : memref<1x18x18x8xf32, #tpu.memory_space<vmem>>, vector<1x1x18x8xf32>
    tpu.vector_store %arg19[%c0_39, %c17_40, %c0_41, %c0_42], %12 {strides = array<i32>} : memref<1x18x18x8xf32, #tpu.memory_space<vmem>>, vector<1x1x18x8xf32>,
    %c0_43 = arith.constant 0 : index
    %c0_44 = arith.constant 0 : index
    %c0_45 = arith.constant 0 : index
    %c0_46 = arith.constant 0 : index
    %16 = vector.load %arg19[%c0_43, %c0_44, %c0_45, %c0_46] : memref<1x18x18x8xf32, #tpu.memory_space<vmem>>, vector<1x18x1x8xf32>
    tpu.vector_store %arg19[%c0_43, %c0_44, %c0_45, %c0_46], %13 {strides = array<i32>} : memref<1x18x18x8xf32, #tpu.memory_space<vmem>>, vector<1x18x1x8xf32>,
    %c0_47 = arith.constant 0 : index
    %c0_48 = arith.constant 0 : index
    %c17_49 = arith.constant 17 : index
    %c0_50 = arith.constant 0 : index
    %17 = vector.load %arg19[%c0_47, %c0_48, %c17_49, %c0_50] : memref<1x18x18x8xf32, #tpu.memory_space<vmem>>, vector<1x18x1x8xf32>
    tpu.vector_store %arg19[%c0_47, %c0_48, %c17_49, %c0_50], %13 {strides = array<i32>} : memref<1x18x18x8xf32, #tpu.memory_space<vmem>>, vector<1x18x1x8xf32>,
    %c0_51 = arith.constant 0 : index
    %c0_52 = arith.constant 0 : index
    %c0_53 = arith.constant 0 : index
    %c0_54 = arith.constant 0 : index
    %18 = vector.load %arg1[%c0_51, %c0_52, %c0_53, %c0_54] : memref<1x16x16x4xf32, #tpu.memory_space<vmem>>, vector<1x16x16x4xf32>
    %c0_55 = arith.constant 0 : index
    %c0_56 = arith.constant 0 : index
    %19 = vector.load %arg4[%c0_55, %c0_56] : memref<1x4xf32, #tpu.memory_space<vmem>>, vector<1x4xf32>
    %20 = vector.shape_cast %19 : vector<1x4xf32> to vector<1x1x1x4xf32>
    %21 = vector.broadcast %20 : vector<1x1x1x4xf32> to vector<1x16x16x4xf32>
    %22 = arith.mulf %18, %21 : vector<1x16x16x4xf32>
    %c0_57 = arith.constant 0 : index
    %c0_58 = arith.constant 0 : index
    %23 = vector.load %arg5[%c0_57, %c0_58] : memref<1x4xf32, #tpu.memory_space<vmem>>, vector<1x4xf32>
    %24 = vector.shape_cast %23 : vector<1x4xf32> to vector<1x1x1x4xf32>
    %25 = vector.broadcast %24 : vector<1x1x1x4xf32> to vector<1x16x16x4xf32>
    %26 = arith.addf %22, %25 : vector<1x16x16x4xf32>
    %27 = arith.negf %26 : vector<1x16x16x4xf32>
    %28 = math.exp %27 : vector<1x16x16x4xf32>
    %cst_59 = arith.constant 1.000000e+00 : f32
    %29 = vector.broadcast %cst_59 : f32 to vector<1x16x16x4xf32>
    %30 = arith.addf %29, %28 : vector<1x16x16x4xf32>
    %31 = arith.divf %29, %30 : vector<1x16x16x4xf32>
    %32 = arith.mulf %26, %31 : vector<1x16x16x4xf32>
    %33 = arith.truncf %32 : vector<1x16x16x4xf32> to vector<1x16x16x4xbf16>
    %c0_60 = arith.constant 0 : index
    %c1 = arith.constant 1 : index
    %c1_61 = arith.constant 1 : index
    %c0_62 = arith.constant 0 : index
    %34 = vector.load %arg17[%c0_60, %c1, %c1_61, %c0_62] : memref<1x18x18x4xbf16, #tpu.memory_space<vmem>>, vector<1x16x16x4xbf16>
    tpu.vector_store %arg17[%c0_60, %c1, %c1_61, %c0_62], %33 {strides = array<i32>} : memref<1x18x18x4xbf16, #tpu.memory_space<vmem>>, vector<1x16x16x4xbf16>,
    %c0_63 = arith.constant 0 : index
    %c0_64 = arith.constant 0 : index
    %35 = vector.load %arg7[%c0_63, %c0_64] : memref<1x8xf32, #tpu.memory_space<vmem>>, vector<1x8xf32>
    %c0_65 = arith.constant 0 : index
    %c0_66 = arith.constant 0 : index
    %c0_67 = arith.constant 0 : index
    %c0_68 = arith.constant 0 : index
    %36 = vector.load %arg17[%c0_65, %c0_66, %c0_67, %c0_68] : memref<1x18x18x4xbf16, #tpu.memory_space<vmem>>, vector<1x16x16x4xbf16>
    %c0_69 = arith.constant 0 : index
    %c0_70 = arith.constant 0 : index
    %c1_71 = arith.constant 1 : index
    %c0_72 = arith.constant 0 : index
    %37 = vector.load %arg17[%c0_69, %c0_70, %c1_71, %c0_72] : memref<1x18x18x4xbf16, #tpu.memory_space<vmem>>, vector<1x16x16x4xbf16>
    %c0_73 = arith.constant 0 : index
    %c0_74 = arith.constant 0 : index
    %c2 = arith.constant 2 : index
    %c0_75 = arith.constant 0 : index
    %38 = vector.load %arg17[%c0_73, %c0_74, %c2, %c0_75] : memref<1x18x18x4xbf16, #tpu.memory_space<vmem>>, vector<1x16x16x4xbf16>
    %c0_76 = arith.constant 0 : index
    %c1_77 = arith.constant 1 : index
    %c0_78 = arith.constant 0 : index
    %c0_79 = arith.constant 0 : index
    %39 = vector.load %arg17[%c0_76, %c1_77, %c0_78, %c0_79] : memref<1x18x18x4xbf16, #tpu.memory_space<vmem>>, vector<1x16x16x4xbf16>
    %c0_80 = arith.constant 0 : index
    %c1_81 = arith.constant 1 : index
    %c1_82 = arith.constant 1 : index
    %c0_83 = arith.constant 0 : index
    %40 = vector.load %arg17[%c0_80, %c1_81, %c1_82, %c0_83] : memref<1x18x18x4xbf16, #tpu.memory_space<vmem>>, vector<1x16x16x4xbf16>
    %c0_84 = arith.constant 0 : index
    %c1_85 = arith.constant 1 : index
    %c2_86 = arith.constant 2 : index
    %c0_87 = arith.constant 0 : index
    %41 = vector.load %arg17[%c0_84, %c1_85, %c2_86, %c0_87] : memref<1x18x18x4xbf16, #tpu.memory_space<vmem>>, vector<1x16x16x4xbf16>
    %c0_88 = arith.constant 0 : index
    %c2_89 = arith.constant 2 : index
    %c0_90 = arith.constant 0 : index
    %c0_91 = arith.constant 0 : index
    %42 = vector.load %arg17[%c0_88, %c2_89, %c0_90, %c0_91] : memref<1x18x18x4xbf16, #tpu.memory_space<vmem>>, vector<1x16x16x4xbf16>
    %c0_92 = arith.constant 0 : index
    %c2_93 = arith.constant 2 : index
    %c1_94 = arith.constant 1 : index
    %c0_95 = arith.constant 0 : index
    %43 = vector.load %arg17[%c0_92, %c2_93, %c1_94, %c0_95] : memref<1x18x18x4xbf16, #tpu.memory_space<vmem>>, vector<1x16x16x4xbf16>
    %c0_96 = arith.constant 0 : index
    %c2_97 = arith.constant 2 : index
    %c2_98 = arith.constant 2 : index
    %c0_99 = arith.constant 0 : index
    %44 = vector.load %arg17[%c0_96, %c2_97, %c2_98, %c0_99] : memref<1x18x18x4xbf16, #tpu.memory_space<vmem>>, vector<1x16x16x4xbf16>
    %45 = tpu.concatenate %36, %37, %38, %39, %40, %41, %42, %43, %44 in 3 : vector<1x16x16x4xbf16>, vector<1x16x16x4xbf16>, vector<1x16x16x4xbf16>, vector<1x16x16x4xbf16>, vector<1x16x16x4xbf16>, vector<1x16x16x4xbf16>, vector<1x16x16x4xbf16>, vector<1x16x16x4xbf16>, vector<1x16x16x4xbf16> -> vector<1x16x16x36xbf16>
    %46 = vector.shape_cast %45 : vector<1x16x16x36xbf16> to vector<256x36xbf16>
    %c0_100 = arith.constant 0 : index
    %c0_101 = arith.constant 0 : index
    %c0_102 = arith.constant 0 : index
    %47 = vector.load %arg6[%c0_100, %c0_101, %c0_102] : memref<9x4x8xbf16, #tpu.memory_space<vmem>>, vector<9x4x8xbf16>
    %48 = vector.shape_cast %47 : vector<9x4x8xbf16> to vector<36x8xbf16>
    %cst_103 = arith.constant dense<0.000000e+00> : vector<256x8xf32>
    %49 = tpu.matmul %46, %48, %cst_103 {dimension_numbers = #tpu.dot_dimension_numbers<[1], [0], [0], [1], [0, 0, 1, 1], [], []>} : vector<256x36xbf16>, vector<36x8xbf16>, vector<256x8xf32> -> vector<256x8xf32>
    %50 = vector.broadcast %35 : vector<1x8xf32> to vector<256x8xf32>
    %51 = arith.addf %49, %50 : vector<256x8xf32>
    %52 = vector.shape_cast %51 : vector<256x8xf32> to vector<1x16x16x8xf32>
    %c0_104 = arith.constant 0 : index
    %c0_105 = arith.constant 0 : index
    %c0_106 = arith.constant 0 : index
    %53 = vector.load %arg2[%c0_104, %c0_105, %c0_106] : memref<1x1x8xf32, #tpu.memory_space<vmem>>, vector<1x1x8xf32>
    %cst_107 = arith.constant 1.000000e+00 : f32
    %54 = vector.broadcast %cst_107 : f32 to vector<1x1x8xf32>
    %55 = arith.addf %54, %53 : vector<1x1x8xf32>
    %56 = vector.shape_cast %55 : vector<1x1x8xf32> to vector<1x1x1x8xf32>
    %57 = vector.broadcast %56 : vector<1x1x1x8xf32> to vector<1x16x16x8xf32>
    %58 = arith.mulf %52, %57 : vector<1x16x16x8xf32>
    %c0_108 = arith.constant 0 : index
    %c0_109 = arith.constant 0 : index
    %c0_110 = arith.constant 0 : index
    %59 = vector.load %arg3[%c0_108, %c0_109, %c0_110] : memref<1x1x8xf32, #tpu.memory_space<vmem>>, vector<1x1x8xf32>
    %60 = vector.shape_cast %59 : vector<1x1x8xf32> to vector<1x1x1x8xf32>
    %61 = vector.broadcast %60 : vector<1x1x1x8xf32> to vector<1x16x16x8xf32>
    %62 = arith.addf %58, %61 : vector<1x16x16x8xf32>
    %c0_111 = arith.constant 0 : index
    %c0_112 = arith.constant 0 : index
    %63 = vector.load %arg8[%c0_111, %c0_112] : memref<1x8xf32, #tpu.memory_space<vmem>>, vector<1x8xf32>
    %64 = vector.shape_cast %63 : vector<1x8xf32> to vector<1x1x1x8xf32>
    %65 = vector.broadcast %64 : vector<1x1x1x8xf32> to vector<1x16x16x8xf32>
    %66 = arith.mulf %62, %65 : vector<1x16x16x8xf32>
    %c0_113 = arith.constant 0 : index
    %c0_114 = arith.constant 0 : index
    %67 = vector.load %arg9[%c0_113, %c0_114] : memref<1x8xf32, #tpu.memory_space<vmem>>, vector<1x8xf32>
    %68 = vector.shape_cast %67 : vector<1x8xf32> to vector<1x1x1x8xf32>
    %69 = vector.broadcast %68 : vector<1x1x1x8xf32> to vector<1x16x16x8xf32>
    %70 = arith.addf %66, %69 : vector<1x16x16x8xf32>
    %71 = arith.negf %70 : vector<1x16x16x8xf32>
    %72 = math.exp %71 : vector<1x16x16x8xf32>
    %cst_115 = arith.constant 1.000000e+00 : f32
    %73 = vector.broadcast %cst_115 : f32 to vector<1x16x16x8xf32>
    %74 = arith.addf %73, %72 : vector<1x16x16x8xf32>
    %75 = arith.divf %73, %74 : vector<1x16x16x8xf32>
    %76 = arith.mulf %70, %75 : vector<1x16x16x8xf32>
    %77 = arith.truncf %76 : vector<1x16x16x8xf32> to vector<1x16x16x8xbf16>
    %c0_116 = arith.constant 0 : index
    %c1_117 = arith.constant 1 : index
    %c1_118 = arith.constant 1 : index
    %c0_119 = arith.constant 0 : index
    %78 = vector.load %arg18[%c0_116, %c1_117, %c1_118, %c0_119] : memref<1x18x18x8xbf16, #tpu.memory_space<vmem>>, vector<1x16x16x8xbf16>
    tpu.vector_store %arg18[%c0_116, %c1_117, %c1_118, %c0_119], %77 {strides = array<i32>} : memref<1x18x18x8xbf16, #tpu.memory_space<vmem>>, vector<1x16x16x8xbf16>,
    %c0_120 = arith.constant 0 : index
    %c0_121 = arith.constant 0 : index
    %79 = vector.load %arg11[%c0_120, %c0_121] : memref<1x8xf32, #tpu.memory_space<vmem>>, vector<1x8xf32>
    %c0_122 = arith.constant 0 : index
    %c0_123 = arith.constant 0 : index
    %c0_124 = arith.constant 0 : index
    %c0_125 = arith.constant 0 : index
    %80 = vector.load %arg18[%c0_122, %c0_123, %c0_124, %c0_125] : memref<1x18x18x8xbf16, #tpu.memory_space<vmem>>, vector<1x16x16x8xbf16>
    %c0_126 = arith.constant 0 : index
    %c0_127 = arith.constant 0 : index
    %c1_128 = arith.constant 1 : index
    %c0_129 = arith.constant 0 : index
    %81 = vector.load %arg18[%c0_126, %c0_127, %c1_128, %c0_129] : memref<1x18x18x8xbf16, #tpu.memory_space<vmem>>, vector<1x16x16x8xbf16>
    %c0_130 = arith.constant 0 : index
    %c0_131 = arith.constant 0 : index
    %c2_132 = arith.constant 2 : index
    %c0_133 = arith.constant 0 : index
    %82 = vector.load %arg18[%c0_130, %c0_131, %c2_132, %c0_133] : memref<1x18x18x8xbf16, #tpu.memory_space<vmem>>, vector<1x16x16x8xbf16>
    %c0_134 = arith.constant 0 : index
    %c1_135 = arith.constant 1 : index
    %c0_136 = arith.constant 0 : index
    %c0_137 = arith.constant 0 : index
    %83 = vector.load %arg18[%c0_134, %c1_135, %c0_136, %c0_137] : memref<1x18x18x8xbf16, #tpu.memory_space<vmem>>, vector<1x16x16x8xbf16>
    %c0_138 = arith.constant 0 : index
    %c1_139 = arith.constant 1 : index
    %c1_140 = arith.constant 1 : index
    %c0_141 = arith.constant 0 : index
    %84 = vector.load %arg18[%c0_138, %c1_139, %c1_140, %c0_141] : memref<1x18x18x8xbf16, #tpu.memory_space<vmem>>, vector<1x16x16x8xbf16>
    %c0_142 = arith.constant 0 : index
    %c1_143 = arith.constant 1 : index
    %c2_144 = arith.constant 2 : index
    %c0_145 = arith.constant 0 : index
    %85 = vector.load %arg18[%c0_142, %c1_143, %c2_144, %c0_145] : memref<1x18x18x8xbf16, #tpu.memory_space<vmem>>, vector<1x16x16x8xbf16>
    %c0_146 = arith.constant 0 : index
    %c2_147 = arith.constant 2 : index
    %c0_148 = arith.constant 0 : index
    %c0_149 = arith.constant 0 : index
    %86 = vector.load %arg18[%c0_146, %c2_147, %c0_148, %c0_149] : memref<1x18x18x8xbf16, #tpu.memory_space<vmem>>, vector<1x16x16x8xbf16>
    %c0_150 = arith.constant 0 : index
    %c2_151 = arith.constant 2 : index
    %c1_152 = arith.constant 1 : index
    %c0_153 = arith.constant 0 : index
    %87 = vector.load %arg18[%c0_150, %c2_151, %c1_152, %c0_153] : memref<1x18x18x8xbf16, #tpu.memory_space<vmem>>, vector<1x16x16x8xbf16>
    %c0_154 = arith.constant 0 : index
    %c2_155 = arith.constant 2 : index
    %c2_156 = arith.constant 2 : index
    %c0_157 = arith.constant 0 : index
    %88 = vector.load %arg18[%c0_154, %c2_155, %c2_156, %c0_157] : memref<1x18x18x8xbf16, #tpu.memory_space<vmem>>, vector<1x16x16x8xbf16>
    %89 = tpu.concatenate %80, %81, %82, %83, %84, %85, %86, %87, %88 in 3 : vector<1x16x16x8xbf16>, vector<1x16x16x8xbf16>, vector<1x16x16x8xbf16>, vector<1x16x16x8xbf16>, vector<1x16x16x8xbf16>, vector<1x16x16x8xbf16>, vector<1x16x16x8xbf16>, vector<1x16x16x8xbf16>, vector<1x16x16x8xbf16> -> vector<1x16x16x72xbf16>
    %90 = vector.shape_cast %89 : vector<1x16x16x72xbf16> to vector<256x72xbf16>
    %c0_158 = arith.constant 0 : index
    %c0_159 = arith.constant 0 : index
    %c0_160 = arith.constant 0 : index
    %91 = vector.load %arg10[%c0_158, %c0_159, %c0_160] : memref<9x8x8xbf16, #tpu.memory_space<vmem>>, vector<9x8x8xbf16>
    %92 = vector.shape_cast %91 : vector<9x8x8xbf16> to vector<72x8xbf16>
    %cst_161 = arith.constant dense<0.000000e+00> : vector<256x8xf32>
    %93 = tpu.matmul %90, %92, %cst_161 {dimension_numbers = #tpu.dot_dimension_numbers<[1], [0], [0], [1], [0, 0, 1, 1], [], []>} : vector<256x72xbf16>, vector<72x8xbf16>, vector<256x8xf32> -> vector<256x8xf32>
    %94 = vector.broadcast %79 : vector<1x8xf32> to vector<256x8xf32>
    %95 = arith.addf %93, %94 : vector<256x8xf32>
    %96 = vector.shape_cast %95 : vector<256x8xf32> to vector<1x16x16x8xf32>
    %97 = vector.shape_cast %18 : vector<1x16x16x4xf32> to vector<256x4xf32>
    %98 = arith.truncf %97 : vector<256x4xf32> to vector<256x4xbf16>
    %c0_162 = arith.constant 0 : index
    %c0_163 = arith.constant 0 : index
    %99 = vector.load %arg12[%c0_162, %c0_163] : memref<4x8xbf16, #tpu.memory_space<vmem>>, vector<4x8xbf16>
    %cst_164 = arith.constant dense<0.000000e+00> : vector<256x8xf32>
    %100 = tpu.matmul %98, %99, %cst_164 {dimension_numbers = #tpu.dot_dimension_numbers<[1], [0], [0], [1], [0, 0, 1, 1], [], []>} : vector<256x4xbf16>, vector<4x8xbf16>, vector<256x8xf32> -> vector<256x8xf32>
    %101 = vector.shape_cast %100 : vector<256x8xf32> to vector<1x16x16x8xf32>
    %102 = arith.addf %96, %101 : vector<1x16x16x8xf32>
    %c0_165 = arith.constant 0 : index
    %c0_166 = arith.constant 0 : index
    %103 = vector.load %arg13[%c0_165, %c0_166] : memref<1x8xf32, #tpu.memory_space<vmem>>, vector<1x8xf32>
    %104 = vector.shape_cast %103 : vector<1x8xf32> to vector<1x1x1x8xf32>
    %105 = vector.broadcast %104 : vector<1x1x1x8xf32> to vector<1x16x16x8xf32>
    %106 = arith.addf %102, %105 : vector<1x16x16x8xf32>
    %c0_167 = arith.constant 0 : index
    %c1_168 = arith.constant 1 : index
    %c1_169 = arith.constant 1 : index
    %c0_170 = arith.constant 0 : index
    %107 = vector.load %arg19[%c0_167, %c1_168, %c1_169, %c0_170] : memref<1x18x18x8xf32, #tpu.memory_space<vmem>>, vector<1x16x16x8xf32>
    tpu.vector_store %arg19[%c0_167, %c1_168, %c1_169, %c0_170], %106 {strides = array<i32>} : memref<1x18x18x8xf32, #tpu.memory_space<vmem>>, vector<1x16x16x8xf32>,
    %c0_171 = arith.constant 0 : index
    %c0_172 = arith.constant 0 : index
    %108 = vector.load %arg15[%c0_171, %c0_172] : memref<1x8xf32, #tpu.memory_space<vmem>>, vector<1x8xf32>
    %c0_173 = arith.constant 0 : index
    %c0_174 = arith.constant 0 : index
    %c0_175 = arith.constant 0 : index
    %c0_176 = arith.constant 0 : index
    %109 = tpu.strided_load %arg19[%c0_173, %c0_174, %c0_175, %c0_176] {strides = array<i32: 1, 2, 2, 1>} : memref<1x18x18x8xf32, #tpu.memory_space<vmem>>, vector<1x8x8x8xf32>
    %c0_177 = arith.constant 0 : index
    %c0_178 = arith.constant 0 : index
    %c1_179 = arith.constant 1 : index
    %c0_180 = arith.constant 0 : index
    %110 = tpu.strided_load %arg19[%c0_177, %c0_178, %c1_179, %c0_180] {strides = array<i32: 1, 2, 2, 1>} : memref<1x18x18x8xf32, #tpu.memory_space<vmem>>, vector<1x8x8x8xf32>
    %c0_181 = arith.constant 0 : index
    %c0_182 = arith.constant 0 : index
    %c2_183 = arith.constant 2 : index
    %c0_184 = arith.constant 0 : index
    %111 = tpu.strided_load %arg19[%c0_181, %c0_182, %c2_183, %c0_184] {strides = array<i32: 1, 2, 2, 1>} : memref<1x18x18x8xf32, #tpu.memory_space<vmem>>, vector<1x8x8x8xf32>
    %c0_185 = arith.constant 0 : index
    %c1_186 = arith.constant 1 : index
    %c0_187 = arith.constant 0 : index
    %c0_188 = arith.constant 0 : index
    %112 = tpu.strided_load %arg19[%c0_185, %c1_186, %c0_187, %c0_188] {strides = array<i32: 1, 2, 2, 1>} : memref<1x18x18x8xf32, #tpu.memory_space<vmem>>, vector<1x8x8x8xf32>
    %c0_189 = arith.constant 0 : index
    %c1_190 = arith.constant 1 : index
    %c1_191 = arith.constant 1 : index
    %c0_192 = arith.constant 0 : index
    %113 = tpu.strided_load %arg19[%c0_189, %c1_190, %c1_191, %c0_192] {strides = array<i32: 1, 2, 2, 1>} : memref<1x18x18x8xf32, #tpu.memory_space<vmem>>, vector<1x8x8x8xf32>
    %c0_193 = arith.constant 0 : index
    %c1_194 = arith.constant 1 : index
    %c2_195 = arith.constant 2 : index
    %c0_196 = arith.constant 0 : index
    %114 = tpu.strided_load %arg19[%c0_193, %c1_194, %c2_195, %c0_196] {strides = array<i32: 1, 2, 2, 1>} : memref<1x18x18x8xf32, #tpu.memory_space<vmem>>, vector<1x8x8x8xf32>
    %c0_197 = arith.constant 0 : index
    %c2_198 = arith.constant 2 : index
    %c0_199 = arith.constant 0 : index
    %c0_200 = arith.constant 0 : index
    %115 = tpu.strided_load %arg19[%c0_197, %c2_198, %c0_199, %c0_200] {strides = array<i32: 1, 2, 2, 1>} : memref<1x18x18x8xf32, #tpu.memory_space<vmem>>, vector<1x8x8x8xf32>
    %c0_201 = arith.constant 0 : index
    %c2_202 = arith.constant 2 : index
    %c1_203 = arith.constant 1 : index
    %c0_204 = arith.constant 0 : index
    %116 = tpu.strided_load %arg19[%c0_201, %c2_202, %c1_203, %c0_204] {strides = array<i32: 1, 2, 2, 1>} : memref<1x18x18x8xf32, #tpu.memory_space<vmem>>, vector<1x8x8x8xf32>
    %c0_205 = arith.constant 0 : index
    %c2_206 = arith.constant 2 : index
    %c2_207 = arith.constant 2 : index
    %c0_208 = arith.constant 0 : index
    %117 = tpu.strided_load %arg19[%c0_205, %c2_206, %c2_207, %c0_208] {strides = array<i32: 1, 2, 2, 1>} : memref<1x18x18x8xf32, #tpu.memory_space<vmem>>, vector<1x8x8x8xf32>
    %118 = tpu.concatenate %109, %110, %111, %112, %113, %114, %115, %116, %117 in 3 : vector<1x8x8x8xf32>, vector<1x8x8x8xf32>, vector<1x8x8x8xf32>, vector<1x8x8x8xf32>, vector<1x8x8x8xf32>, vector<1x8x8x8xf32>, vector<1x8x8x8xf32>, vector<1x8x8x8xf32>, vector<1x8x8x8xf32> -> vector<1x8x8x72xf32>
    %119 = vector.shape_cast %118 : vector<1x8x8x72xf32> to vector<64x72xf32>
    %120 = arith.truncf %119 : vector<64x72xf32> to vector<64x72xbf16>
    %c0_209 = arith.constant 0 : index
    %c0_210 = arith.constant 0 : index
    %c0_211 = arith.constant 0 : index
    %121 = vector.load %arg14[%c0_209, %c0_210, %c0_211] : memref<9x8x8xbf16, #tpu.memory_space<vmem>>, vector<9x8x8xbf16>
    %122 = vector.shape_cast %121 : vector<9x8x8xbf16> to vector<72x8xbf16>
    %cst_212 = arith.constant dense<0.000000e+00> : vector<64x8xf32>
    %123 = tpu.matmul %120, %122, %cst_212 {dimension_numbers = #tpu.dot_dimension_numbers<[1], [0], [0], [1], [0, 0, 1, 1], [], []>} : vector<64x72xbf16>, vector<72x8xbf16>, vector<64x8xf32> -> vector<64x8xf32>
    %124 = vector.broadcast %108 : vector<1x8xf32> to vector<64x8xf32>
    %125 = arith.addf %123, %124 : vector<64x8xf32>
    %126 = vector.shape_cast %125 : vector<64x8xf32> to vector<1x1x512xf32>
    %c0_213 = arith.constant 0 : index
    %c0_214 = arith.constant 0 : index
    %c0_215 = arith.constant 0 : index
    %127 = vector.load %arg16[%c0_213, %c0_214, %c0_215] : memref<1x1x512xf32, #tpu.memory_space<vmem>>, vector<1x1x512xf32>
    tpu.vector_store %arg16[%c0_213, %c0_214, %c0_215], %126 {strides = array<i32>} : memref<1x1x512xf32, #tpu.memory_space<vmem>>, vector<1x1x512xf32>,
    return
  }
  func.func @transform_0(%arg0: i32) -> (i32, i32, i32, i32) {
    %c0_i32 = arith.constant 0 : i32
    %c0_i32_0 = arith.constant 0 : i32
    %c0_i32_1 = arith.constant 0 : i32
    %c0_i32_2 = arith.constant 0 : i32
    return %arg0, %c0_i32, %c0_i32_0, %c0_i32_1 : i32, i32, i32, i32
  }
  func.func @transform_1(%arg0: i32) -> (i32, i32, i32) {
    %c0_i32 = arith.constant 0 : i32
    %c0_i32_0 = arith.constant 0 : i32
    %c0_i32_1 = arith.constant 0 : i32
    return %arg0, %c0_i32, %c0_i32_0 : i32, i32, i32
  }
  func.func @transform_2(%arg0: i32) -> (i32, i32, i32) {
    %c0_i32 = arith.constant 0 : i32
    %c0_i32_0 = arith.constant 0 : i32
    %c0_i32_1 = arith.constant 0 : i32
    return %arg0, %c0_i32, %c0_i32_0 : i32, i32, i32
  }
  func.func @transform_3(%arg0: i32) -> (i32, i32) {
    %c0_i32 = arith.constant 0 : i32
    %c0_i32_0 = arith.constant 0 : i32
    %c0_i32_1 = arith.constant 0 : i32
    return %c0_i32, %c0_i32_0 : i32, i32
  }
  func.func @transform_4(%arg0: i32) -> (i32, i32) {
    %c0_i32 = arith.constant 0 : i32
    %c0_i32_0 = arith.constant 0 : i32
    %c0_i32_1 = arith.constant 0 : i32
    return %c0_i32, %c0_i32_0 : i32, i32
  }
  func.func @transform_5(%arg0: i32) -> (i32, i32, i32) {
    %c0_i32 = arith.constant 0 : i32
    %c0_i32_0 = arith.constant 0 : i32
    %c0_i32_1 = arith.constant 0 : i32
    %c0_i32_2 = arith.constant 0 : i32
    return %c0_i32, %c0_i32_0, %c0_i32_1 : i32, i32, i32
  }
  func.func @transform_6(%arg0: i32) -> (i32, i32) {
    %c0_i32 = arith.constant 0 : i32
    %c0_i32_0 = arith.constant 0 : i32
    %c0_i32_1 = arith.constant 0 : i32
    return %c0_i32, %c0_i32_0 : i32, i32
  }
  func.func @transform_7(%arg0: i32) -> (i32, i32) {
    %c0_i32 = arith.constant 0 : i32
    %c0_i32_0 = arith.constant 0 : i32
    %c0_i32_1 = arith.constant 0 : i32
    return %c0_i32, %c0_i32_0 : i32, i32
  }
  func.func @transform_8(%arg0: i32) -> (i32, i32) {
    %c0_i32 = arith.constant 0 : i32
    %c0_i32_0 = arith.constant 0 : i32
    %c0_i32_1 = arith.constant 0 : i32
    return %c0_i32, %c0_i32_0 : i32, i32
  }
  func.func @transform_9(%arg0: i32) -> (i32, i32, i32) {
    %c0_i32 = arith.constant 0 : i32
    %c0_i32_0 = arith.constant 0 : i32
    %c0_i32_1 = arith.constant 0 : i32
    %c0_i32_2 = arith.constant 0 : i32
    return %c0_i32, %c0_i32_0, %c0_i32_1 : i32, i32, i32
  }
  func.func @transform_10(%arg0: i32) -> (i32, i32) {
    %c0_i32 = arith.constant 0 : i32
    %c0_i32_0 = arith.constant 0 : i32
    %c0_i32_1 = arith.constant 0 : i32
    return %c0_i32, %c0_i32_0 : i32, i32
  }
  func.func @transform_11(%arg0: i32) -> (i32, i32) {
    %c0_i32 = arith.constant 0 : i32
    %c0_i32_0 = arith.constant 0 : i32
    %c0_i32_1 = arith.constant 0 : i32
    return %c0_i32, %c0_i32_0 : i32, i32
  }
  func.func @transform_12(%arg0: i32) -> (i32, i32) {
    %c0_i32 = arith.constant 0 : i32
    %c0_i32_0 = arith.constant 0 : i32
    %c0_i32_1 = arith.constant 0 : i32
    return %c0_i32, %c0_i32_0 : i32, i32
  }
  func.func @transform_13(%arg0: i32) -> (i32, i32, i32) {
    %c0_i32 = arith.constant 0 : i32
    %c0_i32_0 = arith.constant 0 : i32
    %c0_i32_1 = arith.constant 0 : i32
    %c0_i32_2 = arith.constant 0 : i32
    return %c0_i32, %c0_i32_0, %c0_i32_1 : i32, i32, i32
  }
  func.func @transform_14(%arg0: i32) -> (i32, i32) {
    %c0_i32 = arith.constant 0 : i32
    %c0_i32_0 = arith.constant 0 : i32
    %c0_i32_1 = arith.constant 0 : i32
    return %c0_i32, %c0_i32_0 : i32, i32
  }
  func.func @transform_15(%arg0: i32) -> (i32, i32, i32) {
    %c0_i32 = arith.constant 0 : i32
    %c0_i32_0 = arith.constant 0 : i32
    %c0_i32_1 = arith.constant 0 : i32
    return %arg0, %c0_i32, %c0_i32_0 : i32, i32, i32
  }
}

module attributes {stable_mosaic.version = 11 : i64} {
  func.func @downblock_kernel(%arg0: i32, %arg1: memref<1x16x16x4xf32, #tpu.memory_space<vmem>>, %arg2: memref<1x1x8xf32, #tpu.memory_space<vmem>>, %arg3: memref<1x1x8xf32, #tpu.memory_space<vmem>>, %arg4: memref<1x4xf32, #tpu.memory_space<vmem>>, %arg5: memref<1x4xf32, #tpu.memory_space<vmem>>, %arg6: memref<9x4x8xbf16, #tpu.memory_space<vmem>>, %arg7: memref<1x8xf32, #tpu.memory_space<vmem>>, %arg8: memref<1x8xf32, #tpu.memory_space<vmem>>, %arg9: memref<1x8xf32, #tpu.memory_space<vmem>>, %arg10: memref<9x8x8xbf16, #tpu.memory_space<vmem>>, %arg11: memref<1x8xf32, #tpu.memory_space<vmem>>, %arg12: memref<4x8xbf16, #tpu.memory_space<vmem>>, %arg13: memref<1x8xf32, #tpu.memory_space<vmem>>, %arg14: memref<9x8x8xbf16, #tpu.memory_space<vmem>>, %arg15: memref<1x8xf32, #tpu.memory_space<vmem>>, %arg16: memref<1x8x8x8xf32, #tpu.memory_space<vmem>>, %arg17: memref<1x18x18x4xf32, #tpu.memory_space<vmem>>, %arg18: memref<1x18x18x8xf32, #tpu.memory_space<vmem>>, %arg19: memref<1x18x18x8xf32, #tpu.memory_space<vmem>>) attributes {dimension_semantics = [#tpu.dimension_semantics<parallel>], iteration_bounds = array<i64: 2>, scalar_prefetch = 0 : i64, scratch_operands = 3 : i64, tpu.core_type = #tpu.core_type<tc>, window_params = [{transform_indices = @transform_0, window_bounds = array<i64: 1, 16, 16, 4>}, {transform_indices = @transform_1, window_bounds = array<i64: 1, 1, 8>}, {transform_indices = @transform_2, window_bounds = array<i64: 1, 1, 8>}, {pipeline_mode = #tpu.pipeline_mode<synchronous>, transform_indices = @transform_3, window_bounds = array<i64: 1, 4>}, {pipeline_mode = #tpu.pipeline_mode<synchronous>, transform_indices = @transform_4, window_bounds = array<i64: 1, 4>}, {pipeline_mode = #tpu.pipeline_mode<synchronous>, transform_indices = @transform_5, window_bounds = array<i64: 9, 4, 8>}, {pipeline_mode = #tpu.pipeline_mode<synchronous>, transform_indices = @transform_6, window_bounds = array<i64: 1, 8>}, {pipeline_mode = #tpu.pipeline_mode<synchronous>, transform_indices = @transform_7, window_bounds = array<i64: 1, 8>}, {pipeline_mode = #tpu.pipeline_mode<synchronous>, transform_indices = @transform_8, window_bounds = array<i64: 1, 8>}, {pipeline_mode = #tpu.pipeline_mode<synchronous>, transform_indices = @transform_9, window_bounds = array<i64: 9, 8, 8>}, {pipeline_mode = #tpu.pipeline_mode<synchronous>, transform_indices = @transform_10, window_bounds = array<i64: 1, 8>}, {pipeline_mode = #tpu.pipeline_mode<synchronous>, transform_indices = @transform_11, window_bounds = array<i64: 4, 8>}, {pipeline_mode = #tpu.pipeline_mode<synchronous>, transform_indices = @transform_12, window_bounds = array<i64: 1, 8>}, {pipeline_mode = #tpu.pipeline_mode<synchronous>, transform_indices = @transform_13, window_bounds = array<i64: 9, 8, 8>}, {pipeline_mode = #tpu.pipeline_mode<synchronous>, transform_indices = @transform_14, window_bounds = array<i64: 1, 8>}, {transform_indices = @transform_15, window_bounds = array<i64: 1, 8, 8, 8>}]} {
    %cst = arith.constant 0.000000e+00 : f32
    %0 = vector.broadcast %cst : f32 to vector<1x1x18x4xf32>
    %cst_0 = arith.constant 0.000000e+00 : f32
    %1 = vector.broadcast %cst_0 : f32 to vector<1x18x1x4xf32>
    %c0 = arith.constant 0 : index
    %c0_1 = arith.constant 0 : index
    %c0_2 = arith.constant 0 : index
    %c0_3 = arith.constant 0 : index
    %2 = vector.load %arg17[%c0, %c0_1, %c0_2, %c0_3] : memref<1x18x18x4xf32, #tpu.memory_space<vmem>>, vector<1x1x18x4xf32>
    tpu.vector_store %arg17[%c0, %c0_1, %c0_2, %c0_3], %0 {strides = array<i32>} : memref<1x18x18x4xf32, #tpu.memory_space<vmem>>, vector<1x1x18x4xf32>,
    %c0_4 = arith.constant 0 : index
    %c17 = arith.constant 17 : index
    %c0_5 = arith.constant 0 : index
    %c0_6 = arith.constant 0 : index
    %3 = vector.load %arg17[%c0_4, %c17, %c0_5, %c0_6] : memref<1x18x18x4xf32, #tpu.memory_space<vmem>>, vector<1x1x18x4xf32>
    tpu.vector_store %arg17[%c0_4, %c17, %c0_5, %c0_6], %0 {strides = array<i32>} : memref<1x18x18x4xf32, #tpu.memory_space<vmem>>, vector<1x1x18x4xf32>,
    %c0_7 = arith.constant 0 : index
    %c0_8 = arith.constant 0 : index
    %c0_9 = arith.constant 0 : index
    %c0_10 = arith.constant 0 : index
    %4 = vector.load %arg17[%c0_7, %c0_8, %c0_9, %c0_10] : memref<1x18x18x4xf32, #tpu.memory_space<vmem>>, vector<1x18x1x4xf32>
    tpu.vector_store %arg17[%c0_7, %c0_8, %c0_9, %c0_10], %1 {strides = array<i32>} : memref<1x18x18x4xf32, #tpu.memory_space<vmem>>, vector<1x18x1x4xf32>,
    %c0_11 = arith.constant 0 : index
    %c0_12 = arith.constant 0 : index
    %c17_13 = arith.constant 17 : index
    %c0_14 = arith.constant 0 : index
    %5 = vector.load %arg17[%c0_11, %c0_12, %c17_13, %c0_14] : memref<1x18x18x4xf32, #tpu.memory_space<vmem>>, vector<1x18x1x4xf32>
    tpu.vector_store %arg17[%c0_11, %c0_12, %c17_13, %c0_14], %1 {strides = array<i32>} : memref<1x18x18x4xf32, #tpu.memory_space<vmem>>, vector<1x18x1x4xf32>,
    %cst_15 = arith.constant 0.000000e+00 : f32
    %6 = vector.broadcast %cst_15 : f32 to vector<1x1x18x8xf32>
    %cst_16 = arith.constant 0.000000e+00 : f32
    %7 = vector.broadcast %cst_16 : f32 to vector<1x18x1x8xf32>
    %c0_17 = arith.constant 0 : index
    %c0_18 = arith.constant 0 : index
    %c0_19 = arith.constant 0 : index
    %c0_20 = arith.constant 0 : index
    %8 = vector.load %arg18[%c0_17, %c0_18, %c0_19, %c0_20] : memref<1x18x18x8xf32, #tpu.memory_space<vmem>>, vector<1x1x18x8xf32>
    tpu.vector_store %arg18[%c0_17, %c0_18, %c0_19, %c0_20], %6 {strides = array<i32>} : memref<1x18x18x8xf32, #tpu.memory_space<vmem>>, vector<1x1x18x8xf32>,
    %c0_21 = arith.constant 0 : index
    %c17_22 = arith.constant 17 : index
    %c0_23 = arith.constant 0 : index
    %c0_24 = arith.constant 0 : index
    %9 = vector.load %arg18[%c0_21, %c17_22, %c0_23, %c0_24] : memref<1x18x18x8xf32, #tpu.memory_space<vmem>>, vector<1x1x18x8xf32>
    tpu.vector_store %arg18[%c0_21, %c17_22, %c0_23, %c0_24], %6 {strides = array<i32>} : memref<1x18x18x8xf32, #tpu.memory_space<vmem>>, vector<1x1x18x8xf32>,
    %c0_25 = arith.constant 0 : index
    %c0_26 = arith.constant 0 : index
    %c0_27 = arith.constant 0 : index
    %c0_28 = arith.constant 0 : index
    %10 = vector.load %arg18[%c0_25, %c0_26, %c0_27, %c0_28] : memref<1x18x18x8xf32, #tpu.memory_space<vmem>>, vector<1x18x1x8xf32>
    tpu.vector_store %arg18[%c0_25, %c0_26, %c0_27, %c0_28], %7 {strides = array<i32>} : memref<1x18x18x8xf32, #tpu.memory_space<vmem>>, vector<1x18x1x8xf32>,
    %c0_29 = arith.constant 0 : index
    %c0_30 = arith.constant 0 : index
    %c17_31 = arith.constant 17 : index
    %c0_32 = arith.constant 0 : index
    %11 = vector.load %arg18[%c0_29, %c0_30, %c17_31, %c0_32] : memref<1x18x18x8xf32, #tpu.memory_space<vmem>>, vector<1x18x1x8xf32>
    tpu.vector_store %arg18[%c0_29, %c0_30, %c17_31, %c0_32], %7 {strides = array<i32>} : memref<1x18x18x8xf32, #tpu.memory_space<vmem>>, vector<1x18x1x8xf32>,
    %cst_33 = arith.constant 0.000000e+00 : f32
    %12 = vector.broadcast %cst_33 : f32 to vector<1x1x18x8xf32>
    %cst_34 = arith.constant 0.000000e+00 : f32
    %13 = vector.broadcast %cst_34 : f32 to vector<1x18x1x8xf32>
    %c0_35 = arith.constant 0 : index
    %c0_36 = arith.constant 0 : index
    %c0_37 = arith.constant 0 : index
    %c0_38 = arith.constant 0 : index
    %14 = vector.load %arg19[%c0_35, %c0_36, %c0_37, %c0_38] : memref<1x18x18x8xf32, #tpu.memory_space<vmem>>, vector<1x1x18x8xf32>
    tpu.vector_store %arg19[%c0_35, %c0_36, %c0_37, %c0_38], %12 {strides = array<i32>} : memref<1x18x18x8xf32, #tpu.memory_space<vmem>>, vector<1x1x18x8xf32>,
    %c0_39 = arith.constant 0 : index
    %c17_40 = arith.constant 17 : index
    %c0_41 = arith.constant 0 : index
    %c0_42 = arith.constant 0 : index
    %15 = vector.load %arg19[%c0_39, %c17_40, %c0_41, %c0_42] : memref<1x18x18x8xf32, #tpu.memory_space<vmem>>, vector<1x1x18x8xf32>
    tpu.vector_store %arg19[%c0_39, %c17_40, %c0_41, %c0_42], %12 {strides = array<i32>} : memref<1x18x18x8xf32, #tpu.memory_space<vmem>>, vector<1x1x18x8xf32>,
    %c0_43 = arith.constant 0 : index
    %c0_44 = arith.constant 0 : index
    %c0_45 = arith.constant 0 : index
    %c0_46 = arith.constant 0 : index
    %16 = vector.load %arg19[%c0_43, %c0_44, %c0_45, %c0_46] : memref<1x18x18x8xf32, #tpu.memory_space<vmem>>, vector<1x18x1x8xf32>
    tpu.vector_store %arg19[%c0_43, %c0_44, %c0_45, %c0_46], %13 {strides = array<i32>} : memref<1x18x18x8xf32, #tpu.memory_space<vmem>>, vector<1x18x1x8xf32>,
    %c0_47 = arith.constant 0 : index
    %c0_48 = arith.constant 0 : index
    %c17_49 = arith.constant 17 : index
    %c0_50 = arith.constant 0 : index
    %17 = vector.load %arg19[%c0_47, %c0_48, %c17_49, %c0_50] : memref<1x18x18x8xf32, #tpu.memory_space<vmem>>, vector<1x18x1x8xf32>
    tpu.vector_store %arg19[%c0_47, %c0_48, %c17_49, %c0_50], %13 {strides = array<i32>} : memref<1x18x18x8xf32, #tpu.memory_space<vmem>>, vector<1x18x1x8xf32>,
    %c0_51 = arith.constant 0 : index
    %c0_52 = arith.constant 0 : index
    %c0_53 = arith.constant 0 : index
    %c0_54 = arith.constant 0 : index
    %18 = vector.load %arg1[%c0_51, %c0_52, %c0_53, %c0_54] : memref<1x16x16x4xf32, #tpu.memory_space<vmem>>, vector<1x16x16x4xf32>
    %c0_55 = arith.constant 0 : index
    %c0_56 = arith.constant 0 : index
    %19 = vector.load %arg4[%c0_55, %c0_56] : memref<1x4xf32, #tpu.memory_space<vmem>>, vector<1x4xf32>
    %20 = vector.shape_cast %19 : vector<1x4xf32> to vector<1x1x1x4xf32>
    %21 = vector.broadcast %20 : vector<1x1x1x4xf32> to vector<1x16x16x4xf32>
    %22 = arith.mulf %18, %21 : vector<1x16x16x4xf32>
    %c0_57 = arith.constant 0 : index
    %c0_58 = arith.constant 0 : index
    %23 = vector.load %arg5[%c0_57, %c0_58] : memref<1x4xf32, #tpu.memory_space<vmem>>, vector<1x4xf32>
    %24 = vector.shape_cast %23 : vector<1x4xf32> to vector<1x1x1x4xf32>
    %25 = vector.broadcast %24 : vector<1x1x1x4xf32> to vector<1x16x16x4xf32>
    %26 = arith.addf %22, %25 : vector<1x16x16x4xf32>
    %27 = arith.negf %26 : vector<1x16x16x4xf32>
    %28 = math.exp %27 : vector<1x16x16x4xf32>
    %cst_59 = arith.constant 1.000000e+00 : f32
    %29 = vector.broadcast %cst_59 : f32 to vector<1x16x16x4xf32>
    %30 = arith.addf %29, %28 : vector<1x16x16x4xf32>
    %31 = arith.divf %29, %30 : vector<1x16x16x4xf32>
    %32 = arith.mulf %26, %31 : vector<1x16x16x4xf32>
    %c0_60 = arith.constant 0 : index
    %c1 = arith.constant 1 : index
    %c1_61 = arith.constant 1 : index
    %c0_62 = arith.constant 0 : index
    %33 = vector.load %arg17[%c0_60, %c1, %c1_61, %c0_62] : memref<1x18x18x4xf32, #tpu.memory_space<vmem>>, vector<1x16x16x4xf32>
    tpu.vector_store %arg17[%c0_60, %c1, %c1_61, %c0_62], %32 {strides = array<i32>} : memref<1x18x18x4xf32, #tpu.memory_space<vmem>>, vector<1x16x16x4xf32>,
    %c0_63 = arith.constant 0 : index
    %c0_64 = arith.constant 0 : index
    %34 = vector.load %arg7[%c0_63, %c0_64] : memref<1x8xf32, #tpu.memory_space<vmem>>, vector<1x8xf32>
    %c0_65 = arith.constant 0 : index
    %c0_66 = arith.constant 0 : index
    %c0_67 = arith.constant 0 : index
    %c0_68 = arith.constant 0 : index
    %35 = vector.load %arg17[%c0_65, %c0_66, %c0_67, %c0_68] : memref<1x18x18x4xf32, #tpu.memory_space<vmem>>, vector<1x16x16x4xf32>
    %c0_69 = arith.constant 0 : index
    %c0_70 = arith.constant 0 : index
    %c1_71 = arith.constant 1 : index
    %c0_72 = arith.constant 0 : index
    %36 = vector.load %arg17[%c0_69, %c0_70, %c1_71, %c0_72] : memref<1x18x18x4xf32, #tpu.memory_space<vmem>>, vector<1x16x16x4xf32>
    %c0_73 = arith.constant 0 : index
    %c0_74 = arith.constant 0 : index
    %c2 = arith.constant 2 : index
    %c0_75 = arith.constant 0 : index
    %37 = vector.load %arg17[%c0_73, %c0_74, %c2, %c0_75] : memref<1x18x18x4xf32, #tpu.memory_space<vmem>>, vector<1x16x16x4xf32>
    %c0_76 = arith.constant 0 : index
    %c1_77 = arith.constant 1 : index
    %c0_78 = arith.constant 0 : index
    %c0_79 = arith.constant 0 : index
    %38 = vector.load %arg17[%c0_76, %c1_77, %c0_78, %c0_79] : memref<1x18x18x4xf32, #tpu.memory_space<vmem>>, vector<1x16x16x4xf32>
    %c0_80 = arith.constant 0 : index
    %c1_81 = arith.constant 1 : index
    %c1_82 = arith.constant 1 : index
    %c0_83 = arith.constant 0 : index
    %39 = vector.load %arg17[%c0_80, %c1_81, %c1_82, %c0_83] : memref<1x18x18x4xf32, #tpu.memory_space<vmem>>, vector<1x16x16x4xf32>
    %c0_84 = arith.constant 0 : index
    %c1_85 = arith.constant 1 : index
    %c2_86 = arith.constant 2 : index
    %c0_87 = arith.constant 0 : index
    %40 = vector.load %arg17[%c0_84, %c1_85, %c2_86, %c0_87] : memref<1x18x18x4xf32, #tpu.memory_space<vmem>>, vector<1x16x16x4xf32>
    %c0_88 = arith.constant 0 : index
    %c2_89 = arith.constant 2 : index
    %c0_90 = arith.constant 0 : index
    %c0_91 = arith.constant 0 : index
    %41 = vector.load %arg17[%c0_88, %c2_89, %c0_90, %c0_91] : memref<1x18x18x4xf32, #tpu.memory_space<vmem>>, vector<1x16x16x4xf32>
    %c0_92 = arith.constant 0 : index
    %c2_93 = arith.constant 2 : index
    %c1_94 = arith.constant 1 : index
    %c0_95 = arith.constant 0 : index
    %42 = vector.load %arg17[%c0_92, %c2_93, %c1_94, %c0_95] : memref<1x18x18x4xf32, #tpu.memory_space<vmem>>, vector<1x16x16x4xf32>
    %c0_96 = arith.constant 0 : index
    %c2_97 = arith.constant 2 : index
    %c2_98 = arith.constant 2 : index
    %c0_99 = arith.constant 0 : index
    %43 = vector.load %arg17[%c0_96, %c2_97, %c2_98, %c0_99] : memref<1x18x18x4xf32, #tpu.memory_space<vmem>>, vector<1x16x16x4xf32>
    %44 = tpu.concatenate %35, %36, %37, %38, %39, %40, %41, %42, %43 in 3 : vector<1x16x16x4xf32>, vector<1x16x16x4xf32>, vector<1x16x16x4xf32>, vector<1x16x16x4xf32>, vector<1x16x16x4xf32>, vector<1x16x16x4xf32>, vector<1x16x16x4xf32>, vector<1x16x16x4xf32>, vector<1x16x16x4xf32> -> vector<1x16x16x36xf32>
    %45 = vector.shape_cast %44 : vector<1x16x16x36xf32> to vector<256x36xf32>
    %46 = arith.truncf %45 : vector<256x36xf32> to vector<256x36xbf16>
    %c0_100 = arith.constant 0 : index
    %c0_101 = arith.constant 0 : index
    %c0_102 = arith.constant 0 : index
    %47 = vector.load %arg6[%c0_100, %c0_101, %c0_102] : memref<9x4x8xbf16, #tpu.memory_space<vmem>>, vector<9x4x8xbf16>
    %48 = vector.shape_cast %47 : vector<9x4x8xbf16> to vector<36x8xbf16>
    %cst_103 = arith.constant dense<0.000000e+00> : vector<256x8xf32>
    %49 = tpu.matmul %46, %48, %cst_103 {dimension_numbers = #tpu.dot_dimension_numbers<[1], [0], [0], [1], [0, 0, 1, 1], [], []>} : vector<256x36xbf16>, vector<36x8xbf16>, vector<256x8xf32> -> vector<256x8xf32>
    %50 = vector.broadcast %34 : vector<1x8xf32> to vector<256x8xf32>
    %51 = arith.addf %49, %50 : vector<256x8xf32>
    %52 = vector.shape_cast %51 : vector<256x8xf32> to vector<1x16x16x8xf32>
    %c0_104 = arith.constant 0 : index
    %c0_105 = arith.constant 0 : index
    %c0_106 = arith.constant 0 : index
    %53 = vector.load %arg2[%c0_104, %c0_105, %c0_106] : memref<1x1x8xf32, #tpu.memory_space<vmem>>, vector<1x1x8xf32>
    %cst_107 = arith.constant 1.000000e+00 : f32
    %54 = vector.broadcast %cst_107 : f32 to vector<1x1x8xf32>
    %55 = arith.addf %54, %53 : vector<1x1x8xf32>
    %56 = vector.shape_cast %55 : vector<1x1x8xf32> to vector<1x1x1x8xf32>
    %57 = vector.broadcast %56 : vector<1x1x1x8xf32> to vector<1x16x16x8xf32>
    %58 = arith.mulf %52, %57 : vector<1x16x16x8xf32>
    %c0_108 = arith.constant 0 : index
    %c0_109 = arith.constant 0 : index
    %c0_110 = arith.constant 0 : index
    %59 = vector.load %arg3[%c0_108, %c0_109, %c0_110] : memref<1x1x8xf32, #tpu.memory_space<vmem>>, vector<1x1x8xf32>
    %60 = vector.shape_cast %59 : vector<1x1x8xf32> to vector<1x1x1x8xf32>
    %61 = vector.broadcast %60 : vector<1x1x1x8xf32> to vector<1x16x16x8xf32>
    %62 = arith.addf %58, %61 : vector<1x16x16x8xf32>
    %c0_111 = arith.constant 0 : index
    %c0_112 = arith.constant 0 : index
    %63 = vector.load %arg8[%c0_111, %c0_112] : memref<1x8xf32, #tpu.memory_space<vmem>>, vector<1x8xf32>
    %64 = vector.shape_cast %63 : vector<1x8xf32> to vector<1x1x1x8xf32>
    %65 = vector.broadcast %64 : vector<1x1x1x8xf32> to vector<1x16x16x8xf32>
    %66 = arith.mulf %62, %65 : vector<1x16x16x8xf32>
    %c0_113 = arith.constant 0 : index
    %c0_114 = arith.constant 0 : index
    %67 = vector.load %arg9[%c0_113, %c0_114] : memref<1x8xf32, #tpu.memory_space<vmem>>, vector<1x8xf32>
    %68 = vector.shape_cast %67 : vector<1x8xf32> to vector<1x1x1x8xf32>
    %69 = vector.broadcast %68 : vector<1x1x1x8xf32> to vector<1x16x16x8xf32>
    %70 = arith.addf %66, %69 : vector<1x16x16x8xf32>
    %71 = arith.negf %70 : vector<1x16x16x8xf32>
    %72 = math.exp %71 : vector<1x16x16x8xf32>
    %cst_115 = arith.constant 1.000000e+00 : f32
    %73 = vector.broadcast %cst_115 : f32 to vector<1x16x16x8xf32>
    %74 = arith.addf %73, %72 : vector<1x16x16x8xf32>
    %75 = arith.divf %73, %74 : vector<1x16x16x8xf32>
    %76 = arith.mulf %70, %75 : vector<1x16x16x8xf32>
    %c0_116 = arith.constant 0 : index
    %c1_117 = arith.constant 1 : index
    %c1_118 = arith.constant 1 : index
    %c0_119 = arith.constant 0 : index
    %77 = vector.load %arg18[%c0_116, %c1_117, %c1_118, %c0_119] : memref<1x18x18x8xf32, #tpu.memory_space<vmem>>, vector<1x16x16x8xf32>
    tpu.vector_store %arg18[%c0_116, %c1_117, %c1_118, %c0_119], %76 {strides = array<i32>} : memref<1x18x18x8xf32, #tpu.memory_space<vmem>>, vector<1x16x16x8xf32>,
    %c0_120 = arith.constant 0 : index
    %c0_121 = arith.constant 0 : index
    %78 = vector.load %arg11[%c0_120, %c0_121] : memref<1x8xf32, #tpu.memory_space<vmem>>, vector<1x8xf32>
    %c0_122 = arith.constant 0 : index
    %c0_123 = arith.constant 0 : index
    %c0_124 = arith.constant 0 : index
    %c0_125 = arith.constant 0 : index
    %79 = vector.load %arg18[%c0_122, %c0_123, %c0_124, %c0_125] : memref<1x18x18x8xf32, #tpu.memory_space<vmem>>, vector<1x16x16x8xf32>
    %c0_126 = arith.constant 0 : index
    %c0_127 = arith.constant 0 : index
    %c1_128 = arith.constant 1 : index
    %c0_129 = arith.constant 0 : index
    %80 = vector.load %arg18[%c0_126, %c0_127, %c1_128, %c0_129] : memref<1x18x18x8xf32, #tpu.memory_space<vmem>>, vector<1x16x16x8xf32>
    %c0_130 = arith.constant 0 : index
    %c0_131 = arith.constant 0 : index
    %c2_132 = arith.constant 2 : index
    %c0_133 = arith.constant 0 : index
    %81 = vector.load %arg18[%c0_130, %c0_131, %c2_132, %c0_133] : memref<1x18x18x8xf32, #tpu.memory_space<vmem>>, vector<1x16x16x8xf32>
    %c0_134 = arith.constant 0 : index
    %c1_135 = arith.constant 1 : index
    %c0_136 = arith.constant 0 : index
    %c0_137 = arith.constant 0 : index
    %82 = vector.load %arg18[%c0_134, %c1_135, %c0_136, %c0_137] : memref<1x18x18x8xf32, #tpu.memory_space<vmem>>, vector<1x16x16x8xf32>
    %c0_138 = arith.constant 0 : index
    %c1_139 = arith.constant 1 : index
    %c1_140 = arith.constant 1 : index
    %c0_141 = arith.constant 0 : index
    %83 = vector.load %arg18[%c0_138, %c1_139, %c1_140, %c0_141] : memref<1x18x18x8xf32, #tpu.memory_space<vmem>>, vector<1x16x16x8xf32>
    %c0_142 = arith.constant 0 : index
    %c1_143 = arith.constant 1 : index
    %c2_144 = arith.constant 2 : index
    %c0_145 = arith.constant 0 : index
    %84 = vector.load %arg18[%c0_142, %c1_143, %c2_144, %c0_145] : memref<1x18x18x8xf32, #tpu.memory_space<vmem>>, vector<1x16x16x8xf32>
    %c0_146 = arith.constant 0 : index
    %c2_147 = arith.constant 2 : index
    %c0_148 = arith.constant 0 : index
    %c0_149 = arith.constant 0 : index
    %85 = vector.load %arg18[%c0_146, %c2_147, %c0_148, %c0_149] : memref<1x18x18x8xf32, #tpu.memory_space<vmem>>, vector<1x16x16x8xf32>
    %c0_150 = arith.constant 0 : index
    %c2_151 = arith.constant 2 : index
    %c1_152 = arith.constant 1 : index
    %c0_153 = arith.constant 0 : index
    %86 = vector.load %arg18[%c0_150, %c2_151, %c1_152, %c0_153] : memref<1x18x18x8xf32, #tpu.memory_space<vmem>>, vector<1x16x16x8xf32>
    %c0_154 = arith.constant 0 : index
    %c2_155 = arith.constant 2 : index
    %c2_156 = arith.constant 2 : index
    %c0_157 = arith.constant 0 : index
    %87 = vector.load %arg18[%c0_154, %c2_155, %c2_156, %c0_157] : memref<1x18x18x8xf32, #tpu.memory_space<vmem>>, vector<1x16x16x8xf32>
    %88 = tpu.concatenate %79, %80, %81, %82, %83, %84, %85, %86, %87 in 3 : vector<1x16x16x8xf32>, vector<1x16x16x8xf32>, vector<1x16x16x8xf32>, vector<1x16x16x8xf32>, vector<1x16x16x8xf32>, vector<1x16x16x8xf32>, vector<1x16x16x8xf32>, vector<1x16x16x8xf32>, vector<1x16x16x8xf32> -> vector<1x16x16x72xf32>
    %89 = vector.shape_cast %88 : vector<1x16x16x72xf32> to vector<256x72xf32>
    %90 = arith.truncf %89 : vector<256x72xf32> to vector<256x72xbf16>
    %c0_158 = arith.constant 0 : index
    %c0_159 = arith.constant 0 : index
    %c0_160 = arith.constant 0 : index
    %91 = vector.load %arg10[%c0_158, %c0_159, %c0_160] : memref<9x8x8xbf16, #tpu.memory_space<vmem>>, vector<9x8x8xbf16>
    %92 = vector.shape_cast %91 : vector<9x8x8xbf16> to vector<72x8xbf16>
    %cst_161 = arith.constant dense<0.000000e+00> : vector<256x8xf32>
    %93 = tpu.matmul %90, %92, %cst_161 {dimension_numbers = #tpu.dot_dimension_numbers<[1], [0], [0], [1], [0, 0, 1, 1], [], []>} : vector<256x72xbf16>, vector<72x8xbf16>, vector<256x8xf32> -> vector<256x8xf32>
    %94 = vector.broadcast %78 : vector<1x8xf32> to vector<256x8xf32>
    %95 = arith.addf %93, %94 : vector<256x8xf32>
    %96 = vector.shape_cast %95 : vector<256x8xf32> to vector<1x16x16x8xf32>
    %97 = vector.shape_cast %18 : vector<1x16x16x4xf32> to vector<256x4xf32>
    %98 = arith.truncf %97 : vector<256x4xf32> to vector<256x4xbf16>
    %c0_162 = arith.constant 0 : index
    %c0_163 = arith.constant 0 : index
    %99 = vector.load %arg12[%c0_162, %c0_163] : memref<4x8xbf16, #tpu.memory_space<vmem>>, vector<4x8xbf16>
    %cst_164 = arith.constant dense<0.000000e+00> : vector<256x8xf32>
    %100 = tpu.matmul %98, %99, %cst_164 {dimension_numbers = #tpu.dot_dimension_numbers<[1], [0], [0], [1], [0, 0, 1, 1], [], []>} : vector<256x4xbf16>, vector<4x8xbf16>, vector<256x8xf32> -> vector<256x8xf32>
    %101 = vector.shape_cast %100 : vector<256x8xf32> to vector<1x16x16x8xf32>
    %102 = arith.addf %96, %101 : vector<1x16x16x8xf32>
    %c0_165 = arith.constant 0 : index
    %c0_166 = arith.constant 0 : index
    %103 = vector.load %arg13[%c0_165, %c0_166] : memref<1x8xf32, #tpu.memory_space<vmem>>, vector<1x8xf32>
    %104 = vector.shape_cast %103 : vector<1x8xf32> to vector<1x1x1x8xf32>
    %105 = vector.broadcast %104 : vector<1x1x1x8xf32> to vector<1x16x16x8xf32>
    %106 = arith.addf %102, %105 : vector<1x16x16x8xf32>
    %c0_167 = arith.constant 0 : index
    %c1_168 = arith.constant 1 : index
    %c1_169 = arith.constant 1 : index
    %c0_170 = arith.constant 0 : index
    %107 = vector.load %arg19[%c0_167, %c1_168, %c1_169, %c0_170] : memref<1x18x18x8xf32, #tpu.memory_space<vmem>>, vector<1x16x16x8xf32>
    tpu.vector_store %arg19[%c0_167, %c1_168, %c1_169, %c0_170], %106 {strides = array<i32>} : memref<1x18x18x8xf32, #tpu.memory_space<vmem>>, vector<1x16x16x8xf32>,
    %c0_171 = arith.constant 0 : index
    %c0_172 = arith.constant 0 : index
    %108 = vector.load %arg15[%c0_171, %c0_172] : memref<1x8xf32, #tpu.memory_space<vmem>>, vector<1x8xf32>
    %c0_173 = arith.constant 0 : index
    %c0_174 = arith.constant 0 : index
    %c0_175 = arith.constant 0 : index
    %c0_176 = arith.constant 0 : index
    %109 = tpu.strided_load %arg19[%c0_173, %c0_174, %c0_175, %c0_176] {strides = array<i32: 1, 2, 2, 1>} : memref<1x18x18x8xf32, #tpu.memory_space<vmem>>, vector<1x8x8x8xf32>
    %c0_177 = arith.constant 0 : index
    %c0_178 = arith.constant 0 : index
    %c1_179 = arith.constant 1 : index
    %c0_180 = arith.constant 0 : index
    %110 = tpu.strided_load %arg19[%c0_177, %c0_178, %c1_179, %c0_180] {strides = array<i32: 1, 2, 2, 1>} : memref<1x18x18x8xf32, #tpu.memory_space<vmem>>, vector<1x8x8x8xf32>
    %c0_181 = arith.constant 0 : index
    %c0_182 = arith.constant 0 : index
    %c2_183 = arith.constant 2 : index
    %c0_184 = arith.constant 0 : index
    %111 = tpu.strided_load %arg19[%c0_181, %c0_182, %c2_183, %c0_184] {strides = array<i32: 1, 2, 2, 1>} : memref<1x18x18x8xf32, #tpu.memory_space<vmem>>, vector<1x8x8x8xf32>
    %c0_185 = arith.constant 0 : index
    %c1_186 = arith.constant 1 : index
    %c0_187 = arith.constant 0 : index
    %c0_188 = arith.constant 0 : index
    %112 = tpu.strided_load %arg19[%c0_185, %c1_186, %c0_187, %c0_188] {strides = array<i32: 1, 2, 2, 1>} : memref<1x18x18x8xf32, #tpu.memory_space<vmem>>, vector<1x8x8x8xf32>
    %c0_189 = arith.constant 0 : index
    %c1_190 = arith.constant 1 : index
    %c1_191 = arith.constant 1 : index
    %c0_192 = arith.constant 0 : index
    %113 = tpu.strided_load %arg19[%c0_189, %c1_190, %c1_191, %c0_192] {strides = array<i32: 1, 2, 2, 1>} : memref<1x18x18x8xf32, #tpu.memory_space<vmem>>, vector<1x8x8x8xf32>
    %c0_193 = arith.constant 0 : index
    %c1_194 = arith.constant 1 : index
    %c2_195 = arith.constant 2 : index
    %c0_196 = arith.constant 0 : index
    %114 = tpu.strided_load %arg19[%c0_193, %c1_194, %c2_195, %c0_196] {strides = array<i32: 1, 2, 2, 1>} : memref<1x18x18x8xf32, #tpu.memory_space<vmem>>, vector<1x8x8x8xf32>
    %c0_197 = arith.constant 0 : index
    %c2_198 = arith.constant 2 : index
    %c0_199 = arith.constant 0 : index
    %c0_200 = arith.constant 0 : index
    %115 = tpu.strided_load %arg19[%c0_197, %c2_198, %c0_199, %c0_200] {strides = array<i32: 1, 2, 2, 1>} : memref<1x18x18x8xf32, #tpu.memory_space<vmem>>, vector<1x8x8x8xf32>
    %c0_201 = arith.constant 0 : index
    %c2_202 = arith.constant 2 : index
    %c1_203 = arith.constant 1 : index
    %c0_204 = arith.constant 0 : index
    %116 = tpu.strided_load %arg19[%c0_201, %c2_202, %c1_203, %c0_204] {strides = array<i32: 1, 2, 2, 1>} : memref<1x18x18x8xf32, #tpu.memory_space<vmem>>, vector<1x8x8x8xf32>
    %c0_205 = arith.constant 0 : index
    %c2_206 = arith.constant 2 : index
    %c2_207 = arith.constant 2 : index
    %c0_208 = arith.constant 0 : index
    %117 = tpu.strided_load %arg19[%c0_205, %c2_206, %c2_207, %c0_208] {strides = array<i32: 1, 2, 2, 1>} : memref<1x18x18x8xf32, #tpu.memory_space<vmem>>, vector<1x8x8x8xf32>
    %118 = tpu.concatenate %109, %110, %111, %112, %113, %114, %115, %116, %117 in 3 : vector<1x8x8x8xf32>, vector<1x8x8x8xf32>, vector<1x8x8x8xf32>, vector<1x8x8x8xf32>, vector<1x8x8x8xf32>, vector<1x8x8x8xf32>, vector<1x8x8x8xf32>, vector<1x8x8x8xf32>, vector<1x8x8x8xf32> -> vector<1x8x8x72xf32>
    %119 = vector.shape_cast %118 : vector<1x8x8x72xf32> to vector<64x72xf32>
    %120 = arith.truncf %119 : vector<64x72xf32> to vector<64x72xbf16>
    %c0_209 = arith.constant 0 : index
    %c0_210 = arith.constant 0 : index
    %c0_211 = arith.constant 0 : index
    %121 = vector.load %arg14[%c0_209, %c0_210, %c0_211] : memref<9x8x8xbf16, #tpu.memory_space<vmem>>, vector<9x8x8xbf16>
    %122 = vector.shape_cast %121 : vector<9x8x8xbf16> to vector<72x8xbf16>
    %cst_212 = arith.constant dense<0.000000e+00> : vector<64x8xf32>
    %123 = tpu.matmul %120, %122, %cst_212 {dimension_numbers = #tpu.dot_dimension_numbers<[1], [0], [0], [1], [0, 0, 1, 1], [], []>} : vector<64x72xbf16>, vector<72x8xbf16>, vector<64x8xf32> -> vector<64x8xf32>
    %124 = vector.broadcast %108 : vector<1x8xf32> to vector<64x8xf32>
    %125 = arith.addf %123, %124 : vector<64x8xf32>
    %126 = vector.shape_cast %125 : vector<64x8xf32> to vector<1x8x8x8xf32>
    %c0_213 = arith.constant 0 : index
    %c0_214 = arith.constant 0 : index
    %c0_215 = arith.constant 0 : index
    %c0_216 = arith.constant 0 : index
    %127 = vector.load %arg16[%c0_213, %c0_214, %c0_215, %c0_216] : memref<1x8x8x8xf32, #tpu.memory_space<vmem>>, vector<1x8x8x8xf32>
    tpu.vector_store %arg16[%c0_213, %c0_214, %c0_215, %c0_216], %126 {strides = array<i32>} : memref<1x8x8x8xf32, #tpu.memory_space<vmem>>, vector<1x8x8x8xf32>,
    return
  }
  func.func @transform_0(%arg0: i32) -> (i32, i32, i32, i32) {
    %c0_i32 = arith.constant 0 : i32
    %c0_i32_0 = arith.constant 0 : i32
    %c0_i32_1 = arith.constant 0 : i32
    %c0_i32_2 = arith.constant 0 : i32
    return %arg0, %c0_i32, %c0_i32_0, %c0_i32_1 : i32, i32, i32, i32
  }
  func.func @transform_1(%arg0: i32) -> (i32, i32, i32) {
    %c0_i32 = arith.constant 0 : i32
    %c0_i32_0 = arith.constant 0 : i32
    %c0_i32_1 = arith.constant 0 : i32
    return %arg0, %c0_i32, %c0_i32_0 : i32, i32, i32
  }
  func.func @transform_2(%arg0: i32) -> (i32, i32, i32) {
    %c0_i32 = arith.constant 0 : i32
    %c0_i32_0 = arith.constant 0 : i32
    %c0_i32_1 = arith.constant 0 : i32
    return %arg0, %c0_i32, %c0_i32_0 : i32, i32, i32
  }
  func.func @transform_3(%arg0: i32) -> (i32, i32) {
    %c0_i32 = arith.constant 0 : i32
    %c0_i32_0 = arith.constant 0 : i32
    %c0_i32_1 = arith.constant 0 : i32
    return %c0_i32, %c0_i32_0 : i32, i32
  }
  func.func @transform_4(%arg0: i32) -> (i32, i32) {
    %c0_i32 = arith.constant 0 : i32
    %c0_i32_0 = arith.constant 0 : i32
    %c0_i32_1 = arith.constant 0 : i32
    return %c0_i32, %c0_i32_0 : i32, i32
  }
  func.func @transform_5(%arg0: i32) -> (i32, i32, i32) {
    %c0_i32 = arith.constant 0 : i32
    %c0_i32_0 = arith.constant 0 : i32
    %c0_i32_1 = arith.constant 0 : i32
    %c0_i32_2 = arith.constant 0 : i32
    return %c0_i32, %c0_i32_0, %c0_i32_1 : i32, i32, i32
  }
  func.func @transform_6(%arg0: i32) -> (i32, i32) {
    %c0_i32 = arith.constant 0 : i32
    %c0_i32_0 = arith.constant 0 : i32
    %c0_i32_1 = arith.constant 0 : i32
    return %c0_i32, %c0_i32_0 : i32, i32
  }
  func.func @transform_7(%arg0: i32) -> (i32, i32) {
    %c0_i32 = arith.constant 0 : i32
    %c0_i32_0 = arith.constant 0 : i32
    %c0_i32_1 = arith.constant 0 : i32
    return %c0_i32, %c0_i32_0 : i32, i32
  }
  func.func @transform_8(%arg0: i32) -> (i32, i32) {
    %c0_i32 = arith.constant 0 : i32
    %c0_i32_0 = arith.constant 0 : i32
    %c0_i32_1 = arith.constant 0 : i32
    return %c0_i32, %c0_i32_0 : i32, i32
  }
  func.func @transform_9(%arg0: i32) -> (i32, i32, i32) {
    %c0_i32 = arith.constant 0 : i32
    %c0_i32_0 = arith.constant 0 : i32
    %c0_i32_1 = arith.constant 0 : i32
    %c0_i32_2 = arith.constant 0 : i32
    return %c0_i32, %c0_i32_0, %c0_i32_1 : i32, i32, i32
  }
  func.func @transform_10(%arg0: i32) -> (i32, i32) {
    %c0_i32 = arith.constant 0 : i32
    %c0_i32_0 = arith.constant 0 : i32
    %c0_i32_1 = arith.constant 0 : i32
    return %c0_i32, %c0_i32_0 : i32, i32
  }
  func.func @transform_11(%arg0: i32) -> (i32, i32) {
    %c0_i32 = arith.constant 0 : i32
    %c0_i32_0 = arith.constant 0 : i32
    %c0_i32_1 = arith.constant 0 : i32
    return %c0_i32, %c0_i32_0 : i32, i32
  }
  func.func @transform_12(%arg0: i32) -> (i32, i32) {
    %c0_i32 = arith.constant 0 : i32
    %c0_i32_0 = arith.constant 0 : i32
    %c0_i32_1 = arith.constant 0 : i32
    return %c0_i32, %c0_i32_0 : i32, i32
  }
  func.func @transform_13(%arg0: i32) -> (i32, i32, i32) {
    %c0_i32 = arith.constant 0 : i32
    %c0_i32_0 = arith.constant 0 : i32
    %c0_i32_1 = arith.constant 0 : i32
    %c0_i32_2 = arith.constant 0 : i32
    return %c0_i32, %c0_i32_0, %c0_i32_1 : i32, i32, i32
  }
  func.func @transform_14(%arg0: i32) -> (i32, i32) {
    %c0_i32 = arith.constant 0 : i32
    %c0_i32_0 = arith.constant 0 : i32
    %c0_i32_1 = arith.constant 0 : i32
    return %c0_i32, %c0_i32_0 : i32, i32
  }
  func.func @transform_15(%arg0: i32) -> (i32, i32, i32, i32) {
    %c0_i32 = arith.constant 0 : i32
    %c0_i32_0 = arith.constant 0 : i32
    %c0_i32_1 = arith.constant 0 : i32
    %c0_i32_2 = arith.constant 0 : i32
    return %arg0, %c0_i32, %c0_i32_0, %c0_i32_1 : i32, i32, i32, i32
  }
}

</mosaic_0001>

<llo_original>
// kernel: tpu_custom_call.1
$region0: #{tpu_custom_call.1}
  #allocation0 [shape = 'u32[]', space=smem, size = 0x4, offset = 0x4, fixed_abs, tag = 'smem constant byte address 0x4 - core index']
  #allocation1 [shape = 'u32[72,128]{1,0:T(1,128)}', space=vmem, size = 0x9000, scoped, tag = 'internal scratch']
  #allocation2 [shape = 'f32[1,18,18,4]{3,2,1,0:T(8,128)}', space=vmem, size = 0x36000, scoped, tag = 'scratch operand']
  #allocation3 [shape = 'f32[1,18,18,8]{3,2,1,0:T(8,128)}', space=vmem, size = 0x36000, scoped, tag = 'scratch operand']
  #allocation4 [shape = 'f32[1,18,18,8]{3,2,1,0:T(8,128)}', space=vmem, size = 0x36000, scoped, tag = 'scratch operand']
  %s0 = inlined_call_operand.vmem [shape: f32[2,16,16,4], index: 0, kind: input, shape index: {}]
  %s1 = inlined_call_operand.vmem [shape: f32[2,1,8], index: 1, kind: input, shape index: {}]
  %s2 = inlined_call_operand.vmem [shape: f32[2,1,8], index: 2, kind: input, shape index: {}]
  %s3 = inlined_call_operand.vmem [shape: f32[1,4], index: 3, kind: input, shape index: {}]
  %s4 = inlined_call_operand.vmem [shape: f32[1,4], index: 4, kind: input, shape index: {}]
  %s5 = inlined_call_operand.vmem [shape: bf16[9,4,8], index: 5, kind: input, shape index: {}]
  %s6 = inlined_call_operand.vmem [shape: f32[1,8], index: 6, kind: input, shape index: {}]
  %s7 = inlined_call_operand.vmem [shape: f32[1,8], index: 7, kind: input, shape index: {}]
  %s8 = inlined_call_operand.vmem [shape: f32[1,8], index: 8, kind: input, shape index: {}]
  %s9 = inlined_call_operand.vmem [shape: bf16[9,8,8], index: 9, kind: input, shape index: {}]
  %s10 = inlined_call_operand.vmem [shape: f32[1,8], index: 10, kind: input, shape index: {}]
  %s11 = inlined_call_operand.vmem [shape: bf16[4,8], index: 11, kind: input, shape index: {}]
  %s12 = inlined_call_operand.vmem [shape: f32[1,8], index: 12, kind: input, shape index: {}]
  %s13 = inlined_call_operand.vmem [shape: bf16[9,8,8], index: 13, kind: input, shape index: {}]
  %s14 = inlined_call_operand.vmem [shape: f32[1,8], index: 14, kind: input, shape index: {}]
  %s15 = inlined_call_operand.hbm [shape: f32[2,8,8,8], index: 15, kind: output, shape index: {}]
  %s16 = sld [smem:[#allocation0]]
  $region93: #{tpu_custom_call.1} parent=0
    _
  %s18 = ssub.s32 1, %s16
  %s19 = scalar_select 0, %s18, %s16
  $region1: #{tpu_custom_call.1} parent=0
    #allocation5 [shape = 'u8[65536]{0}', space=vmem, size = 0x10000, scoped, tag = 'output window, operand 0']
    #allocation6 [shape = 's32[2]{0}', space=sflag, size = 0x8, scoped, tag = 'scoped memory for tpu_custom_call.1']
    %20 = vsyncpa [#allocation6], 0
    %s21 = scalar_lea.sflag [#allocation6], 1
    %22 = vsyncpa %s21, 0
    loop: start=0, step=1, limit=4
    $region2: #{tpu_custom_call.1} parent=1 // loop_pre_header
      _
    $region3: #{tpu_custom_call.1} parent=1 // loop_header
      %s24 = sphi 0, %s28
      %p25 = scmp.ge.s32.totalorder %s24, 4
      %s34 = sphi 0, %s36
      %s37 = sphi 0, %s34
      %s38 = sphi 0, %s37
      %s54 = sphi 0, %s38
      %s60 = sphi 0, %s62
      %s63 = sphi 0, %s60
      %s64 = sphi 0, %s63
      %s80 = sphi 0, %s64
      %s86 = sphi 0, %s88
      %s89 = sphi 0, %s86
      %s90 = sphi 0, %s89
      %s106 = sphi 0, %s90
      %s110 = sphi 0, %s110
      %s112 = sphi 0, %s110
      %s113 = sphi 0, %s112
      %s127 = sphi 0, %s113
      %s131 = sphi 0, %s131
      %s133 = sphi 0, %s131
      %s134 = sphi 0, %s133
      %s148 = sphi 0, %s134
      %s152 = sphi 0, %s152
      %s154 = sphi 0, %s152
      %s155 = sphi 0, %s154
      %s169 = sphi 0, %s155
      %s173 = sphi 0, %s173
      %s175 = sphi 0, %s173
      %s176 = sphi 0, %s175
      %s190 = sphi 0, %s176
      %s194 = sphi 0, %s194
      %s196 = sphi 0, %s194
      %s197 = sphi 0, %s196
      %s211 = sphi 0, %s197
      %s215 = sphi 0, %s215
      %s217 = sphi 0, %s215
      %s218 = sphi 0, %s217
      %s232 = sphi 0, %s218
      %s236 = sphi 0, %s236
      %s238 = sphi 0, %s236
      %s239 = sphi 0, %s238
      %s253 = sphi 0, %s239
      %s257 = sphi 0, %s257
      %s259 = sphi 0, %s257
      %s260 = sphi 0, %s259
      %s274 = sphi 0, %s260
      %s278 = sphi 0, %s278
      %s280 = sphi 0, %s278
      %s281 = sphi 0, %s280
      %s295 = sphi 0, %s281
      %s299 = sphi 0, %s299
      %s301 = sphi 0, %s299
      %s302 = sphi 0, %s301
      %s316 = sphi 0, %s302
      %s320 = sphi 0, %s320
      %s322 = sphi 0, %s320
      %s323 = sphi 0, %s322
      %s337 = sphi 0, %s323
      %s341 = sphi 0, %s341
      %s343 = sphi 0, %s341
      %s344 = sphi 0, %s343
      %s358 = sphi 0, %s344
      %s364 = sphi 0, %s366
      %s367 = sphi 0, %s364
      %s368 = sphi 0, %s367
      %s384 = sphi 0, %s368
    $region4: #{tpu_custom_call.1} parent=1 // loop_header_branch
      %27 = sbr.rel (%p25) target = $region8
    $region5: #{tpu_custom_call.1} parent=1 // loop_body
      %s29 = ssub.s32 %s24, 1
      %s30 = ssub.s32 %s24, 2
      %s31 = sadd.s32 %s24, 1
      %s32 = ssub.s32 %s24, %s31
      %p33 = scmp.eq.s32.totalorder %s32, 0
      %s35 = sadd.s32 %s34, 1
      %s36 = scalar_select %p33, %s34, %s35
      %p39 = pneg %p33
      %p40 = scmp.eq.s32.totalorder %s24, 1
      %p41 = por %p39, %p40
      %p42 = scmp.ne.s32.totalorder %s34, %s37
      %p43 = scmp.eq.s32.totalorder %s24, 0
      %p44 = por %p42, %p43
      %p45 = scmp.ne.s32.totalorder %s34, %s37
      %p46 = scmp.eq.s32.totalorder %s29, 1
      %p47 = por %p45, %p46
      %p48 = scmp.ne.s32.totalorder %s37, %s38
      %p49 = scmp.eq.s32.totalorder %s29, 0
      %p50 = por %p48, %p49
      %p51 = scmp.ne.s32.totalorder %s37, %s38
      %p52 = scmp.eq.s32.totalorder %s30, 1
      %p53 = por %p51, %p52
      %p55 = scmp.ne.s32.totalorder %s38, %s54
      %p56 = scmp.eq.s32.totalorder %s30, 0
      %p57 = por %p55, %p56
      %s58 = ssub.s32 %s24, %s31
      %p59 = scmp.eq.s32.totalorder %s58, 0
      %s61 = sadd.s32 %s60, 1
      %s62 = scalar_select %p59, %s60, %s61
      %p65 = pneg %p59
      %p66 = scmp.eq.s32.totalorder %s24, 1
      %p67 = por %p65, %p66
      %p68 = scmp.ne.s32.totalorder %s60, %s63
      %p69 = scmp.eq.s32.totalorder %s24, 0
      %p70 = por %p68, %p69
      %p71 = scmp.ne.s32.totalorder %s60, %s63
      %p72 = scmp.eq.s32.totalorder %s29, 1
      %p73 = por %p71, %p72
      %p74 = scmp.ne.s32.totalorder %s63, %s64
      %p75 = scmp.eq.s32.totalorder %s29, 0
      %p76 = por %p74, %p75
      %p77 = scmp.ne.s32.totalorder %s63, %s64
      %p78 = scmp.eq.s32.totalorder %s30, 1
      %p79 = por %p77, %p78
      %p81 = scmp.ne.s32.totalorder %s64, %s80
      %p82 = scmp.eq.s32.totalorder %s30, 0
      %p83 = por %p81, %p82
      %s84 = ssub.s32 %s24, %s31
      %p85 = scmp.eq.s32.totalorder %s84, 0
      %s87 = sadd.s32 %s86, 1
      %s88 = scalar_select %p85, %s86, %s87
      %p91 = pneg %p85
      %p92 = scmp.eq.s32.totalorder %s24, 1
      %p93 = por %p91, %p92
      %p94 = scmp.ne.s32.totalorder %s86, %s89
      %p95 = scmp.eq.s32.totalorder %s24, 0
      %p96 = por %p94, %p95
      %p97 = scmp.ne.s32.totalorder %s86, %s89
      %p98 = scmp.eq.s32.totalorder %s29, 1
      %p99 = por %p97, %p98
      %p100 = scmp.ne.s32.totalorder %s89, %s90
      %p101 = scmp.eq.s32.totalorder %s29, 0
      %p102 = por %p100, %p101
      %p103 = scmp.ne.s32.totalorder %s89, %s90
      %p104 = scmp.eq.s32.totalorder %s30, 1
      %p105 = por %p103, %p104
      %p107 = scmp.ne.s32.totalorder %s90, %s106
      %p108 = scmp.eq.s32.totalorder %s30, 0
      %p109 = por %p107, %p108
      %s111 = sadd.s32 %s110, 1
      %p114 = scmp.eq.s32.totalorder %s24, 1
      %p115 = scmp.ne.s32.totalorder %s110, %s112
      %p116 = scmp.eq.s32.totalorder %s24, 0
      %p117 = por %p115, %p116
      %p118 = scmp.ne.s32.totalorder %s110, %s112
      %p119 = scmp.eq.s32.totalorder %s29, 1
      %p120 = por %p118, %p119
      %p121 = scmp.ne.s32.totalorder %s112, %s113
      %p122 = scmp.eq.s32.totalorder %s29, 0
      %p123 = por %p121, %p122
      %p124 = scmp.ne.s32.totalorder %s112, %s113
      %p125 = scmp.eq.s32.totalorder %s30, 1
      %p126 = por %p124, %p125
      %p128 = scmp.ne.s32.totalorder %s113, %s127
      %p129 = scmp.eq.s32.totalorder %s30, 0
      %p130 = por %p128, %p129
      %s132 = sadd.s32 %s131, 1
      %p135 = scmp.eq.s32.totalorder %s24, 1
      %p136 = scmp.ne.s32.totalorder %s131, %s133
      %p137 = scmp.eq.s32.totalorder %s24, 0
      %p138 = por %p136, %p137
      %p139 = scmp.ne.s32.totalorder %s131, %s133
      %p140 = scmp.eq.s32.totalorder %s29, 1
      %p141 = por %p139, %p140
      %p142 = scmp.ne.s32.totalorder %s133, %s134
      %p143 = scmp.eq.s32.totalorder %s29, 0
      %p144 = por %p142, %p143
      %p145 = scmp.ne.s32.totalorder %s133, %s134
      %p146 = scmp.eq.s32.totalorder %s30, 1
      %p147 = por %p145, %p146
      %p149 = scmp.ne.s32.totalorder %s134, %s148
      %p150 = scmp.eq.s32.totalorder %s30, 0
      %p151 = por %p149, %p150
      %s153 = sadd.s32 %s152, 1
      %p156 = scmp.eq.s32.totalorder %s24, 1
      %p157 = scmp.ne.s32.totalorder %s152, %s154
      %p158 = scmp.eq.s32.totalorder %s24, 0
      %p159 = por %p157, %p158
      %p160 = scmp.ne.s32.totalorder %s152, %s154
      %p161 = scmp.eq.s32.totalorder %s29, 1
      %p162 = por %p160, %p161
      %p163 = scmp.ne.s32.totalorder %s154, %s155
      %p164 = scmp.eq.s32.totalorder %s29, 0
      %p165 = por %p163, %p164
      %p166 = scmp.ne.s32.totalorder %s154, %s155
      %p167 = scmp.eq.s32.totalorder %s30, 1
      %p168 = por %p166, %p167
      %p170 = scmp.ne.s32.totalorder %s155, %s169
      %p171 = scmp.eq.s32.totalorder %s30, 0
      %p172 = por %p170, %p171
      %s174 = sadd.s32 %s173, 1
      %p177 = scmp.eq.s32.totalorder %s24, 1
      %p178 = scmp.ne.s32.totalorder %s173, %s175
      %p179 = scmp.eq.s32.totalorder %s24, 0
      %p180 = por %p178, %p179
      %p181 = scmp.ne.s32.totalorder %s173, %s175
      %p182 = scmp.eq.s32.totalorder %s29, 1
      %p183 = por %p181, %p182
      %p184 = scmp.ne.s32.totalorder %s175, %s176
      %p185 = scmp.eq.s32.totalorder %s29, 0
      %p186 = por %p184, %p185
      %p187 = scmp.ne.s32.totalorder %s175, %s176
      %p188 = scmp.eq.s32.totalorder %s30, 1
      %p189 = por %p187, %p188
      %p191 = scmp.ne.s32.totalorder %s176, %s190
      %p192 = scmp.eq.s32.totalorder %s30, 0
      %p193 = por %p191, %p192
      %s195 = sadd.s32 %s194, 1
      %p198 = scmp.eq.s32.totalorder %s24, 1
      %p199 = scmp.ne.s32.totalorder %s194, %s196
      %p200 = scmp.eq.s32.totalorder %s24, 0
      %p201 = por %p199, %p200
      %p202 = scmp.ne.s32.totalorder %s194, %s196
      %p203 = scmp.eq.s32.totalorder %s29, 1
      %p204 = por %p202, %p203
      %p205 = scmp.ne.s32.totalorder %s196, %s197
      %p206 = scmp.eq.s32.totalorder %s29, 0
      %p207 = por %p205, %p206
      %p208 = scmp.ne.s32.totalorder %s196, %s197
      %p209 = scmp.eq.s32.totalorder %s30, 1
      %p210 = por %p208, %p209
      %p212 = scmp.ne.s32.totalorder %s197, %s211
      %p213 = scmp.eq.s32.totalorder %s30, 0
      %p214 = por %p212, %p213
      %s216 = sadd.s32 %s215, 1
      %p219 = scmp.eq.s32.totalorder %s24, 1
      %p220 = scmp.ne.s32.totalorder %s215, %s217
      %p221 = scmp.eq.s32.totalorder %s24, 0
      %p222 = por %p220, %p221
      %p223 = scmp.ne.s32.totalorder %s215, %s217
      %p224 = scmp.eq.s32.totalorder %s29, 1
      %p225 = por %p223, %p224
      %p226 = scmp.ne.s32.totalorder %s217, %s218
      %p227 = scmp.eq.s32.totalorder %s29, 0
      %p228 = por %p226, %p227
      %p229 = scmp.ne.s32.totalorder %s217, %s218
      %p230 = scmp.eq.s32.totalorder %s30, 1
      %p231 = por %p229, %p230
      %p233 = scmp.ne.s32.totalorder %s218, %s232
      %p234 = scmp.eq.s32.totalorder %s30, 0
      %p235 = por %p233, %p234
      %s237 = sadd.s32 %s236, 1
      %p240 = scmp.eq.s32.totalorder %s24, 1
      %p241 = scmp.ne.s32.totalorder %s236, %s238
      %p242 = scmp.eq.s32.totalorder %s24, 0
      %p243 = por %p241, %p242
      %p244 = scmp.ne.s32.totalorder %s236, %s238
      %p245 = scmp.eq.s32.totalorder %s29, 1
      %p246 = por %p244, %p245
      %p247 = scmp.ne.s32.totalorder %s238, %s239
      %p248 = scmp.eq.s32.totalorder %s29, 0
      %p249 = por %p247, %p248
      %p250 = scmp.ne.s32.totalorder %s238, %s239
      %p251 = scmp.eq.s32.totalorder %s30, 1
      %p252 = por %p250, %p251
      %p254 = scmp.ne.s32.totalorder %s239, %s253
      %p255 = scmp.eq.s32.totalorder %s30, 0
      %p256 = por %p254, %p255
      %s258 = sadd.s32 %s257, 1
      %p261 = scmp.eq.s32.totalorder %s24, 1
      %p262 = scmp.ne.s32.totalorder %s257, %s259
      %p263 = scmp.eq.s32.totalorder %s24, 0
      %p264 = por %p262, %p263
      %p265 = scmp.ne.s32.totalorder %s257, %s259
      %p266 = scmp.eq.s32.totalorder %s29, 1
      %p267 = por %p265, %p266
      %p268 = scmp.ne.s32.totalorder %s259, %s260
      %p269 = scmp.eq.s32.totalorder %s29, 0
      %p270 = por %p268, %p269
      %p271 = scmp.ne.s32.totalorder %s259, %s260
      %p272 = scmp.eq.s32.totalorder %s30, 1
      %p273 = por %p271, %p272
      %p275 = scmp.ne.s32.totalorder %s260, %s274
      %p276 = scmp.eq.s32.totalorder %s30, 0
      %p277 = por %p275, %p276
      %s279 = sadd.s32 %s278, 1
      %p282 = scmp.eq.s32.totalorder %s24, 1
      %p283 = scmp.ne.s32.totalorder %s278, %s280
      %p284 = scmp.eq.s32.totalorder %s24, 0
      %p285 = por %p283, %p284
      %p286 = scmp.ne.s32.totalorder %s278, %s280
      %p287 = scmp.eq.s32.totalorder %s29, 1
      %p288 = por %p286, %p287
      %p289 = scmp.ne.s32.totalorder %s280, %s281
      %p290 = scmp.eq.s32.totalorder %s29, 0
      %p291 = por %p289, %p290
      %p292 = scmp.ne.s32.totalorder %s280, %s281
      %p293 = scmp.eq.s32.totalorder %s30, 1
      %p294 = por %p292, %p293
      %p296 = scmp.ne.s32.totalorder %s281, %s295
      %p297 = scmp.eq.s32.totalorder %s30, 0
      %p298 = por %p296, %p297
      %s300 = sadd.s32 %s299, 1
      %p303 = scmp.eq.s32.totalorder %s24, 1
      %p304 = scmp.ne.s32.totalorder %s299, %s301
      %p305 = scmp.eq.s32.totalorder %s24, 0
      %p306 = por %p304, %p305
      %p307 = scmp.ne.s32.totalorder %s299, %s301
      %p308 = scmp.eq.s32.totalorder %s29, 1
      %p309 = por %p307, %p308
      %p310 = scmp.ne.s32.totalorder %s301, %s302
      %p311 = scmp.eq.s32.totalorder %s29, 0
      %p312 = por %p310, %p311
      %p313 = scmp.ne.s32.totalorder %s301, %s302
      %p314 = scmp.eq.s32.totalorder %s30, 1
      %p315 = por %p313, %p314
      %p317 = scmp.ne.s32.totalorder %s302, %s316
      %p318 = scmp.eq.s32.totalorder %s30, 0
      %p319 = por %p317, %p318
      %s321 = sadd.s32 %s320, 1
      %p324 = scmp.eq.s32.totalorder %s24, 1
      %p325 = scmp.ne.s32.totalorder %s320, %s322
      %p326 = scmp.eq.s32.totalorder %s24, 0
      %p327 = por %p325, %p326
      %p328 = scmp.ne.s32.totalorder %s320, %s322
      %p329 = scmp.eq.s32.totalorder %s29, 1
      %p330 = por %p328, %p329
      %p331 = scmp.ne.s32.totalorder %s322, %s323
      %p332 = scmp.eq.s32.totalorder %s29, 0
      %p333 = por %p331, %p332
      %p334 = scmp.ne.s32.totalorder %s322, %s323
      %p335 = scmp.eq.s32.totalorder %s30, 1
      %p336 = por %p334, %p335
      %p338 = scmp.ne.s32.totalorder %s323, %s337
      %p339 = scmp.eq.s32.totalorder %s30, 0
      %p340 = por %p338, %p339
      %s342 = sadd.s32 %s341, 1
      %p345 = scmp.eq.s32.totalorder %s24, 1
      %p346 = scmp.ne.s32.totalorder %s341, %s343
      %p347 = scmp.eq.s32.totalorder %s24, 0
      %p348 = por %p346, %p347
      %p349 = scmp.ne.s32.totalorder %s341, %s343
      %p350 = scmp.eq.s32.totalorder %s29, 1
      %p351 = por %p349, %p350
      %p352 = scmp.ne.s32.totalorder %s343, %s344
      %p353 = scmp.eq.s32.totalorder %s29, 0
      %p354 = por %p352, %p353
      %p355 = scmp.ne.s32.totalorder %s343, %s344
      %p356 = scmp.eq.s32.totalorder %s30, 1
      %p357 = por %p355, %p356
      %p359 = scmp.ne.s32.totalorder %s344, %s358
      %p360 = scmp.eq.s32.totalorder %s30, 0
      %p361 = por %p359, %p360
      %s362 = ssub.s32 %s24, %s31
      %p363 = scmp.eq.s32.totalorder %s362, 0
      %s365 = sadd.s32 %s364, 1
      %s366 = scalar_select %p363, %s364, %s365
      %p369 = pneg %p363
      %p370 = scmp.eq.s32.totalorder %s24, 1
      %p371 = por %p369, %p370
      %p372 = scmp.ne.s32.totalorder %s364, %s367
      %p373 = scmp.eq.s32.totalorder %s24, 0
      %p374 = por %p372, %p373
      %p375 = scmp.ne.s32.totalorder %s364, %s367
      %p376 = scmp.eq.s32.totalorder %s29, 1
      %p377 = por %p375, %p376
      %p378 = scmp.ne.s32.totalorder %s367, %s368
      %p379 = scmp.eq.s32.totalorder %s29, 0
      %p380 = por %p378, %p379
      %p381 = scmp.ne.s32.totalorder %s367, %s368
      %p382 = scmp.eq.s32.totalorder %s30, 1
      %p383 = por %p381, %p382
      %p385 = scmp.ne.s32.totalorder %s368, %s384
      %p386 = scmp.eq.s32.totalorder %s30, 0
      %p387 = por %p385, %p386
      %p388 = scmp.le.s32.totalorder 1, %s24
      %p389 = scmp.lt.s32.totalorder %s24, 3
      %p390 = pnand %p388, %p389
      %p391 = pneg %p390
      // Predicated region
      $region9: #{tpu_custom_call.1} parent=5 // pred_check
        _
      $region10: #{tpu_custom_call.1} parent=5 // pred_check_branch
        %393 = sbr.rel (%p390) target = $region12
      $region11: #{tpu_custom_call.1} parent=5 // pred_region
        %s394 = ssub.s32 %s24, 1
        // Predicated region
        $region13: #{tpu_custom_call.1} parent=11 // pred_check
          %p395 = pneg %p123
        $region14: #{tpu_custom_call.1} parent=11 // pred_check_branch
          %397 = sbr.rel (%p395) target = $region16
        $region15: #{tpu_custom_call.1} parent=11 // pred_region
          _
        $region16: #{tpu_custom_call.1} parent=11 // pred_fallthru
          _
        // Predicated region
        $region17: #{tpu_custom_call.1} parent=11 // pred_check
          %p398 = pneg %p144
        $region18: #{tpu_custom_call.1} parent=11 // pred_check_branch
          %400 = sbr.rel (%p398) target = $region20
        $region19: #{tpu_custom_call.1} parent=11 // pred_region
          _
        $region20: #{tpu_custom_call.1} parent=11 // pred_fallthru
          _
        // Predicated region
        $region21: #{tpu_custom_call.1} parent=11 // pred_check
          %p401 = pneg %p165
        $region22: #{tpu_custom_call.1} parent=11 // pred_check_branch
          %403 = sbr.rel (%p401) target = $region24
        $region23: #{tpu_custom_call.1} parent=11 // pred_region
          _
        $region24: #{tpu_custom_call.1} parent=11 // pred_fallthru
          _
        // Predicated region
        $region25: #{tpu_custom_call.1} parent=11 // pred_check
          %p404 = pneg %p186
        $region26: #{tpu_custom_call.1} parent=11 // pred_check_branch
          %406 = sbr.rel (%p404) target = $region28
        $region27: #{tpu_custom_call.1} parent=11 // pred_region
          _
        $region28: #{tpu_custom_call.1} parent=11 // pred_fallthru
          _
        // Predicated region
        $region29: #{tpu_custom_call.1} parent=11 // pred_check
          %p407 = pneg %p207
        $region30: #{tpu_custom_call.1} parent=11 // pred_check_branch
          %409 = sbr.rel (%p407) target = $region32
        $region31: #{tpu_custom_call.1} parent=11 // pred_region
          _
        $region32: #{tpu_custom_call.1} parent=11 // pred_fallthru
          _
        // Predicated region
        $region33: #{tpu_custom_call.1} parent=11 // pred_check
          %p410 = pneg %p228
        $region34: #{tpu_custom_call.1} parent=11 // pred_check_branch
          %412 = sbr.rel (%p410) target = $region36
        $region35: #{tpu_custom_call.1} parent=11 // pred_region
          _
        $region36: #{tpu_custom_call.1} parent=11 // pred_fallthru
          _
        // Predicated region
        $region37: #{tpu_custom_call.1} parent=11 // pred_check
          %p413 = pneg %p249
        $region38: #{tpu_custom_call.1} parent=11 // pred_check_branch
          %415 = sbr.rel (%p413) target = $region40
        $region39: #{tpu_custom_call.1} parent=11 // pred_region
          _
        $region40: #{tpu_custom_call.1} parent=11 // pred_fallthru
          _
        // Predicated region
        $region41: #{tpu_custom_call.1} parent=11 // pred_check
          %p416 = pneg %p270
        $region42: #{tpu_custom_call.1} parent=11 // pred_check_branch
          %418 = sbr.rel (%p416) target = $region44
        $region43: #{tpu_custom_call.1} parent=11 // pred_region
          _
        $region44: #{tpu_custom_call.1} parent=11 // pred_fallthru
          _
        // Predicated region
        $region45: #{tpu_custom_call.1} parent=11 // pred_check
          %p419 = pneg %p291
        $region46: #{tpu_custom_call.1} parent=11 // pred_check_branch
          %421 = sbr.rel (%p419) target = $region48
        $region47: #{tpu_custom_call.1} parent=11 // pred_region
          _
        $region48: #{tpu_custom_call.1} parent=11 // pred_fallthru
          _
        // Predicated region
        $region49: #{tpu_custom_call.1} parent=11 // pred_check
          %p422 = pneg %p312
        $region50: #{tpu_custom_call.1} parent=11 // pred_check_branch
          %424 = sbr.rel (%p422) target = $region52
        $region51: #{tpu_custom_call.1} parent=11 // pred_region
          _
        $region52: #{tpu_custom_call.1} parent=11 // pred_fallthru
          _
        // Predicated region
        $region53: #{tpu_custom_call.1} parent=11 // pred_check
          %p425 = pneg %p333
        $region54: #{tpu_custom_call.1} parent=11 // pred_check_branch
          %427 = sbr.rel (%p425) target = $region56
        $region55: #{tpu_custom_call.1} parent=11 // pred_region
          _
        $region56: #{tpu_custom_call.1} parent=11 // pred_fallthru
          _
        // Predicated region
        $region57: #{tpu_custom_call.1} parent=11 // pred_check
          %p428 = pneg %p354
        $region58: #{tpu_custom_call.1} parent=11 // pred_check_branch
          %430 = sbr.rel (%p428) target = $region60
        $region59: #{tpu_custom_call.1} parent=11 // pred_region
          _
        $region60: #{tpu_custom_call.1} parent=11 // pred_fallthru
          _
      $region12: #{tpu_custom_call.1} parent=5 // pred_fallthru
        _
      %p431 = scmp.lt.s32.totalorder %s24, 2
      // Predicated region
      $region61: #{tpu_custom_call.1} parent=5 // pred_check
        %p432 = pneg %p431
      $region62: #{tpu_custom_call.1} parent=5 // pred_check_branch
        %434 = sbr.rel (%p432) target = $region64
      $region63: #{tpu_custom_call.1} parent=5 // pred_region
        // Predicated region
        $region65: #{tpu_custom_call.1} parent=63 // pred_check
          %p435 = pneg %p44
        $region66: #{tpu_custom_call.1} parent=63 // pred_check_branch
          %437 = sbr.rel (%p435) target = $region68
        $region67: #{tpu_custom_call.1} parent=63 // pred_region
          %p438 = scmp.lt.s32.totalorder %s24, 1
          %s439 = scalar_select %p438, %s24, 1
          %s440 = smul.addr %s439, 32
          %s441 = smul.addr %s440, 8
          %s442 = scalar_lea.vmem %s0, %s441
        $region68: #{tpu_custom_call.1} parent=63 // pred_fallthru
          _
        // Predicated region
        $region69: #{tpu_custom_call.1} parent=63 // pred_check
          %p443 = pneg %p70
        $region70: #{tpu_custom_call.1} parent=63 // pred_check_branch
          %445 = sbr.rel (%p443) target = $region72
        $region71: #{tpu_custom_call.1} parent=63 // pred_region
          %p446 = scmp.lt.s32.totalorder %s24, 1
          %s447 = scalar_select %p446, %s24, 1
          %s448 = scalar_lea.vmem %s1, %s447
        $region72: #{tpu_custom_call.1} parent=63 // pred_fallthru
          _
        // Predicated region
        $region73: #{tpu_custom_call.1} parent=63 // pred_check
          %p449 = pneg %p96
        $region74: #{tpu_custom_call.1} parent=63 // pred_check_branch
          %451 = sbr.rel (%p449) target = $region76
        $region75: #{tpu_custom_call.1} parent=63 // pred_region
          %p452 = scmp.lt.s32.totalorder %s24, 1
          %s453 = scalar_select %p452, %s24, 1
          %s454 = scalar_lea.vmem %s2, %s453
        $region76: #{tpu_custom_call.1} parent=63 // pred_fallthru
          _
      $region64: #{tpu_custom_call.1} parent=5 // pred_fallthru
        _
      %p455 = scmp.le.s32.totalorder 1, %s24
      %p456 = scmp.lt.s32.totalorder %s24, 3
      %p457 = pnand %p455, %p456
      %p458 = pneg %p457
      // Predicated region
      $region77: #{tpu_custom_call.1} parent=5 // pred_check
        _
      $region78: #{tpu_custom_call.1} parent=5 // pred_check_branch
        %460 = sbr.rel (%p457) target = $region80
      $region79: #{tpu_custom_call.1} parent=5 // pred_region
        %s461 = ssub.s32 %s24, 1
        %p462 = scmp.lt.s32.totalorder %s29, 1
        %s463 = scalar_select %p462, %s29, 1
        %s464 = smul.addr %s463, 32
        %s465 = smul.addr %s464, 8
        %s466 = scalar_lea.vmem %s0, %s465
        %p467 = pneg %p50
        %p468 = pneg %p47
        %p469 = scmp.lt.s32.totalorder %s29, 1
        %s470 = scalar_select %p469, %s29, 1
        %s471 = scalar_lea.vmem %s1, %s470
        %p472 = pneg %p76
        %p473 = pneg %p73
        %p474 = scmp.lt.s32.totalorder %s29, 1
        %s475 = scalar_select %p474, %s29, 1
        %s476 = scalar_lea.vmem %s2, %s475
        %p477 = pneg %p102
        %p478 = pneg %p99
        %p479 = pneg %p123
        %p480 = pneg %p120
        %p481 = pneg %p144
        %p482 = pneg %p141
        %p483 = pneg %p165
        %p484 = pneg %p162
        %p485 = pneg %p186
        %p486 = pneg %p183
        %p487 = pneg %p207
        %p488 = pneg %p204
        %p489 = pneg %p228
        %p490 = pneg %p225
        %p491 = pneg %p249
        %p492 = pneg %p246
        %p493 = pneg %p270
        %p494 = pneg %p267
        %p495 = pneg %p291
        %p496 = pneg %p288
        %p497 = pneg %p312
        %p498 = pneg %p309
        %p499 = pneg %p333
        %p500 = pneg %p330
        %p501 = pneg %p354
        %p502 = pneg %p351
        %p503 = pneg %p380
        %p504 = pneg %p377
        %s505 = sand.u32 %s367, 1
        %s506 = scalar_lea.sflag [#allocation6], %s505
        %s507 = sand.u32 %s367, 1
        %s508 = smul.addr %s507, 64
        %s509 = scalar_lea.vmem [#allocation5], %s508
        %p510 = scmp.lt.s32.totalorder %s29, 1
        %s511 = scalar_select %p510, %s29, 1
        %s512 = smul.addr %s511, 32
        %s513 = smul.addr %s512, 8
        %s514 = scalar_lea.vmem %s0, %s513
        %p515 = scmp.lt.s32.totalorder %s29, 1
        %s516 = scalar_select %p515, %s29, 1
        %s517 = scalar_lea.vmem %s1, %s516
        %p518 = scmp.lt.s32.totalorder %s29, 1
        %s519 = scalar_select %p518, %s29, 1
        %s520 = scalar_lea.vmem %s2, %s519
        %vm522 = vcmask 31744
        %523 = vst.msk [vmem:[#allocation2] sm:$0xff] %vm522, 0.0
        %524 = vst.msk [vmem:[#allocation2 + $0x8] sm:$0xff] %vm522, 0.0
        %vm525 = vcmask 25600
        %526 = vst.msk [vmem:[#allocation2 + $0x10] sm:$0x3] %vm525, 0.0
        %s527 = scalar_lea.vmem [#allocation2], 408
        %528 = vst.msk [vmem:[%s527] sm:$0xff] %vm522, 0.0
        %529 = vst.msk [vmem:[%s527 + $0x8] sm:$0xff] %vm522, 0.0
        %530 = vst.msk [vmem:[%s527 + $0x10] sm:$0x3] %vm525, 0.0
        %vm531 = vcmask 24576
        %532 = vst.msk [vmem:[#allocation2] sm:$0x1] %vm531, 0.0
        %533 = vst.msk [vmem:[#allocation2 + $0x18] sm:$0x1] %vm531, 0.0
        %534 = vst.msk [vmem:[#allocation2 + $0x30] sm:$0x1] %vm531, 0.0
        %535 = vst.msk [vmem:[#allocation2 + $0x48] sm:$0x1] %vm531, 0.0
        %536 = vst.msk [vmem:[#allocation2 + $0x60] sm:$0x1] %vm531, 0.0
        %537 = vst.msk [vmem:[#allocation2 + $0x78] sm:$0x1] %vm531, 0.0
        %538 = vst.msk [vmem:[#allocation2 + $0x90] sm:$0x1] %vm531, 0.0
        %539 = vst.msk [vmem:[#allocation2 + $0xa8] sm:$0x1] %vm531, 0.0
        %540 = vst.msk [vmem:[#allocation2 + $0xc0] sm:$0x1] %vm531, 0.0
        %541 = vst.msk [vmem:[#allocation2 + $0xd8] sm:$0x1] %vm531, 0.0
        %542 = vst.msk [vmem:[#allocation2 + $0xf0] sm:$0x1] %vm531, 0.0
        %543 = vst.msk [vmem:[#allocation2 + $0x108] sm:$0x1] %vm531, 0.0
        %544 = vst.msk [vmem:[#allocation2 + $0x120] sm:$0x1] %vm531, 0.0
        %545 = vst.msk [vmem:[#allocation2 + $0x138] sm:$0x1] %vm531, 0.0
        %546 = vst.msk [vmem:[#allocation2 + $0x150] sm:$0x1] %vm531, 0.0
        %547 = vst.msk [vmem:[#allocation2 + $0x168] sm:$0x1] %vm531, 0.0
        %548 = vst.msk [vmem:[#allocation2 + $0x180] sm:$0x1] %vm531, 0.0
        %549 = vst.msk [vmem:[#allocation2 + $0x198] sm:$0x1] %vm531, 0.0
        %550 = vst.msk [vmem:[#allocation2 + $0x11] sm:$0x1] %vm531, 0.0
        %551 = vst.msk [vmem:[#allocation2 + $0x29] sm:$0x1] %vm531, 0.0
        %552 = vst.msk [vmem:[#allocation2 + $0x41] sm:$0x1] %vm531, 0.0
        %553 = vst.msk [vmem:[#allocation2 + $0x59] sm:$0x1] %vm531, 0.0
        %554 = vst.msk [vmem:[#allocation2 + $0x71] sm:$0x1] %vm531, 0.0
        %555 = vst.msk [vmem:[#allocation2 + $0x89] sm:$0x1] %vm531, 0.0
        %556 = vst.msk [vmem:[#allocation2 + $0xa1] sm:$0x1] %vm531, 0.0
        %557 = vst.msk [vmem:[#allocation2 + $0xb9] sm:$0x1] %vm531, 0.0
        %558 = vst.msk [vmem:[#allocation2 + $0xd1] sm:$0x1] %vm531, 0.0
        %559 = vst.msk [vmem:[#allocation2 + $0xe9] sm:$0x1] %vm531, 0.0
        %560 = vst.msk [vmem:[#allocation2 + $0x101] sm:$0x1] %vm531, 0.0
        %561 = vst.msk [vmem:[#allocation2 + $0x119] sm:$0x1] %vm531, 0.0
        %562 = vst.msk [vmem:[#allocation2 + $0x131] sm:$0x1] %vm531, 0.0
        %563 = vst.msk [vmem:[#allocation2 + $0x149] sm:$0x1] %vm531, 0.0
        %564 = vst.msk [vmem:[#allocation2 + $0x161] sm:$0x1] %vm531, 0.0
        %565 = vst.msk [vmem:[#allocation2 + $0x179] sm:$0x1] %vm531, 0.0
        %566 = vst.msk [vmem:[#allocation2 + $0x191] sm:$0x1] %vm531, 0.0
        %567 = vst.msk [vmem:[#allocation2 + $0x1a9] sm:$0x1] %vm531, 0.0
        %vm568 = vcmask 64512
        %569 = vst.msk [vmem:[#allocation3] sm:$0xff] %vm568, 0.0
        %570 = vst.msk [vmem:[#allocation3 + $0x8] sm:$0xff] %vm568, 0.0
        %vm571 = vcmask 58368
        %572 = vst.msk [vmem:[#allocation3 + $0x10] sm:$0x3] %vm571, 0.0
        %s573 = scalar_lea.vmem [#allocation3], 408
        %574 = vst.msk [vmem:[%s573] sm:$0xff] %vm568, 0.0
        %575 = vst.msk [vmem:[%s573 + $0x8] sm:$0xff] %vm568, 0.0
        %576 = vst.msk [vmem:[%s573 + $0x10] sm:$0x3] %vm571, 0.0
        %vm577 = vcmask 57344
        %578 = vst.msk [vmem:[#allocation3] sm:$0x1] %vm577, 0.0
        %579 = vst.msk [vmem:[#allocation3 + $0x18] sm:$0x1] %vm577, 0.0
        %580 = vst.msk [vmem:[#allocation3 + $0x30] sm:$0x1] %vm577, 0.0
        %581 = vst.msk [vmem:[#allocation3 + $0x48] sm:$0x1] %vm577, 0.0
        %582 = vst.msk [vmem:[#allocation3 + $0x60] sm:$0x1] %vm577, 0.0
        %583 = vst.msk [vmem:[#allocation3 + $0x78] sm:$0x1] %vm577, 0.0
        %584 = vst.msk [vmem:[#allocation3 + $0x90] sm:$0x1] %vm577, 0.0
        %585 = vst.msk [vmem:[#allocation3 + $0xa8] sm:$0x1] %vm577, 0.0
        %586 = vst.msk [vmem:[#allocation3 + $0xc0] sm:$0x1] %vm577, 0.0
        %587 = vst.msk [vmem:[#allocation3 + $0xd8] sm:$0x1] %vm577, 0.0
        %588 = vst.msk [vmem:[#allocation3 + $0xf0] sm:$0x1] %vm577, 0.0
        %589 = vst.msk [vmem:[#allocation3 + $0x108] sm:$0x1] %vm577, 0.0
        %590 = vst.msk [vmem:[#allocation3 + $0x120] sm:$0x1] %vm577, 0.0
        %591 = vst.msk [vmem:[#allocation3 + $0x138] sm:$0x1] %vm577, 0.0
        %592 = vst.msk [vmem:[#allocation3 + $0x150] sm:$0x1] %vm577, 0.0
        %593 = vst.msk [vmem:[#allocation3 + $0x168] sm:$0x1] %vm577, 0.0
        %594 = vst.msk [vmem:[#allocation3 + $0x180] sm:$0x1] %vm577, 0.0
        %595 = vst.msk [vmem:[#allocation3 + $0x198] sm:$0x1] %vm577, 0.0
        %596 = vst.msk [vmem:[#allocation3 + $0x11] sm:$0x1] %vm577, 0.0
        %597 = vst.msk [vmem:[#allocation3 + $0x29] sm:$0x1] %vm577, 0.0
        %598 = vst.msk [vmem:[#allocation3 + $0x41] sm:$0x1] %vm577, 0.0
        %599 = vst.msk [vmem:[#allocation3 + $0x59] sm:$0x1] %vm577, 0.0
        %600 = vst.msk [vmem:[#allocation3 + $0x71] sm:$0x1] %vm577, 0.0
        %601 = vst.msk [vmem:[#allocation3 + $0x89] sm:$0x1] %vm577, 0.0
        %602 = vst.msk [vmem:[#allocation3 + $0xa1] sm:$0x1] %vm577, 0.0
        %603 = vst.msk [vmem:[#allocation3 + $0xb9] sm:$0x1] %vm577, 0.0
        %604 = vst.msk [vmem:[#allocation3 + $0xd1] sm:$0x1] %vm577, 0.0
        %605 = vst.msk [vmem:[#allocation3 + $0xe9] sm:$0x1] %vm577, 0.0
        %606 = vst.msk [vmem:[#allocation3 + $0x101] sm:$0x1] %vm577, 0.0
        %607 = vst.msk [vmem:[#allocation3 + $0x119] sm:$0x1] %vm577, 0.0
        %608 = vst.msk [vmem:[#allocation3 + $0x131] sm:$0x1] %vm577, 0.0
        %609 = vst.msk [vmem:[#allocation3 + $0x149] sm:$0x1] %vm577, 0.0
        %610 = vst.msk [vmem:[#allocation3 + $0x161] sm:$0x1] %vm577, 0.0
        %611 = vst.msk [vmem:[#allocation3 + $0x179] sm:$0x1] %vm577, 0.0
        %612 = vst.msk [vmem:[#allocation3 + $0x191] sm:$0x1] %vm577, 0.0
        %613 = vst.msk [vmem:[#allocation3 + $0x1a9] sm:$0x1] %vm577, 0.0
        %614 = vst.msk [vmem:[#allocation4] sm:$0xff] %vm568, 0.0
        %615 = vst.msk [vmem:[#allocation4 + $0x8] sm:$0xff] %vm568, 0.0
        %616 = vst.msk [vmem:[#allocation4 + $0x10] sm:$0x3] %vm571, 0.0
        %s617 = scalar_lea.vmem [#allocation4], 408
        %618 = vst.msk [vmem:[%s617] sm:$0xff] %vm568, 0.0
        %619 = vst.msk [vmem:[%s617 + $0x8] sm:$0xff] %vm568, 0.0
        %620 = vst.msk [vmem:[%s617 + $0x10] sm:$0x3] %vm571, 0.0
        %621 = vst.msk [vmem:[#allocation4] sm:$0x1] %vm577, 0.0
        %622 = vst.msk [vmem:[#allocation4 + $0x18] sm:$0x1] %vm577, 0.0
        %623 = vst.msk [vmem:[#allocation4 + $0x30] sm:$0x1] %vm577, 0.0
        %624 = vst.msk [vmem:[#allocation4 + $0x48] sm:$0x1] %vm577, 0.0
        %625 = vst.msk [vmem:[#allocation4 + $0x60] sm:$0x1] %vm577, 0.0
        %626 = vst.msk [vmem:[#allocation4 + $0x78] sm:$0x1] %vm577, 0.0
        %627 = vst.msk [vmem:[#allocation4 + $0x90] sm:$0x1] %vm577, 0.0
        %628 = vst.msk [vmem:[#allocation4 + $0xa8] sm:$0x1] %vm577, 0.0
        %629 = vst.msk [vmem:[#allocation4 + $0xc0] sm:$0x1] %vm577, 0.0
        %630 = vst.msk [vmem:[#allocation4 + $0xd8] sm:$0x1] %vm577, 0.0
        %631 = vst.msk [vmem:[#allocation4 + $0xf0] sm:$0x1] %vm577, 0.0
        %632 = vst.msk [vmem:[#allocation4 + $0x108] sm:$0x1] %vm577, 0.0
        %633 = vst.msk [vmem:[#allocation4 + $0x120] sm:$0x1] %vm577, 0.0
        %634 = vst.msk [vmem:[#allocation4 + $0x138] sm:$0x1] %vm577, 0.0
        %635 = vst.msk [vmem:[#allocation4 + $0x150] sm:$0x1] %vm577, 0.0
        %636 = vst.msk [vmem:[#allocation4 + $0x168] sm:$0x1] %vm577, 0.0
        %637 = vst.msk [vmem:[#allocation4 + $0x180] sm:$0x1] %vm577, 0.0
        %638 = vst.msk [vmem:[#allocation4 + $0x198] sm:$0x1] %vm577, 0.0
        %639 = vst.msk [vmem:[#allocation4 + $0x11] sm:$0x1] %vm577, 0.0
        %640 = vst.msk [vmem:[#allocation4 + $0x29] sm:$0x1] %vm577, 0.0
        %641 = vst.msk [vmem:[#allocation4 + $0x41] sm:$0x1] %vm577, 0.0
        %642 = vst.msk [vmem:[#allocation4 + $0x59] sm:$0x1] %vm577, 0.0
        %643 = vst.msk [vmem:[#allocation4 + $0x71] sm:$0x1] %vm577, 0.0
        %644 = vst.msk [vmem:[#allocation4 + $0x89] sm:$0x1] %vm577, 0.0
        %645 = vst.msk [vmem:[#allocation4 + $0xa1] sm:$0x1] %vm577, 0.0
        %646 = vst.msk [vmem:[#allocation4 + $0xb9] sm:$0x1] %vm577, 0.0
        %647 = vst.msk [vmem:[#allocation4 + $0xd1] sm:$0x1] %vm577, 0.0
        %648 = vst.msk [vmem:[#allocation4 + $0xe9] sm:$0x1] %vm577, 0.0
        %649 = vst.msk [vmem:[#allocation4 + $0x101] sm:$0x1] %vm577, 0.0
        %650 = vst.msk [vmem:[#allocation4 + $0x119] sm:$0x1] %vm577, 0.0
        %651 = vst.msk [vmem:[#allocation4 + $0x131] sm:$0x1] %vm577, 0.0
        %652 = vst.msk [vmem:[#allocation4 + $0x149] sm:$0x1] %vm577, 0.0
        %653 = vst.msk [vmem:[#allocation4 + $0x161] sm:$0x1] %vm577, 0.0
        %654 = vst.msk [vmem:[#allocation4 + $0x179] sm:$0x1] %vm577, 0.0
        %655 = vst.msk [vmem:[#allocation4 + $0x191] sm:$0x1] %vm577, 0.0
        %656 = vst.msk [vmem:[#allocation4 + $0x1a9] sm:$0x1] %vm577, 0.0
        %v657 = vld [vmem:[%s514] sm:$0xff]
        %v658 = vld [vmem:[%s514 + $0x8] sm:$0xff]
        %v659 = vld [vmem:[%s514 + $0x10] sm:$0xff]
        %v660 = vld [vmem:[%s514 + $0x18] sm:$0xff]
        %v661 = vld [vmem:[%s514 + $0x20] sm:$0xff]
        %v662 = vld [vmem:[%s514 + $0x28] sm:$0xff]
        %v663 = vld [vmem:[%s514 + $0x30] sm:$0xff]
        %v664 = vld [vmem:[%s514 + $0x38] sm:$0xff]
        %v665 = vld [vmem:[%s514 + $0x40] sm:$0xff]
        %v666 = vld [vmem:[%s514 + $0x48] sm:$0xff]
        %v667 = vld [vmem:[%s514 + $0x50] sm:$0xff]
        %v668 = vld [vmem:[%s514 + $0x58] sm:$0xff]
        %v669 = vld [vmem:[%s514 + $0x60] sm:$0xff]
        %v670 = vld [vmem:[%s514 + $0x68] sm:$0xff]
        %v671 = vld [vmem:[%s514 + $0x70] sm:$0xff]
        %v672 = vld [vmem:[%s514 + $0x78] sm:$0xff]
        %v673 = vld [vmem:[%s514 + $0x80] sm:$0xff]
        %v674 = vld [vmem:[%s514 + $0x88] sm:$0xff]
        %v675 = vld [vmem:[%s514 + $0x90] sm:$0xff]
        %v676 = vld [vmem:[%s514 + $0x98] sm:$0xff]
        %v677 = vld [vmem:[%s514 + $0xa0] sm:$0xff]
        %v678 = vld [vmem:[%s514 + $0xa8] sm:$0xff]
        %v679 = vld [vmem:[%s514 + $0xb0] sm:$0xff]
        %v680 = vld [vmem:[%s514 + $0xb8] sm:$0xff]
        %v681 = vld [vmem:[%s514 + $0xc0] sm:$0xff]
        %v682 = vld [vmem:[%s514 + $0xc8] sm:$0xff]
        %v683 = vld [vmem:[%s514 + $0xd0] sm:$0xff]
        %v684 = vld [vmem:[%s514 + $0xd8] sm:$0xff]
        %v685 = vld [vmem:[%s514 + $0xe0] sm:$0xff]
        %v686 = vld [vmem:[%s514 + $0xe8] sm:$0xff]
        %v687 = vld [vmem:[%s514 + $0xf0] sm:$0xff]
        %v688 = vld [vmem:[%s514 + $0xf8] sm:$0xff]
        %v689 = vld [vmem:[%s3] sm:$0x1]
        %v691 = vperm.slane %v689, 0
        %v693 = vmul.f32 %v657, %v691
        %v694 = vmul.f32 %v658, %v691
        %v695 = vmul.f32 %v659, %v691
        %v696 = vmul.f32 %v660, %v691
        %v697 = vmul.f32 %v661, %v691
        %v698 = vmul.f32 %v662, %v691
        %v699 = vmul.f32 %v663, %v691
        %v700 = vmul.f32 %v664, %v691
        %v701 = vmul.f32 %v665, %v691
        %v702 = vmul.f32 %v666, %v691
        %v703 = vmul.f32 %v667, %v691
        %v704 = vmul.f32 %v668, %v691
        %v705 = vmul.f32 %v669, %v691
        %v706 = vmul.f32 %v670, %v691
        %v707 = vmul.f32 %v671, %v691
        %v708 = vmul.f32 %v672, %v691
        %v709 = vmul.f32 %v673, %v691
        %v710 = vmul.f32 %v674, %v691
        %v711 = vmul.f32 %v675, %v691
        %v712 = vmul.f32 %v676, %v691
        %v713 = vmul.f32 %v677, %v691
        %v714 = vmul.f32 %v678, %v691
        %v715 = vmul.f32 %v679, %v691
        %v716 = vmul.f32 %v680, %v691
        %v717 = vmul.f32 %v681, %v691
        %v718 = vmul.f32 %v682, %v691
        %v719 = vmul.f32 %v683, %v691
        %v720 = vmul.f32 %v684, %v691
        %v721 = vmul.f32 %v685, %v691
        %v722 = vmul.f32 %v686, %v691
        %v723 = vmul.f32 %v687, %v691
        %v724 = vmul.f32 %v688, %v691
        %v725 = vld [vmem:[%s4] sm:$0x1]
        %v727 = vperm.slane %v725, 0
        %v729 = vadd.f32 %v693, %v727
        %v730 = vadd.f32 %v694, %v727
        %v731 = vadd.f32 %v695, %v727
        %v732 = vadd.f32 %v696, %v727
        %v733 = vadd.f32 %v697, %v727
        %v734 = vadd.f32 %v698, %v727
        %v735 = vadd.f32 %v699, %v727
        %v736 = vadd.f32 %v700, %v727
        %v737 = vadd.f32 %v701, %v727
        %v738 = vadd.f32 %v702, %v727
        %v739 = vadd.f32 %v703, %v727
        %v740 = vadd.f32 %v704, %v727
        %v741 = vadd.f32 %v705, %v727
        %v742 = vadd.f32 %v706, %v727
        %v743 = vadd.f32 %v707, %v727
        %v744 = vadd.f32 %v708, %v727
        %v745 = vadd.f32 %v709, %v727
        %v746 = vadd.f32 %v710, %v727
        %v747 = vadd.f32 %v711, %v727
        %v748 = vadd.f32 %v712, %v727
        %v749 = vadd.f32 %v713, %v727
        %v750 = vadd.f32 %v714, %v727
        %v751 = vadd.f32 %v715, %v727
        %v752 = vadd.f32 %v716, %v727
        %v753 = vadd.f32 %v717, %v727
        %v754 = vadd.f32 %v718, %v727
        %v755 = vadd.f32 %v719, %v727
        %v756 = vadd.f32 %v720, %v727
        %v757 = vadd.f32 %v721, %v727
        %v758 = vadd.f32 %v722, %v727
        %v759 = vadd.f32 %v723, %v727
        %v760 = vadd.f32 %v724, %v727
        %v761 = vxor.u32 %v729, 2147483648
        %v762 = vxor.u32 %v730, 2147483648
        %v763 = vxor.u32 %v731, 2147483648
        %v764 = vxor.u32 %v732, 2147483648
        %v765 = vxor.u32 %v733, 2147483648
        %v766 = vxor.u32 %v734, 2147483648
        %v767 = vxor.u32 %v735, 2147483648
        %v768 = vxor.u32 %v736, 2147483648
        %v769 = vxor.u32 %v737, 2147483648
        %v770 = vxor.u32 %v738, 2147483648
        %v771 = vxor.u32 %v739, 2147483648
        %v772 = vxor.u32 %v740, 2147483648
        %v773 = vxor.u32 %v741, 2147483648
        %v774 = vxor.u32 %v742, 2147483648
        %v775 = vxor.u32 %v743, 2147483648
        %v776 = vxor.u32 %v744, 2147483648
        %v777 = vxor.u32 %v745, 2147483648
        %v778 = vxor.u32 %v746, 2147483648
        %v779 = vxor.u32 %v747, 2147483648
        %v780 = vxor.u32 %v748, 2147483648
        %v781 = vxor.u32 %v749, 2147483648
        %v782 = vxor.u32 %v750, 2147483648
        %v783 = vxor.u32 %v751, 2147483648
        %v784 = vxor.u32 %v752, 2147483648
        %v785 = vxor.u32 %v753, 2147483648
        %v786 = vxor.u32 %v754, 2147483648
        %v787 = vxor.u32 %v755, 2147483648
        %v788 = vxor.u32 %v756, 2147483648
        %v789 = vxor.u32 %v757, 2147483648
        %v790 = vxor.u32 %v758, 2147483648
        %v791 = vxor.u32 %v759, 2147483648
        %v792 = vxor.u32 %v760, 2147483648
        %v793 = vmul.f32 %v761, 1.442695
        %v794 = vpow.pop %v793
        %v795 = vmul.f32 %v762, 1.442695
        %v796 = vpow.pop %v795
        %v797 = vmul.f32 %v763, 1.442695
        %v798 = vpow.pop %v797
        %v799 = vmul.f32 %v764, 1.442695
        %v800 = vpow.pop %v799
        %v801 = vmul.f32 %v765, 1.442695
        %v802 = vpow.pop %v801
        %v803 = vmul.f32 %v766, 1.442695
        %v804 = vpow.pop %v803
        %v805 = vmul.f32 %v767, 1.442695
        %v806 = vpow.pop %v805
        %v807 = vmul.f32 %v768, 1.442695
        %v808 = vpow.pop %v807
        %v809 = vmul.f32 %v769, 1.442695
        %v810 = vpow.pop %v809
        %v811 = vmul.f32 %v770, 1.442695
        %v812 = vpow.pop %v811
        %v813 = vmul.f32 %v771, 1.442695
        %v814 = vpow.pop %v813
        %v815 = vmul.f32 %v772, 1.442695
        %v816 = vpow.pop %v815
        %v817 = vmul.f32 %v773, 1.442695
        %v818 = vpow.pop %v817
        %v819 = vmul.f32 %v774, 1.442695
        %v820 = vpow.pop %v819
        %v821 = vmul.f32 %v775, 1.442695
        %v822 = vpow.pop %v821
        %v823 = vmul.f32 %v776, 1.442695
        %v824 = vpow.pop %v823
        %v825 = vmul.f32 %v777, 1.442695
        %v826 = vpow.pop %v825
        %v827 = vmul.f32 %v778, 1.442695
        %v828 = vpow.pop %v827
        %v829 = vmul.f32 %v779, 1.442695
        %v830 = vpow.pop %v829
        %v831 = vmul.f32 %v780, 1.442695
        %v832 = vpow.pop %v831
        %v833 = vmul.f32 %v781, 1.442695
        %v834 = vpow.pop %v833
        %v835 = vmul.f32 %v782, 1.442695
        %v836 = vpow.pop %v835
        %v837 = vmul.f32 %v783, 1.442695
        %v838 = vpow.pop %v837
        %v839 = vmul.f32 %v784, 1.442695
        %v840 = vpow.pop %v839
        %v841 = vmul.f32 %v785, 1.442695
        %v842 = vpow.pop %v841
        %v843 = vmul.f32 %v786, 1.442695
        %v844 = vpow.pop %v843
        %v845 = vmul.f32 %v787, 1.442695
        %v846 = vpow.pop %v845
        %v847 = vmul.f32 %v788, 1.442695
        %v848 = vpow.pop %v847
        %v849 = vmul.f32 %v789, 1.442695
        %v850 = vpow.pop %v849
        %v851 = vmul.f32 %v790, 1.442695
        %v852 = vpow.pop %v851
        %v853 = vmul.f32 %v791, 1.442695
        %v854 = vpow.pop %v853
        %v855 = vmul.f32 %v792, 1.442695
        %v856 = vpow.pop %v855
        %v857 = vadd.f32 %v794, 1.0
        %v858 = vadd.f32 %v796, 1.0
        %v859 = vadd.f32 %v798, 1.0
        %v860 = vadd.f32 %v800, 1.0
        %v861 = vadd.f32 %v802, 1.0
        %v862 = vadd.f32 %v804, 1.0
        %v863 = vadd.f32 %v806, 1.0
        %v864 = vadd.f32 %v808, 1.0
        %v865 = vadd.f32 %v810, 1.0
        %v866 = vadd.f32 %v812, 1.0
        %v867 = vadd.f32 %v814, 1.0
        %v868 = vadd.f32 %v816, 1.0
        %v869 = vadd.f32 %v818, 1.0
        %v870 = vadd.f32 %v820, 1.0
        %v871 = vadd.f32 %v822, 1.0
        %v872 = vadd.f32 %v824, 1.0
        %v873 = vadd.f32 %v826, 1.0
        %v874 = vadd.f32 %v828, 1.0
        %v875 = vadd.f32 %v830, 1.0
        %v876 = vadd.f32 %v832, 1.0
        %v877 = vadd.f32 %v834, 1.0
        %v878 = vadd.f32 %v836, 1.0
        %v879 = vadd.f32 %v838, 1.0
        %v880 = vadd.f32 %v840, 1.0
        %v881 = vadd.f32 %v842, 1.0
        %v882 = vadd.f32 %v844, 1.0
        %v883 = vadd.f32 %v846, 1.0
        %v884 = vadd.f32 %v848, 1.0
        %v885 = vadd.f32 %v850, 1.0
        %v886 = vadd.f32 %v852, 1.0
        %v887 = vadd.f32 %v854, 1.0
        %v888 = vadd.f32 %v856, 1.0
        %v889 = vrcp.pop %v857
        %v890 = vmul.f32 %v857, %v889
        %v891 = vsub.f32 1.0, %v890
        %v892 = vmul.f32 %v889, %v891
        %v893 = vadd.f32 %v889, %v892
        %vm894 = vweird.f32 %v857
        %vm895 = vweird.f32 %v889
        %vm896 = vmor %vm894, %vm895
        %v897 = vsel %vm896, %v889, %v893
        %v898 = vand.u32 2147483647, %v857
        %vm899 = vcmp.eq.f32.partialorder %v898, 8.507059e+37
        %v900 = vand.u32 %v857, 2147483648
        %v901 = vor.u32 1.1754944e-38, %v900
        %v902 = vsel %vm899, %v901, %v897
        %v903 = vmul.f32 1.0, %v902
        %v904 = vrcp.pop %v858
        %v905 = vmul.f32 %v858, %v904
        %v906 = vsub.f32 1.0, %v905
        %v907 = vmul.f32 %v904, %v906
        %v908 = vadd.f32 %v904, %v907
        %vm909 = vweird.f32 %v858
        %vm910 = vweird.f32 %v904
        %vm911 = vmor %vm909, %vm910
        %v912 = vsel %vm911, %v904, %v908
        %v913 = vand.u32 2147483647, %v858
        %vm914 = vcmp.eq.f32.partialorder %v913, 8.507059e+37
        %v915 = vand.u32 %v858, 2147483648
        %v916 = vor.u32 1.1754944e-38, %v915
        %v917 = vsel %vm914, %v916, %v912
        %v918 = vmul.f32 1.0, %v917
        %v919 = vrcp.pop %v859
        %v920 = vmul.f32 %v859, %v919
        %v921 = vsub.f32 1.0, %v920
        %v922 = vmul.f32 %v919, %v921
        %v923 = vadd.f32 %v919, %v922
        %vm924 = vweird.f32 %v859
        %vm925 = vweird.f32 %v919
        %vm926 = vmor %vm924, %vm925
        %v927 = vsel %vm926, %v919, %v923
        %v928 = vand.u32 2147483647, %v859
        %vm929 = vcmp.eq.f32.partialorder %v928, 8.507059e+37
        %v930 = vand.u32 %v859, 2147483648
        %v931 = vor.u32 1.1754944e-38, %v930
        %v932 = vsel %vm929, %v931, %v927
        %v933 = vmul.f32 1.0, %v932
        %v934 = vrcp.pop %v860
        %v935 = vmul.f32 %v860, %v934
        %v936 = vsub.f32 1.0, %v935
        %v937 = vmul.f32 %v934, %v936
        %v938 = vadd.f32 %v934, %v937
        %vm939 = vweird.f32 %v860
        %vm940 = vweird.f32 %v934
        %vm941 = vmor %vm939, %vm940
        %v942 = vsel %vm941, %v934, %v938
        %v943 = vand.u32 2147483647, %v860
        %vm944 = vcmp.eq.f32.partialorder %v943, 8.507059e+37
        %v945 = vand.u32 %v860, 2147483648
        %v946 = vor.u32 1.1754944e-38, %v945
        %v947 = vsel %vm944, %v946, %v942
        %v948 = vmul.f32 1.0, %v947
        %v949 = vrcp.pop %v861
        %v950 = vmul.f32 %v861, %v949
        %v951 = vsub.f32 1.0, %v950
        %v952 = vmul.f32 %v949, %v951
        %v953 = vadd.f32 %v949, %v952
        %vm954 = vweird.f32 %v861
        %vm955 = vweird.f32 %v949
        %vm956 = vmor %vm954, %vm955
        %v957 = vsel %vm956, %v949, %v953
        %v958 = vand.u32 2147483647, %v861
        %vm959 = vcmp.eq.f32.partialorder %v958, 8.507059e+37
        %v960 = vand.u32 %v861, 2147483648
        %v961 = vor.u32 1.1754944e-38, %v960
        %v962 = vsel %vm959, %v961, %v957
        %v963 = vmul.f32 1.0, %v962
        %v964 = vrcp.pop %v862
        %v965 = vmul.f32 %v862, %v964
        %v966 = vsub.f32 1.0, %v965
        %v967 = vmul.f32 %v964, %v966
        %v968 = vadd.f32 %v964, %v967
        %vm969 = vweird.f32 %v862
        %vm970 = vweird.f32 %v964
        %vm971 = vmor %vm969, %vm970
        %v972 = vsel %vm971, %v964, %v968
        %v973 = vand.u32 2147483647, %v862
        %vm974 = vcmp.eq.f32.partialorder %v973, 8.507059e+37
        %v975 = vand.u32 %v862, 2147483648
        %v976 = vor.u32 1.1754944e-38, %v975
        %v977 = vsel %vm974, %v976, %v972
        %v978 = vmul.f32 1.0, %v977
        %v979 = vrcp.pop %v863
        %v980 = vmul.f32 %v863, %v979
        %v981 = vsub.f32 1.0, %v980
        %v982 = vmul.f32 %v979, %v981
        %v983 = vadd.f32 %v979, %v982
        %vm984 = vweird.f32 %v863
        %vm985 = vweird.f32 %v979
        %vm986 = vmor %vm984, %vm985
        %v987 = vsel %vm986, %v979, %v983
        %v988 = vand.u32 2147483647, %v863
        %vm989 = vcmp.eq.f32.partialorder %v988, 8.507059e+37
        %v990 = vand.u32 %v863, 2147483648
        %v991 = vor.u32 1.1754944e-38, %v990
        %v992 = vsel %vm989, %v991, %v987
        %v993 = vmul.f32 1.0, %v992
        %v994 = vrcp.pop %v864
        %v995 = vmul.f32 %v864, %v994
        %v996 = vsub.f32 1.0, %v995
        %v997 = vmul.f32 %v994, %v996
        %v998 = vadd.f32 %v994, %v997
        %vm999 = vweird.f32 %v864
        %vm1000 = vweird.f32 %v994
        %vm1001 = vmor %vm999, %vm1000
        %v1002 = vsel %vm1001, %v994, %v998
        %v1003 = vand.u32 2147483647, %v864
        %vm1004 = vcmp.eq.f32.partialorder %v1003, 8.507059e+37
        %v1005 = vand.u32 %v864, 2147483648
        %v1006 = vor.u32 1.1754944e-38, %v1005
        %v1007 = vsel %vm1004, %v1006, %v1002
        %v1008 = vmul.f32 1.0, %v1007
        %v1009 = vrcp.pop %v865
        %v1010 = vmul.f32 %v865, %v1009
        %v1011 = vsub.f32 1.0, %v1010
        %v1012 = vmul.f32 %v1009, %v1011
        %v1013 = vadd.f32 %v1009, %v1012
        %vm1014 = vweird.f32 %v865
        %vm1015 = vweird.f32 %v1009
        %vm1016 = vmor %vm1014, %vm1015
        %v1017 = vsel %vm1016, %v1009, %v1013
        %v1018 = vand.u32 2147483647, %v865
        %vm1019 = vcmp.eq.f32.partialorder %v1018, 8.507059e+37
        %v1020 = vand.u32 %v865, 2147483648
        %v1021 = vor.u32 1.1754944e-38, %v1020
        %v1022 = vsel %vm1019, %v1021, %v1017
        %v1023 = vmul.f32 1.0, %v1022
        %v1024 = vrcp.pop %v866
        %v1025 = vmul.f32 %v866, %v1024
        %v1026 = vsub.f32 1.0, %v1025
        %v1027 = vmul.f32 %v1024, %v1026
        %v1028 = vadd.f32 %v1024, %v1027
        %vm1029 = vweird.f32 %v866
        %vm1030 = vweird.f32 %v1024
        %vm1031 = vmor %vm1029, %vm1030
        %v1032 = vsel %vm1031, %v1024, %v1028
        %v1033 = vand.u32 2147483647, %v866
        %vm1034 = vcmp.eq.f32.partialorder %v1033, 8.507059e+37
        %v1035 = vand.u32 %v866, 2147483648
        %v1036 = vor.u32 1.1754944e-38, %v1035
        %v1037 = vsel %vm1034, %v1036, %v1032
        %v1038 = vmul.f32 1.0, %v1037
        %v1039 = vrcp.pop %v867
        %v1040 = vmul.f32 %v867, %v1039
        %v1041 = vsub.f32 1.0, %v1040
        %v1042 = vmul.f32 %v1039, %v1041
        %v1043 = vadd.f32 %v1039, %v1042
        %vm1044 = vweird.f32 %v867
        %vm1045 = vweird.f32 %v1039
        %vm1046 = vmor %vm1044, %vm1045
        %v1047 = vsel %vm1046, %v1039, %v1043
        %v1048 = vand.u32 2147483647, %v867
        %vm1049 = vcmp.eq.f32.partialorder %v1048, 8.507059e+37
        %v1050 = vand.u32 %v867, 2147483648
        %v1051 = vor.u32 1.1754944e-38, %v1050
        %v1052 = vsel %vm1049, %v1051, %v1047
        %v1053 = vmul.f32 1.0, %v1052
        %v1054 = vrcp.pop %v868
        %v1055 = vmul.f32 %v868, %v1054
        %v1056 = vsub.f32 1.0, %v1055
        %v1057 = vmul.f32 %v1054, %v1056
        %v1058 = vadd.f32 %v1054, %v1057
        %vm1059 = vweird.f32 %v868
        %vm1060 = vweird.f32 %v1054
        %vm1061 = vmor %vm1059, %vm1060
        %v1062 = vsel %vm1061, %v1054, %v1058
        %v1063 = vand.u32 2147483647, %v868
        %vm1064 = vcmp.eq.f32.partialorder %v1063, 8.507059e+37
        %v1065 = vand.u32 %v868, 2147483648
        %v1066 = vor.u32 1.1754944e-38, %v1065
        %v1067 = vsel %vm1064, %v1066, %v1062
        %v1068 = vmul.f32 1.0, %v1067
        %v1069 = vrcp.pop %v869
        %v1070 = vmul.f32 %v869, %v1069
        %v1071 = vsub.f32 1.0, %v1070
        %v1072 = vmul.f32 %v1069, %v1071
        %v1073 = vadd.f32 %v1069, %v1072
        %vm1074 = vweird.f32 %v869
        %vm1075 = vweird.f32 %v1069
        %vm1076 = vmor %vm1074, %vm1075
        %v1077 = vsel %vm1076, %v1069, %v1073
        %v1078 = vand.u32 2147483647, %v869
        %vm1079 = vcmp.eq.f32.partialorder %v1078, 8.507059e+37
        %v1080 = vand.u32 %v869, 2147483648
        %v1081 = vor.u32 1.1754944e-38, %v1080
        %v1082 = vsel %vm1079, %v1081, %v1077
        %v1083 = vmul.f32 1.0, %v1082
        %v1084 = vrcp.pop %v870
        %v1085 = vmul.f32 %v870, %v1084
        %v1086 = vsub.f32 1.0, %v1085
        %v1087 = vmul.f32 %v1084, %v1086
        %v1088 = vadd.f32 %v1084, %v1087
        %vm1089 = vweird.f32 %v870
        %vm1090 = vweird.f32 %v1084
        %vm1091 = vmor %vm1089, %vm1090
        %v1092 = vsel %vm1091, %v1084, %v1088
        %v1093 = vand.u32 2147483647, %v870
        %vm1094 = vcmp.eq.f32.partialorder %v1093, 8.507059e+37
        %v1095 = vand.u32 %v870, 2147483648
        %v1096 = vor.u32 1.1754944e-38, %v1095
        %v1097 = vsel %vm1094, %v1096, %v1092
        %v1098 = vmul.f32 1.0, %v1097
        %v1099 = vrcp.pop %v871
        %v1100 = vmul.f32 %v871, %v1099
        %v1101 = vsub.f32 1.0, %v1100
        %v1102 = vmul.f32 %v1099, %v1101
        %v1103 = vadd.f32 %v1099, %v1102
        %vm1104 = vweird.f32 %v871
        %vm1105 = vweird.f32 %v1099
        %vm1106 = vmor %vm1104, %vm1105
        %v1107 = vsel %vm1106, %v1099, %v1103
        %v1108 = vand.u32 2147483647, %v871
        %vm1109 = vcmp.eq.f32.partialorder %v1108, 8.507059e+37
        %v1110 = vand.u32 %v871, 2147483648
        %v1111 = vor.u32 1.1754944e-38, %v1110
        %v1112 = vsel %vm1109, %v1111, %v1107
        %v1113 = vmul.f32 1.0, %v1112
        %v1114 = vrcp.pop %v872
        %v1115 = vmul.f32 %v872, %v1114
        %v1116 = vsub.f32 1.0, %v1115
        %v1117 = vmul.f32 %v1114, %v1116
        %v1118 = vadd.f32 %v1114, %v1117
        %vm1119 = vweird.f32 %v872
        %vm1120 = vweird.f32 %v1114
        %vm1121 = vmor %vm1119, %vm1120
        %v1122 = vsel %vm1121, %v1114, %v1118
        %v1123 = vand.u32 2147483647, %v872
        %vm1124 = vcmp.eq.f32.partialorder %v1123, 8.507059e+37
        %v1125 = vand.u32 %v872, 2147483648
        %v1126 = vor.u32 1.1754944e-38, %v1125
        %v1127 = vsel %vm1124, %v1126, %v1122
        %v1128 = vmul.f32 1.0, %v1127
        %v1129 = vrcp.pop %v873
        %v1130 = vmul.f32 %v873, %v1129
        %v1131 = vsub.f32 1.0, %v1130
        %v1132 = vmul.f32 %v1129, %v1131
        %v1133 = vadd.f32 %v1129, %v1132
        %vm1134 = vweird.f32 %v873
        %vm1135 = vweird.f32 %v1129
        %vm1136 = vmor %vm1134, %vm1135
        %v1137 = vsel %vm1136, %v1129, %v1133
        %v1138 = vand.u32 2147483647, %v873
        %vm1139 = vcmp.eq.f32.partialorder %v1138, 8.507059e+37
        %v1140 = vand.u32 %v873, 2147483648
        %v1141 = vor.u32 1.1754944e-38, %v1140
        %v1142 = vsel %vm1139, %v1141, %v1137
        %v1143 = vmul.f32 1.0, %v1142
        %v1144 = vrcp.pop %v874
        %v1145 = vmul.f32 %v874, %v1144
        %v1146 = vsub.f32 1.0, %v1145
        %v1147 = vmul.f32 %v1144, %v1146
        %v1148 = vadd.f32 %v1144, %v1147
        %vm1149 = vweird.f32 %v874
        %vm1150 = vweird.f32 %v1144
        %vm1151 = vmor %vm1149, %vm1150
        %v1152 = vsel %vm1151, %v1144, %v1148
        %v1153 = vand.u32 2147483647, %v874
        %vm1154 = vcmp.eq.f32.partialorder %v1153, 8.507059e+37
        %v1155 = vand.u32 %v874, 2147483648
        %v1156 = vor.u32 1.1754944e-38, %v1155
        %v1157 = vsel %vm1154, %v1156, %v1152
        %v1158 = vmul.f32 1.0, %v1157
        %v1159 = vrcp.pop %v875
        %v1160 = vmul.f32 %v875, %v1159
        %v1161 = vsub.f32 1.0, %v1160
        %v1162 = vmul.f32 %v1159, %v1161
        %v1163 = vadd.f32 %v1159, %v1162
        %vm1164 = vweird.f32 %v875
        %vm1165 = vweird.f32 %v1159
        %vm1166 = vmor %vm1164, %vm1165
        %v1167 = vsel %vm1166, %v1159, %v1163
        %v1168 = vand.u32 2147483647, %v875
        %vm1169 = vcmp.eq.f32.partialorder %v1168, 8.507059e+37
        %v1170 = vand.u32 %v875, 2147483648
        %v1171 = vor.u32 1.1754944e-38, %v1170
        %v1172 = vsel %vm1169, %v1171, %v1167
        %v1173 = vmul.f32 1.0, %v1172
        %v1174 = vrcp.pop %v876
        %v1175 = vmul.f32 %v876, %v1174
        %v1176 = vsub.f32 1.0, %v1175
        %v1177 = vmul.f32 %v1174, %v1176
        %v1178 = vadd.f32 %v1174, %v1177
        %vm1179 = vweird.f32 %v876
        %vm1180 = vweird.f32 %v1174
        %vm1181 = vmor %vm1179, %vm1180
        %v1182 = vsel %vm1181, %v1174, %v1178
        %v1183 = vand.u32 2147483647, %v876
        %vm1184 = vcmp.eq.f32.partialorder %v1183, 8.507059e+37
        %v1185 = vand.u32 %v876, 2147483648
        %v1186 = vor.u32 1.1754944e-38, %v1185
        %v1187 = vsel %vm1184, %v1186, %v1182
        %v1188 = vmul.f32 1.0, %v1187
        %v1189 = vrcp.pop %v877
        %v1190 = vmul.f32 %v877, %v1189
        %v1191 = vsub.f32 1.0, %v1190
        %v1192 = vmul.f32 %v1189, %v1191
        %v1193 = vadd.f32 %v1189, %v1192
        %vm1194 = vweird.f32 %v877
        %vm1195 = vweird.f32 %v1189
        %vm1196 = vmor %vm1194, %vm1195
        %v1197 = vsel %vm1196, %v1189, %v1193
        %v1198 = vand.u32 2147483647, %v877
        %vm1199 = vcmp.eq.f32.partialorder %v1198, 8.507059e+37
        %v1200 = vand.u32 %v877, 2147483648
        %v1201 = vor.u32 1.1754944e-38, %v1200
        %v1202 = vsel %vm1199, %v1201, %v1197
        %v1203 = vmul.f32 1.0, %v1202
        %v1204 = vrcp.pop %v878
        %v1205 = vmul.f32 %v878, %v1204
        %v1206 = vsub.f32 1.0, %v1205
        %v1207 = vmul.f32 %v1204, %v1206
        %v1208 = vadd.f32 %v1204, %v1207
        %vm1209 = vweird.f32 %v878
        %vm1210 = vweird.f32 %v1204
        %vm1211 = vmor %vm1209, %vm1210
        %v1212 = vsel %vm1211, %v1204, %v1208
        %v1213 = vand.u32 2147483647, %v878
        %vm1214 = vcmp.eq.f32.partialorder %v1213, 8.507059e+37
        %v1215 = vand.u32 %v878, 2147483648
        %v1216 = vor.u32 1.1754944e-38, %v1215
        %v1217 = vsel %vm1214, %v1216, %v1212
        %v1218 = vmul.f32 1.0, %v1217
        %v1219 = vrcp.pop %v879
        %v1220 = vmul.f32 %v879, %v1219
        %v1221 = vsub.f32 1.0, %v1220
        %v1222 = vmul.f32 %v1219, %v1221
        %v1223 = vadd.f32 %v1219, %v1222
        %vm1224 = vweird.f32 %v879
        %vm1225 = vweird.f32 %v1219
        %vm1226 = vmor %vm1224, %vm1225
        %v1227 = vsel %vm1226, %v1219, %v1223
        %v1228 = vand.u32 2147483647, %v879
        %vm1229 = vcmp.eq.f32.partialorder %v1228, 8.507059e+37
        %v1230 = vand.u32 %v879, 2147483648
        %v1231 = vor.u32 1.1754944e-38, %v1230
        %v1232 = vsel %vm1229, %v1231, %v1227
        %v1233 = vmul.f32 1.0, %v1232
        %v1234 = vrcp.pop %v880
        %v1235 = vmul.f32 %v880, %v1234
        %v1236 = vsub.f32 1.0, %v1235
        %v1237 = vmul.f32 %v1234, %v1236
        %v1238 = vadd.f32 %v1234, %v1237
        %vm1239 = vweird.f32 %v880
        %vm1240 = vweird.f32 %v1234
        %vm1241 = vmor %vm1239, %vm1240
        %v1242 = vsel %vm1241, %v1234, %v1238
        %v1243 = vand.u32 2147483647, %v880
        %vm1244 = vcmp.eq.f32.partialorder %v1243, 8.507059e+37
        %v1245 = vand.u32 %v880, 2147483648
        %v1246 = vor.u32 1.1754944e-38, %v1245
        %v1247 = vsel %vm1244, %v1246, %v1242
        %v1248 = vmul.f32 1.0, %v1247
        %v1249 = vrcp.pop %v881
        %v1250 = vmul.f32 %v881, %v1249
        %v1251 = vsub.f32 1.0, %v1250
        %v1252 = vmul.f32 %v1249, %v1251
        %v1253 = vadd.f32 %v1249, %v1252
        %vm1254 = vweird.f32 %v881
        %vm1255 = vweird.f32 %v1249
        %vm1256 = vmor %vm1254, %vm1255
        %v1257 = vsel %vm1256, %v1249, %v1253
        %v1258 = vand.u32 2147483647, %v881
        %vm1259 = vcmp.eq.f32.partialorder %v1258, 8.507059e+37
        %v1260 = vand.u32 %v881, 2147483648
        %v1261 = vor.u32 1.1754944e-38, %v1260
        %v1262 = vsel %vm1259, %v1261, %v1257
        %v1263 = vmul.f32 1.0, %v1262
        %v1264 = vrcp.pop %v882
        %v1265 = vmul.f32 %v882, %v1264
        %v1266 = vsub.f32 1.0, %v1265
        %v1267 = vmul.f32 %v1264, %v1266
        %v1268 = vadd.f32 %v1264, %v1267
        %vm1269 = vweird.f32 %v882
        %vm1270 = vweird.f32 %v1264
        %vm1271 = vmor %vm1269, %vm1270
        %v1272 = vsel %vm1271, %v1264, %v1268
        %v1273 = vand.u32 2147483647, %v882
        %vm1274 = vcmp.eq.f32.partialorder %v1273, 8.507059e+37
        %v1275 = vand.u32 %v882, 2147483648
        %v1276 = vor.u32 1.1754944e-38, %v1275
        %v1277 = vsel %vm1274, %v1276, %v1272
        %v1278 = vmul.f32 1.0, %v1277
        %v1279 = vrcp.pop %v883
        %v1280 = vmul.f32 %v883, %v1279
        %v1281 = vsub.f32 1.0, %v1280
        %v1282 = vmul.f32 %v1279, %v1281
        %v1283 = vadd.f32 %v1279, %v1282
        %vm1284 = vweird.f32 %v883
        %vm1285 = vweird.f32 %v1279
        %vm1286 = vmor %vm1284, %vm1285
        %v1287 = vsel %vm1286, %v1279, %v1283
        %v1288 = vand.u32 2147483647, %v883
        %vm1289 = vcmp.eq.f32.partialorder %v1288, 8.507059e+37
        %v1290 = vand.u32 %v883, 2147483648
        %v1291 = vor.u32 1.1754944e-38, %v1290
        %v1292 = vsel %vm1289, %v1291, %v1287
        %v1293 = vmul.f32 1.0, %v1292
        %v1294 = vrcp.pop %v884
        %v1295 = vmul.f32 %v884, %v1294
        %v1296 = vsub.f32 1.0, %v1295
        %v1297 = vmul.f32 %v1294, %v1296
        %v1298 = vadd.f32 %v1294, %v1297
        %vm1299 = vweird.f32 %v884
        %vm1300 = vweird.f32 %v1294
        %vm1301 = vmor %vm1299, %vm1300
        %v1302 = vsel %vm1301, %v1294, %v1298
        %v1303 = vand.u32 2147483647, %v884
        %vm1304 = vcmp.eq.f32.partialorder %v1303, 8.507059e+37
        %v1305 = vand.u32 %v884, 2147483648
        %v1306 = vor.u32 1.1754944e-38, %v1305
        %v1307 = vsel %vm1304, %v1306, %v1302
        %v1308 = vmul.f32 1.0, %v1307
        %v1309 = vrcp.pop %v885
        %v1310 = vmul.f32 %v885, %v1309
        %v1311 = vsub.f32 1.0, %v1310
        %v1312 = vmul.f32 %v1309, %v1311
        %v1313 = vadd.f32 %v1309, %v1312
        %vm1314 = vweird.f32 %v885
        %vm1315 = vweird.f32 %v1309
        %vm1316 = vmor %vm1314, %vm1315
        %v1317 = vsel %vm1316, %v1309, %v1313
        %v1318 = vand.u32 2147483647, %v885
        %vm1319 = vcmp.eq.f32.partialorder %v1318, 8.507059e+37
        %v1320 = vand.u32 %v885, 2147483648
        %v1321 = vor.u32 1.1754944e-38, %v1320
        %v1322 = vsel %vm1319, %v1321, %v1317
        %v1323 = vmul.f32 1.0, %v1322
        %v1324 = vrcp.pop %v886
        %v1325 = vmul.f32 %v886, %v1324
        %v1326 = vsub.f32 1.0, %v1325
        %v1327 = vmul.f32 %v1324, %v1326
        %v1328 = vadd.f32 %v1324, %v1327
        %vm1329 = vweird.f32 %v886
        %vm1330 = vweird.f32 %v1324
        %vm1331 = vmor %vm1329, %vm1330
        %v1332 = vsel %vm1331, %v1324, %v1328
        %v1333 = vand.u32 2147483647, %v886
        %vm1334 = vcmp.eq.f32.partialorder %v1333, 8.507059e+37
        %v1335 = vand.u32 %v886, 2147483648
        %v1336 = vor.u32 1.1754944e-38, %v1335
        %v1337 = vsel %vm1334, %v1336, %v1332
        %v1338 = vmul.f32 1.0, %v1337
        %v1339 = vrcp.pop %v887
        %v1340 = vmul.f32 %v887, %v1339
        %v1341 = vsub.f32 1.0, %v1340
        %v1342 = vmul.f32 %v1339, %v1341
        %v1343 = vadd.f32 %v1339, %v1342
        %vm1344 = vweird.f32 %v887
        %vm1345 = vweird.f32 %v1339
        %vm1346 = vmor %vm1344, %vm1345
        %v1347 = vsel %vm1346, %v1339, %v1343
        %v1348 = vand.u32 2147483647, %v887
        %vm1349 = vcmp.eq.f32.partialorder %v1348, 8.507059e+37
        %v1350 = vand.u32 %v887, 2147483648
        %v1351 = vor.u32 1.1754944e-38, %v1350
        %v1352 = vsel %vm1349, %v1351, %v1347
        %v1353 = vmul.f32 1.0, %v1352
        %v1354 = vrcp.pop %v888
        %v1355 = vmul.f32 %v888, %v1354
        %v1356 = vsub.f32 1.0, %v1355
        %v1357 = vmul.f32 %v1354, %v1356
        %v1358 = vadd.f32 %v1354, %v1357
        %vm1359 = vweird.f32 %v888
        %vm1360 = vweird.f32 %v1354
        %vm1361 = vmor %vm1359, %vm1360
        %v1362 = vsel %vm1361, %v1354, %v1358
        %v1363 = vand.u32 2147483647, %v888
        %vm1364 = vcmp.eq.f32.partialorder %v1363, 8.507059e+37
        %v1365 = vand.u32 %v888, 2147483648
        %v1366 = vor.u32 1.1754944e-38, %v1365
        %v1367 = vsel %vm1364, %v1366, %v1362
        %v1368 = vmul.f32 1.0, %v1367
        %v1369 = vmul.f32 %v729, %v903
        %v1370 = vmul.f32 %v730, %v918
        %v1371 = vmul.f32 %v731, %v933
        %v1372 = vmul.f32 %v732, %v948
        %v1373 = vmul.f32 %v733, %v963
        %v1374 = vmul.f32 %v734, %v978
        %v1375 = vmul.f32 %v735, %v993
        %v1376 = vmul.f32 %v736, %v1008
        %v1377 = vmul.f32 %v737, %v1023
        %v1378 = vmul.f32 %v738, %v1038
        %v1379 = vmul.f32 %v739, %v1053
        %v1380 = vmul.f32 %v740, %v1068
        %v1381 = vmul.f32 %v741, %v1083
        %v1382 = vmul.f32 %v742, %v1098
        %v1383 = vmul.f32 %v743, %v1113
        %v1384 = vmul.f32 %v744, %v1128
        %v1385 = vmul.f32 %v745, %v1143
        %v1386 = vmul.f32 %v746, %v1158
        %v1387 = vmul.f32 %v747, %v1173
        %v1388 = vmul.f32 %v748, %v1188
        %v1389 = vmul.f32 %v749, %v1203
        %v1390 = vmul.f32 %v750, %v1218
        %v1391 = vmul.f32 %v751, %v1233
        %v1392 = vmul.f32 %v752, %v1248
        %v1393 = vmul.f32 %v753, %v1263
        %v1394 = vmul.f32 %v754, %v1278
        %v1395 = vmul.f32 %v755, %v1293
        %v1396 = vmul.f32 %v756, %v1308
        %v1397 = vmul.f32 %v757, %v1323
        %v1398 = vmul.f32 %v758, %v1338
        %v1399 = vmul.f32 %v759, %v1353
        %v1400 = vmul.f32 %v760, %v1368
        %s1401 = scalar_lea.vmem [#allocation2], 24
        %1402 = vst.msk [vmem:[%s1401 + $0x1] sm:$0xff] %vm522, %v1369
        %1403 = vst.msk [vmem:[%s1401 + $0x9] sm:$0xff] %vm522, %v1370
        %1404 = vst.msk [vmem:[%s1401 + $0x19] sm:$0xff] %vm522, %v1371
        %1405 = vst.msk [vmem:[%s1401 + $0x21] sm:$0xff] %vm522, %v1372
        %1406 = vst.msk [vmem:[%s1401 + $0x31] sm:$0xff] %vm522, %v1373
        %1407 = vst.msk [vmem:[%s1401 + $0x39] sm:$0xff] %vm522, %v1374
        %1408 = vst.msk [vmem:[%s1401 + $0x49] sm:$0xff] %vm522, %v1375
        %1409 = vst.msk [vmem:[%s1401 + $0x51] sm:$0xff] %vm522, %v1376
        %1410 = vst.msk [vmem:[%s1401 + $0x61] sm:$0xff] %vm522, %v1377
        %1411 = vst.msk [vmem:[%s1401 + $0x69] sm:$0xff] %vm522, %v1378
        %1412 = vst.msk [vmem:[%s1401 + $0x79] sm:$0xff] %vm522, %v1379
        %1413 = vst.msk [vmem:[%s1401 + $0x81] sm:$0xff] %vm522, %v1380
        %1414 = vst.msk [vmem:[%s1401 + $0x91] sm:$0xff] %vm522, %v1381
        %1415 = vst.msk [vmem:[%s1401 + $0x99] sm:$0xff] %vm522, %v1382
        %1416 = vst.msk [vmem:[%s1401 + $0xa9] sm:$0xff] %vm522, %v1383
        %1417 = vst.msk [vmem:[%s1401 + $0xb1] sm:$0xff] %vm522, %v1384
        %1418 = vst.msk [vmem:[%s1401 + $0xc1] sm:$0xff] %vm522, %v1385
        %1419 = vst.msk [vmem:[%s1401 + $0xc9] sm:$0xff] %vm522, %v1386
        %1420 = vst.msk [vmem:[%s1401 + $0xd9] sm:$0xff] %vm522, %v1387
        %1421 = vst.msk [vmem:[%s1401 + $0xe1] sm:$0xff] %vm522, %v1388
        %1422 = vst.msk [vmem:[%s1401 + $0xf1] sm:$0xff] %vm522, %v1389
        %1423 = vst.msk [vmem:[%s1401 + $0xf9] sm:$0xff] %vm522, %v1390
        %1424 = vst.msk [vmem:[%s1401 + $0x109] sm:$0xff] %vm522, %v1391
        %1425 = vst.msk [vmem:[%s1401 + $0x111] sm:$0xff] %vm522, %v1392
        %1426 = vst.msk [vmem:[%s1401 + $0x121] sm:$0xff] %vm522, %v1393
        %1427 = vst.msk [vmem:[%s1401 + $0x129] sm:$0xff] %vm522, %v1394
        %1428 = vst.msk [vmem:[%s1401 + $0x139] sm:$0xff] %vm522, %v1395
        %1429 = vst.msk [vmem:[%s1401 + $0x141] sm:$0xff] %vm522, %v1396
        %1430 = vst.msk [vmem:[%s1401 + $0x151] sm:$0xff] %vm522, %v1397
        %1431 = vst.msk [vmem:[%s1401 + $0x159] sm:$0xff] %vm522, %v1398
        %1432 = vst.msk [vmem:[%s1401 + $0x169] sm:$0xff] %vm522, %v1399
        %1433 = vst.msk [vmem:[%s1401 + $0x171] sm:$0xff] %vm522, %v1400
        %v1434 = vld [vmem:[%s6] sm:$0x1]
        %v1435 = vld [vmem:[#allocation2] sm:$0xff]
        %v1436 = vld [vmem:[#allocation2 + $0x8] sm:$0xff]
        %v1437 = vld [vmem:[#allocation2 + $0x18] sm:$0xff]
        %v1438 = vld [vmem:[#allocation2 + $0x20] sm:$0xff]
        %v1439 = vld [vmem:[#allocation2 + $0x30] sm:$0xff]
        %v1440 = vld [vmem:[#allocation2 + $0x38] sm:$0xff]
        %v1441 = vld [vmem:[#allocation2 + $0x48] sm:$0xff]
        %v1442 = vld [vmem:[#allocation2 + $0x50] sm:$0xff]
        %v1443 = vld [vmem:[#allocation2 + $0x60] sm:$0xff]
        %v1444 = vld [vmem:[#allocation2 + $0x68] sm:$0xff]
        %v1445 = vld [vmem:[#allocation2 + $0x78] sm:$0xff]
        %v1446 = vld [vmem:[#allocation2 + $0x80] sm:$0xff]
        %v1447 = vld [vmem:[#allocation2 + $0x90] sm:$0xff]
        %v1448 = vld [vmem:[#allocation2 + $0x98] sm:$0xff]
        %v1449 = vld [vmem:[#allocation2 + $0xa8] sm:$0xff]
        %v1450 = vld [vmem:[#allocation2 + $0xb0] sm:$0xff]
        %v1451 = vld [vmem:[#allocation2 + $0xc0] sm:$0xff]
        %v1452 = vld [vmem:[#allocation2 + $0xc8] sm:$0xff]
        %v1453 = vld [vmem:[#allocation2 + $0xd8] sm:$0xff]
        %v1454 = vld [vmem:[#allocation2 + $0xe0] sm:$0xff]
        %v1455 = vld [vmem:[#allocation2 + $0xf0] sm:$0xff]
        %v1456 = vld [vmem:[#allocation2 + $0xf8] sm:$0xff]
        %v1457 = vld [vmem:[#allocation2 + $0x108] sm:$0xff]
        %v1458 = vld [vmem:[#allocation2 + $0x110] sm:$0xff]
        %v1459 = vld [vmem:[#allocation2 + $0x120] sm:$0xff]
        %v1460 = vld [vmem:[#allocation2 + $0x128] sm:$0xff]
        %v1461 = vld [vmem:[#allocation2 + $0x138] sm:$0xff]
        %v1462 = vld [vmem:[#allocation2 + $0x140] sm:$0xff]
        %v1463 = vld [vmem:[#allocation2 + $0x150] sm:$0xff]
        %v1464 = vld [vmem:[#allocation2 + $0x158] sm:$0xff]
        %v1465 = vld [vmem:[#allocation2 + $0x168] sm:$0xff]
        %v1466 = vld [vmem:[#allocation2 + $0x170] sm:$0xff]
        %v1467 = vld [vmem:[#allocation2 + $0x1] sm:$0xff]
        %v1468 = vld [vmem:[#allocation2 + $0x9] sm:$0xff]
        %v1469 = vld [vmem:[#allocation2 + $0x19] sm:$0xff]
        %v1470 = vld [vmem:[#allocation2 + $0x21] sm:$0xff]
        %v1471 = vld [vmem:[#allocation2 + $0x31] sm:$0xff]
        %v1472 = vld [vmem:[#allocation2 + $0x39] sm:$0xff]
        %v1473 = vld [vmem:[#allocation2 + $0x49] sm:$0xff]
        %v1474 = vld [vmem:[#allocation2 + $0x51] sm:$0xff]
        %v1475 = vld [vmem:[#allocation2 + $0x61] sm:$0xff]
        %v1476 = vld [vmem:[#allocation2 + $0x69] sm:$0xff]
        %v1477 = vld [vmem:[#allocation2 + $0x79] sm:$0xff]
        %v1478 = vld [vmem:[#allocation2 + $0x81] sm:$0xff]
        %v1479 = vld [vmem:[#allocation2 + $0x91] sm:$0xff]
        %v1480 = vld [vmem:[#allocation2 + $0x99] sm:$0xff]
        %v1481 = vld [vmem:[#allocation2 + $0xa9] sm:$0xff]
        %v1482 = vld [vmem:[#allocation2 + $0xb1] sm:$0xff]
        %v1483 = vld [vmem:[#allocation2 + $0xc1] sm:$0xff]
        %v1484 = vld [vmem:[#allocation2 + $0xc9] sm:$0xff]
        %v1485 = vld [vmem:[#allocation2 + $0xd9] sm:$0xff]
        %v1486 = vld [vmem:[#allocation2 + $0xe1] sm:$0xff]
        %v1487 = vld [vmem:[#allocation2 + $0xf1] sm:$0xff]
        %v1488 = vld [vmem:[#allocation2 + $0xf9] sm:$0xff]
        %v1489 = vld [vmem:[#allocation2 + $0x109] sm:$0xff]
        %v1490 = vld [vmem:[#allocation2 + $0x111] sm:$0xff]
        %v1491 = vld [vmem:[#allocation2 + $0x121] sm:$0xff]
        %v1492 = vld [vmem:[#allocation2 + $0x129] sm:$0xff]
        %v1493 = vld [vmem:[#allocation2 + $0x139] sm:$0xff]
        %v1494 = vld [vmem:[#allocation2 + $0x141] sm:$0xff]
        %v1495 = vld [vmem:[#allocation2 + $0x151] sm:$0xff]
        %v1496 = vld [vmem:[#allocation2 + $0x159] sm:$0xff]
        %v1497 = vld [vmem:[#allocation2 + $0x169] sm:$0xff]
        %v1498 = vld [vmem:[#allocation2 + $0x171] sm:$0xff]
        %v1499 = vld [vmem:[#allocation2 + $0x2] sm:$0xff]
        %v1500 = vld [vmem:[#allocation2 + $0xa] sm:$0xff]
        %v1501 = vld [vmem:[#allocation2 + $0x1a] sm:$0xff]
        %v1502 = vld [vmem:[#allocation2 + $0x22] sm:$0xff]
        %v1503 = vld [vmem:[#allocation2 + $0x32] sm:$0xff]
        %v1504 = vld [vmem:[#allocation2 + $0x3a] sm:$0xff]
        %v1505 = vld [vmem:[#allocation2 + $0x4a] sm:$0xff]
        %v1506 = vld [vmem:[#allocation2 + $0x52] sm:$0xff]
        %v1507 = vld [vmem:[#allocation2 + $0x62] sm:$0xff]
        %v1508 = vld [vmem:[#allocation2 + $0x6a] sm:$0xff]
        %v1509 = vld [vmem:[#allocation2 + $0x7a] sm:$0xff]
        %v1510 = vld [vmem:[#allocation2 + $0x82] sm:$0xff]
        %v1511 = vld [vmem:[#allocation2 + $0x92] sm:$0xff]
        %v1512 = vld [vmem:[#allocation2 + $0x9a] sm:$0xff]
        %v1513 = vld [vmem:[#allocation2 + $0xaa] sm:$0xff]
        %v1514 = vld [vmem:[#allocation2 + $0xb2] sm:$0xff]
        %v1515 = vld [vmem:[#allocation2 + $0xc2] sm:$0xff]
        %v1516 = vld [vmem:[#allocation2 + $0xca] sm:$0xff]
        %v1517 = vld [vmem:[#allocation2 + $0xda] sm:$0xff]
        %v1518 = vld [vmem:[#allocation2 + $0xe2] sm:$0xff]
        %v1519 = vld [vmem:[#allocation2 + $0xf2] sm:$0xff]
        %v1520 = vld [vmem:[#allocation2 + $0xfa] sm:$0xff]
        %v1521 = vld [vmem:[#allocation2 + $0x10a] sm:$0xff]
        %v1522 = vld [vmem:[#allocation2 + $0x112] sm:$0xff]
        %v1523 = vld [vmem:[#allocation2 + $0x122] sm:$0xff]
        %v1524 = vld [vmem:[#allocation2 + $0x12a] sm:$0xff]
        %v1525 = vld [vmem:[#allocation2 + $0x13a] sm:$0xff]
        %v1526 = vld [vmem:[#allocation2 + $0x142] sm:$0xff]
        %v1527 = vld [vmem:[#allocation2 + $0x152] sm:$0xff]
        %v1528 = vld [vmem:[#allocation2 + $0x15a] sm:$0xff]
        %v1529 = vld [vmem:[#allocation2 + $0x16a] sm:$0xff]
        %v1530 = vld [vmem:[#allocation2 + $0x172] sm:$0xff]
        %v1531 = vld [vmem:[%s1401] sm:$0xff]
        %v1532 = vld [vmem:[%s1401 + $0x8] sm:$0xff]
        %v1533 = vld [vmem:[%s1401 + $0x18] sm:$0xff]
        %v1534 = vld [vmem:[%s1401 + $0x20] sm:$0xff]
        %v1535 = vld [vmem:[%s1401 + $0x30] sm:$0xff]
        %v1536 = vld [vmem:[%s1401 + $0x38] sm:$0xff]
        %v1537 = vld [vmem:[%s1401 + $0x48] sm:$0xff]
        %v1538 = vld [vmem:[%s1401 + $0x50] sm:$0xff]
        %v1539 = vld [vmem:[%s1401 + $0x60] sm:$0xff]
        %v1540 = vld [vmem:[%s1401 + $0x68] sm:$0xff]
        %v1541 = vld [vmem:[%s1401 + $0x78] sm:$0xff]
        %v1542 = vld [vmem:[%s1401 + $0x80] sm:$0xff]
        %v1543 = vld [vmem:[%s1401 + $0x90] sm:$0xff]
        %v1544 = vld [vmem:[%s1401 + $0x98] sm:$0xff]
        %v1545 = vld [vmem:[%s1401 + $0xa8] sm:$0xff]
        %v1546 = vld [vmem:[%s1401 + $0xb0] sm:$0xff]
        %v1547 = vld [vmem:[%s1401 + $0xc0] sm:$0xff]
        %v1548 = vld [vmem:[%s1401 + $0xc8] sm:$0xff]
        %v1549 = vld [vmem:[%s1401 + $0xd8] sm:$0xff]
        %v1550 = vld [vmem:[%s1401 + $0xe0] sm:$0xff]
        %v1551 = vld [vmem:[%s1401 + $0xf0] sm:$0xff]
        %v1552 = vld [vmem:[%s1401 + $0xf8] sm:$0xff]
        %v1553 = vld [vmem:[%s1401 + $0x108] sm:$0xff]
        %v1554 = vld [vmem:[%s1401 + $0x110] sm:$0xff]
        %v1555 = vld [vmem:[%s1401 + $0x120] sm:$0xff]
        %v1556 = vld [vmem:[%s1401 + $0x128] sm:$0xff]
        %v1557 = vld [vmem:[%s1401 + $0x138] sm:$0xff]
        %v1558 = vld [vmem:[%s1401 + $0x140] sm:$0xff]
        %v1559 = vld [vmem:[%s1401 + $0x150] sm:$0xff]
        %v1560 = vld [vmem:[%s1401 + $0x158] sm:$0xff]
        %v1561 = vld [vmem:[%s1401 + $0x168] sm:$0xff]
        %v1562 = vld [vmem:[%s1401 + $0x170] sm:$0xff]
        %v1563 = vld [vmem:[%s1401 + $0x1] sm:$0xff]
        %v1564 = vld [vmem:[%s1401 + $0x9] sm:$0xff]
        %v1565 = vld [vmem:[%s1401 + $0x19] sm:$0xff]
        %v1566 = vld [vmem:[%s1401 + $0x21] sm:$0xff]
        %v1567 = vld [vmem:[%s1401 + $0x31] sm:$0xff]
        %v1568 = vld [vmem:[%s1401 + $0x39] sm:$0xff]
        %v1569 = vld [vmem:[%s1401 + $0x49] sm:$0xff]
        %v1570 = vld [vmem:[%s1401 + $0x51] sm:$0xff]
        %v1571 = vld [vmem:[%s1401 + $0x61] sm:$0xff]
        %v1572 = vld [vmem:[%s1401 + $0x69] sm:$0xff]
        %v1573 = vld [vmem:[%s1401 + $0x79] sm:$0xff]
        %v1574 = vld [vmem:[%s1401 + $0x81] sm:$0xff]
        %v1575 = vld [vmem:[%s1401 + $0x91] sm:$0xff]
        %v1576 = vld [vmem:[%s1401 + $0x99] sm:$0xff]
        %v1577 = vld [vmem:[%s1401 + $0xa9] sm:$0xff]
        %v1578 = vld [vmem:[%s1401 + $0xb1] sm:$0xff]
        %v1579 = vld [vmem:[%s1401 + $0xc1] sm:$0xff]
        %v1580 = vld [vmem:[%s1401 + $0xc9] sm:$0xff]
        %v1581 = vld [vmem:[%s1401 + $0xd9] sm:$0xff]
        %v1582 = vld [vmem:[%s1401 + $0xe1] sm:$0xff]
        %v1583 = vld [vmem:[%s1401 + $0xf1] sm:$0xff]
        %v1584 = vld [vmem:[%s1401 + $0xf9] sm:$0xff]
        %v1585 = vld [vmem:[%s1401 + $0x109] sm:$0xff]
        %v1586 = vld [vmem:[%s1401 + $0x111] sm:$0xff]
        %v1587 = vld [vmem:[%s1401 + $0x121] sm:$0xff]
        %v1588 = vld [vmem:[%s1401 + $0x129] sm:$0xff]
        %v1589 = vld [vmem:[%s1401 + $0x139] sm:$0xff]
        %v1590 = vld [vmem:[%s1401 + $0x141] sm:$0xff]
        %v1591 = vld [vmem:[%s1401 + $0x151] sm:$0xff]
        %v1592 = vld [vmem:[%s1401 + $0x159] sm:$0xff]
        %v1593 = vld [vmem:[%s1401 + $0x169] sm:$0xff]
        %v1594 = vld [vmem:[%s1401 + $0x171] sm:$0xff]
        %v1595 = vld [vmem:[%s1401 + $0x2] sm:$0xff]
        %v1596 = vld [vmem:[%s1401 + $0xa] sm:$0xff]
        %v1597 = vld [vmem:[%s1401 + $0x1a] sm:$0xff]
        %v1598 = vld [vmem:[%s1401 + $0x22] sm:$0xff]
        %v1599 = vld [vmem:[%s1401 + $0x32] sm:$0xff]
        %v1600 = vld [vmem:[%s1401 + $0x3a] sm:$0xff]
        %v1601 = vld [vmem:[%s1401 + $0x4a] sm:$0xff]
        %v1602 = vld [vmem:[%s1401 + $0x52] sm:$0xff]
        %v1603 = vld [vmem:[%s1401 + $0x62] sm:$0xff]
        %v1604 = vld [vmem:[%s1401 + $0x6a] sm:$0xff]
        %v1605 = vld [vmem:[%s1401 + $0x7a] sm:$0xff]
        %v1606 = vld [vmem:[%s1401 + $0x82] sm:$0xff]
        %v1607 = vld [vmem:[%s1401 + $0x92] sm:$0xff]
        %v1608 = vld [vmem:[%s1401 + $0x9a] sm:$0xff]
        %v1609 = vld [vmem:[%s1401 + $0xaa] sm:$0xff]
        %v1610 = vld [vmem:[%s1401 + $0xb2] sm:$0xff]
        %v1611 = vld [vmem:[%s1401 + $0xc2] sm:$0xff]
        %v1612 = vld [vmem:[%s1401 + $0xca] sm:$0xff]
        %v1613 = vld [vmem:[%s1401 + $0xda] sm:$0xff]
        %v1614 = vld [vmem:[%s1401 + $0xe2] sm:$0xff]
        %v1615 = vld [vmem:[%s1401 + $0xf2] sm:$0xff]
        %v1616 = vld [vmem:[%s1401 + $0xfa] sm:$0xff]
        %v1617 = vld [vmem:[%s1401 + $0x10a] sm:$0xff]
        %v1618 = vld [vmem:[%s1401 + $0x112] sm:$0xff]
        %v1619 = vld [vmem:[%s1401 + $0x122] sm:$0xff]
        %v1620 = vld [vmem:[%s1401 + $0x12a] sm:$0xff]
        %v1621 = vld [vmem:[%s1401 + $0x13a] sm:$0xff]
        %v1622 = vld [vmem:[%s1401 + $0x142] sm:$0xff]
        %v1623 = vld [vmem:[%s1401 + $0x152] sm:$0xff]
        %v1624 = vld [vmem:[%s1401 + $0x15a] sm:$0xff]
        %v1625 = vld [vmem:[%s1401 + $0x16a] sm:$0xff]
        %v1626 = vld [vmem:[%s1401 + $0x172] sm:$0xff]
        %s1627 = scalar_lea.vmem [#allocation2], 48
        %v1628 = vld [vmem:[%s1627] sm:$0xff]
        %v1629 = vld [vmem:[%s1627 + $0x8] sm:$0xff]
        %v1630 = vld [vmem:[%s1627 + $0x18] sm:$0xff]
        %v1631 = vld [vmem:[%s1627 + $0x20] sm:$0xff]
        %v1632 = vld [vmem:[%s1627 + $0x30] sm:$0xff]
        %v1633 = vld [vmem:[%s1627 + $0x38] sm:$0xff]
        %v1634 = vld [vmem:[%s1627 + $0x48] sm:$0xff]
        %v1635 = vld [vmem:[%s1627 + $0x50] sm:$0xff]
        %v1636 = vld [vmem:[%s1627 + $0x60] sm:$0xff]
        %v1637 = vld [vmem:[%s1627 + $0x68] sm:$0xff]
        %v1638 = vld [vmem:[%s1627 + $0x78] sm:$0xff]
        %v1639 = vld [vmem:[%s1627 + $0x80] sm:$0xff]
        %v1640 = vld [vmem:[%s1627 + $0x90] sm:$0xff]
        %v1641 = vld [vmem:[%s1627 + $0x98] sm:$0xff]
        %v1642 = vld [vmem:[%s1627 + $0xa8] sm:$0xff]
        %v1643 = vld [vmem:[%s1627 + $0xb0] sm:$0xff]
        %v1644 = vld [vmem:[%s1627 + $0xc0] sm:$0xff]
        %v1645 = vld [vmem:[%s1627 + $0xc8] sm:$0xff]
        %v1646 = vld [vmem:[%s1627 + $0xd8] sm:$0xff]
        %v1647 = vld [vmem:[%s1627 + $0xe0] sm:$0xff]
        %v1648 = vld [vmem:[%s1627 + $0xf0] sm:$0xff]
        %v1649 = vld [vmem:[%s1627 + $0xf8] sm:$0xff]
        %v1650 = vld [vmem:[%s1627 + $0x108] sm:$0xff]
        %v1651 = vld [vmem:[%s1627 + $0x110] sm:$0xff]
        %v1652 = vld [vmem:[%s1627 + $0x120] sm:$0xff]
        %v1653 = vld [vmem:[%s1627 + $0x128] sm:$0xff]
        %v1654 = vld [vmem:[%s1627 + $0x138] sm:$0xff]
        %v1655 = vld [vmem:[%s1627 + $0x140] sm:$0xff]
        %v1656 = vld [vmem:[%s1627 + $0x150] sm:$0xff]
        %v1657 = vld [vmem:[%s1627 + $0x158] sm:$0xff]
        %v1658 = vld [vmem:[%s1627 + $0x168] sm:$0xff]
        %v1659 = vld [vmem:[%s1627 + $0x170] sm:$0xff]
        %v1660 = vld [vmem:[%s1627 + $0x1] sm:$0xff]
        %v1661 = vld [vmem:[%s1627 + $0x9] sm:$0xff]
        %v1662 = vld [vmem:[%s1627 + $0x19] sm:$0xff]
        %v1663 = vld [vmem:[%s1627 + $0x21] sm:$0xff]
        %v1664 = vld [vmem:[%s1627 + $0x31] sm:$0xff]
        %v1665 = vld [vmem:[%s1627 + $0x39] sm:$0xff]
        %v1666 = vld [vmem:[%s1627 + $0x49] sm:$0xff]
        %v1667 = vld [vmem:[%s1627 + $0x51] sm:$0xff]
        %v1668 = vld [vmem:[%s1627 + $0x61] sm:$0xff]
        %v1669 = vld [vmem:[%s1627 + $0x69] sm:$0xff]
        %v1670 = vld [vmem:[%s1627 + $0x79] sm:$0xff]
        %v1671 = vld [vmem:[%s1627 + $0x81] sm:$0xff]
        %v1672 = vld [vmem:[%s1627 + $0x91] sm:$0xff]
        %v1673 = vld [vmem:[%s1627 + $0x99] sm:$0xff]
        %v1674 = vld [vmem:[%s1627 + $0xa9] sm:$0xff]
        %v1675 = vld [vmem:[%s1627 + $0xb1] sm:$0xff]
        %v1676 = vld [vmem:[%s1627 + $0xc1] sm:$0xff]
        %v1677 = vld [vmem:[%s1627 + $0xc9] sm:$0xff]
        %v1678 = vld [vmem:[%s1627 + $0xd9] sm:$0xff]
        %v1679 = vld [vmem:[%s1627 + $0xe1] sm:$0xff]
        %v1680 = vld [vmem:[%s1627 + $0xf1] sm:$0xff]
        %v1681 = vld [vmem:[%s1627 + $0xf9] sm:$0xff]
        %v1682 = vld [vmem:[%s1627 + $0x109] sm:$0xff]
        %v1683 = vld [vmem:[%s1627 + $0x111] sm:$0xff]
        %v1684 = vld [vmem:[%s1627 + $0x121] sm:$0xff]
        %v1685 = vld [vmem:[%s1627 + $0x129] sm:$0xff]
        %v1686 = vld [vmem:[%s1627 + $0x139] sm:$0xff]
        %v1687 = vld [vmem:[%s1627 + $0x141] sm:$0xff]
        %v1688 = vld [vmem:[%s1627 + $0x151] sm:$0xff]
        %v1689 = vld [vmem:[%s1627 + $0x159] sm:$0xff]
        %v1690 = vld [vmem:[%s1627 + $0x169] sm:$0xff]
        %v1691 = vld [vmem:[%s1627 + $0x171] sm:$0xff]
        %v1692 = vld [vmem:[%s1627 + $0x2] sm:$0xff]
        %v1693 = vld [vmem:[%s1627 + $0xa] sm:$0xff]
        %v1694 = vld [vmem:[%s1627 + $0x1a] sm:$0xff]
        %v1695 = vld [vmem:[%s1627 + $0x22] sm:$0xff]
        %v1696 = vld [vmem:[%s1627 + $0x32] sm:$0xff]
        %v1697 = vld [vmem:[%s1627 + $0x3a] sm:$0xff]
        %v1698 = vld [vmem:[%s1627 + $0x4a] sm:$0xff]
        %v1699 = vld [vmem:[%s1627 + $0x52] sm:$0xff]
        %v1700 = vld [vmem:[%s1627 + $0x62] sm:$0xff]
        %v1701 = vld [vmem:[%s1627 + $0x6a] sm:$0xff]
        %v1702 = vld [vmem:[%s1627 + $0x7a] sm:$0xff]
        %v1703 = vld [vmem:[%s1627 + $0x82] sm:$0xff]
        %v1704 = vld [vmem:[%s1627 + $0x92] sm:$0xff]
        %v1705 = vld [vmem:[%s1627 + $0x9a] sm:$0xff]
        %v1706 = vld [vmem:[%s1627 + $0xaa] sm:$0xff]
        %v1707 = vld [vmem:[%s1627 + $0xb2] sm:$0xff]
        %v1708 = vld [vmem:[%s1627 + $0xc2] sm:$0xff]
        %v1709 = vld [vmem:[%s1627 + $0xca] sm:$0xff]
        %v1710 = vld [vmem:[%s1627 + $0xda] sm:$0xff]
        %v1711 = vld [vmem:[%s1627 + $0xe2] sm:$0xff]
        %v1712 = vld [vmem:[%s1627 + $0xf2] sm:$0xff]
        %v1713 = vld [vmem:[%s1627 + $0xfa] sm:$0xff]
        %v1714 = vld [vmem:[%s1627 + $0x10a] sm:$0xff]
        %v1715 = vld [vmem:[%s1627 + $0x112] sm:$0xff]
        %v1716 = vld [vmem:[%s1627 + $0x122] sm:$0xff]
        %v1717 = vld [vmem:[%s1627 + $0x12a] sm:$0xff]
        %v1718 = vld [vmem:[%s1627 + $0x13a] sm:$0xff]
        %v1719 = vld [vmem:[%s1627 + $0x142] sm:$0xff]
        %v1720 = vld [vmem:[%s1627 + $0x152] sm:$0xff]
        %v1721 = vld [vmem:[%s1627 + $0x15a] sm:$0xff]
        %v1722 = vld [vmem:[%s1627 + $0x16a] sm:$0xff]
        %v1723 = vld [vmem:[%s1627 + $0x172] sm:$0xff]
        %1756 = vrot.lane.b32.xlu0 %v1467, 4
        %v1757 = vpop.permute.xlu0 %1756
        %1758 = vrot.lane.b32.xlu0 %v1468, 4
        %v1759 = vpop.permute.xlu0 %1758
        %1760 = vrot.lane.b32.xlu0 %v1469, 4
        %v1761 = vpop.permute.xlu0 %1760
        %1762 = vrot.lane.b32.xlu0 %v1470, 4
        %v1763 = vpop.permute.xlu0 %1762
        %1764 = vrot.lane.b32.xlu0 %v1471, 4
        %v1765 = vpop.permute.xlu0 %1764
        %1766 = vrot.lane.b32.xlu0 %v1472, 4
        %v1767 = vpop.permute.xlu0 %1766
        %1768 = vrot.lane.b32.xlu0 %v1473, 4
        %v1769 = vpop.permute.xlu0 %1768
        %1770 = vrot.lane.b32.xlu0 %v1474, 4
        %v1771 = vpop.permute.xlu0 %1770
        %1772 = vrot.lane.b32.xlu0 %v1475, 4
        %v1773 = vpop.permute.xlu0 %1772
        %1774 = vrot.lane.b32.xlu0 %v1476, 4
        %v1775 = vpop.permute.xlu0 %1774
        %1776 = vrot.lane.b32.xlu0 %v1477, 4
        %v1777 = vpop.permute.xlu0 %1776
        %1778 = vrot.lane.b32.xlu0 %v1478, 4
        %v1779 = vpop.permute.xlu0 %1778
        %1780 = vrot.lane.b32.xlu0 %v1479, 4
        %v1781 = vpop.permute.xlu0 %1780
        %1782 = vrot.lane.b32.xlu0 %v1480, 4
        %v1783 = vpop.permute.xlu0 %1782
        %1784 = vrot.lane.b32.xlu0 %v1481, 4
        %v1785 = vpop.permute.xlu0 %1784
        %1786 = vrot.lane.b32.xlu0 %v1482, 4
        %v1787 = vpop.permute.xlu0 %1786
        %1788 = vrot.lane.b32.xlu0 %v1483, 4
        %v1789 = vpop.permute.xlu0 %1788
        %1790 = vrot.lane.b32.xlu0 %v1484, 4
        %v1791 = vpop.permute.xlu0 %1790
        %1792 = vrot.lane.b32.xlu0 %v1485, 4
        %v1793 = vpop.permute.xlu0 %1792
        %1794 = vrot.lane.b32.xlu0 %v1486, 4
        %v1795 = vpop.permute.xlu0 %1794
        %1796 = vrot.lane.b32.xlu0 %v1487, 4
        %v1797 = vpop.permute.xlu0 %1796
        %1798 = vrot.lane.b32.xlu0 %v1488, 4
        %v1799 = vpop.permute.xlu0 %1798
        %1800 = vrot.lane.b32.xlu0 %v1489, 4
        %v1801 = vpop.permute.xlu0 %1800
        %1802 = vrot.lane.b32.xlu0 %v1490, 4
        %v1803 = vpop.permute.xlu0 %1802
        %1804 = vrot.lane.b32.xlu0 %v1491, 4
        %v1805 = vpop.permute.xlu0 %1804
        %1806 = vrot.lane.b32.xlu0 %v1492, 4
        %v1807 = vpop.permute.xlu0 %1806
        %1808 = vrot.lane.b32.xlu0 %v1493, 4
        %v1809 = vpop.permute.xlu0 %1808
        %1810 = vrot.lane.b32.xlu0 %v1494, 4
        %v1811 = vpop.permute.xlu0 %1810
        %1812 = vrot.lane.b32.xlu0 %v1495, 4
        %v1813 = vpop.permute.xlu0 %1812
        %1814 = vrot.lane.b32.xlu0 %v1496, 4
        %v1815 = vpop.permute.xlu0 %1814
        %1816 = vrot.lane.b32.xlu0 %v1497, 4
        %v1817 = vpop.permute.xlu0 %1816
        %1818 = vrot.lane.b32.xlu0 %v1498, 4
        %v1819 = vpop.permute.xlu0 %1818
        %1884 = vrot.lane.b32.xlu0 %v1499, 8
        %v1885 = vpop.permute.xlu0 %1884
        %1886 = vrot.lane.b32.xlu0 %v1500, 8
        %v1887 = vpop.permute.xlu0 %1886
        %1888 = vrot.lane.b32.xlu0 %v1501, 8
        %v1889 = vpop.permute.xlu0 %1888
        %1890 = vrot.lane.b32.xlu0 %v1502, 8
        %v1891 = vpop.permute.xlu0 %1890
        %1892 = vrot.lane.b32.xlu0 %v1503, 8
        %v1893 = vpop.permute.xlu0 %1892
        %1894 = vrot.lane.b32.xlu0 %v1504, 8
        %v1895 = vpop.permute.xlu0 %1894
        %1896 = vrot.lane.b32.xlu0 %v1505, 8
        %v1897 = vpop.permute.xlu0 %1896
        %1898 = vrot.lane.b32.xlu0 %v1506, 8
        %v1899 = vpop.permute.xlu0 %1898
        %1900 = vrot.lane.b32.xlu0 %v1507, 8
        %v1901 = vpop.permute.xlu0 %1900
        %1902 = vrot.lane.b32.xlu0 %v1508, 8
        %v1903 = vpop.permute.xlu0 %1902
        %1904 = vrot.lane.b32.xlu0 %v1509, 8
        %v1905 = vpop.permute.xlu0 %1904
        %1906 = vrot.lane.b32.xlu0 %v1510, 8
        %v1907 = vpop.permute.xlu0 %1906
        %1908 = vrot.lane.b32.xlu0 %v1511, 8
        %v1909 = vpop.permute.xlu0 %1908
        %1910 = vrot.lane.b32.xlu0 %v1512, 8
        %v1911 = vpop.permute.xlu0 %1910
        %1912 = vrot.lane.b32.xlu0 %v1513, 8
        %v1913 = vpop.permute.xlu0 %1912
        %1914 = vrot.lane.b32.xlu0 %v1514, 8
        %v1915 = vpop.permute.xlu0 %1914
        %1916 = vrot.lane.b32.xlu0 %v1515, 8
        %v1917 = vpop.permute.xlu0 %1916
        %1918 = vrot.lane.b32.xlu0 %v1516, 8
        %v1919 = vpop.permute.xlu0 %1918
        %1920 = vrot.lane.b32.xlu0 %v1517, 8
        %v1921 = vpop.permute.xlu0 %1920
        %1922 = vrot.lane.b32.xlu0 %v1518, 8
        %v1923 = vpop.permute.xlu0 %1922
        %1924 = vrot.lane.b32.xlu0 %v1519, 8
        %v1925 = vpop.permute.xlu0 %1924
        %1926 = vrot.lane.b32.xlu0 %v1520, 8
        %v1927 = vpop.permute.xlu0 %1926
        %1928 = vrot.lane.b32.xlu0 %v1521, 8
        %v1929 = vpop.permute.xlu0 %1928
        %1930 = vrot.lane.b32.xlu0 %v1522, 8
        %v1931 = vpop.permute.xlu0 %1930
        %1932 = vrot.lane.b32.xlu0 %v1523, 8
        %v1933 = vpop.permute.xlu0 %1932
        %1934 = vrot.lane.b32.xlu0 %v1524, 8
        %v1935 = vpop.permute.xlu0 %1934
        %1936 = vrot.lane.b32.xlu0 %v1525, 8
        %v1937 = vpop.permute.xlu0 %1936
        %1938 = vrot.lane.b32.xlu0 %v1526, 8
        %v1939 = vpop.permute.xlu0 %1938
        %1940 = vrot.lane.b32.xlu0 %v1527, 8
        %v1941 = vpop.permute.xlu0 %1940
        %1942 = vrot.lane.b32.xlu0 %v1528, 8
        %v1943 = vpop.permute.xlu0 %1942
        %1944 = vrot.lane.b32.xlu0 %v1529, 8
        %v1945 = vpop.permute.xlu0 %1944
        %1946 = vrot.lane.b32.xlu0 %v1530, 8
        %v1947 = vpop.permute.xlu0 %1946
        %2012 = vrot.lane.b32.xlu0 %v1531, 12
        %v2013 = vpop.permute.xlu0 %2012
        %2014 = vrot.lane.b32.xlu0 %v1532, 12
        %v2015 = vpop.permute.xlu0 %2014
        %2016 = vrot.lane.b32.xlu0 %v1533, 12
        %v2017 = vpop.permute.xlu0 %2016
        %2018 = vrot.lane.b32.xlu0 %v1534, 12
        %v2019 = vpop.permute.xlu0 %2018
        %2020 = vrot.lane.b32.xlu0 %v1535, 12
        %v2021 = vpop.permute.xlu0 %2020
        %2022 = vrot.lane.b32.xlu0 %v1536, 12
        %v2023 = vpop.permute.xlu0 %2022
        %2024 = vrot.lane.b32.xlu0 %v1537, 12
        %v2025 = vpop.permute.xlu0 %2024
        %2026 = vrot.lane.b32.xlu0 %v1538, 12
        %v2027 = vpop.permute.xlu0 %2026
        %2028 = vrot.lane.b32.xlu0 %v1539, 12
        %v2029 = vpop.permute.xlu0 %2028
        %2030 = vrot.lane.b32.xlu0 %v1540, 12
        %v2031 = vpop.permute.xlu0 %2030
        %2032 = vrot.lane.b32.xlu0 %v1541, 12
        %v2033 = vpop.permute.xlu0 %2032
        %2034 = vrot.lane.b32.xlu0 %v1542, 12
        %v2035 = vpop.permute.xlu0 %2034
        %2036 = vrot.lane.b32.xlu0 %v1543, 12
        %v2037 = vpop.permute.xlu0 %2036
        %2038 = vrot.lane.b32.xlu0 %v1544, 12
        %v2039 = vpop.permute.xlu0 %2038
        %2040 = vrot.lane.b32.xlu0 %v1545, 12
        %v2041 = vpop.permute.xlu0 %2040
        %2042 = vrot.lane.b32.xlu0 %v1546, 12
        %v2043 = vpop.permute.xlu0 %2042
        %2044 = vrot.lane.b32.xlu0 %v1547, 12
        %v2045 = vpop.permute.xlu0 %2044
        %2046 = vrot.lane.b32.xlu0 %v1548, 12
        %v2047 = vpop.permute.xlu0 %2046
        %2048 = vrot.lane.b32.xlu0 %v1549, 12
        %v2049 = vpop.permute.xlu0 %2048
        %2050 = vrot.lane.b32.xlu0 %v1550, 12
        %v2051 = vpop.permute.xlu0 %2050
        %2052 = vrot.lane.b32.xlu0 %v1551, 12
        %v2053 = vpop.permute.xlu0 %2052
        %2054 = vrot.lane.b32.xlu0 %v1552, 12
        %v2055 = vpop.permute.xlu0 %2054
        %2056 = vrot.lane.b32.xlu0 %v1553, 12
        %v2057 = vpop.permute.xlu0 %2056
        %2058 = vrot.lane.b32.xlu0 %v1554, 12
        %v2059 = vpop.permute.xlu0 %2058
        %2060 = vrot.lane.b32.xlu0 %v1555, 12
        %v2061 = vpop.permute.xlu0 %2060
        %2062 = vrot.lane.b32.xlu0 %v1556, 12
        %v2063 = vpop.permute.xlu0 %2062
        %2064 = vrot.lane.b32.xlu0 %v1557, 12
        %v2065 = vpop.permute.xlu0 %2064
        %2066 = vrot.lane.b32.xlu0 %v1558, 12
        %v2067 = vpop.permute.xlu0 %2066
        %2068 = vrot.lane.b32.xlu0 %v1559, 12
        %v2069 = vpop.permute.xlu0 %2068
        %2070 = vrot.lane.b32.xlu0 %v1560, 12
        %v2071 = vpop.permute.xlu0 %2070
        %2072 = vrot.lane.b32.xlu0 %v1561, 12
        %v2073 = vpop.permute.xlu0 %2072
        %2074 = vrot.lane.b32.xlu0 %v1562, 12
        %v2075 = vpop.permute.xlu0 %2074
        %2140 = vrot.lane.b32.xlu0 %v1563, 16
        %v2141 = vpop.permute.xlu0 %2140
        %2142 = vrot.lane.b32.xlu0 %v1564, 16
        %v2143 = vpop.permute.xlu0 %2142
        %2144 = vrot.lane.b32.xlu0 %v1565, 16
        %v2145 = vpop.permute.xlu0 %2144
        %2146 = vrot.lane.b32.xlu0 %v1566, 16
        %v2147 = vpop.permute.xlu0 %2146
        %2148 = vrot.lane.b32.xlu0 %v1567, 16
        %v2149 = vpop.permute.xlu0 %2148
        %2150 = vrot.lane.b32.xlu0 %v1568, 16
        %v2151 = vpop.permute.xlu0 %2150
        %2152 = vrot.lane.b32.xlu0 %v1569, 16
        %v2153 = vpop.permute.xlu0 %2152
        %2154 = vrot.lane.b32.xlu0 %v1570, 16
        %v2155 = vpop.permute.xlu0 %2154
        %2156 = vrot.lane.b32.xlu0 %v1571, 16
        %v2157 = vpop.permute.xlu0 %2156
        %2158 = vrot.lane.b32.xlu0 %v1572, 16
        %v2159 = vpop.permute.xlu0 %2158
        %2160 = vrot.lane.b32.xlu0 %v1573, 16
        %v2161 = vpop.permute.xlu0 %2160
        %2162 = vrot.lane.b32.xlu0 %v1574, 16
        %v2163 = vpop.permute.xlu0 %2162
        %2164 = vrot.lane.b32.xlu0 %v1575, 16
        %v2165 = vpop.permute.xlu0 %2164
        %2166 = vrot.lane.b32.xlu0 %v1576, 16
        %v2167 = vpop.permute.xlu0 %2166
        %2168 = vrot.lane.b32.xlu0 %v1577, 16
        %v2169 = vpop.permute.xlu0 %2168
        %2170 = vrot.lane.b32.xlu0 %v1578, 16
        %v2171 = vpop.permute.xlu0 %2170
        %2172 = vrot.lane.b32.xlu0 %v1579, 16
        %v2173 = vpop.permute.xlu0 %2172
        %2174 = vrot.lane.b32.xlu0 %v1580, 16
        %v2175 = vpop.permute.xlu0 %2174
        %2176 = vrot.lane.b32.xlu0 %v1581, 16
        %v2177 = vpop.permute.xlu0 %2176
        %2178 = vrot.lane.b32.xlu0 %v1582, 16
        %v2179 = vpop.permute.xlu0 %2178
        %2180 = vrot.lane.b32.xlu0 %v1583, 16
        %v2181 = vpop.permute.xlu0 %2180
        %2182 = vrot.lane.b32.xlu0 %v1584, 16
        %v2183 = vpop.permute.xlu0 %2182
        %2184 = vrot.lane.b32.xlu0 %v1585, 16
        %v2185 = vpop.permute.xlu0 %2184
        %2186 = vrot.lane.b32.xlu0 %v1586, 16
        %v2187 = vpop.permute.xlu0 %2186
        %2188 = vrot.lane.b32.xlu0 %v1587, 16
        %v2189 = vpop.permute.xlu0 %2188
        %2190 = vrot.lane.b32.xlu0 %v1588, 16
        %v2191 = vpop.permute.xlu0 %2190
        %2192 = vrot.lane.b32.xlu0 %v1589, 16
        %v2193 = vpop.permute.xlu0 %2192
        %2194 = vrot.lane.b32.xlu0 %v1590, 16
        %v2195 = vpop.permute.xlu0 %2194
        %2196 = vrot.lane.b32.xlu0 %v1591, 16
        %v2197 = vpop.permute.xlu0 %2196
        %2198 = vrot.lane.b32.xlu0 %v1592, 16
        %v2199 = vpop.permute.xlu0 %2198
        %2200 = vrot.lane.b32.xlu0 %v1593, 16
        %v2201 = vpop.permute.xlu0 %2200
        %2202 = vrot.lane.b32.xlu0 %v1594, 16
        %v2203 = vpop.permute.xlu0 %2202
        %2268 = vrot.lane.b32.xlu0 %v1595, 20
        %v2269 = vpop.permute.xlu0 %2268
        %2270 = vrot.lane.b32.xlu0 %v1596, 20
        %v2271 = vpop.permute.xlu0 %2270
        %2272 = vrot.lane.b32.xlu0 %v1597, 20
        %v2273 = vpop.permute.xlu0 %2272
        %2274 = vrot.lane.b32.xlu0 %v1598, 20
        %v2275 = vpop.permute.xlu0 %2274
        %2276 = vrot.lane.b32.xlu0 %v1599, 20
        %v2277 = vpop.permute.xlu0 %2276
        %2278 = vrot.lane.b32.xlu0 %v1600, 20
        %v2279 = vpop.permute.xlu0 %2278
        %2280 = vrot.lane.b32.xlu0 %v1601, 20
        %v2281 = vpop.permute.xlu0 %2280
        %2282 = vrot.lane.b32.xlu0 %v1602, 20
        %v2283 = vpop.permute.xlu0 %2282
        %2284 = vrot.lane.b32.xlu0 %v1603, 20
        %v2285 = vpop.permute.xlu0 %2284
        %2286 = vrot.lane.b32.xlu0 %v1604, 20
        %v2287 = vpop.permute.xlu0 %2286
        %2288 = vrot.lane.b32.xlu0 %v1605, 20
        %v2289 = vpop.permute.xlu0 %2288
        %2290 = vrot.lane.b32.xlu0 %v1606, 20
        %v2291 = vpop.permute.xlu0 %2290
        %2292 = vrot.lane.b32.xlu0 %v1607, 20
        %v2293 = vpop.permute.xlu0 %2292
        %2294 = vrot.lane.b32.xlu0 %v1608, 20
        %v2295 = vpop.permute.xlu0 %2294
        %2296 = vrot.lane.b32.xlu0 %v1609, 20
        %v2297 = vpop.permute.xlu0 %2296
        %2298 = vrot.lane.b32.xlu0 %v1610, 20
        %v2299 = vpop.permute.xlu0 %2298
        %2300 = vrot.lane.b32.xlu0 %v1611, 20
        %v2301 = vpop.permute.xlu0 %2300
        %2302 = vrot.lane.b32.xlu0 %v1612, 20
        %v2303 = vpop.permute.xlu0 %2302
        %2304 = vrot.lane.b32.xlu0 %v1613, 20
        %v2305 = vpop.permute.xlu0 %2304
        %2306 = vrot.lane.b32.xlu0 %v1614, 20
        %v2307 = vpop.permute.xlu0 %2306
        %2308 = vrot.lane.b32.xlu0 %v1615, 20
        %v2309 = vpop.permute.xlu0 %2308
        %2310 = vrot.lane.b32.xlu0 %v1616, 20
        %v2311 = vpop.permute.xlu0 %2310
        %2312 = vrot.lane.b32.xlu0 %v1617, 20
        %v2313 = vpop.permute.xlu0 %2312
        %2314 = vrot.lane.b32.xlu0 %v1618, 20
        %v2315 = vpop.permute.xlu0 %2314
        %2316 = vrot.lane.b32.xlu0 %v1619, 20
        %v2317 = vpop.permute.xlu0 %2316
        %2318 = vrot.lane.b32.xlu0 %v1620, 20
        %v2319 = vpop.permute.xlu0 %2318
        %2320 = vrot.lane.b32.xlu0 %v1621, 20
        %v2321 = vpop.permute.xlu0 %2320
        %2322 = vrot.lane.b32.xlu0 %v1622, 20
        %v2323 = vpop.permute.xlu0 %2322
        %2324 = vrot.lane.b32.xlu0 %v1623, 20
        %v2325 = vpop.permute.xlu0 %2324
        %2326 = vrot.lane.b32.xlu0 %v1624, 20
        %v2327 = vpop.permute.xlu0 %2326
        %2328 = vrot.lane.b32.xlu0 %v1625, 20
        %v2329 = vpop.permute.xlu0 %2328
        %2330 = vrot.lane.b32.xlu0 %v1626, 20
        %v2331 = vpop.permute.xlu0 %2330
        %2396 = vrot.lane.b32.xlu0 %v1628, 24
        %v2397 = vpop.permute.xlu0 %2396
        %2398 = vrot.lane.b32.xlu0 %v1629, 24
        %v2399 = vpop.permute.xlu0 %2398
        %2400 = vrot.lane.b32.xlu0 %v1630, 24
        %v2401 = vpop.permute.xlu0 %2400
        %2402 = vrot.lane.b32.xlu0 %v1631, 24
        %v2403 = vpop.permute.xlu0 %2402
        %2404 = vrot.lane.b32.xlu0 %v1632, 24
        %v2405 = vpop.permute.xlu0 %2404
        %2406 = vrot.lane.b32.xlu0 %v1633, 24
        %v2407 = vpop.permute.xlu0 %2406
        %2408 = vrot.lane.b32.xlu0 %v1634, 24
        %v2409 = vpop.permute.xlu0 %2408
        %2410 = vrot.lane.b32.xlu0 %v1635, 24
        %v2411 = vpop.permute.xlu0 %2410
        %2412 = vrot.lane.b32.xlu0 %v1636, 24
        %v2413 = vpop.permute.xlu0 %2412
        %2414 = vrot.lane.b32.xlu0 %v1637, 24
        %v2415 = vpop.permute.xlu0 %2414
        %2416 = vrot.lane.b32.xlu0 %v1638, 24
        %v2417 = vpop.permute.xlu0 %2416
        %2418 = vrot.lane.b32.xlu0 %v1639, 24
        %v2419 = vpop.permute.xlu0 %2418
        %2420 = vrot.lane.b32.xlu0 %v1640, 24
        %v2421 = vpop.permute.xlu0 %2420
        %2422 = vrot.lane.b32.xlu0 %v1641, 24
        %v2423 = vpop.permute.xlu0 %2422
        %2424 = vrot.lane.b32.xlu0 %v1642, 24
        %v2425 = vpop.permute.xlu0 %2424
        %2426 = vrot.lane.b32.xlu0 %v1643, 24
        %v2427 = vpop.permute.xlu0 %2426
        %2428 = vrot.lane.b32.xlu0 %v1644, 24
        %v2429 = vpop.permute.xlu0 %2428
        %2430 = vrot.lane.b32.xlu0 %v1645, 24
        %v2431 = vpop.permute.xlu0 %2430
        %2432 = vrot.lane.b32.xlu0 %v1646, 24
        %v2433 = vpop.permute.xlu0 %2432
        %2434 = vrot.lane.b32.xlu0 %v1647, 24
        %v2435 = vpop.permute.xlu0 %2434
        %2436 = vrot.lane.b32.xlu0 %v1648, 24
        %v2437 = vpop.permute.xlu0 %2436
        %2438 = vrot.lane.b32.xlu0 %v1649, 24
        %v2439 = vpop.permute.xlu0 %2438
        %2440 = vrot.lane.b32.xlu0 %v1650, 24
        %v2441 = vpop.permute.xlu0 %2440
        %2442 = vrot.lane.b32.xlu0 %v1651, 24
        %v2443 = vpop.permute.xlu0 %2442
        %2444 = vrot.lane.b32.xlu0 %v1652, 24
        %v2445 = vpop.permute.xlu0 %2444
        %2446 = vrot.lane.b32.xlu0 %v1653, 24
        %v2447 = vpop.permute.xlu0 %2446
        %2448 = vrot.lane.b32.xlu0 %v1654, 24
        %v2449 = vpop.permute.xlu0 %2448
        %2450 = vrot.lane.b32.xlu0 %v1655, 24
        %v2451 = vpop.permute.xlu0 %2450
        %2452 = vrot.lane.b32.xlu0 %v1656, 24
        %v2453 = vpop.permute.xlu0 %2452
        %2454 = vrot.lane.b32.xlu0 %v1657, 24
        %v2455 = vpop.permute.xlu0 %2454
        %2456 = vrot.lane.b32.xlu0 %v1658, 24
        %v2457 = vpop.permute.xlu0 %2456
        %2458 = vrot.lane.b32.xlu0 %v1659, 24
        %v2459 = vpop.permute.xlu0 %2458
        %2524 = vrot.lane.b32.xlu0 %v1660, 28
        %v2525 = vpop.permute.xlu0 %2524
        %2526 = vrot.lane.b32.xlu0 %v1661, 28
        %v2527 = vpop.permute.xlu0 %2526
        %2528 = vrot.lane.b32.xlu0 %v1662, 28
        %v2529 = vpop.permute.xlu0 %2528
        %2530 = vrot.lane.b32.xlu0 %v1663, 28
        %v2531 = vpop.permute.xlu0 %2530
        %2532 = vrot.lane.b32.xlu0 %v1664, 28
        %v2533 = vpop.permute.xlu0 %2532
        %2534 = vrot.lane.b32.xlu0 %v1665, 28
        %v2535 = vpop.permute.xlu0 %2534
        %2536 = vrot.lane.b32.xlu0 %v1666, 28
        %v2537 = vpop.permute.xlu0 %2536
        %2538 = vrot.lane.b32.xlu0 %v1667, 28
        %v2539 = vpop.permute.xlu0 %2538
        %2540 = vrot.lane.b32.xlu0 %v1668, 28
        %v2541 = vpop.permute.xlu0 %2540
        %2542 = vrot.lane.b32.xlu0 %v1669, 28
        %v2543 = vpop.permute.xlu0 %2542
        %2544 = vrot.lane.b32.xlu0 %v1670, 28
        %v2545 = vpop.permute.xlu0 %2544
        %2546 = vrot.lane.b32.xlu0 %v1671, 28
        %v2547 = vpop.permute.xlu0 %2546
        %2548 = vrot.lane.b32.xlu0 %v1672, 28
        %v2549 = vpop.permute.xlu0 %2548
        %2550 = vrot.lane.b32.xlu0 %v1673, 28
        %v2551 = vpop.permute.xlu0 %2550
        %2552 = vrot.lane.b32.xlu0 %v1674, 28
        %v2553 = vpop.permute.xlu0 %2552
        %2554 = vrot.lane.b32.xlu0 %v1675, 28
        %v2555 = vpop.permute.xlu0 %2554
        %2556 = vrot.lane.b32.xlu0 %v1676, 28
        %v2557 = vpop.permute.xlu0 %2556
        %2558 = vrot.lane.b32.xlu0 %v1677, 28
        %v2559 = vpop.permute.xlu0 %2558
        %2560 = vrot.lane.b32.xlu0 %v1678, 28
        %v2561 = vpop.permute.xlu0 %2560
        %2562 = vrot.lane.b32.xlu0 %v1679, 28
        %v2563 = vpop.permute.xlu0 %2562
        %2564 = vrot.lane.b32.xlu0 %v1680, 28
        %v2565 = vpop.permute.xlu0 %2564
        %2566 = vrot.lane.b32.xlu0 %v1681, 28
        %v2567 = vpop.permute.xlu0 %2566
        %2568 = vrot.lane.b32.xlu0 %v1682, 28
        %v2569 = vpop.permute.xlu0 %2568
        %2570 = vrot.lane.b32.xlu0 %v1683, 28
        %v2571 = vpop.permute.xlu0 %2570
        %2572 = vrot.lane.b32.xlu0 %v1684, 28
        %v2573 = vpop.permute.xlu0 %2572
        %2574 = vrot.lane.b32.xlu0 %v1685, 28
        %v2575 = vpop.permute.xlu0 %2574
        %2576 = vrot.lane.b32.xlu0 %v1686, 28
        %v2577 = vpop.permute.xlu0 %2576
        %2578 = vrot.lane.b32.xlu0 %v1687, 28
        %v2579 = vpop.permute.xlu0 %2578
        %2580 = vrot.lane.b32.xlu0 %v1688, 28
        %v2581 = vpop.permute.xlu0 %2580
        %2582 = vrot.lane.b32.xlu0 %v1689, 28
        %v2583 = vpop.permute.xlu0 %2582
        %2584 = vrot.lane.b32.xlu0 %v1690, 28
        %v2585 = vpop.permute.xlu0 %2584
        %2586 = vrot.lane.b32.xlu0 %v1691, 28
        %v2587 = vpop.permute.xlu0 %2586
        %2652 = vrot.lane.b32.xlu0 %v1692, 32
        %v2653 = vpop.permute.xlu0 %2652
        %2654 = vrot.lane.b32.xlu0 %v1693, 32
        %v2655 = vpop.permute.xlu0 %2654
        %2656 = vrot.lane.b32.xlu0 %v1694, 32
        %v2657 = vpop.permute.xlu0 %2656
        %2658 = vrot.lane.b32.xlu0 %v1695, 32
        %v2659 = vpop.permute.xlu0 %2658
        %2660 = vrot.lane.b32.xlu0 %v1696, 32
        %v2661 = vpop.permute.xlu0 %2660
        %2662 = vrot.lane.b32.xlu0 %v1697, 32
        %v2663 = vpop.permute.xlu0 %2662
        %2664 = vrot.lane.b32.xlu0 %v1698, 32
        %v2665 = vpop.permute.xlu0 %2664
        %2666 = vrot.lane.b32.xlu0 %v1699, 32
        %v2667 = vpop.permute.xlu0 %2666
        %2668 = vrot.lane.b32.xlu0 %v1700, 32
        %v2669 = vpop.permute.xlu0 %2668
        %2670 = vrot.lane.b32.xlu0 %v1701, 32
        %v2671 = vpop.permute.xlu0 %2670
        %2672 = vrot.lane.b32.xlu0 %v1702, 32
        %v2673 = vpop.permute.xlu0 %2672
        %2674 = vrot.lane.b32.xlu0 %v1703, 32
        %v2675 = vpop.permute.xlu0 %2674
        %2676 = vrot.lane.b32.xlu0 %v1704, 32
        %v2677 = vpop.permute.xlu0 %2676
        %2678 = vrot.lane.b32.xlu0 %v1705, 32
        %v2679 = vpop.permute.xlu0 %2678
        %2680 = vrot.lane.b32.xlu0 %v1706, 32
        %v2681 = vpop.permute.xlu0 %2680
        %2682 = vrot.lane.b32.xlu0 %v1707, 32
        %v2683 = vpop.permute.xlu0 %2682
        %2684 = vrot.lane.b32.xlu0 %v1708, 32
        %v2685 = vpop.permute.xlu0 %2684
        %2686 = vrot.lane.b32.xlu0 %v1709, 32
        %v2687 = vpop.permute.xlu0 %2686
        %2688 = vrot.lane.b32.xlu0 %v1710, 32
        %v2689 = vpop.permute.xlu0 %2688
        %2690 = vrot.lane.b32.xlu0 %v1711, 32
        %v2691 = vpop.permute.xlu0 %2690
        %2692 = vrot.lane.b32.xlu0 %v1712, 32
        %v2693 = vpop.permute.xlu0 %2692
        %2694 = vrot.lane.b32.xlu0 %v1713, 32
        %v2695 = vpop.permute.xlu0 %2694
        %2696 = vrot.lane.b32.xlu0 %v1714, 32
        %v2697 = vpop.permute.xlu0 %2696
        %2698 = vrot.lane.b32.xlu0 %v1715, 32
        %v2699 = vpop.permute.xlu0 %2698
        %2700 = vrot.lane.b32.xlu0 %v1716, 32
        %v2701 = vpop.permute.xlu0 %2700
        %2702 = vrot.lane.b32.xlu0 %v1717, 32
        %v2703 = vpop.permute.xlu0 %2702
        %2704 = vrot.lane.b32.xlu0 %v1718, 32
        %v2705 = vpop.permute.xlu0 %2704
        %2706 = vrot.lane.b32.xlu0 %v1719, 32
        %v2707 = vpop.permute.xlu0 %2706
        %2708 = vrot.lane.b32.xlu0 %v1720, 32
        %v2709 = vpop.permute.xlu0 %2708
        %2710 = vrot.lane.b32.xlu0 %v1721, 32
        %v2711 = vpop.permute.xlu0 %2710
        %2712 = vrot.lane.b32.xlu0 %v1722, 32
        %v2713 = vpop.permute.xlu0 %2712
        %2714 = vrot.lane.b32.xlu0 %v1723, 32
        %v2715 = vpop.permute.xlu0 %2714
        %v2748 = vsel %vm522, %v1435, %v1757
        %v2749 = vsel %vm522, %v1436, %v1759
        %v2750 = vsel %vm522, %v1437, %v1761
        %v2751 = vsel %vm522, %v1438, %v1763
        %v2752 = vsel %vm522, %v1439, %v1765
        %v2753 = vsel %vm522, %v1440, %v1767
        %v2754 = vsel %vm522, %v1441, %v1769
        %v2755 = vsel %vm522, %v1442, %v1771
        %v2756 = vsel %vm522, %v1443, %v1773
        %v2757 = vsel %vm522, %v1444, %v1775
        %v2758 = vsel %vm522, %v1445, %v1777
        %v2759 = vsel %vm522, %v1446, %v1779
        %v2760 = vsel %vm522, %v1447, %v1781
        %v2761 = vsel %vm522, %v1448, %v1783
        %v2762 = vsel %vm522, %v1449, %v1785
        %v2763 = vsel %vm522, %v1450, %v1787
        %v2764 = vsel %vm522, %v1451, %v1789
        %v2765 = vsel %vm522, %v1452, %v1791
        %v2766 = vsel %vm522, %v1453, %v1793
        %v2767 = vsel %vm522, %v1454, %v1795
        %v2768 = vsel %vm522, %v1455, %v1797
        %v2769 = vsel %vm522, %v1456, %v1799
        %v2770 = vsel %vm522, %v1457, %v1801
        %v2771 = vsel %vm522, %v1458, %v1803
        %v2772 = vsel %vm522, %v1459, %v1805
        %v2773 = vsel %vm522, %v1460, %v1807
        %v2774 = vsel %vm522, %v1461, %v1809
        %v2775 = vsel %vm522, %v1462, %v1811
        %v2776 = vsel %vm522, %v1463, %v1813
        %v2777 = vsel %vm522, %v1464, %v1815
        %v2778 = vsel %vm522, %v1465, %v1817
        %v2779 = vsel %vm522, %v1466, %v1819
        %v2780 = vsel %vm568, %v2748, %v1885
        %v2781 = vsel %vm568, %v2749, %v1887
        %v2782 = vsel %vm568, %v2750, %v1889
        %v2783 = vsel %vm568, %v2751, %v1891
        %v2784 = vsel %vm568, %v2752, %v1893
        %v2785 = vsel %vm568, %v2753, %v1895
        %v2786 = vsel %vm568, %v2754, %v1897
        %v2787 = vsel %vm568, %v2755, %v1899
        %v2788 = vsel %vm568, %v2756, %v1901
        %v2789 = vsel %vm568, %v2757, %v1903
        %v2790 = vsel %vm568, %v2758, %v1905
        %v2791 = vsel %vm568, %v2759, %v1907
        %v2792 = vsel %vm568, %v2760, %v1909
        %v2793 = vsel %vm568, %v2761, %v1911
        %v2794 = vsel %vm568, %v2762, %v1913
        %v2795 = vsel %vm568, %v2763, %v1915
        %v2796 = vsel %vm568, %v2764, %v1917
        %v2797 = vsel %vm568, %v2765, %v1919
        %v2798 = vsel %vm568, %v2766, %v1921
        %v2799 = vsel %vm568, %v2767, %v1923
        %v2800 = vsel %vm568, %v2768, %v1925
        %v2801 = vsel %vm568, %v2769, %v1927
        %v2802 = vsel %vm568, %v2770, %v1929
        %v2803 = vsel %vm568, %v2771, %v1931
        %v2804 = vsel %vm568, %v2772, %v1933
        %v2805 = vsel %vm568, %v2773, %v1935
        %v2806 = vsel %vm568, %v2774, %v1937
        %v2807 = vsel %vm568, %v2775, %v1939
        %v2808 = vsel %vm568, %v2776, %v1941
        %v2809 = vsel %vm568, %v2777, %v1943
        %v2810 = vsel %vm568, %v2778, %v1945
        %v2811 = vsel %vm568, %v2779, %v1947
        %vm2812 = vcmask 97280
        %v2813 = vsel %vm2812, %v2780, %v2013
        %v2814 = vsel %vm2812, %v2781, %v2015
        %v2815 = vsel %vm2812, %v2782, %v2017
        %v2816 = vsel %vm2812, %v2783, %v2019
        %v2817 = vsel %vm2812, %v2784, %v2021
        %v2818 = vsel %vm2812, %v2785, %v2023
        %v2819 = vsel %vm2812, %v2786, %v2025
        %v2820 = vsel %vm2812, %v2787, %v2027
        %v2821 = vsel %vm2812, %v2788, %v2029
        %v2822 = vsel %vm2812, %v2789, %v2031
        %v2823 = vsel %vm2812, %v2790, %v2033
        %v2824 = vsel %vm2812, %v2791, %v2035
        %v2825 = vsel %vm2812, %v2792, %v2037
        %v2826 = vsel %vm2812, %v2793, %v2039
        %v2827 = vsel %vm2812, %v2794, %v2041
        %v2828 = vsel %vm2812, %v2795, %v2043
        %v2829 = vsel %vm2812, %v2796, %v2045
        %v2830 = vsel %vm2812, %v2797, %v2047
        %v2831 = vsel %vm2812, %v2798, %v2049
        %v2832 = vsel %vm2812, %v2799, %v2051
        %v2833 = vsel %vm2812, %v2800, %v2053
        %v2834 = vsel %vm2812, %v2801, %v2055
        %v2835 = vsel %vm2812, %v2802, %v2057
        %v2836 = vsel %vm2812, %v2803, %v2059
        %v2837 = vsel %vm2812, %v2804, %v2061
        %v2838 = vsel %vm2812, %v2805, %v2063
        %v2839 = vsel %vm2812, %v2806, %v2065
        %v2840 = vsel %vm2812, %v2807, %v2067
        %v2841 = vsel %vm2812, %v2808, %v2069
        %v2842 = vsel %vm2812, %v2809, %v2071
        %v2843 = vsel %vm2812, %v2810, %v2073
        %v2844 = vsel %vm2812, %v2811, %v2075
        %vm2845 = vcmask 130048
        %v2846 = vsel %vm2845, %v2813, %v2141
        %v2847 = vsel %vm2845, %v2814, %v2143
        %v2848 = vsel %vm2845, %v2815, %v2145
        %v2849 = vsel %vm2845, %v2816, %v2147
        %v2850 = vsel %vm2845, %v2817, %v2149
        %v2851 = vsel %vm2845, %v2818, %v2151
        %v2852 = vsel %vm2845, %v2819, %v2153
        %v2853 = vsel %vm2845, %v2820, %v2155
        %v2854 = vsel %vm2845, %v2821, %v2157
        %v2855 = vsel %vm2845, %v2822, %v2159
        %v2856 = vsel %vm2845, %v2823, %v2161
        %v2857 = vsel %vm2845, %v2824, %v2163
        %v2858 = vsel %vm2845, %v2825, %v2165
        %v2859 = vsel %vm2845, %v2826, %v2167
        %v2860 = vsel %vm2845, %v2827, %v2169
        %v2861 = vsel %vm2845, %v2828, %v2171
        %v2862 = vsel %vm2845, %v2829, %v2173
        %v2863 = vsel %vm2845, %v2830, %v2175
        %v2864 = vsel %vm2845, %v2831, %v2177
        %v2865 = vsel %vm2845, %v2832, %v2179
        %v2866 = vsel %vm2845, %v2833, %v2181
        %v2867 = vsel %vm2845, %v2834, %v2183
        %v2868 = vsel %vm2845, %v2835, %v2185
        %v2869 = vsel %vm2845, %v2836, %v2187
        %v2870 = vsel %vm2845, %v2837, %v2189
        %v2871 = vsel %vm2845, %v2838, %v2191
        %v2872 = vsel %vm2845, %v2839, %v2193
        %v2873 = vsel %vm2845, %v2840, %v2195
        %v2874 = vsel %vm2845, %v2841, %v2197
        %v2875 = vsel %vm2845, %v2842, %v2199
        %v2876 = vsel %vm2845, %v2843, %v2201
        %v2877 = vsel %vm2845, %v2844, %v2203
        %vm2878 = vcmask 162816
        %v2879 = vsel %vm2878, %v2846, %v2269
        %v2880 = vsel %vm2878, %v2847, %v2271
        %v2881 = vsel %vm2878, %v2848, %v2273
        %v2882 = vsel %vm2878, %v2849, %v2275
        %v2883 = vsel %vm2878, %v2850, %v2277
        %v2884 = vsel %vm2878, %v2851, %v2279
        %v2885 = vsel %vm2878, %v2852, %v2281
        %v2886 = vsel %vm2878, %v2853, %v2283
        %v2887 = vsel %vm2878, %v2854, %v2285
        %v2888 = vsel %vm2878, %v2855, %v2287
        %v2889 = vsel %vm2878, %v2856, %v2289
        %v2890 = vsel %vm2878, %v2857, %v2291
        %v2891 = vsel %vm2878, %v2858, %v2293
        %v2892 = vsel %vm2878, %v2859, %v2295
        %v2893 = vsel %vm2878, %v2860, %v2297
        %v2894 = vsel %vm2878, %v2861, %v2299
        %v2895 = vsel %vm2878, %v2862, %v2301
        %v2896 = vsel %vm2878, %v2863, %v2303
        %v2897 = vsel %vm2878, %v2864, %v2305
        %v2898 = vsel %vm2878, %v2865, %v2307
        %v2899 = vsel %vm2878, %v2866, %v2309
        %v2900 = vsel %vm2878, %v2867, %v2311
        %v2901 = vsel %vm2878, %v2868, %v2313
        %v2902 = vsel %vm2878, %v2869, %v2315
        %v2903 = vsel %vm2878, %v2870, %v2317
        %v2904 = vsel %vm2878, %v2871, %v2319
        %v2905 = vsel %vm2878, %v2872, %v2321
        %v2906 = vsel %vm2878, %v2873, %v2323
        %v2907 = vsel %vm2878, %v2874, %v2325
        %v2908 = vsel %vm2878, %v2875, %v2327
        %v2909 = vsel %vm2878, %v2876, %v2329
        %v2910 = vsel %vm2878, %v2877, %v2331
        %vm2911 = vcmask 195584
        %v2912 = vsel %vm2911, %v2879, %v2397
        %v2913 = vsel %vm2911, %v2880, %v2399
        %v2914 = vsel %vm2911, %v2881, %v2401
        %v2915 = vsel %vm2911, %v2882, %v2403
        %v2916 = vsel %vm2911, %v2883, %v2405
        %v2917 = vsel %vm2911, %v2884, %v2407
        %v2918 = vsel %vm2911, %v2885, %v2409
        %v2919 = vsel %vm2911, %v2886, %v2411
        %v2920 = vsel %vm2911, %v2887, %v2413
        %v2921 = vsel %vm2911, %v2888, %v2415
        %v2922 = vsel %vm2911, %v2889, %v2417
        %v2923 = vsel %vm2911, %v2890, %v2419
        %v2924 = vsel %vm2911, %v2891, %v2421
        %v2925 = vsel %vm2911, %v2892, %v2423
        %v2926 = vsel %vm2911, %v2893, %v2425
        %v2927 = vsel %vm2911, %v2894, %v2427
        %v2928 = vsel %vm2911, %v2895, %v2429
        %v2929 = vsel %vm2911, %v2896, %v2431
        %v2930 = vsel %vm2911, %v2897, %v2433
        %v2931 = vsel %vm2911, %v2898, %v2435
        %v2932 = vsel %vm2911, %v2899, %v2437
        %v2933 = vsel %vm2911, %v2900, %v2439
        %v2934 = vsel %vm2911, %v2901, %v2441
        %v2935 = vsel %vm2911, %v2902, %v2443
        %v2936 = vsel %vm2911, %v2903, %v2445
        %v2937 = vsel %vm2911, %v2904, %v2447
        %v2938 = vsel %vm2911, %v2905, %v2449
        %v2939 = vsel %vm2911, %v2906, %v2451
        %v2940 = vsel %vm2911, %v2907, %v2453
        %v2941 = vsel %vm2911, %v2908, %v2455
        %v2942 = vsel %vm2911, %v2909, %v2457
        %v2943 = vsel %vm2911, %v2910, %v2459
        %vm2944 = vcmask 228352
        %v2945 = vsel %vm2944, %v2912, %v2525
        %v2946 = vsel %vm2944, %v2913, %v2527
        %v2947 = vsel %vm2944, %v2914, %v2529
        %v2948 = vsel %vm2944, %v2915, %v2531
        %v2949 = vsel %vm2944, %v2916, %v2533
        %v2950 = vsel %vm2944, %v2917, %v2535
        %v2951 = vsel %vm2944, %v2918, %v2537
        %v2952 = vsel %vm2944, %v2919, %v2539
        %v2953 = vsel %vm2944, %v2920, %v2541
        %v2954 = vsel %vm2944, %v2921, %v2543
        %v2955 = vsel %vm2944, %v2922, %v2545
        %v2956 = vsel %vm2944, %v2923, %v2547
        %v2957 = vsel %vm2944, %v2924, %v2549
        %v2958 = vsel %vm2944, %v2925, %v2551
        %v2959 = vsel %vm2944, %v2926, %v2553
        %v2960 = vsel %vm2944, %v2927, %v2555
        %v2961 = vsel %vm2944, %v2928, %v2557
        %v2962 = vsel %vm2944, %v2929, %v2559
        %v2963 = vsel %vm2944, %v2930, %v2561
        %v2964 = vsel %vm2944, %v2931, %v2563
        %v2965 = vsel %vm2944, %v2932, %v2565
        %v2966 = vsel %vm2944, %v2933, %v2567
        %v2967 = vsel %vm2944, %v2934, %v2569
        %v2968 = vsel %vm2944, %v2935, %v2571
        %v2969 = vsel %vm2944, %v2936, %v2573
        %v2970 = vsel %vm2944, %v2937, %v2575
        %v2971 = vsel %vm2944, %v2938, %v2577
        %v2972 = vsel %vm2944, %v2939, %v2579
        %v2973 = vsel %vm2944, %v2940, %v2581
        %v2974 = vsel %vm2944, %v2941, %v2583
        %v2975 = vsel %vm2944, %v2942, %v2585
        %v2976 = vsel %vm2944, %v2943, %v2587
        %vm2977 = vcmask 261120
        %v2978 = vsel %vm2977, %v2945, %v2653
        %v2979 = vsel %vm2977, %v2946, %v2655
        %v2980 = vsel %vm2977, %v2947, %v2657
        %v2981 = vsel %vm2977, %v2948, %v2659
        %v2982 = vsel %vm2977, %v2949, %v2661
        %v2983 = vsel %vm2977, %v2950, %v2663
        %v2984 = vsel %vm2977, %v2951, %v2665
        %v2985 = vsel %vm2977, %v2952, %v2667
        %v2986 = vsel %vm2977, %v2953, %v2669
        %v2987 = vsel %vm2977, %v2954, %v2671
        %v2988 = vsel %vm2977, %v2955, %v2673
        %v2989 = vsel %vm2977, %v2956, %v2675
        %v2990 = vsel %vm2977, %v2957, %v2677
        %v2991 = vsel %vm2977, %v2958, %v2679
        %v2992 = vsel %vm2977, %v2959, %v2681
        %v2993 = vsel %vm2977, %v2960, %v2683
        %v2994 = vsel %vm2977, %v2961, %v2685
        %v2995 = vsel %vm2977, %v2962, %v2687
        %v2996 = vsel %vm2977, %v2963, %v2689
        %v2997 = vsel %vm2977, %v2964, %v2691
        %v2998 = vsel %vm2977, %v2965, %v2693
        %v2999 = vsel %vm2977, %v2966, %v2695
        %v3000 = vsel %vm2977, %v2967, %v2697
        %v3001 = vsel %vm2977, %v2968, %v2699
        %v3002 = vsel %vm2977, %v2969, %v2701
        %v3003 = vsel %vm2977, %v2970, %v2703
        %v3004 = vsel %vm2977, %v2971, %v2705
        %v3005 = vsel %vm2977, %v2972, %v2707
        %v3006 = vsel %vm2977, %v2973, %v2709
        %v3007 = vsel %vm2977, %v2974, %v2711
        %v3008 = vsel %vm2977, %v2975, %v2713
        %v3009 = vsel %vm2977, %v2976, %v2715
        %v3010 = vpack.c.bf16 %v2979, %v2978
        %v3011 = vpack.c.bf16 %v2981, %v2980
        %v3012 = vpack.c.bf16 %v2983, %v2982
        %v3013 = vpack.c.bf16 %v2985, %v2984
        %v3014 = vpack.c.bf16 %v2987, %v2986
        %v3015 = vpack.c.bf16 %v2989, %v2988
        %v3016 = vpack.c.bf16 %v2991, %v2990
        %v3017 = vpack.c.bf16 %v2993, %v2992
        %v3018 = vpack.c.bf16 %v2995, %v2994
        %v3019 = vpack.c.bf16 %v2997, %v2996
        %v3020 = vpack.c.bf16 %v2999, %v2998
        %v3021 = vpack.c.bf16 %v3001, %v3000
        %v3022 = vpack.c.bf16 %v3003, %v3002
        %v3023 = vpack.c.bf16 %v3005, %v3004
        %v3024 = vpack.c.bf16 %v3007, %v3006
        %v3025 = vpack.c.bf16 %v3009, %v3008
        %v3026 = vld [vmem:[%s5] sm:$0x3]
        %v3027 = vld [vmem:[%s5 + $0x2] sm:$0x3]
        %v3028 = vld [vmem:[%s5 + $0x4] sm:$0x3]
        %v3029 = vld [vmem:[%s5 + $0x6] sm:$0x3]
        %v3030 = vld [vmem:[%s5 + $0x8] sm:$0x3]
        %v3031 = vld [vmem:[%s5 + $0xa] sm:$0x3]
        %v3032 = vld [vmem:[%s5 + $0xc] sm:$0x3]
        %v3033 = vld [vmem:[%s5 + $0xe] sm:$0x3]
        %v3034 = vld [vmem:[%s5 + $0x10] sm:$0x3]
        %v3036 = vperm.slane %v1434, 0
        %3039 = vst [vmem:[#allocation1] ss:$4 sm:$0xff] %v3026
        %s3041 = scalar_lea.vmem [#allocation1], 1
        %3042 = vst [vmem:[%s3041] ss:$4 sm:$0xff] %v3027
        %s3044 = scalar_lea.vmem [#allocation1], 2
        %3045 = vst [vmem:[%s3044] ss:$4 sm:$0xff] %v3028
        %s3047 = scalar_lea.vmem [#allocation1], 3
        %3048 = vst [vmem:[%s3047] ss:$4 sm:$0xff] %v3029
        %s3050 = scalar_lea.vmem [#allocation1], 32
        %3051 = vst [vmem:[%s3050] ss:$4 sm:$0xff] %v3030
        %s3053 = scalar_lea.vmem [#allocation1], 33
        %3054 = vst [vmem:[%s3053] ss:$4 sm:$0xff] %v3031
        %s3056 = scalar_lea.vmem [#allocation1], 34
        %3057 = vst [vmem:[%s3056] ss:$4 sm:$0xff] %v3032
        %s3059 = scalar_lea.vmem [#allocation1], 35
        %3060 = vst [vmem:[%s3059] ss:$4 sm:$0xff] %v3033
        %v3061 = vld.sshfl [vmem:[#allocation1] sm:$0xff pattern:$0x73625140]
        %v3062 = vld.sshfl [vmem:[#allocation1 + $0x20] sm:$0xff pattern:$0x73625140]
        %3064 = vst [vmem:[#allocation1] ss:$4 sm:$0xff] %v3034
        %v3065 = vld.sshfl [vmem:[#allocation1] sm:$0xff pattern:$0x73625140]
        %vm3068 = vcmask 293888
        %v3070 = vsel %vm3068, %v3010, 0
        %v3073 = vsel %vm3068, %v3011, 0
        %v3076 = vsel %vm3068, %v3012, 0
        %v3079 = vsel %vm3068, %v3013, 0
        %v3082 = vsel %vm3068, %v3014, 0
        %v3085 = vsel %vm3068, %v3015, 0
        %v3088 = vsel %vm3068, %v3016, 0
        %v3091 = vsel %vm3068, %v3017, 0
        %v3094 = vsel %vm3068, %v3018, 0
        %v3097 = vsel %vm3068, %v3019, 0
        %v3100 = vsel %vm3068, %v3020, 0
        %v3103 = vsel %vm3068, %v3021, 0
        %v3106 = vsel %vm3068, %v3022, 0
        %v3109 = vsel %vm3068, %v3023, 0
        %v3112 = vsel %vm3068, %v3024, 0
        %v3115 = vsel %vm3068, %v3025, 0
        %vm3117 = vcmask 1041408
        %v3118 = vsel %vm3117, %v3065, 0
        %3120 = vmatpush.bf16.msra.mxu0 0
        %3121 = vmatpush.bf16.msra.mxu0 0
        %3122 = vmatpush.bf16.msra.mxu0 0
        %3123 = vmatpush.bf16.msra.mxu0 0
        %3124 = vmatpush.bf16.msra.mxu0 0
        %3125 = vmatpush.bf16.msra.mxu0 %v3118
        %3126 = vmatpush.bf16.msra.mxu0 %v3062
        %3127 = vmatpush.bf16.msra.mxu0 %v3061
        %3128 = vmatmul.bf16.gmra.mxu0 %v3070
        %v3129 = vpop.f32.mrf.mxu0
        %v3130 = vadd.f32 %v3036, %v3129
        %v3131 = vpop.f32.mrf.mxu0
        %v3132 = vadd.f32 %v3036, %v3131
        %3133 = vmatmul.bf16.gmra.mxu0 %v3073
        %v3134 = vpop.f32.mrf.mxu0
        %v3135 = vadd.f32 %v3036, %v3134
        %v3136 = vpop.f32.mrf.mxu0
        %v3137 = vadd.f32 %v3036, %v3136
        %3138 = vmatmul.bf16.gmra.mxu0 %v3076
        %v3139 = vpop.f32.mrf.mxu0
        %v3140 = vadd.f32 %v3036, %v3139
        %v3141 = vpop.f32.mrf.mxu0
        %v3142 = vadd.f32 %v3036, %v3141
        %3143 = vmatmul.bf16.gmra.mxu0 %v3079
        %v3144 = vpop.f32.mrf.mxu0
        %v3145 = vadd.f32 %v3036, %v3144
        %v3146 = vpop.f32.mrf.mxu0
        %v3147 = vadd.f32 %v3036, %v3146
        %3148 = vmatmul.bf16.gmra.mxu0 %v3082
        %v3149 = vpop.f32.mrf.mxu0
        %v3150 = vadd.f32 %v3036, %v3149
        %v3151 = vpop.f32.mrf.mxu0
        %v3152 = vadd.f32 %v3036, %v3151
        %3153 = vmatmul.bf16.gmra.mxu0 %v3085
        %v3154 = vpop.f32.mrf.mxu0
        %v3155 = vadd.f32 %v3036, %v3154
        %v3156 = vpop.f32.mrf.mxu0
        %v3157 = vadd.f32 %v3036, %v3156
        %3158 = vmatmul.bf16.gmra.mxu0 %v3088
        %v3159 = vpop.f32.mrf.mxu0
        %v3160 = vadd.f32 %v3036, %v3159
        %v3161 = vpop.f32.mrf.mxu0
        %v3162 = vadd.f32 %v3036, %v3161
        %3163 = vmatmul.bf16.gmra.mxu0 %v3091
        %v3164 = vpop.f32.mrf.mxu0
        %v3165 = vadd.f32 %v3036, %v3164
        %v3166 = vpop.f32.mrf.mxu0
        %v3167 = vadd.f32 %v3036, %v3166
        %3168 = vmatmul.bf16.gmra.mxu0 %v3094
        %v3169 = vpop.f32.mrf.mxu0
        %v3170 = vadd.f32 %v3036, %v3169
        %v3171 = vpop.f32.mrf.mxu0
        %v3172 = vadd.f32 %v3036, %v3171
        %3173 = vmatmul.bf16.gmra.mxu0 %v3097
        %v3174 = vpop.f32.mrf.mxu0
        %v3175 = vadd.f32 %v3036, %v3174
        %v3176 = vpop.f32.mrf.mxu0
        %v3177 = vadd.f32 %v3036, %v3176
        %3178 = vmatmul.bf16.gmra.mxu0 %v3100
        %v3179 = vpop.f32.mrf.mxu0
        %v3180 = vadd.f32 %v3036, %v3179
        %v3181 = vpop.f32.mrf.mxu0
        %v3182 = vadd.f32 %v3036, %v3181
        %3183 = vmatmul.bf16.gmra.mxu0 %v3103
        %v3184 = vpop.f32.mrf.mxu0
        %v3185 = vadd.f32 %v3036, %v3184
        %v3186 = vpop.f32.mrf.mxu0
        %v3187 = vadd.f32 %v3036, %v3186
        %3188 = vmatmul.bf16.gmra.mxu0 %v3106
        %v3189 = vpop.f32.mrf.mxu0
        %v3190 = vadd.f32 %v3036, %v3189
        %v3191 = vpop.f32.mrf.mxu0
        %v3192 = vadd.f32 %v3036, %v3191
        %3193 = vmatmul.bf16.gmra.mxu0 %v3109
        %v3194 = vpop.f32.mrf.mxu0
        %v3195 = vadd.f32 %v3036, %v3194
        %v3196 = vpop.f32.mrf.mxu0
        %v3197 = vadd.f32 %v3036, %v3196
        %3198 = vmatmul.bf16.gmra.mxu0 %v3112
        %v3199 = vpop.f32.mrf.mxu0
        %v3200 = vadd.f32 %v3036, %v3199
        %v3201 = vpop.f32.mrf.mxu0
        %v3202 = vadd.f32 %v3036, %v3201
        %3203 = vmatmul.bf16.gmra.mxu0 %v3115
        %v3204 = vpop.f32.mrf.mxu0
        %v3205 = vadd.f32 %v3036, %v3204
        %v3206 = vpop.f32.mrf.mxu0
        %v3207 = vadd.f32 %v3036, %v3206
        %3208 = vdwg.mxu0
        %v3209 = vld [vmem:[%s517] sm:$0x1]
        %v3210 = vadd.f32 %v3209, 1.0
        %v3212 = vperm.slane %v3210, 0
        %v3214 = vmul.f32 %v3130, %v3212
        %v3215 = vmul.f32 %v3132, %v3212
        %v3216 = vmul.f32 %v3135, %v3212
        %v3217 = vmul.f32 %v3137, %v3212
        %v3218 = vmul.f32 %v3140, %v3212
        %v3219 = vmul.f32 %v3142, %v3212
        %v3220 = vmul.f32 %v3145, %v3212
        %v3221 = vmul.f32 %v3147, %v3212
        %v3222 = vmul.f32 %v3150, %v3212
        %v3223 = vmul.f32 %v3152, %v3212
        %v3224 = vmul.f32 %v3155, %v3212
        %v3225 = vmul.f32 %v3157, %v3212
        %v3226 = vmul.f32 %v3160, %v3212
        %v3227 = vmul.f32 %v3162, %v3212
        %v3228 = vmul.f32 %v3165, %v3212
        %v3229 = vmul.f32 %v3167, %v3212
        %v3230 = vmul.f32 %v3170, %v3212
        %v3231 = vmul.f32 %v3172, %v3212
        %v3232 = vmul.f32 %v3175, %v3212
        %v3233 = vmul.f32 %v3177, %v3212
        %v3234 = vmul.f32 %v3180, %v3212
        %v3235 = vmul.f32 %v3182, %v3212
        %v3236 = vmul.f32 %v3185, %v3212
        %v3237 = vmul.f32 %v3187, %v3212
        %v3238 = vmul.f32 %v3190, %v3212
        %v3239 = vmul.f32 %v3192, %v3212
        %v3240 = vmul.f32 %v3195, %v3212
        %v3241 = vmul.f32 %v3197, %v3212
        %v3242 = vmul.f32 %v3200, %v3212
        %v3243 = vmul.f32 %v3202, %v3212
        %v3244 = vmul.f32 %v3205, %v3212
        %v3245 = vmul.f32 %v3207, %v3212
        %v3246 = vld [vmem:[%s520] sm:$0x1]
        %v3248 = vperm.slane %v3246, 0
        %v3250 = vadd.f32 %v3214, %v3248
        %v3251 = vadd.f32 %v3215, %v3248
        %v3252 = vadd.f32 %v3216, %v3248
        %v3253 = vadd.f32 %v3217, %v3248
        %v3254 = vadd.f32 %v3218, %v3248
        %v3255 = vadd.f32 %v3219, %v3248
        %v3256 = vadd.f32 %v3220, %v3248
        %v3257 = vadd.f32 %v3221, %v3248
        %v3258 = vadd.f32 %v3222, %v3248
        %v3259 = vadd.f32 %v3223, %v3248
        %v3260 = vadd.f32 %v3224, %v3248
        %v3261 = vadd.f32 %v3225, %v3248
        %v3262 = vadd.f32 %v3226, %v3248
        %v3263 = vadd.f32 %v3227, %v3248
        %v3264 = vadd.f32 %v3228, %v3248
        %v3265 = vadd.f32 %v3229, %v3248
        %v3266 = vadd.f32 %v3230, %v3248
        %v3267 = vadd.f32 %v3231, %v3248
        %v3268 = vadd.f32 %v3232, %v3248
        %v3269 = vadd.f32 %v3233, %v3248
        %v3270 = vadd.f32 %v3234, %v3248
        %v3271 = vadd.f32 %v3235, %v3248
        %v3272 = vadd.f32 %v3236, %v3248
        %v3273 = vadd.f32 %v3237, %v3248
        %v3274 = vadd.f32 %v3238, %v3248
        %v3275 = vadd.f32 %v3239, %v3248
        %v3276 = vadd.f32 %v3240, %v3248
        %v3277 = vadd.f32 %v3241, %v3248
        %v3278 = vadd.f32 %v3242, %v3248
        %v3279 = vadd.f32 %v3243, %v3248
        %v3280 = vadd.f32 %v3244, %v3248
        %v3281 = vadd.f32 %v3245, %v3248
        %v3282 = vld [vmem:[%s7] sm:$0x1]
        %v3284 = vperm.slane %v3282, 0
        %v3286 = vmul.f32 %v3250, %v3284
        %v3287 = vmul.f32 %v3251, %v3284
        %v3288 = vmul.f32 %v3252, %v3284
        %v3289 = vmul.f32 %v3253, %v3284
        %v3290 = vmul.f32 %v3254, %v3284
        %v3291 = vmul.f32 %v3255, %v3284
        %v3292 = vmul.f32 %v3256, %v3284
        %v3293 = vmul.f32 %v3257, %v3284
        %v3294 = vmul.f32 %v3258, %v3284
        %v3295 = vmul.f32 %v3259, %v3284
        %v3296 = vmul.f32 %v3260, %v3284
        %v3297 = vmul.f32 %v3261, %v3284
        %v3298 = vmul.f32 %v3262, %v3284
        %v3299 = vmul.f32 %v3263, %v3284
        %v3300 = vmul.f32 %v3264, %v3284
        %v3301 = vmul.f32 %v3265, %v3284
        %v3302 = vmul.f32 %v3266, %v3284
        %v3303 = vmul.f32 %v3267, %v3284
        %v3304 = vmul.f32 %v3268, %v3284
        %v3305 = vmul.f32 %v3269, %v3284
        %v3306 = vmul.f32 %v3270, %v3284
        %v3307 = vmul.f32 %v3271, %v3284
        %v3308 = vmul.f32 %v3272, %v3284
        %v3309 = vmul.f32 %v3273, %v3284
        %v3310 = vmul.f32 %v3274, %v3284
        %v3311 = vmul.f32 %v3275, %v3284
        %v3312 = vmul.f32 %v3276, %v3284
        %v3313 = vmul.f32 %v3277, %v3284
        %v3314 = vmul.f32 %v3278, %v3284
        %v3315 = vmul.f32 %v3279, %v3284
        %v3316 = vmul.f32 %v3280, %v3284
        %v3317 = vmul.f32 %v3281, %v3284
        %v3318 = vld [vmem:[%s8] sm:$0x1]
        %v3320 = vperm.slane %v3318, 0
        %v3322 = vadd.f32 %v3286, %v3320
        %v3323 = vadd.f32 %v3287, %v3320
        %v3324 = vadd.f32 %v3288, %v3320
        %v3325 = vadd.f32 %v3289, %v3320
        %v3326 = vadd.f32 %v3290, %v3320
        %v3327 = vadd.f32 %v3291, %v3320
        %v3328 = vadd.f32 %v3292, %v3320
        %v3329 = vadd.f32 %v3293, %v3320
        %v3330 = vadd.f32 %v3294, %v3320
        %v3331 = vadd.f32 %v3295, %v3320
        %v3332 = vadd.f32 %v3296, %v3320
        %v3333 = vadd.f32 %v3297, %v3320
        %v3334 = vadd.f32 %v3298, %v3320
        %v3335 = vadd.f32 %v3299, %v3320
        %v3336 = vadd.f32 %v3300, %v3320
        %v3337 = vadd.f32 %v3301, %v3320
        %v3338 = vadd.f32 %v3302, %v3320
        %v3339 = vadd.f32 %v3303, %v3320
        %v3340 = vadd.f32 %v3304, %v3320
        %v3341 = vadd.f32 %v3305, %v3320
        %v3342 = vadd.f32 %v3306, %v3320
        %v3343 = vadd.f32 %v3307, %v3320
        %v3344 = vadd.f32 %v3308, %v3320
        %v3345 = vadd.f32 %v3309, %v3320
        %v3346 = vadd.f32 %v3310, %v3320
        %v3347 = vadd.f32 %v3311, %v3320
        %v3348 = vadd.f32 %v3312, %v3320
        %v3349 = vadd.f32 %v3313, %v3320
        %v3350 = vadd.f32 %v3314, %v3320
        %v3351 = vadd.f32 %v3315, %v3320
        %v3352 = vadd.f32 %v3316, %v3320
        %v3353 = vadd.f32 %v3317, %v3320
        %v3354 = vxor.u32 %v3322, 2147483648
        %v3355 = vxor.u32 %v3323, 2147483648
        %v3356 = vxor.u32 %v3324, 2147483648
        %v3357 = vxor.u32 %v3325, 2147483648
        %v3358 = vxor.u32 %v3326, 2147483648
        %v3359 = vxor.u32 %v3327, 2147483648
        %v3360 = vxor.u32 %v3328, 2147483648
        %v3361 = vxor.u32 %v3329, 2147483648
        %v3362 = vxor.u32 %v3330, 2147483648
        %v3363 = vxor.u32 %v3331, 2147483648
        %v3364 = vxor.u32 %v3332, 2147483648
        %v3365 = vxor.u32 %v3333, 2147483648
        %v3366 = vxor.u32 %v3334, 2147483648
        %v3367 = vxor.u32 %v3335, 2147483648
        %v3368 = vxor.u32 %v3336, 2147483648
        %v3369 = vxor.u32 %v3337, 2147483648
        %v3370 = vxor.u32 %v3338, 2147483648
        %v3371 = vxor.u32 %v3339, 2147483648
        %v3372 = vxor.u32 %v3340, 2147483648
        %v3373 = vxor.u32 %v3341, 2147483648
        %v3374 = vxor.u32 %v3342, 2147483648
        %v3375 = vxor.u32 %v3343, 2147483648
        %v3376 = vxor.u32 %v3344, 2147483648
        %v3377 = vxor.u32 %v3345, 2147483648
        %v3378 = vxor.u32 %v3346, 2147483648
        %v3379 = vxor.u32 %v3347, 2147483648
        %v3380 = vxor.u32 %v3348, 2147483648
        %v3381 = vxor.u32 %v3349, 2147483648
        %v3382 = vxor.u32 %v3350, 2147483648
        %v3383 = vxor.u32 %v3351, 2147483648
        %v3384 = vxor.u32 %v3352, 2147483648
        %v3385 = vxor.u32 %v3353, 2147483648
        %v3386 = vmul.f32 %v3354, 1.442695
        %v3387 = vpow.pop %v3386
        %v3388 = vmul.f32 %v3355, 1.442695
        %v3389 = vpow.pop %v3388
        %v3390 = vmul.f32 %v3356, 1.442695
        %v3391 = vpow.pop %v3390
        %v3392 = vmul.f32 %v3357, 1.442695
        %v3393 = vpow.pop %v3392
        %v3394 = vmul.f32 %v3358, 1.442695
        %v3395 = vpow.pop %v3394
        %v3396 = vmul.f32 %v3359, 1.442695
        %v3397 = vpow.pop %v3396
        %v3398 = vmul.f32 %v3360, 1.442695
        %v3399 = vpow.pop %v3398
        %v3400 = vmul.f32 %v3361, 1.442695
        %v3401 = vpow.pop %v3400
        %v3402 = vmul.f32 %v3362, 1.442695
        %v3403 = vpow.pop %v3402
        %v3404 = vmul.f32 %v3363, 1.442695
        %v3405 = vpow.pop %v3404
        %v3406 = vmul.f32 %v3364, 1.442695
        %v3407 = vpow.pop %v3406
        %v3408 = vmul.f32 %v3365, 1.442695
        %v3409 = vpow.pop %v3408
        %v3410 = vmul.f32 %v3366, 1.442695
        %v3411 = vpow.pop %v3410
        %v3412 = vmul.f32 %v3367, 1.442695
        %v3413 = vpow.pop %v3412
        %v3414 = vmul.f32 %v3368, 1.442695
        %v3415 = vpow.pop %v3414
        %v3416 = vmul.f32 %v3369, 1.442695
        %v3417 = vpow.pop %v3416
        %v3418 = vmul.f32 %v3370, 1.442695
        %v3419 = vpow.pop %v3418
        %v3420 = vmul.f32 %v3371, 1.442695
        %v3421 = vpow.pop %v3420
        %v3422 = vmul.f32 %v3372, 1.442695
        %v3423 = vpow.pop %v3422
        %v3424 = vmul.f32 %v3373, 1.442695
        %v3425 = vpow.pop %v3424
        %v3426 = vmul.f32 %v3374, 1.442695
        %v3427 = vpow.pop %v3426
        %v3428 = vmul.f32 %v3375, 1.442695
        %v3429 = vpow.pop %v3428
        %v3430 = vmul.f32 %v3376, 1.442695
        %v3431 = vpow.pop %v3430
        %v3432 = vmul.f32 %v3377, 1.442695
        %v3433 = vpow.pop %v3432
        %v3434 = vmul.f32 %v3378, 1.442695
        %v3435 = vpow.pop %v3434
        %v3436 = vmul.f32 %v3379, 1.442695
        %v3437 = vpow.pop %v3436
        %v3438 = vmul.f32 %v3380, 1.442695
        %v3439 = vpow.pop %v3438
        %v3440 = vmul.f32 %v3381, 1.442695
        %v3441 = vpow.pop %v3440
        %v3442 = vmul.f32 %v3382, 1.442695
        %v3443 = vpow.pop %v3442
        %v3444 = vmul.f32 %v3383, 1.442695
        %v3445 = vpow.pop %v3444
        %v3446 = vmul.f32 %v3384, 1.442695
        %v3447 = vpow.pop %v3446
        %v3448 = vmul.f32 %v3385, 1.442695
        %v3449 = vpow.pop %v3448
        %v3450 = vadd.f32 %v3387, 1.0
        %v3451 = vadd.f32 %v3389, 1.0
        %v3452 = vadd.f32 %v3391, 1.0
        %v3453 = vadd.f32 %v3393, 1.0
        %v3454 = vadd.f32 %v3395, 1.0
        %v3455 = vadd.f32 %v3397, 1.0
        %v3456 = vadd.f32 %v3399, 1.0
        %v3457 = vadd.f32 %v3401, 1.0
        %v3458 = vadd.f32 %v3403, 1.0
        %v3459 = vadd.f32 %v3405, 1.0
        %v3460 = vadd.f32 %v3407, 1.0
        %v3461 = vadd.f32 %v3409, 1.0
        %v3462 = vadd.f32 %v3411, 1.0
        %v3463 = vadd.f32 %v3413, 1.0
        %v3464 = vadd.f32 %v3415, 1.0
        %v3465 = vadd.f32 %v3417, 1.0
        %v3466 = vadd.f32 %v3419, 1.0
        %v3467 = vadd.f32 %v3421, 1.0
        %v3468 = vadd.f32 %v3423, 1.0
        %v3469 = vadd.f32 %v3425, 1.0
        %v3470 = vadd.f32 %v3427, 1.0
        %v3471 = vadd.f32 %v3429, 1.0
        %v3472 = vadd.f32 %v3431, 1.0
        %v3473 = vadd.f32 %v3433, 1.0
        %v3474 = vadd.f32 %v3435, 1.0
        %v3475 = vadd.f32 %v3437, 1.0
        %v3476 = vadd.f32 %v3439, 1.0
        %v3477 = vadd.f32 %v3441, 1.0
        %v3478 = vadd.f32 %v3443, 1.0
        %v3479 = vadd.f32 %v3445, 1.0
        %v3480 = vadd.f32 %v3447, 1.0
        %v3481 = vadd.f32 %v3449, 1.0
        %v3482 = vrcp.pop %v3450
        %v3483 = vmul.f32 %v3450, %v3482
        %v3484 = vsub.f32 1.0, %v3483
        %v3485 = vmul.f32 %v3482, %v3484
        %v3486 = vadd.f32 %v3482, %v3485
        %vm3487 = vweird.f32 %v3450
        %vm3488 = vweird.f32 %v3482
        %vm3489 = vmor %vm3487, %vm3488
        %v3490 = vsel %vm3489, %v3482, %v3486
        %v3491 = vand.u32 2147483647, %v3450
        %vm3492 = vcmp.eq.f32.partialorder %v3491, 8.507059e+37
        %v3493 = vand.u32 %v3450, 2147483648
        %v3494 = vor.u32 1.1754944e-38, %v3493
        %v3495 = vsel %vm3492, %v3494, %v3490
        %v3496 = vmul.f32 1.0, %v3495
        %v3497 = vrcp.pop %v3451
        %v3498 = vmul.f32 %v3451, %v3497
        %v3499 = vsub.f32 1.0, %v3498
        %v3500 = vmul.f32 %v3497, %v3499
        %v3501 = vadd.f32 %v3497, %v3500
        %vm3502 = vweird.f32 %v3451
        %vm3503 = vweird.f32 %v3497
        %vm3504 = vmor %vm3502, %vm3503
        %v3505 = vsel %vm3504, %v3497, %v3501
        %v3506 = vand.u32 2147483647, %v3451
        %vm3507 = vcmp.eq.f32.partialorder %v3506, 8.507059e+37
        %v3508 = vand.u32 %v3451, 2147483648
        %v3509 = vor.u32 1.1754944e-38, %v3508
        %v3510 = vsel %vm3507, %v3509, %v3505
        %v3511 = vmul.f32 1.0, %v3510
        %v3512 = vrcp.pop %v3452
        %v3513 = vmul.f32 %v3452, %v3512
        %v3514 = vsub.f32 1.0, %v3513
        %v3515 = vmul.f32 %v3512, %v3514
        %v3516 = vadd.f32 %v3512, %v3515
        %vm3517 = vweird.f32 %v3452
        %vm3518 = vweird.f32 %v3512
        %vm3519 = vmor %vm3517, %vm3518
        %v3520 = vsel %vm3519, %v3512, %v3516
        %v3521 = vand.u32 2147483647, %v3452
        %vm3522 = vcmp.eq.f32.partialorder %v3521, 8.507059e+37
        %v3523 = vand.u32 %v3452, 2147483648
        %v3524 = vor.u32 1.1754944e-38, %v3523
        %v3525 = vsel %vm3522, %v3524, %v3520
        %v3526 = vmul.f32 1.0, %v3525
        %v3527 = vrcp.pop %v3453
        %v3528 = vmul.f32 %v3453, %v3527
        %v3529 = vsub.f32 1.0, %v3528
        %v3530 = vmul.f32 %v3527, %v3529
        %v3531 = vadd.f32 %v3527, %v3530
        %vm3532 = vweird.f32 %v3453
        %vm3533 = vweird.f32 %v3527
        %vm3534 = vmor %vm3532, %vm3533
        %v3535 = vsel %vm3534, %v3527, %v3531
        %v3536 = vand.u32 2147483647, %v3453
        %vm3537 = vcmp.eq.f32.partialorder %v3536, 8.507059e+37
        %v3538 = vand.u32 %v3453, 2147483648
        %v3539 = vor.u32 1.1754944e-38, %v3538
        %v3540 = vsel %vm3537, %v3539, %v3535
        %v3541 = vmul.f32 1.0, %v3540
        %v3542 = vrcp.pop %v3454
        %v3543 = vmul.f32 %v3454, %v3542
        %v3544 = vsub.f32 1.0, %v3543
        %v3545 = vmul.f32 %v3542, %v3544
        %v3546 = vadd.f32 %v3542, %v3545
        %vm3547 = vweird.f32 %v3454
        %vm3548 = vweird.f32 %v3542
        %vm3549 = vmor %vm3547, %vm3548
        %v3550 = vsel %vm3549, %v3542, %v3546
        %v3551 = vand.u32 2147483647, %v3454
        %vm3552 = vcmp.eq.f32.partialorder %v3551, 8.507059e+37
        %v3553 = vand.u32 %v3454, 2147483648
        %v3554 = vor.u32 1.1754944e-38, %v3553
        %v3555 = vsel %vm3552, %v3554, %v3550
        %v3556 = vmul.f32 1.0, %v3555
        %v3557 = vrcp.pop %v3455
        %v3558 = vmul.f32 %v3455, %v3557
        %v3559 = vsub.f32 1.0, %v3558
        %v3560 = vmul.f32 %v3557, %v3559
        %v3561 = vadd.f32 %v3557, %v3560
        %vm3562 = vweird.f32 %v3455
        %vm3563 = vweird.f32 %v3557
        %vm3564 = vmor %vm3562, %vm3563
        %v3565 = vsel %vm3564, %v3557, %v3561
        %v3566 = vand.u32 2147483647, %v3455
        %vm3567 = vcmp.eq.f32.partialorder %v3566, 8.507059e+37
        %v3568 = vand.u32 %v3455, 2147483648
        %v3569 = vor.u32 1.1754944e-38, %v3568
        %v3570 = vsel %vm3567, %v3569, %v3565
        %v3571 = vmul.f32 1.0, %v3570
        %v3572 = vrcp.pop %v3456
        %v3573 = vmul.f32 %v3456, %v3572
        %v3574 = vsub.f32 1.0, %v3573
        %v3575 = vmul.f32 %v3572, %v3574
        %v3576 = vadd.f32 %v3572, %v3575
        %vm3577 = vweird.f32 %v3456
        %vm3578 = vweird.f32 %v3572
        %vm3579 = vmor %vm3577, %vm3578
        %v3580 = vsel %vm3579, %v3572, %v3576
        %v3581 = vand.u32 2147483647, %v3456
        %vm3582 = vcmp.eq.f32.partialorder %v3581, 8.507059e+37
        %v3583 = vand.u32 %v3456, 2147483648
        %v3584 = vor.u32 1.1754944e-38, %v3583
        %v3585 = vsel %vm3582, %v3584, %v3580
        %v3586 = vmul.f32 1.0, %v3585
        %v3587 = vrcp.pop %v3457
        %v3588 = vmul.f32 %v3457, %v3587
        %v3589 = vsub.f32 1.0, %v3588
        %v3590 = vmul.f32 %v3587, %v3589
        %v3591 = vadd.f32 %v3587, %v3590
        %vm3592 = vweird.f32 %v3457
        %vm3593 = vweird.f32 %v3587
        %vm3594 = vmor %vm3592, %vm3593
        %v3595 = vsel %vm3594, %v3587, %v3591
        %v3596 = vand.u32 2147483647, %v3457
        %vm3597 = vcmp.eq.f32.partialorder %v3596, 8.507059e+37
        %v3598 = vand.u32 %v3457, 2147483648
        %v3599 = vor.u32 1.1754944e-38, %v3598
        %v3600 = vsel %vm3597, %v3599, %v3595
        %v3601 = vmul.f32 1.0, %v3600
        %v3602 = vrcp.pop %v3458
        %v3603 = vmul.f32 %v3458, %v3602
        %v3604 = vsub.f32 1.0, %v3603
        %v3605 = vmul.f32 %v3602, %v3604
        %v3606 = vadd.f32 %v3602, %v3605
        %vm3607 = vweird.f32 %v3458
        %vm3608 = vweird.f32 %v3602
        %vm3609 = vmor %vm3607, %vm3608
        %v3610 = vsel %vm3609, %v3602, %v3606
        %v3611 = vand.u32 2147483647, %v3458
        %vm3612 = vcmp.eq.f32.partialorder %v3611, 8.507059e+37
        %v3613 = vand.u32 %v3458, 2147483648
        %v3614 = vor.u32 1.1754944e-38, %v3613
        %v3615 = vsel %vm3612, %v3614, %v3610
        %v3616 = vmul.f32 1.0, %v3615
        %v3617 = vrcp.pop %v3459
        %v3618 = vmul.f32 %v3459, %v3617
        %v3619 = vsub.f32 1.0, %v3618
        %v3620 = vmul.f32 %v3617, %v3619
        %v3621 = vadd.f32 %v3617, %v3620
        %vm3622 = vweird.f32 %v3459
        %vm3623 = vweird.f32 %v3617
        %vm3624 = vmor %vm3622, %vm3623
        %v3625 = vsel %vm3624, %v3617, %v3621
        %v3626 = vand.u32 2147483647, %v3459
        %vm3627 = vcmp.eq.f32.partialorder %v3626, 8.507059e+37
        %v3628 = vand.u32 %v3459, 2147483648
        %v3629 = vor.u32 1.1754944e-38, %v3628
        %v3630 = vsel %vm3627, %v3629, %v3625
        %v3631 = vmul.f32 1.0, %v3630
        %v3632 = vrcp.pop %v3460
        %v3633 = vmul.f32 %v3460, %v3632
        %v3634 = vsub.f32 1.0, %v3633
        %v3635 = vmul.f32 %v3632, %v3634
        %v3636 = vadd.f32 %v3632, %v3635
        %vm3637 = vweird.f32 %v3460
        %vm3638 = vweird.f32 %v3632
        %vm3639 = vmor %vm3637, %vm3638
        %v3640 = vsel %vm3639, %v3632, %v3636
        %v3641 = vand.u32 2147483647, %v3460
        %vm3642 = vcmp.eq.f32.partialorder %v3641, 8.507059e+37
        %v3643 = vand.u32 %v3460, 2147483648
        %v3644 = vor.u32 1.1754944e-38, %v3643
        %v3645 = vsel %vm3642, %v3644, %v3640
        %v3646 = vmul.f32 1.0, %v3645
        %v3647 = vrcp.pop %v3461
        %v3648 = vmul.f32 %v3461, %v3647
        %v3649 = vsub.f32 1.0, %v3648
        %v3650 = vmul.f32 %v3647, %v3649
        %v3651 = vadd.f32 %v3647, %v3650
        %vm3652 = vweird.f32 %v3461
        %vm3653 = vweird.f32 %v3647
        %vm3654 = vmor %vm3652, %vm3653
        %v3655 = vsel %vm3654, %v3647, %v3651
        %v3656 = vand.u32 2147483647, %v3461
        %vm3657 = vcmp.eq.f32.partialorder %v3656, 8.507059e+37
        %v3658 = vand.u32 %v3461, 2147483648
        %v3659 = vor.u32 1.1754944e-38, %v3658
        %v3660 = vsel %vm3657, %v3659, %v3655
        %v3661 = vmul.f32 1.0, %v3660
        %v3662 = vrcp.pop %v3462
        %v3663 = vmul.f32 %v3462, %v3662
        %v3664 = vsub.f32 1.0, %v3663
        %v3665 = vmul.f32 %v3662, %v3664
        %v3666 = vadd.f32 %v3662, %v3665
        %vm3667 = vweird.f32 %v3462
        %vm3668 = vweird.f32 %v3662
        %vm3669 = vmor %vm3667, %vm3668
        %v3670 = vsel %vm3669, %v3662, %v3666
        %v3671 = vand.u32 2147483647, %v3462
        %vm3672 = vcmp.eq.f32.partialorder %v3671, 8.507059e+37
        %v3673 = vand.u32 %v3462, 2147483648
        %v3674 = vor.u32 1.1754944e-38, %v3673
        %v3675 = vsel %vm3672, %v3674, %v3670
        %v3676 = vmul.f32 1.0, %v3675
        %v3677 = vrcp.pop %v3463
        %v3678 = vmul.f32 %v3463, %v3677
        %v3679 = vsub.f32 1.0, %v3678
        %v3680 = vmul.f32 %v3677, %v3679
        %v3681 = vadd.f32 %v3677, %v3680
        %vm3682 = vweird.f32 %v3463
        %vm3683 = vweird.f32 %v3677
        %vm3684 = vmor %vm3682, %vm3683
        %v3685 = vsel %vm3684, %v3677, %v3681
        %v3686 = vand.u32 2147483647, %v3463
        %vm3687 = vcmp.eq.f32.partialorder %v3686, 8.507059e+37
        %v3688 = vand.u32 %v3463, 2147483648
        %v3689 = vor.u32 1.1754944e-38, %v3688
        %v3690 = vsel %vm3687, %v3689, %v3685
        %v3691 = vmul.f32 1.0, %v3690
        %v3692 = vrcp.pop %v3464
        %v3693 = vmul.f32 %v3464, %v3692
        %v3694 = vsub.f32 1.0, %v3693
        %v3695 = vmul.f32 %v3692, %v3694
        %v3696 = vadd.f32 %v3692, %v3695
        %vm3697 = vweird.f32 %v3464
        %vm3698 = vweird.f32 %v3692
        %vm3699 = vmor %vm3697, %vm3698
        %v3700 = vsel %vm3699, %v3692, %v3696
        %v3701 = vand.u32 2147483647, %v3464
        %vm3702 = vcmp.eq.f32.partialorder %v3701, 8.507059e+37
        %v3703 = vand.u32 %v3464, 2147483648
        %v3704 = vor.u32 1.1754944e-38, %v3703
        %v3705 = vsel %vm3702, %v3704, %v3700
        %v3706 = vmul.f32 1.0, %v3705
        %v3707 = vrcp.pop %v3465
        %v3708 = vmul.f32 %v3465, %v3707
        %v3709 = vsub.f32 1.0, %v3708
        %v3710 = vmul.f32 %v3707, %v3709
        %v3711 = vadd.f32 %v3707, %v3710
        %vm3712 = vweird.f32 %v3465
        %vm3713 = vweird.f32 %v3707
        %vm3714 = vmor %vm3712, %vm3713
        %v3715 = vsel %vm3714, %v3707, %v3711
        %v3716 = vand.u32 2147483647, %v3465
        %vm3717 = vcmp.eq.f32.partialorder %v3716, 8.507059e+37
        %v3718 = vand.u32 %v3465, 2147483648
        %v3719 = vor.u32 1.1754944e-38, %v3718
        %v3720 = vsel %vm3717, %v3719, %v3715
        %v3721 = vmul.f32 1.0, %v3720
        %v3722 = vrcp.pop %v3466
        %v3723 = vmul.f32 %v3466, %v3722
        %v3724 = vsub.f32 1.0, %v3723
        %v3725 = vmul.f32 %v3722, %v3724
        %v3726 = vadd.f32 %v3722, %v3725
        %vm3727 = vweird.f32 %v3466
        %vm3728 = vweird.f32 %v3722
        %vm3729 = vmor %vm3727, %vm3728
        %v3730 = vsel %vm3729, %v3722, %v3726
        %v3731 = vand.u32 2147483647, %v3466
        %vm3732 = vcmp.eq.f32.partialorder %v3731, 8.507059e+37
        %v3733 = vand.u32 %v3466, 2147483648
        %v3734 = vor.u32 1.1754944e-38, %v3733
        %v3735 = vsel %vm3732, %v3734, %v3730
        %v3736 = vmul.f32 1.0, %v3735
        %v3737 = vrcp.pop %v3467
        %v3738 = vmul.f32 %v3467, %v3737
        %v3739 = vsub.f32 1.0, %v3738
        %v3740 = vmul.f32 %v3737, %v3739
        %v3741 = vadd.f32 %v3737, %v3740
        %vm3742 = vweird.f32 %v3467
        %vm3743 = vweird.f32 %v3737
        %vm3744 = vmor %vm3742, %vm3743
        %v3745 = vsel %vm3744, %v3737, %v3741
        %v3746 = vand.u32 2147483647, %v3467
        %vm3747 = vcmp.eq.f32.partialorder %v3746, 8.507059e+37
        %v3748 = vand.u32 %v3467, 2147483648
        %v3749 = vor.u32 1.1754944e-38, %v3748
        %v3750 = vsel %vm3747, %v3749, %v3745
        %v3751 = vmul.f32 1.0, %v3750
        %v3752 = vrcp.pop %v3468
        %v3753 = vmul.f32 %v3468, %v3752
        %v3754 = vsub.f32 1.0, %v3753
        %v3755 = vmul.f32 %v3752, %v3754
        %v3756 = vadd.f32 %v3752, %v3755
        %vm3757 = vweird.f32 %v3468
        %vm3758 = vweird.f32 %v3752
        %vm3759 = vmor %vm3757, %vm3758
        %v3760 = vsel %vm3759, %v3752, %v3756
        %v3761 = vand.u32 2147483647, %v3468
        %vm3762 = vcmp.eq.f32.partialorder %v3761, 8.507059e+37
        %v3763 = vand.u32 %v3468, 2147483648
        %v3764 = vor.u32 1.1754944e-38, %v3763
        %v3765 = vsel %vm3762, %v3764, %v3760
        %v3766 = vmul.f32 1.0, %v3765
        %v3767 = vrcp.pop %v3469
        %v3768 = vmul.f32 %v3469, %v3767
        %v3769 = vsub.f32 1.0, %v3768
        %v3770 = vmul.f32 %v3767, %v3769
        %v3771 = vadd.f32 %v3767, %v3770
        %vm3772 = vweird.f32 %v3469
        %vm3773 = vweird.f32 %v3767
        %vm3774 = vmor %vm3772, %vm3773
        %v3775 = vsel %vm3774, %v3767, %v3771
        %v3776 = vand.u32 2147483647, %v3469
        %vm3777 = vcmp.eq.f32.partialorder %v3776, 8.507059e+37
        %v3778 = vand.u32 %v3469, 2147483648
        %v3779 = vor.u32 1.1754944e-38, %v3778
        %v3780 = vsel %vm3777, %v3779, %v3775
        %v3781 = vmul.f32 1.0, %v3780
        %v3782 = vrcp.pop %v3470
        %v3783 = vmul.f32 %v3470, %v3782
        %v3784 = vsub.f32 1.0, %v3783
        %v3785 = vmul.f32 %v3782, %v3784
        %v3786 = vadd.f32 %v3782, %v3785
        %vm3787 = vweird.f32 %v3470
        %vm3788 = vweird.f32 %v3782
        %vm3789 = vmor %vm3787, %vm3788
        %v3790 = vsel %vm3789, %v3782, %v3786
        %v3791 = vand.u32 2147483647, %v3470
        %vm3792 = vcmp.eq.f32.partialorder %v3791, 8.507059e+37
        %v3793 = vand.u32 %v3470, 2147483648
        %v3794 = vor.u32 1.1754944e-38, %v3793
        %v3795 = vsel %vm3792, %v3794, %v3790
        %v3796 = vmul.f32 1.0, %v3795
        %v3797 = vrcp.pop %v3471
        %v3798 = vmul.f32 %v3471, %v3797
        %v3799 = vsub.f32 1.0, %v3798
        %v3800 = vmul.f32 %v3797, %v3799
        %v3801 = vadd.f32 %v3797, %v3800
        %vm3802 = vweird.f32 %v3471
        %vm3803 = vweird.f32 %v3797
        %vm3804 = vmor %vm3802, %vm3803
        %v3805 = vsel %vm3804, %v3797, %v3801
        %v3806 = vand.u32 2147483647, %v3471
        %vm3807 = vcmp.eq.f32.partialorder %v3806, 8.507059e+37
        %v3808 = vand.u32 %v3471, 2147483648
        %v3809 = vor.u32 1.1754944e-38, %v3808
        %v3810 = vsel %vm3807, %v3809, %v3805
        %v3811 = vmul.f32 1.0, %v3810
        %v3812 = vrcp.pop %v3472
        %v3813 = vmul.f32 %v3472, %v3812
        %v3814 = vsub.f32 1.0, %v3813
        %v3815 = vmul.f32 %v3812, %v3814
        %v3816 = vadd.f32 %v3812, %v3815
        %vm3817 = vweird.f32 %v3472
        %vm3818 = vweird.f32 %v3812
        %vm3819 = vmor %vm3817, %vm3818
        %v3820 = vsel %vm3819, %v3812, %v3816
        %v3821 = vand.u32 2147483647, %v3472
        %vm3822 = vcmp.eq.f32.partialorder %v3821, 8.507059e+37
        %v3823 = vand.u32 %v3472, 2147483648
        %v3824 = vor.u32 1.1754944e-38, %v3823
        %v3825 = vsel %vm3822, %v3824, %v3820
        %v3826 = vmul.f32 1.0, %v3825
        %v3827 = vrcp.pop %v3473
        %v3828 = vmul.f32 %v3473, %v3827
        %v3829 = vsub.f32 1.0, %v3828
        %v3830 = vmul.f32 %v3827, %v3829
        %v3831 = vadd.f32 %v3827, %v3830
        %vm3832 = vweird.f32 %v3473
        %vm3833 = vweird.f32 %v3827
        %vm3834 = vmor %vm3832, %vm3833
        %v3835 = vsel %vm3834, %v3827, %v3831
        %v3836 = vand.u32 2147483647, %v3473
        %vm3837 = vcmp.eq.f32.partialorder %v3836, 8.507059e+37
        %v3838 = vand.u32 %v3473, 2147483648
        %v3839 = vor.u32 1.1754944e-38, %v3838
        %v3840 = vsel %vm3837, %v3839, %v3835
        %v3841 = vmul.f32 1.0, %v3840
        %v3842 = vrcp.pop %v3474
        %v3843 = vmul.f32 %v3474, %v3842
        %v3844 = vsub.f32 1.0, %v3843
        %v3845 = vmul.f32 %v3842, %v3844
        %v3846 = vadd.f32 %v3842, %v3845
        %vm3847 = vweird.f32 %v3474
        %vm3848 = vweird.f32 %v3842
        %vm3849 = vmor %vm3847, %vm3848
        %v3850 = vsel %vm3849, %v3842, %v3846
        %v3851 = vand.u32 2147483647, %v3474
        %vm3852 = vcmp.eq.f32.partialorder %v3851, 8.507059e+37
        %v3853 = vand.u32 %v3474, 2147483648
        %v3854 = vor.u32 1.1754944e-38, %v3853
        %v3855 = vsel %vm3852, %v3854, %v3850
        %v3856 = vmul.f32 1.0, %v3855
        %v3857 = vrcp.pop %v3475
        %v3858 = vmul.f32 %v3475, %v3857
        %v3859 = vsub.f32 1.0, %v3858
        %v3860 = vmul.f32 %v3857, %v3859
        %v3861 = vadd.f32 %v3857, %v3860
        %vm3862 = vweird.f32 %v3475
        %vm3863 = vweird.f32 %v3857
        %vm3864 = vmor %vm3862, %vm3863
        %v3865 = vsel %vm3864, %v3857, %v3861
        %v3866 = vand.u32 2147483647, %v3475
        %vm3867 = vcmp.eq.f32.partialorder %v3866, 8.507059e+37
        %v3868 = vand.u32 %v3475, 2147483648
        %v3869 = vor.u32 1.1754944e-38, %v3868
        %v3870 = vsel %vm3867, %v3869, %v3865
        %v3871 = vmul.f32 1.0, %v3870
        %v3872 = vrcp.pop %v3476
        %v3873 = vmul.f32 %v3476, %v3872
        %v3874 = vsub.f32 1.0, %v3873
        %v3875 = vmul.f32 %v3872, %v3874
        %v3876 = vadd.f32 %v3872, %v3875
        %vm3877 = vweird.f32 %v3476
        %vm3878 = vweird.f32 %v3872
        %vm3879 = vmor %vm3877, %vm3878
        %v3880 = vsel %vm3879, %v3872, %v3876
        %v3881 = vand.u32 2147483647, %v3476
        %vm3882 = vcmp.eq.f32.partialorder %v3881, 8.507059e+37
        %v3883 = vand.u32 %v3476, 2147483648
        %v3884 = vor.u32 1.1754944e-38, %v3883
        %v3885 = vsel %vm3882, %v3884, %v3880
        %v3886 = vmul.f32 1.0, %v3885
        %v3887 = vrcp.pop %v3477
        %v3888 = vmul.f32 %v3477, %v3887
        %v3889 = vsub.f32 1.0, %v3888
        %v3890 = vmul.f32 %v3887, %v3889
        %v3891 = vadd.f32 %v3887, %v3890
        %vm3892 = vweird.f32 %v3477
        %vm3893 = vweird.f32 %v3887
        %vm3894 = vmor %vm3892, %vm3893
        %v3895 = vsel %vm3894, %v3887, %v3891
        %v3896 = vand.u32 2147483647, %v3477
        %vm3897 = vcmp.eq.f32.partialorder %v3896, 8.507059e+37
        %v3898 = vand.u32 %v3477, 2147483648
        %v3899 = vor.u32 1.1754944e-38, %v3898
        %v3900 = vsel %vm3897, %v3899, %v3895
        %v3901 = vmul.f32 1.0, %v3900
        %v3902 = vrcp.pop %v3478
        %v3903 = vmul.f32 %v3478, %v3902
        %v3904 = vsub.f32 1.0, %v3903
        %v3905 = vmul.f32 %v3902, %v3904
        %v3906 = vadd.f32 %v3902, %v3905
        %vm3907 = vweird.f32 %v3478
        %vm3908 = vweird.f32 %v3902
        %vm3909 = vmor %vm3907, %vm3908
        %v3910 = vsel %vm3909, %v3902, %v3906
        %v3911 = vand.u32 2147483647, %v3478
        %vm3912 = vcmp.eq.f32.partialorder %v3911, 8.507059e+37
        %v3913 = vand.u32 %v3478, 2147483648
        %v3914 = vor.u32 1.1754944e-38, %v3913
        %v3915 = vsel %vm3912, %v3914, %v3910
        %v3916 = vmul.f32 1.0, %v3915
        %v3917 = vrcp.pop %v3479
        %v3918 = vmul.f32 %v3479, %v3917
        %v3919 = vsub.f32 1.0, %v3918
        %v3920 = vmul.f32 %v3917, %v3919
        %v3921 = vadd.f32 %v3917, %v3920
        %vm3922 = vweird.f32 %v3479
        %vm3923 = vweird.f32 %v3917
        %vm3924 = vmor %vm3922, %vm3923
        %v3925 = vsel %vm3924, %v3917, %v3921
        %v3926 = vand.u32 2147483647, %v3479
        %vm3927 = vcmp.eq.f32.partialorder %v3926, 8.507059e+37
        %v3928 = vand.u32 %v3479, 2147483648
        %v3929 = vor.u32 1.1754944e-38, %v3928
        %v3930 = vsel %vm3927, %v3929, %v3925
        %v3931 = vmul.f32 1.0, %v3930
        %v3932 = vrcp.pop %v3480
        %v3933 = vmul.f32 %v3480, %v3932
        %v3934 = vsub.f32 1.0, %v3933
        %v3935 = vmul.f32 %v3932, %v3934
        %v3936 = vadd.f32 %v3932, %v3935
        %vm3937 = vweird.f32 %v3480
        %vm3938 = vweird.f32 %v3932
        %vm3939 = vmor %vm3937, %vm3938
        %v3940 = vsel %vm3939, %v3932, %v3936
        %v3941 = vand.u32 2147483647, %v3480
        %vm3942 = vcmp.eq.f32.partialorder %v3941, 8.507059e+37
        %v3943 = vand.u32 %v3480, 2147483648
        %v3944 = vor.u32 1.1754944e-38, %v3943
        %v3945 = vsel %vm3942, %v3944, %v3940
        %v3946 = vmul.f32 1.0, %v3945
        %v3947 = vrcp.pop %v3481
        %v3948 = vmul.f32 %v3481, %v3947
        %v3949 = vsub.f32 1.0, %v3948
        %v3950 = vmul.f32 %v3947, %v3949
        %v3951 = vadd.f32 %v3947, %v3950
        %vm3952 = vweird.f32 %v3481
        %vm3953 = vweird.f32 %v3947
        %vm3954 = vmor %vm3952, %vm3953
        %v3955 = vsel %vm3954, %v3947, %v3951
        %v3956 = vand.u32 2147483647, %v3481
        %vm3957 = vcmp.eq.f32.partialorder %v3956, 8.507059e+37
        %v3958 = vand.u32 %v3481, 2147483648
        %v3959 = vor.u32 1.1754944e-38, %v3958
        %v3960 = vsel %vm3957, %v3959, %v3955
        %v3961 = vmul.f32 1.0, %v3960
        %v3962 = vmul.f32 %v3322, %v3496
        %v3963 = vmul.f32 %v3323, %v3511
        %v3964 = vmul.f32 %v3324, %v3526
        %v3965 = vmul.f32 %v3325, %v3541
        %v3966 = vmul.f32 %v3326, %v3556
        %v3967 = vmul.f32 %v3327, %v3571
        %v3968 = vmul.f32 %v3328, %v3586
        %v3969 = vmul.f32 %v3329, %v3601
        %v3970 = vmul.f32 %v3330, %v3616
        %v3971 = vmul.f32 %v3331, %v3631
        %v3972 = vmul.f32 %v3332, %v3646
        %v3973 = vmul.f32 %v3333, %v3661
        %v3974 = vmul.f32 %v3334, %v3676
        %v3975 = vmul.f32 %v3335, %v3691
        %v3976 = vmul.f32 %v3336, %v3706
        %v3977 = vmul.f32 %v3337, %v3721
        %v3978 = vmul.f32 %v3338, %v3736
        %v3979 = vmul.f32 %v3339, %v3751
        %v3980 = vmul.f32 %v3340, %v3766
        %v3981 = vmul.f32 %v3341, %v3781
        %v3982 = vmul.f32 %v3342, %v3796
        %v3983 = vmul.f32 %v3343, %v3811
        %v3984 = vmul.f32 %v3344, %v3826
        %v3985 = vmul.f32 %v3345, %v3841
        %v3986 = vmul.f32 %v3346, %v3856
        %v3987 = vmul.f32 %v3347, %v3871
        %v3988 = vmul.f32 %v3348, %v3886
        %v3989 = vmul.f32 %v3349, %v3901
        %v3990 = vmul.f32 %v3350, %v3916
        %v3991 = vmul.f32 %v3351, %v3931
        %v3992 = vmul.f32 %v3352, %v3946
        %v3993 = vmul.f32 %v3353, %v3961
        %s3994 = scalar_lea.vmem [#allocation3], 24
        %3995 = vst.msk [vmem:[%s3994 + $0x1] sm:$0xff] %vm568, %v3962
        %3996 = vst.msk [vmem:[%s3994 + $0x9] sm:$0xff] %vm568, %v3963
        %3997 = vst.msk [vmem:[%s3994 + $0x19] sm:$0xff] %vm568, %v3964
        %3998 = vst.msk [vmem:[%s3994 + $0x21] sm:$0xff] %vm568, %v3965
        %3999 = vst.msk [vmem:[%s3994 + $0x31] sm:$0xff] %vm568, %v3966
        %4000 = vst.msk [vmem:[%s3994 + $0x39] sm:$0xff] %vm568, %v3967
        %4001 = vst.msk [vmem:[%s3994 + $0x49] sm:$0xff] %vm568, %v3968
        %4002 = vst.msk [vmem:[%s3994 + $0x51] sm:$0xff] %vm568, %v3969
        %4003 = vst.msk [vmem:[%s3994 + $0x61] sm:$0xff] %vm568, %v3970
        %4004 = vst.msk [vmem:[%s3994 + $0x69] sm:$0xff] %vm568, %v3971
        %4005 = vst.msk [vmem:[%s3994 + $0x79] sm:$0xff] %vm568, %v3972
        %4006 = vst.msk [vmem:[%s3994 + $0x81] sm:$0xff] %vm568, %v3973
        %4007 = vst.msk [vmem:[%s3994 + $0x91] sm:$0xff] %vm568, %v3974
        %4008 = vst.msk [vmem:[%s3994 + $0x99] sm:$0xff] %vm568, %v3975
        %4009 = vst.msk [vmem:[%s3994 + $0xa9] sm:$0xff] %vm568, %v3976
        %4010 = vst.msk [vmem:[%s3994 + $0xb1] sm:$0xff] %vm568, %v3977
        %4011 = vst.msk [vmem:[%s3994 + $0xc1] sm:$0xff] %vm568, %v3978
        %4012 = vst.msk [vmem:[%s3994 + $0xc9] sm:$0xff] %vm568, %v3979
        %4013 = vst.msk [vmem:[%s3994 + $0xd9] sm:$0xff] %vm568, %v3980
        %4014 = vst.msk [vmem:[%s3994 + $0xe1] sm:$0xff] %vm568, %v3981
        %4015 = vst.msk [vmem:[%s3994 + $0xf1] sm:$0xff] %vm568, %v3982
        %4016 = vst.msk [vmem:[%s3994 + $0xf9] sm:$0xff] %vm568, %v3983
        %4017 = vst.msk [vmem:[%s3994 + $0x109] sm:$0xff] %vm568, %v3984
        %4018 = vst.msk [vmem:[%s3994 + $0x111] sm:$0xff] %vm568, %v3985
        %4019 = vst.msk [vmem:[%s3994 + $0x121] sm:$0xff] %vm568, %v3986
        %4020 = vst.msk [vmem:[%s3994 + $0x129] sm:$0xff] %vm568, %v3987
        %4021 = vst.msk [vmem:[%s3994 + $0x139] sm:$0xff] %vm568, %v3988
        %4022 = vst.msk [vmem:[%s3994 + $0x141] sm:$0xff] %vm568, %v3989
        %4023 = vst.msk [vmem:[%s3994 + $0x151] sm:$0xff] %vm568, %v3990
        %4024 = vst.msk [vmem:[%s3994 + $0x159] sm:$0xff] %vm568, %v3991
        %4025 = vst.msk [vmem:[%s3994 + $0x169] sm:$0xff] %vm568, %v3992
        %4026 = vst.msk [vmem:[%s3994 + $0x171] sm:$0xff] %vm568, %v3993
        %v4027 = vld [vmem:[%s10] sm:$0x1]
        %v4028 = vld [vmem:[#allocation3] sm:$0xff]
        %v4029 = vld [vmem:[#allocation3 + $0x8] sm:$0xff]
        %v4030 = vld [vmem:[#allocation3 + $0x18] sm:$0xff]
        %v4031 = vld [vmem:[#allocation3 + $0x20] sm:$0xff]
        %v4032 = vld [vmem:[#allocation3 + $0x30] sm:$0xff]
        %v4033 = vld [vmem:[#allocation3 + $0x38] sm:$0xff]
        %v4034 = vld [vmem:[#allocation3 + $0x48] sm:$0xff]
        %v4035 = vld [vmem:[#allocation3 + $0x50] sm:$0xff]
        %v4036 = vld [vmem:[#allocation3 + $0x60] sm:$0xff]
        %v4037 = vld [vmem:[#allocation3 + $0x68] sm:$0xff]
        %v4038 = vld [vmem:[#allocation3 + $0x78] sm:$0xff]
        %v4039 = vld [vmem:[#allocation3 + $0x80] sm:$0xff]
        %v4040 = vld [vmem:[#allocation3 + $0x90] sm:$0xff]
        %v4041 = vld [vmem:[#allocation3 + $0x98] sm:$0xff]
        %v4042 = vld [vmem:[#allocation3 + $0xa8] sm:$0xff]
        %v4043 = vld [vmem:[#allocation3 + $0xb0] sm:$0xff]
        %v4044 = vld [vmem:[#allocation3 + $0xc0] sm:$0xff]
        %v4045 = vld [vmem:[#allocation3 + $0xc8] sm:$0xff]
        %v4046 = vld [vmem:[#allocation3 + $0xd8] sm:$0xff]
        %v4047 = vld [vmem:[#allocation3 + $0xe0] sm:$0xff]
        %v4048 = vld [vmem:[#allocation3 + $0xf0] sm:$0xff]
        %v4049 = vld [vmem:[#allocation3 + $0xf8] sm:$0xff]
        %v4050 = vld [vmem:[#allocation3 + $0x108] sm:$0xff]
        %v4051 = vld [vmem:[#allocation3 + $0x110] sm:$0xff]
        %v4052 = vld [vmem:[#allocation3 + $0x120] sm:$0xff]
        %v4053 = vld [vmem:[#allocation3 + $0x128] sm:$0xff]
        %v4054 = vld [vmem:[#allocation3 + $0x138] sm:$0xff]
        %v4055 = vld [vmem:[#allocation3 + $0x140] sm:$0xff]
        %v4056 = vld [vmem:[#allocation3 + $0x150] sm:$0xff]
        %v4057 = vld [vmem:[#allocation3 + $0x158] sm:$0xff]
        %v4058 = vld [vmem:[#allocation3 + $0x168] sm:$0xff]
        %v4059 = vld [vmem:[#allocation3 + $0x170] sm:$0xff]
        %v4060 = vld [vmem:[#allocation3 + $0x1] sm:$0xff]
        %v4061 = vld [vmem:[#allocation3 + $0x9] sm:$0xff]
        %v4062 = vld [vmem:[#allocation3 + $0x19] sm:$0xff]
        %v4063 = vld [vmem:[#allocation3 + $0x21] sm:$0xff]
        %v4064 = vld [vmem:[#allocation3 + $0x31] sm:$0xff]
        %v4065 = vld [vmem:[#allocation3 + $0x39] sm:$0xff]
        %v4066 = vld [vmem:[#allocation3 + $0x49] sm:$0xff]
        %v4067 = vld [vmem:[#allocation3 + $0x51] sm:$0xff]
        %v4068 = vld [vmem:[#allocation3 + $0x61] sm:$0xff]
        %v4069 = vld [vmem:[#allocation3 + $0x69] sm:$0xff]
        %v4070 = vld [vmem:[#allocation3 + $0x79] sm:$0xff]
        %v4071 = vld [vmem:[#allocation3 + $0x81] sm:$0xff]
        %v4072 = vld [vmem:[#allocation3 + $0x91] sm:$0xff]
        %v4073 = vld [vmem:[#allocation3 + $0x99] sm:$0xff]
        %v4074 = vld [vmem:[#allocation3 + $0xa9] sm:$0xff]
        %v4075 = vld [vmem:[#allocation3 + $0xb1] sm:$0xff]
        %v4076 = vld [vmem:[#allocation3 + $0xc1] sm:$0xff]
        %v4077 = vld [vmem:[#allocation3 + $0xc9] sm:$0xff]
        %v4078 = vld [vmem:[#allocation3 + $0xd9] sm:$0xff]
        %v4079 = vld [vmem:[#allocation3 + $0xe1] sm:$0xff]
        %v4080 = vld [vmem:[#allocation3 + $0xf1] sm:$0xff]
        %v4081 = vld [vmem:[#allocation3 + $0xf9] sm:$0xff]
        %v4082 = vld [vmem:[#allocation3 + $0x109] sm:$0xff]
        %v4083 = vld [vmem:[#allocation3 + $0x111] sm:$0xff]
        %v4084 = vld [vmem:[#allocation3 + $0x121] sm:$0xff]
        %v4085 = vld [vmem:[#allocation3 + $0x129] sm:$0xff]
        %v4086 = vld [vmem:[#allocation3 + $0x139] sm:$0xff]
        %v4087 = vld [vmem:[#allocation3 + $0x141] sm:$0xff]
        %v4088 = vld [vmem:[#allocation3 + $0x151] sm:$0xff]
        %v4089 = vld [vmem:[#allocation3 + $0x159] sm:$0xff]
        %v4090 = vld [vmem:[#allocation3 + $0x169] sm:$0xff]
        %v4091 = vld [vmem:[#allocation3 + $0x171] sm:$0xff]
        %v4092 = vld [vmem:[#allocation3 + $0x2] sm:$0xff]
        %v4093 = vld [vmem:[#allocation3 + $0xa] sm:$0xff]
        %v4094 = vld [vmem:[#allocation3 + $0x1a] sm:$0xff]
        %v4095 = vld [vmem:[#allocation3 + $0x22] sm:$0xff]
        %v4096 = vld [vmem:[#allocation3 + $0x32] sm:$0xff]
        %v4097 = vld [vmem:[#allocation3 + $0x3a] sm:$0xff]
        %v4098 = vld [vmem:[#allocation3 + $0x4a] sm:$0xff]
        %v4099 = vld [vmem:[#allocation3 + $0x52] sm:$0xff]
        %v4100 = vld [vmem:[#allocation3 + $0x62] sm:$0xff]
        %v4101 = vld [vmem:[#allocation3 + $0x6a] sm:$0xff]
        %v4102 = vld [vmem:[#allocation3 + $0x7a] sm:$0xff]
        %v4103 = vld [vmem:[#allocation3 + $0x82] sm:$0xff]
        %v4104 = vld [vmem:[#allocation3 + $0x92] sm:$0xff]
        %v4105 = vld [vmem:[#allocation3 + $0x9a] sm:$0xff]
        %v4106 = vld [vmem:[#allocation3 + $0xaa] sm:$0xff]
        %v4107 = vld [vmem:[#allocation3 + $0xb2] sm:$0xff]
        %v4108 = vld [vmem:[#allocation3 + $0xc2] sm:$0xff]
        %v4109 = vld [vmem:[#allocation3 + $0xca] sm:$0xff]
        %v4110 = vld [vmem:[#allocation3 + $0xda] sm:$0xff]
        %v4111 = vld [vmem:[#allocation3 + $0xe2] sm:$0xff]
        %v4112 = vld [vmem:[#allocation3 + $0xf2] sm:$0xff]
        %v4113 = vld [vmem:[#allocation3 + $0xfa] sm:$0xff]
        %v4114 = vld [vmem:[#allocation3 + $0x10a] sm:$0xff]
        %v4115 = vld [vmem:[#allocation3 + $0x112] sm:$0xff]
        %v4116 = vld [vmem:[#allocation3 + $0x122] sm:$0xff]
        %v4117 = vld [vmem:[#allocation3 + $0x12a] sm:$0xff]
        %v4118 = vld [vmem:[#allocation3 + $0x13a] sm:$0xff]
        %v4119 = vld [vmem:[#allocation3 + $0x142] sm:$0xff]
        %v4120 = vld [vmem:[#allocation3 + $0x152] sm:$0xff]
        %v4121 = vld [vmem:[#allocation3 + $0x15a] sm:$0xff]
        %v4122 = vld [vmem:[#allocation3 + $0x16a] sm:$0xff]
        %v4123 = vld [vmem:[#allocation3 + $0x172] sm:$0xff]
        %v4124 = vld [vmem:[%s3994] sm:$0xff]
        %v4125 = vld [vmem:[%s3994 + $0x8] sm:$0xff]
        %v4126 = vld [vmem:[%s3994 + $0x18] sm:$0xff]
        %v4127 = vld [vmem:[%s3994 + $0x20] sm:$0xff]
        %v4128 = vld [vmem:[%s3994 + $0x30] sm:$0xff]
        %v4129 = vld [vmem:[%s3994 + $0x38] sm:$0xff]
        %v4130 = vld [vmem:[%s3994 + $0x48] sm:$0xff]
        %v4131 = vld [vmem:[%s3994 + $0x50] sm:$0xff]
        %v4132 = vld [vmem:[%s3994 + $0x60] sm:$0xff]
        %v4133 = vld [vmem:[%s3994 + $0x68] sm:$0xff]
        %v4134 = vld [vmem:[%s3994 + $0x78] sm:$0xff]
        %v4135 = vld [vmem:[%s3994 + $0x80] sm:$0xff]
        %v4136 = vld [vmem:[%s3994 + $0x90] sm:$0xff]
        %v4137 = vld [vmem:[%s3994 + $0x98] sm:$0xff]
        %v4138 = vld [vmem:[%s3994 + $0xa8] sm:$0xff]
        %v4139 = vld [vmem:[%s3994 + $0xb0] sm:$0xff]
        %v4140 = vld [vmem:[%s3994 + $0xc0] sm:$0xff]
        %v4141 = vld [vmem:[%s3994 + $0xc8] sm:$0xff]
        %v4142 = vld [vmem:[%s3994 + $0xd8] sm:$0xff]
        %v4143 = vld [vmem:[%s3994 + $0xe0] sm:$0xff]
        %v4144 = vld [vmem:[%s3994 + $0xf0] sm:$0xff]
        %v4145 = vld [vmem:[%s3994 + $0xf8] sm:$0xff]
        %v4146 = vld [vmem:[%s3994 + $0x108] sm:$0xff]
        %v4147 = vld [vmem:[%s3994 + $0x110] sm:$0xff]
        %v4148 = vld [vmem:[%s3994 + $0x120] sm:$0xff]
        %v4149 = vld [vmem:[%s3994 + $0x128] sm:$0xff]
        %v4150 = vld [vmem:[%s3994 + $0x138] sm:$0xff]
        %v4151 = vld [vmem:[%s3994 + $0x140] sm:$0xff]
        %v4152 = vld [vmem:[%s3994 + $0x150] sm:$0xff]
        %v4153 = vld [vmem:[%s3994 + $0x158] sm:$0xff]
        %v4154 = vld [vmem:[%s3994 + $0x168] sm:$0xff]
        %v4155 = vld [vmem:[%s3994 + $0x170] sm:$0xff]
        %v4156 = vld [vmem:[%s3994 + $0x1] sm:$0xff]
        %v4157 = vld [vmem:[%s3994 + $0x9] sm:$0xff]
        %v4158 = vld [vmem:[%s3994 + $0x19] sm:$0xff]
        %v4159 = vld [vmem:[%s3994 + $0x21] sm:$0xff]
        %v4160 = vld [vmem:[%s3994 + $0x31] sm:$0xff]
        %v4161 = vld [vmem:[%s3994 + $0x39] sm:$0xff]
        %v4162 = vld [vmem:[%s3994 + $0x49] sm:$0xff]
        %v4163 = vld [vmem:[%s3994 + $0x51] sm:$0xff]
        %v4164 = vld [vmem:[%s3994 + $0x61] sm:$0xff]
        %v4165 = vld [vmem:[%s3994 + $0x69] sm:$0xff]
        %v4166 = vld [vmem:[%s3994 + $0x79] sm:$0xff]
        %v4167 = vld [vmem:[%s3994 + $0x81] sm:$0xff]
        %v4168 = vld [vmem:[%s3994 + $0x91] sm:$0xff]
        %v4169 = vld [vmem:[%s3994 + $0x99] sm:$0xff]
        %v4170 = vld [vmem:[%s3994 + $0xa9] sm:$0xff]
        %v4171 = vld [vmem:[%s3994 + $0xb1] sm:$0xff]
        %v4172 = vld [vmem:[%s3994 + $0xc1] sm:$0xff]
        %v4173 = vld [vmem:[%s3994 + $0xc9] sm:$0xff]
        %v4174 = vld [vmem:[%s3994 + $0xd9] sm:$0xff]
        %v4175 = vld [vmem:[%s3994 + $0xe1] sm:$0xff]
        %v4176 = vld [vmem:[%s3994 + $0xf1] sm:$0xff]
        %v4177 = vld [vmem:[%s3994 + $0xf9] sm:$0xff]
        %v4178 = vld [vmem:[%s3994 + $0x109] sm:$0xff]
        %v4179 = vld [vmem:[%s3994 + $0x111] sm:$0xff]
        %v4180 = vld [vmem:[%s3994 + $0x121] sm:$0xff]
        %v4181 = vld [vmem:[%s3994 + $0x129] sm:$0xff]
        %v4182 = vld [vmem:[%s3994 + $0x139] sm:$0xff]
        %v4183 = vld [vmem:[%s3994 + $0x141] sm:$0xff]
        %v4184 = vld [vmem:[%s3994 + $0x151] sm:$0xff]
        %v4185 = vld [vmem:[%s3994 + $0x159] sm:$0xff]
        %v4186 = vld [vmem:[%s3994 + $0x169] sm:$0xff]
        %v4187 = vld [vmem:[%s3994 + $0x171] sm:$0xff]
        %v4188 = vld [vmem:[%s3994 + $0x2] sm:$0xff]
        %v4189 = vld [vmem:[%s3994 + $0xa] sm:$0xff]
        %v4190 = vld [vmem:[%s3994 + $0x1a] sm:$0xff]
        %v4191 = vld [vmem:[%s3994 + $0x22] sm:$0xff]
        %v4192 = vld [vmem:[%s3994 + $0x32] sm:$0xff]
        %v4193 = vld [vmem:[%s3994 + $0x3a] sm:$0xff]
        %v4194 = vld [vmem:[%s3994 + $0x4a] sm:$0xff]
        %v4195 = vld [vmem:[%s3994 + $0x52] sm:$0xff]
        %v4196 = vld [vmem:[%s3994 + $0x62] sm:$0xff]
        %v4197 = vld [vmem:[%s3994 + $0x6a] sm:$0xff]
        %v4198 = vld [vmem:[%s3994 + $0x7a] sm:$0xff]
        %v4199 = vld [vmem:[%s3994 + $0x82] sm:$0xff]
        %v4200 = vld [vmem:[%s3994 + $0x92] sm:$0xff]
        %v4201 = vld [vmem:[%s3994 + $0x9a] sm:$0xff]
        %v4202 = vld [vmem:[%s3994 + $0xaa] sm:$0xff]
        %v4203 = vld [vmem:[%s3994 + $0xb2] sm:$0xff]
        %v4204 = vld [vmem:[%s3994 + $0xc2] sm:$0xff]
        %v4205 = vld [vmem:[%s3994 + $0xca] sm:$0xff]
        %v4206 = vld [vmem:[%s3994 + $0xda] sm:$0xff]
        %v4207 = vld [vmem:[%s3994 + $0xe2] sm:$0xff]
        %v4208 = vld [vmem:[%s3994 + $0xf2] sm:$0xff]
        %v4209 = vld [vmem:[%s3994 + $0xfa] sm:$0xff]
        %v4210 = vld [vmem:[%s3994 + $0x10a] sm:$0xff]
        %v4211 = vld [vmem:[%s3994 + $0x112] sm:$0xff]
        %v4212 = vld [vmem:[%s3994 + $0x122] sm:$0xff]
        %v4213 = vld [vmem:[%s3994 + $0x12a] sm:$0xff]
        %v4214 = vld [vmem:[%s3994 + $0x13a] sm:$0xff]
        %v4215 = vld [vmem:[%s3994 + $0x142] sm:$0xff]
        %v4216 = vld [vmem:[%s3994 + $0x152] sm:$0xff]
        %v4217 = vld [vmem:[%s3994 + $0x15a] sm:$0xff]
        %v4218 = vld [vmem:[%s3994 + $0x16a] sm:$0xff]
        %v4219 = vld [vmem:[%s3994 + $0x172] sm:$0xff]
        %s4220 = scalar_lea.vmem [#allocation3], 48
        %v4221 = vld [vmem:[%s4220] sm:$0xff]
        %v4222 = vld [vmem:[%s4220 + $0x8] sm:$0xff]
        %v4223 = vld [vmem:[%s4220 + $0x18] sm:$0xff]
        %v4224 = vld [vmem:[%s4220 + $0x20] sm:$0xff]
        %v4225 = vld [vmem:[%s4220 + $0x30] sm:$0xff]
        %v4226 = vld [vmem:[%s4220 + $0x38] sm:$0xff]
        %v4227 = vld [vmem:[%s4220 + $0x48] sm:$0xff]
        %v4228 = vld [vmem:[%s4220 + $0x50] sm:$0xff]
        %v4229 = vld [vmem:[%s4220 + $0x60] sm:$0xff]
        %v4230 = vld [vmem:[%s4220 + $0x68] sm:$0xff]
        %v4231 = vld [vmem:[%s4220 + $0x78] sm:$0xff]
        %v4232 = vld [vmem:[%s4220 + $0x80] sm:$0xff]
        %v4233 = vld [vmem:[%s4220 + $0x90] sm:$0xff]
        %v4234 = vld [vmem:[%s4220 + $0x98] sm:$0xff]
        %v4235 = vld [vmem:[%s4220 + $0xa8] sm:$0xff]
        %v4236 = vld [vmem:[%s4220 + $0xb0] sm:$0xff]
        %v4237 = vld [vmem:[%s4220 + $0xc0] sm:$0xff]
        %v4238 = vld [vmem:[%s4220 + $0xc8] sm:$0xff]
        %v4239 = vld [vmem:[%s4220 + $0xd8] sm:$0xff]
        %v4240 = vld [vmem:[%s4220 + $0xe0] sm:$0xff]
        %v4241 = vld [vmem:[%s4220 + $0xf0] sm:$0xff]
        %v4242 = vld [vmem:[%s4220 + $0xf8] sm:$0xff]
        %v4243 = vld [vmem:[%s4220 + $0x108] sm:$0xff]
        %v4244 = vld [vmem:[%s4220 + $0x110] sm:$0xff]
        %v4245 = vld [vmem:[%s4220 + $0x120] sm:$0xff]
        %v4246 = vld [vmem:[%s4220 + $0x128] sm:$0xff]
        %v4247 = vld [vmem:[%s4220 + $0x138] sm:$0xff]
        %v4248 = vld [vmem:[%s4220 + $0x140] sm:$0xff]
        %v4249 = vld [vmem:[%s4220 + $0x150] sm:$0xff]
        %v4250 = vld [vmem:[%s4220 + $0x158] sm:$0xff]
        %v4251 = vld [vmem:[%s4220 + $0x168] sm:$0xff]
        %v4252 = vld [vmem:[%s4220 + $0x170] sm:$0xff]
        %v4253 = vld [vmem:[%s4220 + $0x1] sm:$0xff]
        %v4254 = vld [vmem:[%s4220 + $0x9] sm:$0xff]
        %v4255 = vld [vmem:[%s4220 + $0x19] sm:$0xff]
        %v4256 = vld [vmem:[%s4220 + $0x21] sm:$0xff]
        %v4257 = vld [vmem:[%s4220 + $0x31] sm:$0xff]
        %v4258 = vld [vmem:[%s4220 + $0x39] sm:$0xff]
        %v4259 = vld [vmem:[%s4220 + $0x49] sm:$0xff]
        %v4260 = vld [vmem:[%s4220 + $0x51] sm:$0xff]
        %v4261 = vld [vmem:[%s4220 + $0x61] sm:$0xff]
        %v4262 = vld [vmem:[%s4220 + $0x69] sm:$0xff]
        %v4263 = vld [vmem:[%s4220 + $0x79] sm:$0xff]
        %v4264 = vld [vmem:[%s4220 + $0x81] sm:$0xff]
        %v4265 = vld [vmem:[%s4220 + $0x91] sm:$0xff]
        %v4266 = vld [vmem:[%s4220 + $0x99] sm:$0xff]
        %v4267 = vld [vmem:[%s4220 + $0xa9] sm:$0xff]
        %v4268 = vld [vmem:[%s4220 + $0xb1] sm:$0xff]
        %v4269 = vld [vmem:[%s4220 + $0xc1] sm:$0xff]
        %v4270 = vld [vmem:[%s4220 + $0xc9] sm:$0xff]
        %v4271 = vld [vmem:[%s4220 + $0xd9] sm:$0xff]
        %v4272 = vld [vmem:[%s4220 + $0xe1] sm:$0xff]
        %v4273 = vld [vmem:[%s4220 + $0xf1] sm:$0xff]
        %v4274 = vld [vmem:[%s4220 + $0xf9] sm:$0xff]
        %v4275 = vld [vmem:[%s4220 + $0x109] sm:$0xff]
        %v4276 = vld [vmem:[%s4220 + $0x111] sm:$0xff]
        %v4277 = vld [vmem:[%s4220 + $0x121] sm:$0xff]
        %v4278 = vld [vmem:[%s4220 + $0x129] sm:$0xff]
        %v4279 = vld [vmem:[%s4220 + $0x139] sm:$0xff]
        %v4280 = vld [vmem:[%s4220 + $0x141] sm:$0xff]
        %v4281 = vld [vmem:[%s4220 + $0x151] sm:$0xff]
        %v4282 = vld [vmem:[%s4220 + $0x159] sm:$0xff]
        %v4283 = vld [vmem:[%s4220 + $0x169] sm:$0xff]
        %v4284 = vld [vmem:[%s4220 + $0x171] sm:$0xff]
        %v4285 = vld [vmem:[%s4220 + $0x2] sm:$0xff]
        %v4286 = vld [vmem:[%s4220 + $0xa] sm:$0xff]
        %v4287 = vld [vmem:[%s4220 + $0x1a] sm:$0xff]
        %v4288 = vld [vmem:[%s4220 + $0x22] sm:$0xff]
        %v4289 = vld [vmem:[%s4220 + $0x32] sm:$0xff]
        %v4290 = vld [vmem:[%s4220 + $0x3a] sm:$0xff]
        %v4291 = vld [vmem:[%s4220 + $0x4a] sm:$0xff]
        %v4292 = vld [vmem:[%s4220 + $0x52] sm:$0xff]
        %v4293 = vld [vmem:[%s4220 + $0x62] sm:$0xff]
        %v4294 = vld [vmem:[%s4220 + $0x6a] sm:$0xff]
        %v4295 = vld [vmem:[%s4220 + $0x7a] sm:$0xff]
        %v4296 = vld [vmem:[%s4220 + $0x82] sm:$0xff]
        %v4297 = vld [vmem:[%s4220 + $0x92] sm:$0xff]
        %v4298 = vld [vmem:[%s4220 + $0x9a] sm:$0xff]
        %v4299 = vld [vmem:[%s4220 + $0xaa] sm:$0xff]
        %v4300 = vld [vmem:[%s4220 + $0xb2] sm:$0xff]
        %v4301 = vld [vmem:[%s4220 + $0xc2] sm:$0xff]
        %v4302 = vld [vmem:[%s4220 + $0xca] sm:$0xff]
        %v4303 = vld [vmem:[%s4220 + $0xda] sm:$0xff]
        %v4304 = vld [vmem:[%s4220 + $0xe2] sm:$0xff]
        %v4305 = vld [vmem:[%s4220 + $0xf2] sm:$0xff]
        %v4306 = vld [vmem:[%s4220 + $0xfa] sm:$0xff]
        %v4307 = vld [vmem:[%s4220 + $0x10a] sm:$0xff]
        %v4308 = vld [vmem:[%s4220 + $0x112] sm:$0xff]
        %v4309 = vld [vmem:[%s4220 + $0x122] sm:$0xff]
        %v4310 = vld [vmem:[%s4220 + $0x12a] sm:$0xff]
        %v4311 = vld [vmem:[%s4220 + $0x13a] sm:$0xff]
        %v4312 = vld [vmem:[%s4220 + $0x142] sm:$0xff]
        %v4313 = vld [vmem:[%s4220 + $0x152] sm:$0xff]
        %v4314 = vld [vmem:[%s4220 + $0x15a] sm:$0xff]
        %v4315 = vld [vmem:[%s4220 + $0x16a] sm:$0xff]
        %v4316 = vld [vmem:[%s4220 + $0x172] sm:$0xff]
        %4349 = vrot.lane.b32.xlu0 %v4060, 8
        %v4350 = vpop.permute.xlu0 %4349
        %4351 = vrot.lane.b32.xlu0 %v4061, 8
        %v4352 = vpop.permute.xlu0 %4351
        %4353 = vrot.lane.b32.xlu0 %v4062, 8
        %v4354 = vpop.permute.xlu0 %4353
        %4355 = vrot.lane.b32.xlu0 %v4063, 8
        %v4356 = vpop.permute.xlu0 %4355
        %4357 = vrot.lane.b32.xlu0 %v4064, 8
        %v4358 = vpop.permute.xlu0 %4357
        %4359 = vrot.lane.b32.xlu0 %v4065, 8
        %v4360 = vpop.permute.xlu0 %4359
        %4361 = vrot.lane.b32.xlu0 %v4066, 8
        %v4362 = vpop.permute.xlu0 %4361
        %4363 = vrot.lane.b32.xlu0 %v4067, 8
        %v4364 = vpop.permute.xlu0 %4363
        %4365 = vrot.lane.b32.xlu0 %v4068, 8
        %v4366 = vpop.permute.xlu0 %4365
        %4367 = vrot.lane.b32.xlu0 %v4069, 8
        %v4368 = vpop.permute.xlu0 %4367
        %4369 = vrot.lane.b32.xlu0 %v4070, 8
        %v4370 = vpop.permute.xlu0 %4369
        %4371 = vrot.lane.b32.xlu0 %v4071, 8
        %v4372 = vpop.permute.xlu0 %4371
        %4373 = vrot.lane.b32.xlu0 %v4072, 8
        %v4374 = vpop.permute.xlu0 %4373
        %4375 = vrot.lane.b32.xlu0 %v4073, 8
        %v4376 = vpop.permute.xlu0 %4375
        %4377 = vrot.lane.b32.xlu0 %v4074, 8
        %v4378 = vpop.permute.xlu0 %4377
        %4379 = vrot.lane.b32.xlu0 %v4075, 8
        %v4380 = vpop.permute.xlu0 %4379
        %4381 = vrot.lane.b32.xlu0 %v4076, 8
        %v4382 = vpop.permute.xlu0 %4381
        %4383 = vrot.lane.b32.xlu0 %v4077, 8
        %v4384 = vpop.permute.xlu0 %4383
        %4385 = vrot.lane.b32.xlu0 %v4078, 8
        %v4386 = vpop.permute.xlu0 %4385
        %4387 = vrot.lane.b32.xlu0 %v4079, 8
        %v4388 = vpop.permute.xlu0 %4387
        %4389 = vrot.lane.b32.xlu0 %v4080, 8
        %v4390 = vpop.permute.xlu0 %4389
        %4391 = vrot.lane.b32.xlu0 %v4081, 8
        %v4392 = vpop.permute.xlu0 %4391
        %4393 = vrot.lane.b32.xlu0 %v4082, 8
        %v4394 = vpop.permute.xlu0 %4393
        %4395 = vrot.lane.b32.xlu0 %v4083, 8
        %v4396 = vpop.permute.xlu0 %4395
        %4397 = vrot.lane.b32.xlu0 %v4084, 8
        %v4398 = vpop.permute.xlu0 %4397
        %4399 = vrot.lane.b32.xlu0 %v4085, 8
        %v4400 = vpop.permute.xlu0 %4399
        %4401 = vrot.lane.b32.xlu0 %v4086, 8
        %v4402 = vpop.permute.xlu0 %4401
        %4403 = vrot.lane.b32.xlu0 %v4087, 8
        %v4404 = vpop.permute.xlu0 %4403
        %4405 = vrot.lane.b32.xlu0 %v4088, 8
        %v4406 = vpop.permute.xlu0 %4405
        %4407 = vrot.lane.b32.xlu0 %v4089, 8
        %v4408 = vpop.permute.xlu0 %4407
        %4409 = vrot.lane.b32.xlu0 %v4090, 8
        %v4410 = vpop.permute.xlu0 %4409
        %4411 = vrot.lane.b32.xlu0 %v4091, 8
        %v4412 = vpop.permute.xlu0 %4411
        %4477 = vrot.lane.b32.xlu0 %v4092, 16
        %v4478 = vpop.permute.xlu0 %4477
        %4479 = vrot.lane.b32.xlu0 %v4093, 16
        %v4480 = vpop.permute.xlu0 %4479
        %4481 = vrot.lane.b32.xlu0 %v4094, 16
        %v4482 = vpop.permute.xlu0 %4481
        %4483 = vrot.lane.b32.xlu0 %v4095, 16
        %v4484 = vpop.permute.xlu0 %4483
        %4485 = vrot.lane.b32.xlu0 %v4096, 16
        %v4486 = vpop.permute.xlu0 %4485
        %4487 = vrot.lane.b32.xlu0 %v4097, 16
        %v4488 = vpop.permute.xlu0 %4487
        %4489 = vrot.lane.b32.xlu0 %v4098, 16
        %v4490 = vpop.permute.xlu0 %4489
        %4491 = vrot.lane.b32.xlu0 %v4099, 16
        %v4492 = vpop.permute.xlu0 %4491
        %4493 = vrot.lane.b32.xlu0 %v4100, 16
        %v4494 = vpop.permute.xlu0 %4493
        %4495 = vrot.lane.b32.xlu0 %v4101, 16
        %v4496 = vpop.permute.xlu0 %4495
        %4497 = vrot.lane.b32.xlu0 %v4102, 16
        %v4498 = vpop.permute.xlu0 %4497
        %4499 = vrot.lane.b32.xlu0 %v4103, 16
        %v4500 = vpop.permute.xlu0 %4499
        %4501 = vrot.lane.b32.xlu0 %v4104, 16
        %v4502 = vpop.permute.xlu0 %4501
        %4503 = vrot.lane.b32.xlu0 %v4105, 16
        %v4504 = vpop.permute.xlu0 %4503
        %4505 = vrot.lane.b32.xlu0 %v4106, 16
        %v4506 = vpop.permute.xlu0 %4505
        %4507 = vrot.lane.b32.xlu0 %v4107, 16
        %v4508 = vpop.permute.xlu0 %4507
        %4509 = vrot.lane.b32.xlu0 %v4108, 16
        %v4510 = vpop.permute.xlu0 %4509
        %4511 = vrot.lane.b32.xlu0 %v4109, 16
        %v4512 = vpop.permute.xlu0 %4511
        %4513 = vrot.lane.b32.xlu0 %v4110, 16
        %v4514 = vpop.permute.xlu0 %4513
        %4515 = vrot.lane.b32.xlu0 %v4111, 16
        %v4516 = vpop.permute.xlu0 %4515
        %4517 = vrot.lane.b32.xlu0 %v4112, 16
        %v4518 = vpop.permute.xlu0 %4517
        %4519 = vrot.lane.b32.xlu0 %v4113, 16
        %v4520 = vpop.permute.xlu0 %4519
        %4521 = vrot.lane.b32.xlu0 %v4114, 16
        %v4522 = vpop.permute.xlu0 %4521
        %4523 = vrot.lane.b32.xlu0 %v4115, 16
        %v4524 = vpop.permute.xlu0 %4523
        %4525 = vrot.lane.b32.xlu0 %v4116, 16
        %v4526 = vpop.permute.xlu0 %4525
        %4527 = vrot.lane.b32.xlu0 %v4117, 16
        %v4528 = vpop.permute.xlu0 %4527
        %4529 = vrot.lane.b32.xlu0 %v4118, 16
        %v4530 = vpop.permute.xlu0 %4529
        %4531 = vrot.lane.b32.xlu0 %v4119, 16
        %v4532 = vpop.permute.xlu0 %4531
        %4533 = vrot.lane.b32.xlu0 %v4120, 16
        %v4534 = vpop.permute.xlu0 %4533
        %4535 = vrot.lane.b32.xlu0 %v4121, 16
        %v4536 = vpop.permute.xlu0 %4535
        %4537 = vrot.lane.b32.xlu0 %v4122, 16
        %v4538 = vpop.permute.xlu0 %4537
        %4539 = vrot.lane.b32.xlu0 %v4123, 16
        %v4540 = vpop.permute.xlu0 %4539
        %4605 = vrot.lane.b32.xlu0 %v4124, 24
        %v4606 = vpop.permute.xlu0 %4605
        %4607 = vrot.lane.b32.xlu0 %v4125, 24
        %v4608 = vpop.permute.xlu0 %4607
        %4609 = vrot.lane.b32.xlu0 %v4126, 24
        %v4610 = vpop.permute.xlu0 %4609
        %4611 = vrot.lane.b32.xlu0 %v4127, 24
        %v4612 = vpop.permute.xlu0 %4611
        %4613 = vrot.lane.b32.xlu0 %v4128, 24
        %v4614 = vpop.permute.xlu0 %4613
        %4615 = vrot.lane.b32.xlu0 %v4129, 24
        %v4616 = vpop.permute.xlu0 %4615
        %4617 = vrot.lane.b32.xlu0 %v4130, 24
        %v4618 = vpop.permute.xlu0 %4617
        %4619 = vrot.lane.b32.xlu0 %v4131, 24
        %v4620 = vpop.permute.xlu0 %4619
        %4621 = vrot.lane.b32.xlu0 %v4132, 24
        %v4622 = vpop.permute.xlu0 %4621
        %4623 = vrot.lane.b32.xlu0 %v4133, 24
        %v4624 = vpop.permute.xlu0 %4623
        %4625 = vrot.lane.b32.xlu0 %v4134, 24
        %v4626 = vpop.permute.xlu0 %4625
        %4627 = vrot.lane.b32.xlu0 %v4135, 24
        %v4628 = vpop.permute.xlu0 %4627
        %4629 = vrot.lane.b32.xlu0 %v4136, 24
        %v4630 = vpop.permute.xlu0 %4629
        %4631 = vrot.lane.b32.xlu0 %v4137, 24
        %v4632 = vpop.permute.xlu0 %4631
        %4633 = vrot.lane.b32.xlu0 %v4138, 24
        %v4634 = vpop.permute.xlu0 %4633
        %4635 = vrot.lane.b32.xlu0 %v4139, 24
        %v4636 = vpop.permute.xlu0 %4635
        %4637 = vrot.lane.b32.xlu0 %v4140, 24
        %v4638 = vpop.permute.xlu0 %4637
        %4639 = vrot.lane.b32.xlu0 %v4141, 24
        %v4640 = vpop.permute.xlu0 %4639
        %4641 = vrot.lane.b32.xlu0 %v4142, 24
        %v4642 = vpop.permute.xlu0 %4641
        %4643 = vrot.lane.b32.xlu0 %v4143, 24
        %v4644 = vpop.permute.xlu0 %4643
        %4645 = vrot.lane.b32.xlu0 %v4144, 24
        %v4646 = vpop.permute.xlu0 %4645
        %4647 = vrot.lane.b32.xlu0 %v4145, 24
        %v4648 = vpop.permute.xlu0 %4647
        %4649 = vrot.lane.b32.xlu0 %v4146, 24
        %v4650 = vpop.permute.xlu0 %4649
        %4651 = vrot.lane.b32.xlu0 %v4147, 24
        %v4652 = vpop.permute.xlu0 %4651
        %4653 = vrot.lane.b32.xlu0 %v4148, 24
        %v4654 = vpop.permute.xlu0 %4653
        %4655 = vrot.lane.b32.xlu0 %v4149, 24
        %v4656 = vpop.permute.xlu0 %4655
        %4657 = vrot.lane.b32.xlu0 %v4150, 24
        %v4658 = vpop.permute.xlu0 %4657
        %4659 = vrot.lane.b32.xlu0 %v4151, 24
        %v4660 = vpop.permute.xlu0 %4659
        %4661 = vrot.lane.b32.xlu0 %v4152, 24
        %v4662 = vpop.permute.xlu0 %4661
        %4663 = vrot.lane.b32.xlu0 %v4153, 24
        %v4664 = vpop.permute.xlu0 %4663
        %4665 = vrot.lane.b32.xlu0 %v4154, 24
        %v4666 = vpop.permute.xlu0 %4665
        %4667 = vrot.lane.b32.xlu0 %v4155, 24
        %v4668 = vpop.permute.xlu0 %4667
        %4733 = vrot.lane.b32.xlu0 %v4156, 32
        %v4734 = vpop.permute.xlu0 %4733
        %4735 = vrot.lane.b32.xlu0 %v4157, 32
        %v4736 = vpop.permute.xlu0 %4735
        %4737 = vrot.lane.b32.xlu0 %v4158, 32
        %v4738 = vpop.permute.xlu0 %4737
        %4739 = vrot.lane.b32.xlu0 %v4159, 32
        %v4740 = vpop.permute.xlu0 %4739
        %4741 = vrot.lane.b32.xlu0 %v4160, 32
        %v4742 = vpop.permute.xlu0 %4741
        %4743 = vrot.lane.b32.xlu0 %v4161, 32
        %v4744 = vpop.permute.xlu0 %4743
        %4745 = vrot.lane.b32.xlu0 %v4162, 32
        %v4746 = vpop.permute.xlu0 %4745
        %4747 = vrot.lane.b32.xlu0 %v4163, 32
        %v4748 = vpop.permute.xlu0 %4747
        %4749 = vrot.lane.b32.xlu0 %v4164, 32
        %v4750 = vpop.permute.xlu0 %4749
        %4751 = vrot.lane.b32.xlu0 %v4165, 32
        %v4752 = vpop.permute.xlu0 %4751
        %4753 = vrot.lane.b32.xlu0 %v4166, 32
        %v4754 = vpop.permute.xlu0 %4753
        %4755 = vrot.lane.b32.xlu0 %v4167, 32
        %v4756 = vpop.permute.xlu0 %4755
        %4757 = vrot.lane.b32.xlu0 %v4168, 32
        %v4758 = vpop.permute.xlu0 %4757
        %4759 = vrot.lane.b32.xlu0 %v4169, 32
        %v4760 = vpop.permute.xlu0 %4759
        %4761 = vrot.lane.b32.xlu0 %v4170, 32
        %v4762 = vpop.permute.xlu0 %4761
        %4763 = vrot.lane.b32.xlu0 %v4171, 32
        %v4764 = vpop.permute.xlu0 %4763
        %4765 = vrot.lane.b32.xlu0 %v4172, 32
        %v4766 = vpop.permute.xlu0 %4765
        %4767 = vrot.lane.b32.xlu0 %v4173, 32
        %v4768 = vpop.permute.xlu0 %4767
        %4769 = vrot.lane.b32.xlu0 %v4174, 32
        %v4770 = vpop.permute.xlu0 %4769
        %4771 = vrot.lane.b32.xlu0 %v4175, 32
        %v4772 = vpop.permute.xlu0 %4771
        %4773 = vrot.lane.b32.xlu0 %v4176, 32
        %v4774 = vpop.permute.xlu0 %4773
        %4775 = vrot.lane.b32.xlu0 %v4177, 32
        %v4776 = vpop.permute.xlu0 %4775
        %4777 = vrot.lane.b32.xlu0 %v4178, 32
        %v4778 = vpop.permute.xlu0 %4777
        %4779 = vrot.lane.b32.xlu0 %v4179, 32
        %v4780 = vpop.permute.xlu0 %4779
        %4781 = vrot.lane.b32.xlu0 %v4180, 32
        %v4782 = vpop.permute.xlu0 %4781
        %4783 = vrot.lane.b32.xlu0 %v4181, 32
        %v4784 = vpop.permute.xlu0 %4783
        %4785 = vrot.lane.b32.xlu0 %v4182, 32
        %v4786 = vpop.permute.xlu0 %4785
        %4787 = vrot.lane.b32.xlu0 %v4183, 32
        %v4788 = vpop.permute.xlu0 %4787
        %4789 = vrot.lane.b32.xlu0 %v4184, 32
        %v4790 = vpop.permute.xlu0 %4789
        %4791 = vrot.lane.b32.xlu0 %v4185, 32
        %v4792 = vpop.permute.xlu0 %4791
        %4793 = vrot.lane.b32.xlu0 %v4186, 32
        %v4794 = vpop.permute.xlu0 %4793
        %4795 = vrot.lane.b32.xlu0 %v4187, 32
        %v4796 = vpop.permute.xlu0 %4795
        %4861 = vrot.lane.b32.xlu0 %v4188, 40
        %v4862 = vpop.permute.xlu0 %4861
        %4863 = vrot.lane.b32.xlu0 %v4189, 40
        %v4864 = vpop.permute.xlu0 %4863
        %4865 = vrot.lane.b32.xlu0 %v4190, 40
        %v4866 = vpop.permute.xlu0 %4865
        %4867 = vrot.lane.b32.xlu0 %v4191, 40
        %v4868 = vpop.permute.xlu0 %4867
        %4869 = vrot.lane.b32.xlu0 %v4192, 40
        %v4870 = vpop.permute.xlu0 %4869
        %4871 = vrot.lane.b32.xlu0 %v4193, 40
        %v4872 = vpop.permute.xlu0 %4871
        %4873 = vrot.lane.b32.xlu0 %v4194, 40
        %v4874 = vpop.permute.xlu0 %4873
        %4875 = vrot.lane.b32.xlu0 %v4195, 40
        %v4876 = vpop.permute.xlu0 %4875
        %4877 = vrot.lane.b32.xlu0 %v4196, 40
        %v4878 = vpop.permute.xlu0 %4877
        %4879 = vrot.lane.b32.xlu0 %v4197, 40
        %v4880 = vpop.permute.xlu0 %4879
        %4881 = vrot.lane.b32.xlu0 %v4198, 40
        %v4882 = vpop.permute.xlu0 %4881
        %4883 = vrot.lane.b32.xlu0 %v4199, 40
        %v4884 = vpop.permute.xlu0 %4883
        %4885 = vrot.lane.b32.xlu0 %v4200, 40
        %v4886 = vpop.permute.xlu0 %4885
        %4887 = vrot.lane.b32.xlu0 %v4201, 40
        %v4888 = vpop.permute.xlu0 %4887
        %4889 = vrot.lane.b32.xlu0 %v4202, 40
        %v4890 = vpop.permute.xlu0 %4889
        %4891 = vrot.lane.b32.xlu0 %v4203, 40
        %v4892 = vpop.permute.xlu0 %4891
        %4893 = vrot.lane.b32.xlu0 %v4204, 40
        %v4894 = vpop.permute.xlu0 %4893
        %4895 = vrot.lane.b32.xlu0 %v4205, 40
        %v4896 = vpop.permute.xlu0 %4895
        %4897 = vrot.lane.b32.xlu0 %v4206, 40
        %v4898 = vpop.permute.xlu0 %4897
        %4899 = vrot.lane.b32.xlu0 %v4207, 40
        %v4900 = vpop.permute.xlu0 %4899
        %4901 = vrot.lane.b32.xlu0 %v4208, 40
        %v4902 = vpop.permute.xlu0 %4901
        %4903 = vrot.lane.b32.xlu0 %v4209, 40
        %v4904 = vpop.permute.xlu0 %4903
        %4905 = vrot.lane.b32.xlu0 %v4210, 40
        %v4906 = vpop.permute.xlu0 %4905
        %4907 = vrot.lane.b32.xlu0 %v4211, 40
        %v4908 = vpop.permute.xlu0 %4907
        %4909 = vrot.lane.b32.xlu0 %v4212, 40
        %v4910 = vpop.permute.xlu0 %4909
        %4911 = vrot.lane.b32.xlu0 %v4213, 40
        %v4912 = vpop.permute.xlu0 %4911
        %4913 = vrot.lane.b32.xlu0 %v4214, 40
        %v4914 = vpop.permute.xlu0 %4913
        %4915 = vrot.lane.b32.xlu0 %v4215, 40
        %v4916 = vpop.permute.xlu0 %4915
        %4917 = vrot.lane.b32.xlu0 %v4216, 40
        %v4918 = vpop.permute.xlu0 %4917
        %4919 = vrot.lane.b32.xlu0 %v4217, 40
        %v4920 = vpop.permute.xlu0 %4919
        %4921 = vrot.lane.b32.xlu0 %v4218, 40
        %v4922 = vpop.permute.xlu0 %4921
        %4923 = vrot.lane.b32.xlu0 %v4219, 40
        %v4924 = vpop.permute.xlu0 %4923
        %4989 = vrot.lane.b32.xlu0 %v4221, 48
        %v4990 = vpop.permute.xlu0 %4989
        %4991 = vrot.lane.b32.xlu0 %v4222, 48
        %v4992 = vpop.permute.xlu0 %4991
        %4993 = vrot.lane.b32.xlu0 %v4223, 48
        %v4994 = vpop.permute.xlu0 %4993
        %4995 = vrot.lane.b32.xlu0 %v4224, 48
        %v4996 = vpop.permute.xlu0 %4995
        %4997 = vrot.lane.b32.xlu0 %v4225, 48
        %v4998 = vpop.permute.xlu0 %4997
        %4999 = vrot.lane.b32.xlu0 %v4226, 48
        %v5000 = vpop.permute.xlu0 %4999
        %5001 = vrot.lane.b32.xlu0 %v4227, 48
        %v5002 = vpop.permute.xlu0 %5001
        %5003 = vrot.lane.b32.xlu0 %v4228, 48
        %v5004 = vpop.permute.xlu0 %5003
        %5005 = vrot.lane.b32.xlu0 %v4229, 48
        %v5006 = vpop.permute.xlu0 %5005
        %5007 = vrot.lane.b32.xlu0 %v4230, 48
        %v5008 = vpop.permute.xlu0 %5007
        %5009 = vrot.lane.b32.xlu0 %v4231, 48
        %v5010 = vpop.permute.xlu0 %5009
        %5011 = vrot.lane.b32.xlu0 %v4232, 48
        %v5012 = vpop.permute.xlu0 %5011
        %5013 = vrot.lane.b32.xlu0 %v4233, 48
        %v5014 = vpop.permute.xlu0 %5013
        %5015 = vrot.lane.b32.xlu0 %v4234, 48
        %v5016 = vpop.permute.xlu0 %5015
        %5017 = vrot.lane.b32.xlu0 %v4235, 48
        %v5018 = vpop.permute.xlu0 %5017
        %5019 = vrot.lane.b32.xlu0 %v4236, 48
        %v5020 = vpop.permute.xlu0 %5019
        %5021 = vrot.lane.b32.xlu0 %v4237, 48
        %v5022 = vpop.permute.xlu0 %5021
        %5023 = vrot.lane.b32.xlu0 %v4238, 48
        %v5024 = vpop.permute.xlu0 %5023
        %5025 = vrot.lane.b32.xlu0 %v4239, 48
        %v5026 = vpop.permute.xlu0 %5025
        %5027 = vrot.lane.b32.xlu0 %v4240, 48
        %v5028 = vpop.permute.xlu0 %5027
        %5029 = vrot.lane.b32.xlu0 %v4241, 48
        %v5030 = vpop.permute.xlu0 %5029
        %5031 = vrot.lane.b32.xlu0 %v4242, 48
        %v5032 = vpop.permute.xlu0 %5031
        %5033 = vrot.lane.b32.xlu0 %v4243, 48
        %v5034 = vpop.permute.xlu0 %5033
        %5035 = vrot.lane.b32.xlu0 %v4244, 48
        %v5036 = vpop.permute.xlu0 %5035
        %5037 = vrot.lane.b32.xlu0 %v4245, 48
        %v5038 = vpop.permute.xlu0 %5037
        %5039 = vrot.lane.b32.xlu0 %v4246, 48
        %v5040 = vpop.permute.xlu0 %5039
        %5041 = vrot.lane.b32.xlu0 %v4247, 48
        %v5042 = vpop.permute.xlu0 %5041
        %5043 = vrot.lane.b32.xlu0 %v4248, 48
        %v5044 = vpop.permute.xlu0 %5043
        %5045 = vrot.lane.b32.xlu0 %v4249, 48
        %v5046 = vpop.permute.xlu0 %5045
        %5047 = vrot.lane.b32.xlu0 %v4250, 48
        %v5048 = vpop.permute.xlu0 %5047
        %5049 = vrot.lane.b32.xlu0 %v4251, 48
        %v5050 = vpop.permute.xlu0 %5049
        %5051 = vrot.lane.b32.xlu0 %v4252, 48
        %v5052 = vpop.permute.xlu0 %5051
        %5117 = vrot.lane.b32.xlu0 %v4253, 56
        %v5118 = vpop.permute.xlu0 %5117
        %5119 = vrot.lane.b32.xlu0 %v4254, 56
        %v5120 = vpop.permute.xlu0 %5119
        %5121 = vrot.lane.b32.xlu0 %v4255, 56
        %v5122 = vpop.permute.xlu0 %5121
        %5123 = vrot.lane.b32.xlu0 %v4256, 56
        %v5124 = vpop.permute.xlu0 %5123
        %5125 = vrot.lane.b32.xlu0 %v4257, 56
        %v5126 = vpop.permute.xlu0 %5125
        %5127 = vrot.lane.b32.xlu0 %v4258, 56
        %v5128 = vpop.permute.xlu0 %5127
        %5129 = vrot.lane.b32.xlu0 %v4259, 56
        %v5130 = vpop.permute.xlu0 %5129
        %5131 = vrot.lane.b32.xlu0 %v4260, 56
        %v5132 = vpop.permute.xlu0 %5131
        %5133 = vrot.lane.b32.xlu0 %v4261, 56
        %v5134 = vpop.permute.xlu0 %5133
        %5135 = vrot.lane.b32.xlu0 %v4262, 56
        %v5136 = vpop.permute.xlu0 %5135
        %5137 = vrot.lane.b32.xlu0 %v4263, 56
        %v5138 = vpop.permute.xlu0 %5137
        %5139 = vrot.lane.b32.xlu0 %v4264, 56
        %v5140 = vpop.permute.xlu0 %5139
        %5141 = vrot.lane.b32.xlu0 %v4265, 56
        %v5142 = vpop.permute.xlu0 %5141
        %5143 = vrot.lane.b32.xlu0 %v4266, 56
        %v5144 = vpop.permute.xlu0 %5143
        %5145 = vrot.lane.b32.xlu0 %v4267, 56
        %v5146 = vpop.permute.xlu0 %5145
        %5147 = vrot.lane.b32.xlu0 %v4268, 56
        %v5148 = vpop.permute.xlu0 %5147
        %5149 = vrot.lane.b32.xlu0 %v4269, 56
        %v5150 = vpop.permute.xlu0 %5149
        %5151 = vrot.lane.b32.xlu0 %v4270, 56
        %v5152 = vpop.permute.xlu0 %5151
        %5153 = vrot.lane.b32.xlu0 %v4271, 56
        %v5154 = vpop.permute.xlu0 %5153
        %5155 = vrot.lane.b32.xlu0 %v4272, 56
        %v5156 = vpop.permute.xlu0 %5155
        %5157 = vrot.lane.b32.xlu0 %v4273, 56
        %v5158 = vpop.permute.xlu0 %5157
        %5159 = vrot.lane.b32.xlu0 %v4274, 56
        %v5160 = vpop.permute.xlu0 %5159
        %5161 = vrot.lane.b32.xlu0 %v4275, 56
        %v5162 = vpop.permute.xlu0 %5161
        %5163 = vrot.lane.b32.xlu0 %v4276, 56
        %v5164 = vpop.permute.xlu0 %5163
        %5165 = vrot.lane.b32.xlu0 %v4277, 56
        %v5166 = vpop.permute.xlu0 %5165
        %5167 = vrot.lane.b32.xlu0 %v4278, 56
        %v5168 = vpop.permute.xlu0 %5167
        %5169 = vrot.lane.b32.xlu0 %v4279, 56
        %v5170 = vpop.permute.xlu0 %5169
        %5171 = vrot.lane.b32.xlu0 %v4280, 56
        %v5172 = vpop.permute.xlu0 %5171
        %5173 = vrot.lane.b32.xlu0 %v4281, 56
        %v5174 = vpop.permute.xlu0 %5173
        %5175 = vrot.lane.b32.xlu0 %v4282, 56
        %v5176 = vpop.permute.xlu0 %5175
        %5177 = vrot.lane.b32.xlu0 %v4283, 56
        %v5178 = vpop.permute.xlu0 %5177
        %5179 = vrot.lane.b32.xlu0 %v4284, 56
        %v5180 = vpop.permute.xlu0 %5179
        %5245 = vrot.lane.b32.xlu0 %v4285, 64
        %v5246 = vpop.permute.xlu0 %5245
        %5247 = vrot.lane.b32.xlu0 %v4286, 64
        %v5248 = vpop.permute.xlu0 %5247
        %5249 = vrot.lane.b32.xlu0 %v4287, 64
        %v5250 = vpop.permute.xlu0 %5249
        %5251 = vrot.lane.b32.xlu0 %v4288, 64
        %v5252 = vpop.permute.xlu0 %5251
        %5253 = vrot.lane.b32.xlu0 %v4289, 64
        %v5254 = vpop.permute.xlu0 %5253
        %5255 = vrot.lane.b32.xlu0 %v4290, 64
        %v5256 = vpop.permute.xlu0 %5255
        %5257 = vrot.lane.b32.xlu0 %v4291, 64
        %v5258 = vpop.permute.xlu0 %5257
        %5259 = vrot.lane.b32.xlu0 %v4292, 64
        %v5260 = vpop.permute.xlu0 %5259
        %5261 = vrot.lane.b32.xlu0 %v4293, 64
        %v5262 = vpop.permute.xlu0 %5261
        %5263 = vrot.lane.b32.xlu0 %v4294, 64
        %v5264 = vpop.permute.xlu0 %5263
        %5265 = vrot.lane.b32.xlu0 %v4295, 64
        %v5266 = vpop.permute.xlu0 %5265
        %5267 = vrot.lane.b32.xlu0 %v4296, 64
        %v5268 = vpop.permute.xlu0 %5267
        %5269 = vrot.lane.b32.xlu0 %v4297, 64
        %v5270 = vpop.permute.xlu0 %5269
        %5271 = vrot.lane.b32.xlu0 %v4298, 64
        %v5272 = vpop.permute.xlu0 %5271
        %5273 = vrot.lane.b32.xlu0 %v4299, 64
        %v5274 = vpop.permute.xlu0 %5273
        %5275 = vrot.lane.b32.xlu0 %v4300, 64
        %v5276 = vpop.permute.xlu0 %5275
        %5277 = vrot.lane.b32.xlu0 %v4301, 64
        %v5278 = vpop.permute.xlu0 %5277
        %5279 = vrot.lane.b32.xlu0 %v4302, 64
        %v5280 = vpop.permute.xlu0 %5279
        %5281 = vrot.lane.b32.xlu0 %v4303, 64
        %v5282 = vpop.permute.xlu0 %5281
        %5283 = vrot.lane.b32.xlu0 %v4304, 64
        %v5284 = vpop.permute.xlu0 %5283
        %5285 = vrot.lane.b32.xlu0 %v4305, 64
        %v5286 = vpop.permute.xlu0 %5285
        %5287 = vrot.lane.b32.xlu0 %v4306, 64
        %v5288 = vpop.permute.xlu0 %5287
        %5289 = vrot.lane.b32.xlu0 %v4307, 64
        %v5290 = vpop.permute.xlu0 %5289
        %5291 = vrot.lane.b32.xlu0 %v4308, 64
        %v5292 = vpop.permute.xlu0 %5291
        %5293 = vrot.lane.b32.xlu0 %v4309, 64
        %v5294 = vpop.permute.xlu0 %5293
        %5295 = vrot.lane.b32.xlu0 %v4310, 64
        %v5296 = vpop.permute.xlu0 %5295
        %5297 = vrot.lane.b32.xlu0 %v4311, 64
        %v5298 = vpop.permute.xlu0 %5297
        %5299 = vrot.lane.b32.xlu0 %v4312, 64
        %v5300 = vpop.permute.xlu0 %5299
        %5301 = vrot.lane.b32.xlu0 %v4313, 64
        %v5302 = vpop.permute.xlu0 %5301
        %5303 = vrot.lane.b32.xlu0 %v4314, 64
        %v5304 = vpop.permute.xlu0 %5303
        %5305 = vrot.lane.b32.xlu0 %v4315, 64
        %v5306 = vpop.permute.xlu0 %5305
        %5307 = vrot.lane.b32.xlu0 %v4316, 64
        %v5308 = vpop.permute.xlu0 %5307
        %v5341 = vsel %vm568, %v4028, %v4350
        %v5342 = vsel %vm568, %v4029, %v4352
        %v5343 = vsel %vm568, %v4030, %v4354
        %v5344 = vsel %vm568, %v4031, %v4356
        %v5345 = vsel %vm568, %v4032, %v4358
        %v5346 = vsel %vm568, %v4033, %v4360
        %v5347 = vsel %vm568, %v4034, %v4362
        %v5348 = vsel %vm568, %v4035, %v4364
        %v5349 = vsel %vm568, %v4036, %v4366
        %v5350 = vsel %vm568, %v4037, %v4368
        %v5351 = vsel %vm568, %v4038, %v4370
        %v5352 = vsel %vm568, %v4039, %v4372
        %v5353 = vsel %vm568, %v4040, %v4374
        %v5354 = vsel %vm568, %v4041, %v4376
        %v5355 = vsel %vm568, %v4042, %v4378
        %v5356 = vsel %vm568, %v4043, %v4380
        %v5357 = vsel %vm568, %v4044, %v4382
        %v5358 = vsel %vm568, %v4045, %v4384
        %v5359 = vsel %vm568, %v4046, %v4386
        %v5360 = vsel %vm568, %v4047, %v4388
        %v5361 = vsel %vm568, %v4048, %v4390
        %v5362 = vsel %vm568, %v4049, %v4392
        %v5363 = vsel %vm568, %v4050, %v4394
        %v5364 = vsel %vm568, %v4051, %v4396
        %v5365 = vsel %vm568, %v4052, %v4398
        %v5366 = vsel %vm568, %v4053, %v4400
        %v5367 = vsel %vm568, %v4054, %v4402
        %v5368 = vsel %vm568, %v4055, %v4404
        %v5369 = vsel %vm568, %v4056, %v4406
        %v5370 = vsel %vm568, %v4057, %v4408
        %v5371 = vsel %vm568, %v4058, %v4410
        %v5372 = vsel %vm568, %v4059, %v4412
        %v5373 = vsel %vm2845, %v5341, %v4478
        %v5374 = vsel %vm2845, %v5342, %v4480
        %v5375 = vsel %vm2845, %v5343, %v4482
        %v5376 = vsel %vm2845, %v5344, %v4484
        %v5377 = vsel %vm2845, %v5345, %v4486
        %v5378 = vsel %vm2845, %v5346, %v4488
        %v5379 = vsel %vm2845, %v5347, %v4490
        %v5380 = vsel %vm2845, %v5348, %v4492
        %v5381 = vsel %vm2845, %v5349, %v4494
        %v5382 = vsel %vm2845, %v5350, %v4496
        %v5383 = vsel %vm2845, %v5351, %v4498
        %v5384 = vsel %vm2845, %v5352, %v4500
        %v5385 = vsel %vm2845, %v5353, %v4502
        %v5386 = vsel %vm2845, %v5354, %v4504
        %v5387 = vsel %vm2845, %v5355, %v4506
        %v5388 = vsel %vm2845, %v5356, %v4508
        %v5389 = vsel %vm2845, %v5357, %v4510
        %v5390 = vsel %vm2845, %v5358, %v4512
        %v5391 = vsel %vm2845, %v5359, %v4514
        %v5392 = vsel %vm2845, %v5360, %v4516
        %v5393 = vsel %vm2845, %v5361, %v4518
        %v5394 = vsel %vm2845, %v5362, %v4520
        %v5395 = vsel %vm2845, %v5363, %v4522
        %v5396 = vsel %vm2845, %v5364, %v4524
        %v5397 = vsel %vm2845, %v5365, %v4526
        %v5398 = vsel %vm2845, %v5366, %v4528
        %v5399 = vsel %vm2845, %v5367, %v4530
        %v5400 = vsel %vm2845, %v5368, %v4532
        %v5401 = vsel %vm2845, %v5369, %v4534
        %v5402 = vsel %vm2845, %v5370, %v4536
        %v5403 = vsel %vm2845, %v5371, %v4538
        %v5404 = vsel %vm2845, %v5372, %v4540
        %v5405 = vsel %vm2911, %v5373, %v4606
        %v5406 = vsel %vm2911, %v5374, %v4608
        %v5407 = vsel %vm2911, %v5375, %v4610
        %v5408 = vsel %vm2911, %v5376, %v4612
        %v5409 = vsel %vm2911, %v5377, %v4614
        %v5410 = vsel %vm2911, %v5378, %v4616
        %v5411 = vsel %vm2911, %v5379, %v4618
        %v5412 = vsel %vm2911, %v5380, %v4620
        %v5413 = vsel %vm2911, %v5381, %v4622
        %v5414 = vsel %vm2911, %v5382, %v4624
        %v5415 = vsel %vm2911, %v5383, %v4626
        %v5416 = vsel %vm2911, %v5384, %v4628
        %v5417 = vsel %vm2911, %v5385, %v4630
        %v5418 = vsel %vm2911, %v5386, %v4632
        %v5419 = vsel %vm2911, %v5387, %v4634
        %v5420 = vsel %vm2911, %v5388, %v4636
        %v5421 = vsel %vm2911, %v5389, %v4638
        %v5422 = vsel %vm2911, %v5390, %v4640
        %v5423 = vsel %vm2911, %v5391, %v4642
        %v5424 = vsel %vm2911, %v5392, %v4644
        %v5425 = vsel %vm2911, %v5393, %v4646
        %v5426 = vsel %vm2911, %v5394, %v4648
        %v5427 = vsel %vm2911, %v5395, %v4650
        %v5428 = vsel %vm2911, %v5396, %v4652
        %v5429 = vsel %vm2911, %v5397, %v4654
        %v5430 = vsel %vm2911, %v5398, %v4656
        %v5431 = vsel %vm2911, %v5399, %v4658
        %v5432 = vsel %vm2911, %v5400, %v4660
        %v5433 = vsel %vm2911, %v5401, %v4662
        %v5434 = vsel %vm2911, %v5402, %v4664
        %v5435 = vsel %vm2911, %v5403, %v4666
        %v5436 = vsel %vm2911, %v5404, %v4668
        %v5437 = vsel %vm2977, %v5405, %v4734
        %v5438 = vsel %vm2977, %v5406, %v4736
        %v5439 = vsel %vm2977, %v5407, %v4738
        %v5440 = vsel %vm2977, %v5408, %v4740
        %v5441 = vsel %vm2977, %v5409, %v4742
        %v5442 = vsel %vm2977, %v5410, %v4744
        %v5443 = vsel %vm2977, %v5411, %v4746
        %v5444 = vsel %vm2977, %v5412, %v4748
        %v5445 = vsel %vm2977, %v5413, %v4750
        %v5446 = vsel %vm2977, %v5414, %v4752
        %v5447 = vsel %vm2977, %v5415, %v4754
        %v5448 = vsel %vm2977, %v5416, %v4756
        %v5449 = vsel %vm2977, %v5417, %v4758
        %v5450 = vsel %vm2977, %v5418, %v4760
        %v5451 = vsel %vm2977, %v5419, %v4762
        %v5452 = vsel %vm2977, %v5420, %v4764
        %v5453 = vsel %vm2977, %v5421, %v4766
        %v5454 = vsel %vm2977, %v5422, %v4768
        %v5455 = vsel %vm2977, %v5423, %v4770
        %v5456 = vsel %vm2977, %v5424, %v4772
        %v5457 = vsel %vm2977, %v5425, %v4774
        %v5458 = vsel %vm2977, %v5426, %v4776
        %v5459 = vsel %vm2977, %v5427, %v4778
        %v5460 = vsel %vm2977, %v5428, %v4780
        %v5461 = vsel %vm2977, %v5429, %v4782
        %v5462 = vsel %vm2977, %v5430, %v4784
        %v5463 = vsel %vm2977, %v5431, %v4786
        %v5464 = vsel %vm2977, %v5432, %v4788
        %v5465 = vsel %vm2977, %v5433, %v4790
        %v5466 = vsel %vm2977, %v5434, %v4792
        %v5467 = vsel %vm2977, %v5435, %v4794
        %v5468 = vsel %vm2977, %v5436, %v4796
        %vm5469 = vcmask 326656
        %v5470 = vsel %vm5469, %v5437, %v4862
        %v5471 = vsel %vm5469, %v5438, %v4864
        %v5472 = vsel %vm5469, %v5439, %v4866
        %v5473 = vsel %vm5469, %v5440, %v4868
        %v5474 = vsel %vm5469, %v5441, %v4870
        %v5475 = vsel %vm5469, %v5442, %v4872
        %v5476 = vsel %vm5469, %v5443, %v4874
        %v5477 = vsel %vm5469, %v5444, %v4876
        %v5478 = vsel %vm5469, %v5445, %v4878
        %v5479 = vsel %vm5469, %v5446, %v4880
        %v5480 = vsel %vm5469, %v5447, %v4882
        %v5481 = vsel %vm5469, %v5448, %v4884
        %v5482 = vsel %vm5469, %v5449, %v4886
        %v5483 = vsel %vm5469, %v5450, %v4888
        %v5484 = vsel %vm5469, %v5451, %v4890
        %v5485 = vsel %vm5469, %v5452, %v4892
        %v5486 = vsel %vm5469, %v5453, %v4894
        %v5487 = vsel %vm5469, %v5454, %v4896
        %v5488 = vsel %vm5469, %v5455, %v4898
        %v5489 = vsel %vm5469, %v5456, %v4900
        %v5490 = vsel %vm5469, %v5457, %v4902
        %v5491 = vsel %vm5469, %v5458, %v4904
        %v5492 = vsel %vm5469, %v5459, %v4906
        %v5493 = vsel %vm5469, %v5460, %v4908
        %v5494 = vsel %vm5469, %v5461, %v4910
        %v5495 = vsel %vm5469, %v5462, %v4912
        %v5496 = vsel %vm5469, %v5463, %v4914
        %v5497 = vsel %vm5469, %v5464, %v4916
        %v5498 = vsel %vm5469, %v5465, %v4918
        %v5499 = vsel %vm5469, %v5466, %v4920
        %v5500 = vsel %vm5469, %v5467, %v4922
        %v5501 = vsel %vm5469, %v5468, %v4924
        %vm5502 = vcmask 392192
        %v5503 = vsel %vm5502, %v5470, %v4990
        %v5504 = vsel %vm5502, %v5471, %v4992
        %v5505 = vsel %vm5502, %v5472, %v4994
        %v5506 = vsel %vm5502, %v5473, %v4996
        %v5507 = vsel %vm5502, %v5474, %v4998
        %v5508 = vsel %vm5502, %v5475, %v5000
        %v5509 = vsel %vm5502, %v5476, %v5002
        %v5510 = vsel %vm5502, %v5477, %v5004
        %v5511 = vsel %vm5502, %v5478, %v5006
        %v5512 = vsel %vm5502, %v5479, %v5008
        %v5513 = vsel %vm5502, %v5480, %v5010
        %v5514 = vsel %vm5502, %v5481, %v5012
        %v5515 = vsel %vm5502, %v5482, %v5014
        %v5516 = vsel %vm5502, %v5483, %v5016
        %v5517 = vsel %vm5502, %v5484, %v5018
        %v5518 = vsel %vm5502, %v5485, %v5020
        %v5519 = vsel %vm5502, %v5486, %v5022
        %v5520 = vsel %vm5502, %v5487, %v5024
        %v5521 = vsel %vm5502, %v5488, %v5026
        %v5522 = vsel %vm5502, %v5489, %v5028
        %v5523 = vsel %vm5502, %v5490, %v5030
        %v5524 = vsel %vm5502, %v5491, %v5032
        %v5525 = vsel %vm5502, %v5492, %v5034
        %v5526 = vsel %vm5502, %v5493, %v5036
        %v5527 = vsel %vm5502, %v5494, %v5038
        %v5528 = vsel %vm5502, %v5495, %v5040
        %v5529 = vsel %vm5502, %v5496, %v5042
        %v5530 = vsel %vm5502, %v5497, %v5044
        %v5531 = vsel %vm5502, %v5498, %v5046
        %v5532 = vsel %vm5502, %v5499, %v5048
        %v5533 = vsel %vm5502, %v5500, %v5050
        %v5534 = vsel %vm5502, %v5501, %v5052
        %vm5535 = vcmask 457728
        %v5536 = vsel %vm5535, %v5503, %v5118
        %v5537 = vsel %vm5535, %v5504, %v5120
        %v5538 = vsel %vm5535, %v5505, %v5122
        %v5539 = vsel %vm5535, %v5506, %v5124
        %v5540 = vsel %vm5535, %v5507, %v5126
        %v5541 = vsel %vm5535, %v5508, %v5128
        %v5542 = vsel %vm5535, %v5509, %v5130
        %v5543 = vsel %vm5535, %v5510, %v5132
        %v5544 = vsel %vm5535, %v5511, %v5134
        %v5545 = vsel %vm5535, %v5512, %v5136
        %v5546 = vsel %vm5535, %v5513, %v5138
        %v5547 = vsel %vm5535, %v5514, %v5140
        %v5548 = vsel %vm5535, %v5515, %v5142
        %v5549 = vsel %vm5535, %v5516, %v5144
        %v5550 = vsel %vm5535, %v5517, %v5146
        %v5551 = vsel %vm5535, %v5518, %v5148
        %v5552 = vsel %vm5535, %v5519, %v5150
        %v5553 = vsel %vm5535, %v5520, %v5152
        %v5554 = vsel %vm5535, %v5521, %v5154
        %v5555 = vsel %vm5535, %v5522, %v5156
        %v5556 = vsel %vm5535, %v5523, %v5158
        %v5557 = vsel %vm5535, %v5524, %v5160
        %v5558 = vsel %vm5535, %v5525, %v5162
        %v5559 = vsel %vm5535, %v5526, %v5164
        %v5560 = vsel %vm5535, %v5527, %v5166
        %v5561 = vsel %vm5535, %v5528, %v5168
        %v5562 = vsel %vm5535, %v5529, %v5170
        %v5563 = vsel %vm5535, %v5530, %v5172
        %v5564 = vsel %vm5535, %v5531, %v5174
        %v5565 = vsel %vm5535, %v5532, %v5176
        %v5566 = vsel %vm5535, %v5533, %v5178
        %v5567 = vsel %vm5535, %v5534, %v5180
        %vm5568 = vcmask 523264
        %v5569 = vsel %vm5568, %v5536, %v5246
        %v5570 = vsel %vm5568, %v5537, %v5248
        %v5571 = vsel %vm5568, %v5538, %v5250
        %v5572 = vsel %vm5568, %v5539, %v5252
        %v5573 = vsel %vm5568, %v5540, %v5254
        %v5574 = vsel %vm5568, %v5541, %v5256
        %v5575 = vsel %vm5568, %v5542, %v5258
        %v5576 = vsel %vm5568, %v5543, %v5260
        %v5577 = vsel %vm5568, %v5544, %v5262
        %v5578 = vsel %vm5568, %v5545, %v5264
        %v5579 = vsel %vm5568, %v5546, %v5266
        %v5580 = vsel %vm5568, %v5547, %v5268
        %v5581 = vsel %vm5568, %v5548, %v5270
        %v5582 = vsel %vm5568, %v5549, %v5272
        %v5583 = vsel %vm5568, %v5550, %v5274
        %v5584 = vsel %vm5568, %v5551, %v5276
        %v5585 = vsel %vm5568, %v5552, %v5278
        %v5586 = vsel %vm5568, %v5553, %v5280
        %v5587 = vsel %vm5568, %v5554, %v5282
        %v5588 = vsel %vm5568, %v5555, %v5284
        %v5589 = vsel %vm5568, %v5556, %v5286
        %v5590 = vsel %vm5568, %v5557, %v5288
        %v5591 = vsel %vm5568, %v5558, %v5290
        %v5592 = vsel %vm5568, %v5559, %v5292
        %v5593 = vsel %vm5568, %v5560, %v5294
        %v5594 = vsel %vm5568, %v5561, %v5296
        %v5595 = vsel %vm5568, %v5562, %v5298
        %v5596 = vsel %vm5568, %v5563, %v5300
        %v5597 = vsel %vm5568, %v5564, %v5302
        %v5598 = vsel %vm5568, %v5565, %v5304
        %v5599 = vsel %vm5568, %v5566, %v5306
        %v5600 = vsel %vm5568, %v5567, %v5308
        %v5601 = vpack.c.bf16 %v5570, %v5569
        %v5602 = vpack.c.bf16 %v5572, %v5571
        %v5603 = vpack.c.bf16 %v5574, %v5573
        %v5604 = vpack.c.bf16 %v5576, %v5575
        %v5605 = vpack.c.bf16 %v5578, %v5577
        %v5606 = vpack.c.bf16 %v5580, %v5579
        %v5607 = vpack.c.bf16 %v5582, %v5581
        %v5608 = vpack.c.bf16 %v5584, %v5583
        %v5609 = vpack.c.bf16 %v5586, %v5585
        %v5610 = vpack.c.bf16 %v5588, %v5587
        %v5611 = vpack.c.bf16 %v5590, %v5589
        %v5612 = vpack.c.bf16 %v5592, %v5591
        %v5613 = vpack.c.bf16 %v5594, %v5593
        %v5614 = vpack.c.bf16 %v5596, %v5595
        %v5615 = vpack.c.bf16 %v5598, %v5597
        %v5616 = vpack.c.bf16 %v5600, %v5599
        %v5617 = vld [vmem:[%s9] sm:$0xf]
        %v5618 = vld [vmem:[%s9 + $0x4] sm:$0xf]
        %v5619 = vld [vmem:[%s9 + $0x8] sm:$0xf]
        %v5620 = vld [vmem:[%s9 + $0xc] sm:$0xf]
        %v5621 = vld [vmem:[%s9 + $0x10] sm:$0xf]
        %v5622 = vld [vmem:[%s9 + $0x14] sm:$0xf]
        %v5623 = vld [vmem:[%s9 + $0x18] sm:$0xf]
        %v5624 = vld [vmem:[%s9 + $0x1c] sm:$0xf]
        %v5625 = vld [vmem:[%s9 + $0x20] sm:$0xf]
        %v5627 = vperm.slane %v4027, 0
        %v5638 = vunpack.c.l.b16 %v5617
        %v5639 = vunpack.c.l.b16 %v5618
        %v5640 = vunpack.c.l.b16 %v5619
        %v5641 = vunpack.c.l.b16 %v5620
        %v5642 = vunpack.c.l.b16 %v5621
        %v5643 = vunpack.c.l.b16 %v5622
        %v5644 = vunpack.c.l.b16 %v5623
        %v5645 = vunpack.c.l.b16 %v5624
        %v5646 = vunpack.c.l.b16 %v5625
        %v5647 = vpack.c.b16 %v5639, %v5638
        %v5648 = vpack.c.b16 %v5641, %v5640
        %v5649 = vpack.c.b16 %v5643, %v5642
        %v5650 = vpack.c.b16 %v5645, %v5644
        %v5651 = vpack.c.b16 %v5646, %v5646
        %vm5656 = vcmask 588800
        %v5658 = vsel %vm5656, %v5601, 0
        %v5661 = vsel %vm5656, %v5602, 0
        %v5664 = vsel %vm5656, %v5603, 0
        %v5667 = vsel %vm5656, %v5604, 0
        %v5670 = vsel %vm5656, %v5605, 0
        %v5673 = vsel %vm5656, %v5606, 0
        %v5676 = vsel %vm5656, %v5607, 0
        %v5679 = vsel %vm5656, %v5608, 0
        %v5682 = vsel %vm5656, %v5609, 0
        %v5685 = vsel %vm5656, %v5610, 0
        %v5688 = vsel %vm5656, %v5611, 0
        %v5691 = vsel %vm5656, %v5612, 0
        %v5694 = vsel %vm5656, %v5613, 0
        %v5697 = vsel %vm5656, %v5614, 0
        %v5700 = vsel %vm5656, %v5615, 0
        %v5703 = vsel %vm5656, %v5616, 0
        %vm5705 = vcmask 1043456
        %v5707 = vsel %vm5705, %v5651, 0
        %5709 = vmatpush.bf16.msra.mxu0 0
        %5710 = vmatpush.bf16.msra.mxu0 0
        %5711 = vmatpush.bf16.msra.mxu0 0
        %5712 = vmatpush.bf16.msra.mxu0 %v5707
        %5713 = vmatpush.bf16.msra.mxu0 %v5650
        %5714 = vmatpush.bf16.msra.mxu0 %v5649
        %5715 = vmatpush.bf16.msra.mxu0 %v5648
        %5716 = vmatpush.bf16.msra.mxu0 %v5647
        %5717 = vmatmul.bf16.gmra.mxu0 %v5658
        %v5718 = vpop.f32.mrf.mxu0
        %v5719 = vadd.f32 %v5627, %v5718
        %v5720 = vpop.f32.mrf.mxu0
        %v5721 = vadd.f32 %v5627, %v5720
        %5722 = vmatmul.bf16.gmra.mxu0 %v5661
        %v5723 = vpop.f32.mrf.mxu0
        %v5724 = vadd.f32 %v5627, %v5723
        %v5725 = vpop.f32.mrf.mxu0
        %v5726 = vadd.f32 %v5627, %v5725
        %5727 = vmatmul.bf16.gmra.mxu0 %v5664
        %v5728 = vpop.f32.mrf.mxu0
        %v5729 = vadd.f32 %v5627, %v5728
        %v5730 = vpop.f32.mrf.mxu0
        %v5731 = vadd.f32 %v5627, %v5730
        %5732 = vmatmul.bf16.gmra.mxu0 %v5667
        %v5733 = vpop.f32.mrf.mxu0
        %v5734 = vadd.f32 %v5627, %v5733
        %v5735 = vpop.f32.mrf.mxu0
        %v5736 = vadd.f32 %v5627, %v5735
        %5737 = vmatmul.bf16.gmra.mxu0 %v5670
        %v5738 = vpop.f32.mrf.mxu0
        %v5739 = vadd.f32 %v5627, %v5738
        %v5740 = vpop.f32.mrf.mxu0
        %v5741 = vadd.f32 %v5627, %v5740
        %5742 = vmatmul.bf16.gmra.mxu0 %v5673
        %v5743 = vpop.f32.mrf.mxu0
        %v5744 = vadd.f32 %v5627, %v5743
        %v5745 = vpop.f32.mrf.mxu0
        %v5746 = vadd.f32 %v5627, %v5745
        %5747 = vmatmul.bf16.gmra.mxu0 %v5676
        %v5748 = vpop.f32.mrf.mxu0
        %v5749 = vadd.f32 %v5627, %v5748
        %v5750 = vpop.f32.mrf.mxu0
        %v5751 = vadd.f32 %v5627, %v5750
        %5752 = vmatmul.bf16.gmra.mxu0 %v5679
        %v5753 = vpop.f32.mrf.mxu0
        %v5754 = vadd.f32 %v5627, %v5753
        %v5755 = vpop.f32.mrf.mxu0
        %v5756 = vadd.f32 %v5627, %v5755
        %5757 = vmatmul.bf16.gmra.mxu0 %v5682
        %v5758 = vpop.f32.mrf.mxu0
        %v5759 = vadd.f32 %v5627, %v5758
        %v5760 = vpop.f32.mrf.mxu0
        %v5761 = vadd.f32 %v5627, %v5760
        %5762 = vmatmul.bf16.gmra.mxu0 %v5685
        %v5763 = vpop.f32.mrf.mxu0
        %v5764 = vadd.f32 %v5627, %v5763
        %v5765 = vpop.f32.mrf.mxu0
        %v5766 = vadd.f32 %v5627, %v5765
        %5767 = vmatmul.bf16.gmra.mxu0 %v5688
        %v5768 = vpop.f32.mrf.mxu0
        %v5769 = vadd.f32 %v5627, %v5768
        %v5770 = vpop.f32.mrf.mxu0
        %v5771 = vadd.f32 %v5627, %v5770
        %5772 = vmatmul.bf16.gmra.mxu0 %v5691
        %v5773 = vpop.f32.mrf.mxu0
        %v5774 = vadd.f32 %v5627, %v5773
        %v5775 = vpop.f32.mrf.mxu0
        %v5776 = vadd.f32 %v5627, %v5775
        %5777 = vmatmul.bf16.gmra.mxu0 %v5694
        %v5778 = vpop.f32.mrf.mxu0
        %v5779 = vadd.f32 %v5627, %v5778
        %v5780 = vpop.f32.mrf.mxu0
        %v5781 = vadd.f32 %v5627, %v5780
        %5782 = vmatmul.bf16.gmra.mxu0 %v5697
        %v5783 = vpop.f32.mrf.mxu0
        %v5784 = vadd.f32 %v5627, %v5783
        %v5785 = vpop.f32.mrf.mxu0
        %v5786 = vadd.f32 %v5627, %v5785
        %5787 = vmatmul.bf16.gmra.mxu0 %v5700
        %v5788 = vpop.f32.mrf.mxu0
        %v5789 = vadd.f32 %v5627, %v5788
        %v5790 = vpop.f32.mrf.mxu0
        %v5791 = vadd.f32 %v5627, %v5790
        %5792 = vmatmul.bf16.gmra.mxu0 %v5703
        %v5793 = vpop.f32.mrf.mxu0
        %v5794 = vadd.f32 %v5627, %v5793
        %v5795 = vpop.f32.mrf.mxu0
        %v5796 = vadd.f32 %v5627, %v5795
        %5797 = vdwg.mxu0
        %v5798 = vpack.c.bf16 %v658, %v657
        %v5799 = vpack.c.bf16 %v660, %v659
        %v5800 = vpack.c.bf16 %v662, %v661
        %v5801 = vpack.c.bf16 %v664, %v663
        %v5802 = vpack.c.bf16 %v666, %v665
        %v5803 = vpack.c.bf16 %v668, %v667
        %v5804 = vpack.c.bf16 %v670, %v669
        %v5805 = vpack.c.bf16 %v672, %v671
        %v5806 = vpack.c.bf16 %v674, %v673
        %v5807 = vpack.c.bf16 %v676, %v675
        %v5808 = vpack.c.bf16 %v678, %v677
        %v5809 = vpack.c.bf16 %v680, %v679
        %v5810 = vpack.c.bf16 %v682, %v681
        %v5811 = vpack.c.bf16 %v684, %v683
        %v5812 = vpack.c.bf16 %v686, %v685
        %v5813 = vpack.c.bf16 %v688, %v687
        %v5814 = vld [vmem:[%s11] sm:$0x3]
        %v5816 = vsel %vm522, %v5798, 0
        %v5819 = vsel %vm522, %v5799, 0
        %v5822 = vsel %vm522, %v5800, 0
        %v5825 = vsel %vm522, %v5801, 0
        %v5828 = vsel %vm522, %v5802, 0
        %v5831 = vsel %vm522, %v5803, 0
        %v5834 = vsel %vm522, %v5804, 0
        %v5837 = vsel %vm522, %v5805, 0
        %v5840 = vsel %vm522, %v5806, 0
        %v5843 = vsel %vm522, %v5807, 0
        %v5846 = vsel %vm522, %v5808, 0
        %v5849 = vsel %vm522, %v5809, 0
        %v5852 = vsel %vm522, %v5810, 0
        %v5855 = vsel %vm522, %v5811, 0
        %v5858 = vsel %vm522, %v5812, 0
        %v5861 = vsel %vm522, %v5813, 0
        %v5864 = vsel %vm3117, %v5814, 0
        %5866 = vmatpush.bf16.msra.mxu0 0
        %5867 = vmatpush.bf16.msra.mxu0 0
        %5868 = vmatpush.bf16.msra.mxu0 0
        %5869 = vmatpush.bf16.msra.mxu0 0
        %5870 = vmatpush.bf16.msra.mxu0 0
        %5871 = vmatpush.bf16.msra.mxu0 0
        %5872 = vmatpush.bf16.msra.mxu0 0
        %5873 = vmatpush.bf16.msra.mxu0 %v5864
        %5874 = vmatmul.bf16.gmra.mxu0 %v5816
        %v5875 = vpop.f32.mrf.mxu0
        %v5876 = vadd.f32 0.0, %v5875
        %v5877 = vpop.f32.mrf.mxu0
        %v5878 = vadd.f32 0.0, %v5877
        %5879 = vmatmul.bf16.gmra.mxu0 %v5819
        %v5880 = vpop.f32.mrf.mxu0
        %v5881 = vadd.f32 0.0, %v5880
        %v5882 = vpop.f32.mrf.mxu0
        %v5883 = vadd.f32 0.0, %v5882
        %5884 = vmatmul.bf16.gmra.mxu0 %v5822
        %v5885 = vpop.f32.mrf.mxu0
        %v5886 = vadd.f32 0.0, %v5885
        %v5887 = vpop.f32.mrf.mxu0
        %v5888 = vadd.f32 0.0, %v5887
        %5889 = vmatmul.bf16.gmra.mxu0 %v5825
        %v5890 = vpop.f32.mrf.mxu0
        %v5891 = vadd.f32 0.0, %v5890
        %v5892 = vpop.f32.mrf.mxu0
        %v5893 = vadd.f32 0.0, %v5892
        %5894 = vmatmul.bf16.gmra.mxu0 %v5828
        %v5895 = vpop.f32.mrf.mxu0
        %v5896 = vadd.f32 0.0, %v5895
        %v5897 = vpop.f32.mrf.mxu0
        %v5898 = vadd.f32 0.0, %v5897
        %5899 = vmatmul.bf16.gmra.mxu0 %v5831
        %v5900 = vpop.f32.mrf.mxu0
        %v5901 = vadd.f32 0.0, %v5900
        %v5902 = vpop.f32.mrf.mxu0
        %v5903 = vadd.f32 0.0, %v5902
        %5904 = vmatmul.bf16.gmra.mxu0 %v5834
        %v5905 = vpop.f32.mrf.mxu0
        %v5906 = vadd.f32 0.0, %v5905
        %v5907 = vpop.f32.mrf.mxu0
        %v5908 = vadd.f32 0.0, %v5907
        %5909 = vmatmul.bf16.gmra.mxu0 %v5837
        %v5910 = vpop.f32.mrf.mxu0
        %v5911 = vadd.f32 0.0, %v5910
        %v5912 = vpop.f32.mrf.mxu0
        %v5913 = vadd.f32 0.0, %v5912
        %5914 = vmatmul.bf16.gmra.mxu0 %v5840
        %v5915 = vpop.f32.mrf.mxu0
        %v5916 = vadd.f32 0.0, %v5915
        %v5917 = vpop.f32.mrf.mxu0
        %v5918 = vadd.f32 0.0, %v5917
        %5919 = vmatmul.bf16.gmra.mxu0 %v5843
        %v5920 = vpop.f32.mrf.mxu0
        %v5921 = vadd.f32 0.0, %v5920
        %v5922 = vpop.f32.mrf.mxu0
        %v5923 = vadd.f32 0.0, %v5922
        %5924 = vmatmul.bf16.gmra.mxu0 %v5846
        %v5925 = vpop.f32.mrf.mxu0
        %v5926 = vadd.f32 0.0, %v5925
        %v5927 = vpop.f32.mrf.mxu0
        %v5928 = vadd.f32 0.0, %v5927
        %5929 = vmatmul.bf16.gmra.mxu0 %v5849
        %v5930 = vpop.f32.mrf.mxu0
        %v5931 = vadd.f32 0.0, %v5930
        %v5932 = vpop.f32.mrf.mxu0
        %v5933 = vadd.f32 0.0, %v5932
        %5934 = vmatmul.bf16.gmra.mxu0 %v5852
        %v5935 = vpop.f32.mrf.mxu0
        %v5936 = vadd.f32 0.0, %v5935
        %v5937 = vpop.f32.mrf.mxu0
        %v5938 = vadd.f32 0.0, %v5937
        %5939 = vmatmul.bf16.gmra.mxu0 %v5855
        %v5940 = vpop.f32.mrf.mxu0
        %v5941 = vadd.f32 0.0, %v5940
        %v5942 = vpop.f32.mrf.mxu0
        %v5943 = vadd.f32 0.0, %v5942
        %5944 = vmatmul.bf16.gmra.mxu0 %v5858
        %v5945 = vpop.f32.mrf.mxu0
        %v5946 = vadd.f32 0.0, %v5945
        %v5947 = vpop.f32.mrf.mxu0
        %v5948 = vadd.f32 0.0, %v5947
        %5949 = vmatmul.bf16.gmra.mxu0 %v5861
        %v5950 = vpop.f32.mrf.mxu0
        %v5951 = vadd.f32 0.0, %v5950
        %v5952 = vpop.f32.mrf.mxu0
        %v5953 = vadd.f32 0.0, %v5952
        %5954 = vdwg.mxu0
        %v5955 = vadd.f32 %v5719, %v5876
        %v5956 = vadd.f32 %v5721, %v5878
        %v5957 = vadd.f32 %v5724, %v5881
        %v5958 = vadd.f32 %v5726, %v5883
        %v5959 = vadd.f32 %v5729, %v5886
        %v5960 = vadd.f32 %v5731, %v5888
        %v5961 = vadd.f32 %v5734, %v5891
        %v5962 = vadd.f32 %v5736, %v5893
        %v5963 = vadd.f32 %v5739, %v5896
        %v5964 = vadd.f32 %v5741, %v5898
        %v5965 = vadd.f32 %v5744, %v5901
        %v5966 = vadd.f32 %v5746, %v5903
        %v5967 = vadd.f32 %v5749, %v5906
        %v5968 = vadd.f32 %v5751, %v5908
        %v5969 = vadd.f32 %v5754, %v5911
        %v5970 = vadd.f32 %v5756, %v5913
        %v5971 = vadd.f32 %v5759, %v5916
        %v5972 = vadd.f32 %v5761, %v5918
        %v5973 = vadd.f32 %v5764, %v5921
        %v5974 = vadd.f32 %v5766, %v5923
        %v5975 = vadd.f32 %v5769, %v5926
        %v5976 = vadd.f32 %v5771, %v5928
        %v5977 = vadd.f32 %v5774, %v5931
        %v5978 = vadd.f32 %v5776, %v5933
        %v5979 = vadd.f32 %v5779, %v5936
        %v5980 = vadd.f32 %v5781, %v5938
        %v5981 = vadd.f32 %v5784, %v5941
        %v5982 = vadd.f32 %v5786, %v5943
        %v5983 = vadd.f32 %v5789, %v5946
        %v5984 = vadd.f32 %v5791, %v5948
        %v5985 = vadd.f32 %v5794, %v5951
        %v5986 = vadd.f32 %v5796, %v5953
        %v5987 = vld [vmem:[%s12] sm:$0x1]
        %v5989 = vperm.slane %v5987, 0
        %v5991 = vadd.f32 %v5955, %v5989
        %v5992 = vadd.f32 %v5956, %v5989
        %v5993 = vadd.f32 %v5957, %v5989
        %v5994 = vadd.f32 %v5958, %v5989
        %v5995 = vadd.f32 %v5959, %v5989
        %v5996 = vadd.f32 %v5960, %v5989
        %v5997 = vadd.f32 %v5961, %v5989
        %v5998 = vadd.f32 %v5962, %v5989
        %v5999 = vadd.f32 %v5963, %v5989
        %v6000 = vadd.f32 %v5964, %v5989
        %v6001 = vadd.f32 %v5965, %v5989
        %v6002 = vadd.f32 %v5966, %v5989
        %v6003 = vadd.f32 %v5967, %v5989
        %v6004 = vadd.f32 %v5968, %v5989
        %v6005 = vadd.f32 %v5969, %v5989
        %v6006 = vadd.f32 %v5970, %v5989
        %v6007 = vadd.f32 %v5971, %v5989
        %v6008 = vadd.f32 %v5972, %v5989
        %v6009 = vadd.f32 %v5973, %v5989
        %v6010 = vadd.f32 %v5974, %v5989
        %v6011 = vadd.f32 %v5975, %v5989
        %v6012 = vadd.f32 %v5976, %v5989
        %v6013 = vadd.f32 %v5977, %v5989
        %v6014 = vadd.f32 %v5978, %v5989
        %v6015 = vadd.f32 %v5979, %v5989
        %v6016 = vadd.f32 %v5980, %v5989
        %v6017 = vadd.f32 %v5981, %v5989
        %v6018 = vadd.f32 %v5982, %v5989
        %v6019 = vadd.f32 %v5983, %v5989
        %v6020 = vadd.f32 %v5984, %v5989
        %v6021 = vadd.f32 %v5985, %v5989
        %v6022 = vadd.f32 %v5986, %v5989
        %s6023 = scalar_lea.vmem [#allocation4], 24
        %6024 = vst.msk [vmem:[%s6023 + $0x1] sm:$0xff] %vm568, %v5991
        %6025 = vst.msk [vmem:[%s6023 + $0x9] sm:$0xff] %vm568, %v5992
        %6026 = vst.msk [vmem:[%s6023 + $0x19] sm:$0xff] %vm568, %v5993
        %6027 = vst.msk [vmem:[%s6023 + $0x21] sm:$0xff] %vm568, %v5994
        %6028 = vst.msk [vmem:[%s6023 + $0x31] sm:$0xff] %vm568, %v5995
        %6029 = vst.msk [vmem:[%s6023 + $0x39] sm:$0xff] %vm568, %v5996
        %6030 = vst.msk [vmem:[%s6023 + $0x49] sm:$0xff] %vm568, %v5997
        %6031 = vst.msk [vmem:[%s6023 + $0x51] sm:$0xff] %vm568, %v5998
        %6032 = vst.msk [vmem:[%s6023 + $0x61] sm:$0xff] %vm568, %v5999
        %6033 = vst.msk [vmem:[%s6023 + $0x69] sm:$0xff] %vm568, %v6000
        %6034 = vst.msk [vmem:[%s6023 + $0x79] sm:$0xff] %vm568, %v6001
        %6035 = vst.msk [vmem:[%s6023 + $0x81] sm:$0xff] %vm568, %v6002
        %6036 = vst.msk [vmem:[%s6023 + $0x91] sm:$0xff] %vm568, %v6003
        %6037 = vst.msk [vmem:[%s6023 + $0x99] sm:$0xff] %vm568, %v6004
        %6038 = vst.msk [vmem:[%s6023 + $0xa9] sm:$0xff] %vm568, %v6005
        %6039 = vst.msk [vmem:[%s6023 + $0xb1] sm:$0xff] %vm568, %v6006
        %6040 = vst.msk [vmem:[%s6023 + $0xc1] sm:$0xff] %vm568, %v6007
        %6041 = vst.msk [vmem:[%s6023 + $0xc9] sm:$0xff] %vm568, %v6008
        %6042 = vst.msk [vmem:[%s6023 + $0xd9] sm:$0xff] %vm568, %v6009
        %6043 = vst.msk [vmem:[%s6023 + $0xe1] sm:$0xff] %vm568, %v6010
        %6044 = vst.msk [vmem:[%s6023 + $0xf1] sm:$0xff] %vm568, %v6011
        %6045 = vst.msk [vmem:[%s6023 + $0xf9] sm:$0xff] %vm568, %v6012
        %6046 = vst.msk [vmem:[%s6023 + $0x109] sm:$0xff] %vm568, %v6013
        %6047 = vst.msk [vmem:[%s6023 + $0x111] sm:$0xff] %vm568, %v6014
        %6048 = vst.msk [vmem:[%s6023 + $0x121] sm:$0xff] %vm568, %v6015
        %6049 = vst.msk [vmem:[%s6023 + $0x129] sm:$0xff] %vm568, %v6016
        %6050 = vst.msk [vmem:[%s6023 + $0x139] sm:$0xff] %vm568, %v6017
        %6051 = vst.msk [vmem:[%s6023 + $0x141] sm:$0xff] %vm568, %v6018
        %6052 = vst.msk [vmem:[%s6023 + $0x151] sm:$0xff] %vm568, %v6019
        %6053 = vst.msk [vmem:[%s6023 + $0x159] sm:$0xff] %vm568, %v6020
        %6054 = vst.msk [vmem:[%s6023 + $0x169] sm:$0xff] %vm568, %v6021
        %6055 = vst.msk [vmem:[%s6023 + $0x171] sm:$0xff] %vm568, %v6022
        %v6056 = vld [vmem:[%s14] sm:$0x1]
        %v6057 = vld [vmem:[#allocation4] ss:$2 sm:$0xff]
        %s6058 = scalar_lea.vmem [#allocation4], 48
        %v6059 = vld [vmem:[%s6058] ss:$2 sm:$0xff]
        %s6060 = scalar_lea.vmem [#allocation4], 96
        %v6061 = vld [vmem:[%s6060] ss:$2 sm:$0xff]
        %s6062 = scalar_lea.vmem [#allocation4], 144
        %v6063 = vld [vmem:[%s6062] ss:$2 sm:$0xff]
        %s6064 = scalar_lea.vmem [#allocation4], 192
        %v6065 = vld [vmem:[%s6064] ss:$2 sm:$0xff]
        %s6066 = scalar_lea.vmem [#allocation4], 240
        %v6067 = vld [vmem:[%s6066] ss:$2 sm:$0xff]
        %s6068 = scalar_lea.vmem [#allocation4], 288
        %v6069 = vld [vmem:[%s6068] ss:$2 sm:$0xff]
        %s6070 = scalar_lea.vmem [#allocation4], 336
        %v6071 = vld [vmem:[%s6070] ss:$2 sm:$0xff]
        %s6072 = scalar_lea.vmem [#allocation4], 1
        %v6073 = vld [vmem:[%s6072] ss:$2 sm:$0xff]
        %s6074 = scalar_lea.vmem [#allocation4], 49
        %v6075 = vld [vmem:[%s6074] ss:$2 sm:$0xff]
        %s6076 = scalar_lea.vmem [#allocation4], 97
        %v6077 = vld [vmem:[%s6076] ss:$2 sm:$0xff]
        %s6078 = scalar_lea.vmem [#allocation4], 145
        %v6079 = vld [vmem:[%s6078] ss:$2 sm:$0xff]
        %s6080 = scalar_lea.vmem [#allocation4], 193
        %v6081 = vld [vmem:[%s6080] ss:$2 sm:$0xff]
        %s6082 = scalar_lea.vmem [#allocation4], 241
        %v6083 = vld [vmem:[%s6082] ss:$2 sm:$0xff]
        %s6084 = scalar_lea.vmem [#allocation4], 289
        %v6085 = vld [vmem:[%s6084] ss:$2 sm:$0xff]
        %s6086 = scalar_lea.vmem [#allocation4], 337
        %v6087 = vld [vmem:[%s6086] ss:$2 sm:$0xff]
        %s6088 = scalar_lea.vmem [#allocation4], 2
        %v6089 = vld [vmem:[%s6088] ss:$2 sm:$0xff]
        %s6090 = scalar_lea.vmem [#allocation4], 50
        %v6091 = vld [vmem:[%s6090] ss:$2 sm:$0xff]
        %s6092 = scalar_lea.vmem [#allocation4], 98
        %v6093 = vld [vmem:[%s6092] ss:$2 sm:$0xff]
        %s6094 = scalar_lea.vmem [#allocation4], 146
        %v6095 = vld [vmem:[%s6094] ss:$2 sm:$0xff]
        %s6096 = scalar_lea.vmem [#allocation4], 194
        %v6097 = vld [vmem:[%s6096] ss:$2 sm:$0xff]
        %s6098 = scalar_lea.vmem [#allocation4], 242
        %v6099 = vld [vmem:[%s6098] ss:$2 sm:$0xff]
        %s6100 = scalar_lea.vmem [#allocation4], 290
        %v6101 = vld [vmem:[%s6100] ss:$2 sm:$0xff]
        %s6102 = scalar_lea.vmem [#allocation4], 338
        %v6103 = vld [vmem:[%s6102] ss:$2 sm:$0xff]
        %v6104 = vld [vmem:[%s6023] ss:$2 sm:$0xff]
        %s6105 = scalar_lea.vmem %s6023, 48 [#allocation4]
        %v6106 = vld [vmem:[%s6105] ss:$2 sm:$0xff]
        %s6107 = scalar_lea.vmem %s6023, 96 [#allocation4]
        %v6108 = vld [vmem:[%s6107] ss:$2 sm:$0xff]
        %s6109 = scalar_lea.vmem %s6023, 144 [#allocation4]
        %v6110 = vld [vmem:[%s6109] ss:$2 sm:$0xff]
        %s6111 = scalar_lea.vmem %s6023, 192 [#allocation4]
        %v6112 = vld [vmem:[%s6111] ss:$2 sm:$0xff]
        %s6113 = scalar_lea.vmem %s6023, 240 [#allocation4]
        %v6114 = vld [vmem:[%s6113] ss:$2 sm:$0xff]
        %s6115 = scalar_lea.vmem %s6023, 288 [#allocation4]
        %v6116 = vld [vmem:[%s6115] ss:$2 sm:$0xff]
        %s6117 = scalar_lea.vmem %s6023, 336 [#allocation4]
        %v6118 = vld [vmem:[%s6117] ss:$2 sm:$0xff]
        %s6119 = scalar_lea.vmem %s6023, 1 [#allocation4]
        %v6120 = vld [vmem:[%s6119] ss:$2 sm:$0xff]
        %s6121 = scalar_lea.vmem %s6023, 49 [#allocation4]
        %v6122 = vld [vmem:[%s6121] ss:$2 sm:$0xff]
        %s6123 = scalar_lea.vmem %s6023, 97 [#allocation4]
        %v6124 = vld [vmem:[%s6123] ss:$2 sm:$0xff]
        %s6125 = scalar_lea.vmem %s6023, 145 [#allocation4]
        %v6126 = vld [vmem:[%s6125] ss:$2 sm:$0xff]
        %s6127 = scalar_lea.vmem %s6023, 193 [#allocation4]
        %v6128 = vld [vmem:[%s6127] ss:$2 sm:$0xff]
        %s6129 = scalar_lea.vmem %s6023, 241 [#allocation4]
        %v6130 = vld [vmem:[%s6129] ss:$2 sm:$0xff]
        %s6131 = scalar_lea.vmem %s6023, 289 [#allocation4]
        %v6132 = vld [vmem:[%s6131] ss:$2 sm:$0xff]
        %s6133 = scalar_lea.vmem %s6023, 337 [#allocation4]
        %v6134 = vld [vmem:[%s6133] ss:$2 sm:$0xff]
        %s6135 = scalar_lea.vmem %s6023, 2 [#allocation4]
        %v6136 = vld [vmem:[%s6135] ss:$2 sm:$0xff]
        %s6137 = scalar_lea.vmem %s6023, 50 [#allocation4]
        %v6138 = vld [vmem:[%s6137] ss:$2 sm:$0xff]
        %s6139 = scalar_lea.vmem %s6023, 98 [#allocation4]
        %v6140 = vld [vmem:[%s6139] ss:$2 sm:$0xff]
        %s6141 = scalar_lea.vmem %s6023, 146 [#allocation4]
        %v6142 = vld [vmem:[%s6141] ss:$2 sm:$0xff]
        %s6143 = scalar_lea.vmem %s6023, 194 [#allocation4]
        %v6144 = vld [vmem:[%s6143] ss:$2 sm:$0xff]
        %s6145 = scalar_lea.vmem %s6023, 242 [#allocation4]
        %v6146 = vld [vmem:[%s6145] ss:$2 sm:$0xff]
        %s6147 = scalar_lea.vmem %s6023, 290 [#allocation4]
        %v6148 = vld [vmem:[%s6147] ss:$2 sm:$0xff]
        %s6149 = scalar_lea.vmem %s6023, 338 [#allocation4]
        %v6150 = vld [vmem:[%s6149] ss:$2 sm:$0xff]
        %s6151 = scalar_lea.vmem [#allocation4], 48
        %v6152 = vld [vmem:[%s6151] ss:$2 sm:$0xff]
        %s6153 = scalar_lea.vmem %s6151, 48 [#allocation4]
        %v6154 = vld [vmem:[%s6153] ss:$2 sm:$0xff]
        %s6155 = scalar_lea.vmem %s6151, 96 [#allocation4]
        %v6156 = vld [vmem:[%s6155] ss:$2 sm:$0xff]
        %s6157 = scalar_lea.vmem %s6151, 144 [#allocation4]
        %v6158 = vld [vmem:[%s6157] ss:$2 sm:$0xff]
        %s6159 = scalar_lea.vmem %s6151, 192 [#allocation4]
        %v6160 = vld [vmem:[%s6159] ss:$2 sm:$0xff]
        %s6161 = scalar_lea.vmem %s6151, 240 [#allocation4]
        %v6162 = vld [vmem:[%s6161] ss:$2 sm:$0xff]
        %s6163 = scalar_lea.vmem %s6151, 288 [#allocation4]
        %v6164 = vld [vmem:[%s6163] ss:$2 sm:$0xff]
        %s6165 = scalar_lea.vmem %s6151, 336 [#allocation4]
        %v6166 = vld [vmem:[%s6165] ss:$2 sm:$0xff]
        %s6167 = scalar_lea.vmem %s6151, 1 [#allocation4]
        %v6168 = vld [vmem:[%s6167] ss:$2 sm:$0xff]
        %s6169 = scalar_lea.vmem %s6151, 49 [#allocation4]
        %v6170 = vld [vmem:[%s6169] ss:$2 sm:$0xff]
        %s6171 = scalar_lea.vmem %s6151, 97 [#allocation4]
        %v6172 = vld [vmem:[%s6171] ss:$2 sm:$0xff]
        %s6173 = scalar_lea.vmem %s6151, 145 [#allocation4]
        %v6174 = vld [vmem:[%s6173] ss:$2 sm:$0xff]
        %s6175 = scalar_lea.vmem %s6151, 193 [#allocation4]
        %v6176 = vld [vmem:[%s6175] ss:$2 sm:$0xff]
        %s6177 = scalar_lea.vmem %s6151, 241 [#allocation4]
        %v6178 = vld [vmem:[%s6177] ss:$2 sm:$0xff]
        %s6179 = scalar_lea.vmem %s6151, 289 [#allocation4]
        %v6180 = vld [vmem:[%s6179] ss:$2 sm:$0xff]
        %s6181 = scalar_lea.vmem %s6151, 337 [#allocation4]
        %v6182 = vld [vmem:[%s6181] ss:$2 sm:$0xff]
        %s6183 = scalar_lea.vmem %s6151, 2 [#allocation4]
        %v6184 = vld [vmem:[%s6183] ss:$2 sm:$0xff]
        %s6185 = scalar_lea.vmem %s6151, 50 [#allocation4]
        %v6186 = vld [vmem:[%s6185] ss:$2 sm:$0xff]
        %s6187 = scalar_lea.vmem %s6151, 98 [#allocation4]
        %v6188 = vld [vmem:[%s6187] ss:$2 sm:$0xff]
        %s6189 = scalar_lea.vmem %s6151, 146 [#allocation4]
        %v6190 = vld [vmem:[%s6189] ss:$2 sm:$0xff]
        %s6191 = scalar_lea.vmem %s6151, 194 [#allocation4]
        %v6192 = vld [vmem:[%s6191] ss:$2 sm:$0xff]
        %s6193 = scalar_lea.vmem %s6151, 242 [#allocation4]
        %v6194 = vld [vmem:[%s6193] ss:$2 sm:$0xff]
        %s6195 = scalar_lea.vmem %s6151, 290 [#allocation4]
        %v6196 = vld [vmem:[%s6195] ss:$2 sm:$0xff]
        %s6197 = scalar_lea.vmem %s6151, 338 [#allocation4]
        %v6198 = vld [vmem:[%s6197] ss:$2 sm:$0xff]
        %6207 = vrot.lane.b32.xlu0 %v6073, 8
        %v6208 = vpop.permute.xlu0 %6207
        %6209 = vrot.lane.b32.xlu0 %v6075, 8
        %v6210 = vpop.permute.xlu0 %6209
        %6211 = vrot.lane.b32.xlu0 %v6077, 8
        %v6212 = vpop.permute.xlu0 %6211
        %6213 = vrot.lane.b32.xlu0 %v6079, 8
        %v6214 = vpop.permute.xlu0 %6213
        %6215 = vrot.lane.b32.xlu0 %v6081, 8
        %v6216 = vpop.permute.xlu0 %6215
        %6217 = vrot.lane.b32.xlu0 %v6083, 8
        %v6218 = vpop.permute.xlu0 %6217
        %6219 = vrot.lane.b32.xlu0 %v6085, 8
        %v6220 = vpop.permute.xlu0 %6219
        %6221 = vrot.lane.b32.xlu0 %v6087, 8
        %v6222 = vpop.permute.xlu0 %6221
        %6239 = vrot.lane.b32.xlu0 %v6089, 16
        %v6240 = vpop.permute.xlu0 %6239
        %6241 = vrot.lane.b32.xlu0 %v6091, 16
        %v6242 = vpop.permute.xlu0 %6241
        %6243 = vrot.lane.b32.xlu0 %v6093, 16
        %v6244 = vpop.permute.xlu0 %6243
        %6245 = vrot.lane.b32.xlu0 %v6095, 16
        %v6246 = vpop.permute.xlu0 %6245
        %6247 = vrot.lane.b32.xlu0 %v6097, 16
        %v6248 = vpop.permute.xlu0 %6247
        %6249 = vrot.lane.b32.xlu0 %v6099, 16
        %v6250 = vpop.permute.xlu0 %6249
        %6251 = vrot.lane.b32.xlu0 %v6101, 16
        %v6252 = vpop.permute.xlu0 %6251
        %6253 = vrot.lane.b32.xlu0 %v6103, 16
        %v6254 = vpop.permute.xlu0 %6253
        %6271 = vrot.lane.b32.xlu0 %v6104, 24
        %v6272 = vpop.permute.xlu0 %6271
        %6273 = vrot.lane.b32.xlu0 %v6106, 24
        %v6274 = vpop.permute.xlu0 %6273
        %6275 = vrot.lane.b32.xlu0 %v6108, 24
        %v6276 = vpop.permute.xlu0 %6275
        %6277 = vrot.lane.b32.xlu0 %v6110, 24
        %v6278 = vpop.permute.xlu0 %6277
        %6279 = vrot.lane.b32.xlu0 %v6112, 24
        %v6280 = vpop.permute.xlu0 %6279
        %6281 = vrot.lane.b32.xlu0 %v6114, 24
        %v6282 = vpop.permute.xlu0 %6281
        %6283 = vrot.lane.b32.xlu0 %v6116, 24
        %v6284 = vpop.permute.xlu0 %6283
        %6285 = vrot.lane.b32.xlu0 %v6118, 24
        %v6286 = vpop.permute.xlu0 %6285
        %6303 = vrot.lane.b32.xlu0 %v6120, 32
        %v6304 = vpop.permute.xlu0 %6303
        %6305 = vrot.lane.b32.xlu0 %v6122, 32
        %v6306 = vpop.permute.xlu0 %6305
        %6307 = vrot.lane.b32.xlu0 %v6124, 32
        %v6308 = vpop.permute.xlu0 %6307
        %6309 = vrot.lane.b32.xlu0 %v6126, 32
        %v6310 = vpop.permute.xlu0 %6309
        %6311 = vrot.lane.b32.xlu0 %v6128, 32
        %v6312 = vpop.permute.xlu0 %6311
        %6313 = vrot.lane.b32.xlu0 %v6130, 32
        %v6314 = vpop.permute.xlu0 %6313
        %6315 = vrot.lane.b32.xlu0 %v6132, 32
        %v6316 = vpop.permute.xlu0 %6315
        %6317 = vrot.lane.b32.xlu0 %v6134, 32
        %v6318 = vpop.permute.xlu0 %6317
        %6335 = vrot.lane.b32.xlu0 %v6136, 40
        %v6336 = vpop.permute.xlu0 %6335
        %6337 = vrot.lane.b32.xlu0 %v6138, 40
        %v6338 = vpop.permute.xlu0 %6337
        %6339 = vrot.lane.b32.xlu0 %v6140, 40
        %v6340 = vpop.permute.xlu0 %6339
        %6341 = vrot.lane.b32.xlu0 %v6142, 40
        %v6342 = vpop.permute.xlu0 %6341
        %6343 = vrot.lane.b32.xlu0 %v6144, 40
        %v6344 = vpop.permute.xlu0 %6343
        %6345 = vrot.lane.b32.xlu0 %v6146, 40
        %v6346 = vpop.permute.xlu0 %6345
        %6347 = vrot.lane.b32.xlu0 %v6148, 40
        %v6348 = vpop.permute.xlu0 %6347
        %6349 = vrot.lane.b32.xlu0 %v6150, 40
        %v6350 = vpop.permute.xlu0 %6349
        %6367 = vrot.lane.b32.xlu0 %v6152, 48
        %v6368 = vpop.permute.xlu0 %6367
        %6369 = vrot.lane.b32.xlu0 %v6154, 48
        %v6370 = vpop.permute.xlu0 %6369
        %6371 = vrot.lane.b32.xlu0 %v6156, 48
        %v6372 = vpop.permute.xlu0 %6371
        %6373 = vrot.lane.b32.xlu0 %v6158, 48
        %v6374 = vpop.permute.xlu0 %6373
        %6375 = vrot.lane.b32.xlu0 %v6160, 48
        %v6376 = vpop.permute.xlu0 %6375
        %6377 = vrot.lane.b32.xlu0 %v6162, 48
        %v6378 = vpop.permute.xlu0 %6377
        %6379 = vrot.lane.b32.xlu0 %v6164, 48
        %v6380 = vpop.permute.xlu0 %6379
        %6381 = vrot.lane.b32.xlu0 %v6166, 48
        %v6382 = vpop.permute.xlu0 %6381
        %6399 = vrot.lane.b32.xlu0 %v6168, 56
        %v6400 = vpop.permute.xlu0 %6399
        %6401 = vrot.lane.b32.xlu0 %v6170, 56
        %v6402 = vpop.permute.xlu0 %6401
        %6403 = vrot.lane.b32.xlu0 %v6172, 56
        %v6404 = vpop.permute.xlu0 %6403
        %6405 = vrot.lane.b32.xlu0 %v6174, 56
        %v6406 = vpop.permute.xlu0 %6405
        %6407 = vrot.lane.b32.xlu0 %v6176, 56
        %v6408 = vpop.permute.xlu0 %6407
        %6409 = vrot.lane.b32.xlu0 %v6178, 56
        %v6410 = vpop.permute.xlu0 %6409
        %6411 = vrot.lane.b32.xlu0 %v6180, 56
        %v6412 = vpop.permute.xlu0 %6411
        %6413 = vrot.lane.b32.xlu0 %v6182, 56
        %v6414 = vpop.permute.xlu0 %6413
        %6431 = vrot.lane.b32.xlu0 %v6184, 64
        %v6432 = vpop.permute.xlu0 %6431
        %6433 = vrot.lane.b32.xlu0 %v6186, 64
        %v6434 = vpop.permute.xlu0 %6433
        %6435 = vrot.lane.b32.xlu0 %v6188, 64
        %v6436 = vpop.permute.xlu0 %6435
        %6437 = vrot.lane.b32.xlu0 %v6190, 64
        %v6438 = vpop.permute.xlu0 %6437
        %6439 = vrot.lane.b32.xlu0 %v6192, 64
        %v6440 = vpop.permute.xlu0 %6439
        %6441 = vrot.lane.b32.xlu0 %v6194, 64
        %v6442 = vpop.permute.xlu0 %6441
        %6443 = vrot.lane.b32.xlu0 %v6196, 64
        %v6444 = vpop.permute.xlu0 %6443
        %6445 = vrot.lane.b32.xlu0 %v6198, 64
        %v6446 = vpop.permute.xlu0 %6445
        %v6455 = vsel %vm568, %v6057, %v6208
        %v6456 = vsel %vm568, %v6059, %v6210
        %v6457 = vsel %vm568, %v6061, %v6212
        %v6458 = vsel %vm568, %v6063, %v6214
        %v6459 = vsel %vm568, %v6065, %v6216
        %v6460 = vsel %vm568, %v6067, %v6218
        %v6461 = vsel %vm568, %v6069, %v6220
        %v6462 = vsel %vm568, %v6071, %v6222
        %v6463 = vsel %vm2845, %v6455, %v6240
        %v6464 = vsel %vm2845, %v6456, %v6242
        %v6465 = vsel %vm2845, %v6457, %v6244
        %v6466 = vsel %vm2845, %v6458, %v6246
        %v6467 = vsel %vm2845, %v6459, %v6248
        %v6468 = vsel %vm2845, %v6460, %v6250
        %v6469 = vsel %vm2845, %v6461, %v6252
        %v6470 = vsel %vm2845, %v6462, %v6254
        %v6471 = vsel %vm2911, %v6463, %v6272
        %v6472 = vsel %vm2911, %v6464, %v6274
        %v6473 = vsel %vm2911, %v6465, %v6276
        %v6474 = vsel %vm2911, %v6466, %v6278
        %v6475 = vsel %vm2911, %v6467, %v6280
        %v6476 = vsel %vm2911, %v6468, %v6282
        %v6477 = vsel %vm2911, %v6469, %v6284
        %v6478 = vsel %vm2911, %v6470, %v6286
        %v6479 = vsel %vm2977, %v6471, %v6304
        %v6480 = vsel %vm2977, %v6472, %v6306
        %v6481 = vsel %vm2977, %v6473, %v6308
        %v6482 = vsel %vm2977, %v6474, %v6310
        %v6483 = vsel %vm2977, %v6475, %v6312
        %v6484 = vsel %vm2977, %v6476, %v6314
        %v6485 = vsel %vm2977, %v6477, %v6316
        %v6486 = vsel %vm2977, %v6478, %v6318
        %v6487 = vsel %vm5469, %v6479, %v6336
        %v6488 = vsel %vm5469, %v6480, %v6338
        %v6489 = vsel %vm5469, %v6481, %v6340
        %v6490 = vsel %vm5469, %v6482, %v6342
        %v6491 = vsel %vm5469, %v6483, %v6344
        %v6492 = vsel %vm5469, %v6484, %v6346
        %v6493 = vsel %vm5469, %v6485, %v6348
        %v6494 = vsel %vm5469, %v6486, %v6350
        %v6495 = vsel %vm5502, %v6487, %v6368
        %v6496 = vsel %vm5502, %v6488, %v6370
        %v6497 = vsel %vm5502, %v6489, %v6372
        %v6498 = vsel %vm5502, %v6490, %v6374
        %v6499 = vsel %vm5502, %v6491, %v6376
        %v6500 = vsel %vm5502, %v6492, %v6378
        %v6501 = vsel %vm5502, %v6493, %v6380
        %v6502 = vsel %vm5502, %v6494, %v6382
        %v6503 = vsel %vm5535, %v6495, %v6400
        %v6504 = vsel %vm5535, %v6496, %v6402
        %v6505 = vsel %vm5535, %v6497, %v6404
        %v6506 = vsel %vm5535, %v6498, %v6406
        %v6507 = vsel %vm5535, %v6499, %v6408
        %v6508 = vsel %vm5535, %v6500, %v6410
        %v6509 = vsel %vm5535, %v6501, %v6412
        %v6510 = vsel %vm5535, %v6502, %v6414
        %v6511 = vsel %vm5568, %v6503, %v6432
        %v6512 = vsel %vm5568, %v6504, %v6434
        %v6513 = vsel %vm5568, %v6505, %v6436
        %v6514 = vsel %vm5568, %v6506, %v6438
        %v6515 = vsel %vm5568, %v6507, %v6440
        %v6516 = vsel %vm5568, %v6508, %v6442
        %v6517 = vsel %vm5568, %v6509, %v6444
        %v6518 = vsel %vm5568, %v6510, %v6446
        %v6519 = vpack.c.bf16 %v6512, %v6511
        %v6520 = vpack.c.bf16 %v6514, %v6513
        %v6521 = vpack.c.bf16 %v6516, %v6515
        %v6522 = vpack.c.bf16 %v6518, %v6517
        %v6523 = vld [vmem:[%s13] sm:$0xf]
        %v6524 = vld [vmem:[%s13 + $0x4] sm:$0xf]
        %v6525 = vld [vmem:[%s13 + $0x8] sm:$0xf]
        %v6526 = vld [vmem:[%s13 + $0xc] sm:$0xf]
        %v6527 = vld [vmem:[%s13 + $0x10] sm:$0xf]
        %v6528 = vld [vmem:[%s13 + $0x14] sm:$0xf]
        %v6529 = vld [vmem:[%s13 + $0x18] sm:$0xf]
        %v6530 = vld [vmem:[%s13 + $0x1c] sm:$0xf]
        %v6531 = vld [vmem:[%s13 + $0x20] sm:$0xf]
        %v6533 = vperm.slane %v6056, 0
        %v6544 = vunpack.c.l.b16 %v6523
        %v6545 = vunpack.c.l.b16 %v6524
        %v6546 = vunpack.c.l.b16 %v6525
        %v6547 = vunpack.c.l.b16 %v6526
        %v6548 = vunpack.c.l.b16 %v6527
        %v6549 = vunpack.c.l.b16 %v6528
        %v6550 = vunpack.c.l.b16 %v6529
        %v6551 = vunpack.c.l.b16 %v6530
        %v6552 = vunpack.c.l.b16 %v6531
        %v6553 = vpack.c.b16 %v6545, %v6544
        %v6554 = vpack.c.b16 %v6547, %v6546
        %v6555 = vpack.c.b16 %v6549, %v6548
        %v6556 = vpack.c.b16 %v6551, %v6550
        %v6557 = vpack.c.b16 %v6552, %v6552
        %v6563 = vsel %vm5656, %v6519, 0
        %v6566 = vsel %vm5656, %v6520, 0
        %v6569 = vsel %vm5656, %v6521, 0
        %v6572 = vsel %vm5656, %v6522, 0
        %v6575 = vsel %vm5705, %v6557, 0
        %6577 = vmatpush.bf16.msra.mxu0 0
        %6578 = vmatpush.bf16.msra.mxu0 0
        %6579 = vmatpush.bf16.msra.mxu0 0
        %6580 = vmatpush.bf16.msra.mxu0 %v6575
        %6581 = vmatpush.bf16.msra.mxu0 %v6556
        %6582 = vmatpush.bf16.msra.mxu0 %v6555
        %6583 = vmatpush.bf16.msra.mxu0 %v6554
        %6584 = vmatpush.bf16.msra.mxu0 %v6553
        %6585 = vmatmul.bf16.gmra.mxu0 %v6563
        %v6586 = vpop.f32.mrf.mxu0
        %v6587 = vadd.f32 %v6533, %v6586
        %v6588 = vpop.f32.mrf.mxu0
        %v6589 = vadd.f32 %v6533, %v6588
        %6590 = vmatmul.bf16.gmra.mxu0 %v6566
        %v6591 = vpop.f32.mrf.mxu0
        %v6592 = vadd.f32 %v6533, %v6591
        %v6593 = vpop.f32.mrf.mxu0
        %v6594 = vadd.f32 %v6533, %v6593
        %6595 = vmatmul.bf16.gmra.mxu0 %v6569
        %v6596 = vpop.f32.mrf.mxu0
        %v6597 = vadd.f32 %v6533, %v6596
        %v6598 = vpop.f32.mrf.mxu0
        %v6599 = vadd.f32 %v6533, %v6598
        %6600 = vmatmul.bf16.gmra.mxu0 %v6572
        %v6601 = vpop.f32.mrf.mxu0
        %v6602 = vadd.f32 %v6533, %v6601
        %v6603 = vpop.f32.mrf.mxu0
        %v6604 = vadd.f32 %v6533, %v6603
        %6605 = vdwg.mxu0
        %6606 = vst.msk [vmem:[%s509] sm:$0xff] %vm568, %v6587
        %6607 = vst.msk [vmem:[%s509 + $0x8] sm:$0xff] %vm568, %v6589
        %6608 = vst.msk [vmem:[%s509 + $0x10] sm:$0xff] %vm568, %v6592
        %6609 = vst.msk [vmem:[%s509 + $0x18] sm:$0xff] %vm568, %v6594
        %6610 = vst.msk [vmem:[%s509 + $0x20] sm:$0xff] %vm568, %v6597
        %6611 = vst.msk [vmem:[%s509 + $0x28] sm:$0xff] %vm568, %v6599
        %6612 = vst.msk [vmem:[%s509 + $0x30] sm:$0xff] %vm568, %v6602
        %6613 = vst.msk [vmem:[%s509 + $0x38] sm:$0xff] %vm568, %v6604
        %s6614 = sand.u32 %s367, 1
        %s6615 = scalar_lea.sflag [#allocation6], %s6614
        %s6616 = sand.u32 %s367, 1
        %s6617 = smul.addr %s6616, 64
        %s6618 = scalar_lea.vmem [#allocation5], %s6617
        // Predicated region
        $region81: #{tpu_custom_call.1} parent=79 // pred_check
          %p6619 = pneg %p377
        $region82: #{tpu_custom_call.1} parent=79 // pred_check_branch
          %6621 = sbr.rel (%p6619) target = $region84
        $region83: #{tpu_custom_call.1} parent=79 // pred_region
          %6623 = vsyncadd %s6615, 0
          %s6624 = smul.addr %s29, 8
          %s6625 = smul.addr %s6624, 8
          %s6626 = scalar_lea.hbm %s15, %s6625
          %s6627 = sshll.u32 %s6618, 4
          %s6628 = int_to_ptr.vmem [resolvable:$true] %s6627
          %s6629 = sshll.u32 %s6626, 4
          %s6630 = int_to_ptr.hbm [resolvable:$true] %s6629
          %6635 = dma.vmem_to_hbm [thread:$0]  %s6628, 1024, %s6630, %s6615, 128, 128, 8
        $region84: #{tpu_custom_call.1} parent=79 // pred_fallthru
          _
      $region80: #{tpu_custom_call.1} parent=5 // pred_fallthru
        _
      %p6636 = scmp.le.s32.totalorder 2, %s24
      // Predicated region
      $region85: #{tpu_custom_call.1} parent=5 // pred_check
        %p6637 = pneg %p6636
      $region86: #{tpu_custom_call.1} parent=5 // pred_check_branch
        %6639 = sbr.rel (%p6637) target = $region88
      $region87: #{tpu_custom_call.1} parent=5 // pred_region
        %s6640 = ssub.s32 %s24, 2
        // Predicated region
        $region89: #{tpu_custom_call.1} parent=87 // pred_check
          %p6641 = pneg %p383
        $region90: #{tpu_custom_call.1} parent=87 // pred_check_branch
          %6643 = sbr.rel (%p6641) target = $region92
        $region91: #{tpu_custom_call.1} parent=87 // pred_region
          %s6644 = sand.u32 %s368, 1
          %s6645 = scalar_lea.sflag [#allocation6], %s6644
          %s6646 = sand.u32 %s368, 1
          %s6647 = smul.addr %s6646, 64
          %s6648 = scalar_lea.vmem [#allocation5], %s6647
          %6650 = dma.done %s6645, 1024
        $region92: #{tpu_custom_call.1} parent=87 // pred_fallthru
          _
      $region88: #{tpu_custom_call.1} parent=5 // pred_fallthru
        _
    $region6: #{tpu_custom_call.1} parent=1 // loop_footer
      %s28 = sadd.s32 1, %s24
    $region7: #{tpu_custom_call.1} parent=1 // loop_footer_branch
      %23 = sbr.rel target = $region3
    $region8: #{tpu_custom_call.1} parent=1 // loop_exit
      _
    %6651 = vsyncpa [#allocation6], 1
    %s6652 = scalar_lea.sflag [#allocation6], 1
    %6653 = vsyncpa %s6652, 1

</llo_original>
